<compile_context>
chip_gen: v6e
topology: v6e:2x2x1
jax: 0.10.0
libtpu: 0.0.40
codegen_flags: <defaults>
</compile_context>

<pallas_src>
import math
import functools

import jax
import jax.numpy as jnp
from jax.experimental import pallas as pl
from jax.experimental.pallas import tpu as pltpu


# ----------------------------- helpers -----------------------------

def _pick_chunk(n, cap=128):
    """Largest divisor of n that is <= cap, preferring >= 2 grid blocks
    (so 'parallel' grid axes can spread across TensorCores on megacore)."""
    cap = max(1, min(cap, n))
    if n >= 2:
        cap = min(cap, max(1, n // 2))
    best = 1
    for d in range(1, cap + 1):
        if n % d == 0:
            best = d
    return best


def _pick_row_chunk(n, cap=512):
    """Row chunk for 2-D blocks: a multiple of 8 (sublane tile) dividing n, else n."""
    best = None
    c = 8
    while c <= min(cap, n // 2):
        if n % c == 0:
            best = c
        c += 8
    return best if best is not None else n


def _round_up(n, m):
    return ((n + m - 1) // m) * m


# ----------------------------- Pallas kernels -----------------------------

def _revin_kernel(x_ref, xn_ref, mean_ref, std_ref):
    # x_ref: (C, 1, L) -- one row per (batch, variable) series
    x = x_ref[...]
    mean = jnp.mean(x, axis=-1, keepdims=True)
    xc = x - mean
    var = jnp.mean(xc * xc, axis=-1, keepdims=True)      # unbiased=False
    std = jnp.sqrt(var + 1e-5)
    xn_ref[...] = (xc / std).astype(xn_ref.dtype)
    mean_ref[...] = mean.astype(mean_ref.dtype)
    std_ref[...] = std.astype(std_ref.dtype)


def revin_norm(x):
    B, _, L = x.shape
    C = _pick_chunk(B)
    return pl.pallas_call(
        _revin_kernel,
        out_shape=(jax.ShapeDtypeStruct((B, 1, L), jnp.float32),
                   jax.ShapeDtypeStruct((B, 1, 1), jnp.float32),
                   jax.ShapeDtypeStruct((B, 1, 1), jnp.float32)),
        grid=(B // C,),
        in_specs=[pl.BlockSpec((C, 1, L), lambda i: (i, 0, 0))],
        out_specs=(pl.BlockSpec((C, 1, L), lambda i: (i, 0, 0)),
                   pl.BlockSpec((C, 1, 1), lambda i: (i, 0, 0)),
                   pl.BlockSpec((C, 1, 1), lambda i: (i, 0, 0))),
        compiler_params=pltpu.CompilerParams(dimension_semantics=("parallel",)),
    )(x)


def _patch_embed_kernel(p_ref, w_ref, pos_ref, o_ref):
    # p_ref: (C, Pp, PL), w_ref: (PL, D), pos_ref: (Pp, D)
    C, Pp, PL = p_ref.shape
    D = w_ref.shape[1]
    p2 = p_ref[...].reshape(C * Pp, PL)                 # sublane-aligned (Pp % 8 == 0)
    y = jnp.dot(p2, w_ref[...], preferred_element_type=jnp.float32)
    y = y.reshape(C, Pp, D) + pos_ref[...][None]        # pos-emb broadcast in-kernel
    o_ref[...] = y.astype(o_ref.dtype)


def patch_embed(patches, w_value_t, pos_emb):
    B, Pp, PL = patches.shape
    D = w_value_t.shape[1]
    C = _pick_chunk(B)
    return pl.pallas_call(
        _patch_embed_kernel,
        out_shape=jax.ShapeDtypeStruct((B, Pp, D), jnp.float32),
        grid=(B // C,),
        in_specs=[pl.BlockSpec((C, Pp, PL), lambda i: (i, 0, 0)),
                  pl.BlockSpec((PL, D), lambda i: (0, 0)),
                  pl.BlockSpec((Pp, D), lambda i: (0, 0))],
        out_specs=pl.BlockSpec((C, Pp, D), lambda i: (i, 0, 0)),
        compiler_params=pltpu.CompilerParams(dimension_semantics=("parallel",)),
    )(patches, w_value_t, pos_emb)


def _ln(x, g, b, eps=1e-5):
    mean = jnp.mean(x, axis=-1, keepdims=True)
    xc = x - mean
    var = jnp.mean(xc * xc, axis=-1, keepdims=True)
    return xc * jax.lax.rsqrt(var + eps) * g + b


def _encoder_layer_kernel(x_ref, wqkv_ref, bqkv_ref, wo_ref, bo_ref,
                          wff1_ref, bff1_ref, wff2_ref, bff2_ref,
                          g1_ref, b1_ref, g2_ref, b2_ref,
                          gf_ref, bf_ref, o_ref,
                          *, n_heads, n_valid, scale, activation, final_norm):
    C, Pp, D = x_ref.shape
    E = D // n_heads

    x2d = x_ref[...].reshape(C * Pp, D)                 # aligned merge (Pp % 8 == 0)

    # fused Q/K/V projection: single (C*Pp, D) @ (D, 3D) MXU matmul
    qkv = jnp.dot(x2d, wqkv_ref[...],
                  preferred_element_type=jnp.float32) + bqkv_ref[...]

    # DSAttention (mask_flag=False, tau=1, delta=0); heads batched over the
    # C sequences of this block via single-batch-dim einsums.
    if n_valid < Pp:
        kmask = jax.lax.broadcasted_iota(jnp.int32, (Pp, Pp), 1) < n_valid
    heads = []
    for h in range(n_heads):
        q_h = qkv[:, h * E:(h + 1) * E].reshape(C, Pp, E)
        k_h = qkv[:, D + h * E:D + (h + 1) * E].reshape(C, Pp, E)
        v_h = qkv[:, 2 * D + h * E:2 * D + (h + 1) * E].reshape(C, Pp, E)
        s = jnp.einsum("bqe,bke->bqk", q_h, k_h,
                       preferred_element_type=jnp.float32) * scale
        if n_valid < Pp:
            s = jnp.where(kmask[None], s, -1e30)        # mask padded keys
        m = jnp.max(s, axis=-1, keepdims=True)
        p = jnp.exp(s - m)
        p = p * pl.reciprocal(jnp.sum(p, axis=-1, keepdims=True), approx=True)
        heads.append(jnp.einsum("bqk,bke->bqe", p, v_h,
                                preferred_element_type=jnp.float32))
    attn = jnp.concatenate(heads, axis=-1).reshape(C * Pp, D)

    new_x = jnp.dot(attn, wo_ref[...],
                    preferred_element_type=jnp.float32) + bo_ref[...]
    xn = _ln(x2d + new_x, g1_ref[...], b1_ref[...])     # norm1

    y = jnp.dot(xn, wff1_ref[...],
                preferred_element_type=jnp.float32) + bff1_ref[...]
    if activation == "relu":
        y = jnp.maximum(y, 0.0)
    else:
        y = jax.nn.gelu(y, approximate=False)
    y = jnp.dot(y, wff2_ref[...],
                preferred_element_type=jnp.float32) + bff2_ref[...]

    out = _ln(xn + y, g2_ref[...], b2_ref[...])         # norm2
    if final_norm:                                      # Encoder's norm_layer (fused)
        out = _ln(out, gf_ref[...], bf_ref[...])
    o_ref[...] = out.reshape(C, Pp, D).astype(o_ref.dtype)


def encoder_layer(x, lp, g_enc, beta_enc, *, n_heads, n_valid, scale,
                  activation, final_norm):
    B, Pp, D = x.shape
    d_ff = lp["w_ff1_t"].shape[1]
    C = _pick_chunk(B)

    def full2d(shape):
        return pl.BlockSpec(shape, lambda i: (0, 0))

    kern = functools.partial(_encoder_layer_kernel, n_heads=n_heads,
                             n_valid=n_valid, scale=scale,
                             activation=activation, final_norm=final_norm)
    return pl.pallas_call(
        kern,
        out_shape=jax.ShapeDtypeStruct((B, Pp, D), jnp.float32),
        grid=(B // C,),
        in_specs=[pl.BlockSpec((C, Pp, D), lambda i: (i, 0, 0)),
                  full2d((D, 3 * D)), full2d((1, 3 * D)),
                  full2d((D, D)), full2d((1, D)),
                  full2d((D, d_ff)), full2d((1, d_ff)),
                  full2d((d_ff, D)), full2d((1, D)),
                  full2d((1, D)), full2d((1, D)),
                  full2d((1, D)), full2d((1, D)),
                  full2d((1, D)), full2d((1, D))],
        out_specs=pl.BlockSpec((C, Pp, D), lambda i: (i, 0, 0)),
        compiler_params=pltpu.CompilerParams(
            dimension_semantics=("parallel",),
            vmem_limit_bytes=64 << 20),
    )(x, lp["wqkv_t"], lp["bqkv"], lp["wo_t"], lp["bo"],
      lp["w_ff1_t"], lp["b_ff1"], lp["w_ff2_t"], lp["b_ff2"],
      lp["g1"], lp["beta1"], lp["g2"], lp["beta2"],
      g_enc, beta_enc)


def _head_kernel(flat_ref, wh_ref, bh_ref, mean_ref, std_ref, o_ref):
    # flat_ref: (C, nf); wh_ref: (nf, pred_len); mean/std: (C, 1)
    dec = jnp.dot(flat_ref[...], wh_ref[...],
                  preferred_element_type=jnp.float32) + bh_ref[...]
    dec = dec * std_ref[...] + mean_ref[...]            # de-normalization (fused)
    o_ref[...] = dec.astype(o_ref.dtype)


def forecast_head(flat, w_head_t, b_head, means, stdev):
    B, nf = flat.shape
    pred_len = w_head_t.shape[1]
    C = _pick_row_chunk(B)
    return pl.pallas_call(
        _head_kernel,
        out_shape=jax.ShapeDtypeStruct((B, pred_len), jnp.float32),
        grid=(B // C,),
        in_specs=[pl.BlockSpec((C, nf), lambda i: (i, 0)),
                  pl.BlockSpec((nf, pred_len), lambda i: (0, 0)),
                  pl.BlockSpec((1, pred_len), lambda i: (0, 0)),
                  pl.BlockSpec((C, 1), lambda i: (i, 0)),
                  pl.BlockSpec((C, 1), lambda i: (i, 0))],
        out_specs=pl.BlockSpec((C, pred_len), lambda i: (i, 0)),
        compiler_params=pltpu.CompilerParams(dimension_semantics=("parallel",)),
    )(flat, w_head_t, b_head, means, stdev)


# ----------------------------- plain-JAX glue -----------------------------

def positional_embedding(d_model, max_len=64):
    position = jnp.arange(max_len, dtype=jnp.float32)[:, None]
    div_term = jnp.exp(jnp.arange(0, d_model, 2, dtype=jnp.float32)
                       * (-math.log(10000.0) / d_model))
    pe = jnp.zeros((max_len, d_model), dtype=jnp.float32)
    pe = pe.at[:, 0::2].set(jnp.sin(position * div_term))
    pe = pe.at[:, 1::2].set(jnp.cos(position * div_term))
    return pe


def init_params(key, cfg):
    d_model, d_ff = cfg["d_model"], cfg["d_ff"]
    patch_len, stride = cfg["patch_len"], cfg["stride"]
    seq_len, pred_len = cfg["seq_len"], cfg["pred_len"]
    patch_num = (seq_len - patch_len) // stride + 2
    head_nf = patch_num * d_model

    keys = iter(jax.random.split(key, 4 + 4 * cfg["e_layers"]))

    def w(shape, scale=0.05):
        return scale * jax.random.normal(next(keys), shape, dtype=jnp.float32)

    params = {
        "w_value_t": w((patch_len, d_model)),            # value_embedding (no bias)
        "pos_emb": positional_embedding(d_model, max_len=max(64, patch_num)),
        "layers": [],
        "g_enc": jnp.ones((1, d_model), jnp.float32),    # Encoder final LayerNorm
        "beta_enc": jnp.zeros((1, d_model), jnp.float32),
        "w_head_t": w((head_nf, pred_len)),              # Flatten_Head.linear
        "b_head": jnp.zeros((1, pred_len), jnp.float32),
    }
    for _ in range(cfg["e_layers"]):
        params["layers"].append({
            # Q|K|V weights fused into one (d_model, 3*d_model) matmul
            "wqkv_t": w((d_model, 3 * d_model)),
            "bqkv": jnp.zeros((1, 3 * d_model), jnp.float32),
            "wo_t": w((d_model, d_model)),
            "bo": jnp.zeros((1, d_model), jnp.float32),
            "w_ff1_t": w((d_model, d_ff)),
            "b_ff1": jnp.zeros((1, d_ff), jnp.float32),
            "w_ff2_t": w((d_ff, d_model)),
            "b_ff2": jnp.zeros((1, d_model), jnp.float32),
            "g1": jnp.ones((1, d_model), jnp.float32),
            "beta1": jnp.zeros((1, d_model), jnp.float32),
            "g2": jnp.ones((1, d_model), jnp.float32),
            "beta2": jnp.zeros((1, d_model), jnp.float32),
        })
    return params


def model_forward(params, x_enc, cfg):
    """Model.forward with task_name='finetune' (forecast path); dropout = identity."""
    bs, seq_len, n_vars = x_enc.shape
    d_model, n_heads = cfg["d_model"], cfg["n_heads"]
    patch_len, stride, pred_len = cfg["patch_len"], cfg["stride"], cfg["pred_len"]
    B = bs * n_vars

    # --- non-stationary normalization (per batch/variable series) ---
    x_cl = jnp.transpose(x_enc, (0, 2, 1)).reshape(B, 1, seq_len)
    xn, means, stdev = revin_norm(x_cl)
    xn = xn.reshape(B, seq_len)

    # --- PatchEmbedding: ReplicationPad1d((0, stride)) + unfold ---
    x_pad = jnp.concatenate([xn, jnp.repeat(xn[:, -1:], stride, axis=-1)], axis=-1)
    P = (x_pad.shape[-1] - patch_len) // stride + 1
    if stride == patch_len and x_pad.shape[-1] % patch_len == 0:
        patches = x_pad.reshape(B, P, patch_len)         # non-overlapping: free reshape
    else:
        # TODO(synk): fold the strided unfold into the embedding kernel (pl.ds reads)
        idx = stride * jnp.arange(P)[:, None] + jnp.arange(patch_len)[None, :]
        patches = x_pad[:, idx]

    # pad the patch axis to a multiple of 8: keeps in-kernel (C,Pp,.) <-> (C*Pp,.)
    # reshapes sublane-aligned and fully uses sublanes; padded keys masked in softmax.
    Pp = _round_up(P, 8)
    if Pp > P:
        patches = jnp.pad(patches, ((0, 0), (0, Pp - P), (0, 0)))
    pos = params["pos_emb"][:P]
    if Pp > P:
        pos = jnp.pad(pos, ((0, Pp - P), (0, 0)))

    x2 = patch_embed(patches, params["w_value_t"], pos)  # (B, Pp, d_model)

    # --- Transformer encoder: one fused Pallas kernel per layer ---
    scale = 1.0 / math.sqrt(d_model // n_heads)
    n_layers = len(params["layers"])
    for li, lp in enumerate(params["layers"]):
        x2 = encoder_layer(x2, lp, params["g_enc"], params["beta_enc"],
                           n_heads=n_heads, n_valid=P, scale=scale,
                           activation=cfg["activation"],
                           final_norm=(li == n_layers - 1))

    # --- Flatten_Head + de-normalization (fused kernel) ---
    flat = x2[:, :P, :].reshape(B, P * d_model)
    dec = forecast_head(flat, params["w_head_t"], params["b_head"],
                        means.reshape(B, 1), stdev.reshape(B, 1))
    dec = dec.reshape(bs, n_vars, pred_len)
    dec = jnp.transpose(dec, (0, 2, 1))                  # (bs, pred_len, n_vars)
    return dec[:, -pred_len:, :]


# ----------------------------- driver -----------------------------

if __name__ == "__main__":
    cfg = dict(
        task_name="finetune",
        seq_len=16, pred_len=8, label_len=8,
        d_model=16, n_heads=4, d_ff=32, e_layers=2,
        patch_len=4, stride=4,
        dropout=0.0, head_dropout=0.0,
        activation="relu", factor=1, output_attention=False,
    )
    bs, n_vars = 2, 3

    key = jax.random.PRNGKey(0)
    k_x, k_p = jax.random.split(key)
    x_enc = jax.random.normal(k_x, (bs, cfg["seq_len"], n_vars), dtype=jnp.float32)
    x_mark_enc = None  # unused by this model's forward

    params = init_params(k_p, cfg)

    fwd = jax.jit(functools.partial(model_forward, cfg=cfg))
    out = fwd(params, x_enc)
    out = jax.block_until_ready(out)

    assert out.shape == (bs, cfg["pred_len"], n_vars), out.shape
    assert bool(jnp.all(jnp.isfinite(out)))
    print("KERNEL_OK")
</pallas_src>

<mosaic_0001>
module attributes {stable_mosaic.version = 11 : i64} {
  func.func @_revin_kernel(%arg0: i32, %arg1: memref<3x1x16xf32, #tpu.memory_space<vmem>>, %arg2: memref<3x1x16xf32, #tpu.memory_space<vmem>>, %arg3: memref<3x1x1xf32, #tpu.memory_space<vmem>>, %arg4: memref<3x1x1xf32, #tpu.memory_space<vmem>>) attributes {dimension_semantics = [#tpu.dimension_semantics<parallel>], iteration_bounds = array<i64: 2>, scalar_prefetch = 0 : i64, scratch_operands = 0 : i64, tpu.core_type = #tpu.core_type<tc>, window_params = [{transform_indices = @transform_0, window_bounds = array<i64: 3, 1, 16>}, {transform_indices = @transform_1, window_bounds = array<i64: 3, 1, 16>}, {transform_indices = @transform_2, window_bounds = array<i64: 3, 1, 1>}, {transform_indices = @transform_3, window_bounds = array<i64: 3, 1, 1>}]} {
    %c0 = arith.constant 0 : index
    %c0_0 = arith.constant 0 : index
    %c0_1 = arith.constant 0 : index
    %0 = vector.load %arg1[%c0, %c0_0, %c0_1] : memref<3x1x16xf32, #tpu.memory_space<vmem>>, vector<3x1x16xf32>
    %cst = arith.constant dense<0.000000e+00> : vector<3x1xf32>
    %1 = vector.multi_reduction <add>, %0, %cst [2] : vector<3x1x16xf32> to vector<3x1xf32>
    %2 = vector.shape_cast %1 : vector<3x1xf32> to vector<3x1x1xf32>
    %cst_2 = arith.constant 1.600000e+01 : f32
    %3 = vector.broadcast %cst_2 : f32 to vector<3x1x1xf32>
    %4 = arith.divf %2, %3 : vector<3x1x1xf32>
    %5 = vector.broadcast %4 : vector<3x1x1xf32> to vector<3x1x16xf32>
    %6 = arith.subf %0, %5 : vector<3x1x16xf32>
    %7 = arith.mulf %6, %6 : vector<3x1x16xf32>
    %cst_3 = arith.constant dense<0.000000e+00> : vector<3x1xf32>
    %8 = vector.multi_reduction <add>, %7, %cst_3 [2] : vector<3x1x16xf32> to vector<3x1xf32>
    %9 = vector.shape_cast %8 : vector<3x1xf32> to vector<3x1x1xf32>
    %cst_4 = arith.constant 1.600000e+01 : f32
    %10 = vector.broadcast %cst_4 : f32 to vector<3x1x1xf32>
    %11 = arith.divf %9, %10 : vector<3x1x1xf32>
    %cst_5 = arith.constant 9.99999974E-6 : f32
    %12 = vector.broadcast %cst_5 : f32 to vector<3x1x1xf32>
    %13 = arith.addf %11, %12 : vector<3x1x1xf32>
    %14 = math.sqrt %13 : vector<3x1x1xf32>
    %15 = vector.broadcast %14 : vector<3x1x1xf32> to vector<3x1x16xf32>
    %16 = arith.divf %6, %15 : vector<3x1x16xf32>
    %c0_6 = arith.constant 0 : index
    %c0_7 = arith.constant 0 : index
    %c0_8 = arith.constant 0 : index
    %17 = vector.load %arg2[%c0_6, %c0_7, %c0_8] : memref<3x1x16xf32, #tpu.memory_space<vmem>>, vector<3x1x16xf32>
    tpu.vector_store %arg2[%c0_6, %c0_7, %c0_8], %16 {strides = array<i32>} : memref<3x1x16xf32, #tpu.memory_space<vmem>>, vector<3x1x16xf32>,
    %c0_9 = arith.constant 0 : index
    %c0_10 = arith.constant 0 : index
    %c0_11 = arith.constant 0 : index
    %18 = vector.load %arg3[%c0_9, %c0_10, %c0_11] : memref<3x1x1xf32, #tpu.memory_space<vmem>>, vector<3x1x1xf32>
    tpu.vector_store %arg3[%c0_9, %c0_10, %c0_11], %4 {strides = array<i32>} : memref<3x1x1xf32, #tpu.memory_space<vmem>>, vector<3x1x1xf32>,
    %c0_12 = arith.constant 0 : index
    %c0_13 = arith.constant 0 : index
    %c0_14 = arith.constant 0 : index
    %19 = vector.load %arg4[%c0_12, %c0_13, %c0_14] : memref<3x1x1xf32, #tpu.memory_space<vmem>>, vector<3x1x1xf32>
    tpu.vector_store %arg4[%c0_12, %c0_13, %c0_14], %14 {strides = array<i32>} : memref<3x1x1xf32, #tpu.memory_space<vmem>>, vector<3x1x1xf32>,
    return
  }
  func.func @transform_0(%arg0: i32) -> (i32, i32, i32) {
    %c0_i32 = arith.constant 0 : i32
    %c0_i32_0 = arith.constant 0 : i32
    %c0_i32_1 = arith.constant 0 : i32
    return %arg0, %c0_i32, %c0_i32_0 : i32, i32, i32
  }
  func.func @transform_1(%arg0: i32) -> (i32, i32, i32) {
    %c0_i32 = arith.constant 0 : i32
    %c0_i32_0 = arith.constant 0 : i32
    %c0_i32_1 = arith.constant 0 : i32
    return %arg0, %c0_i32, %c0_i32_0 : i32, i32, i32
  }
  func.func @transform_2(%arg0: i32) -> (i32, i32, i32) {
    %c0_i32 = arith.constant 0 : i32
    %c0_i32_0 = arith.constant 0 : i32
    %c0_i32_1 = arith.constant 0 : i32
    return %arg0, %c0_i32, %c0_i32_0 : i32, i32, i32
  }
  func.func @transform_3(%arg0: i32) -> (i32, i32, i32) {
    %c0_i32 = arith.constant 0 : i32
    %c0_i32_0 = arith.constant 0 : i32
    %c0_i32_1 = arith.constant 0 : i32
    return %arg0, %c0_i32, %c0_i32_0 : i32, i32, i32
  }
}

module attributes {stable_mosaic.version = 11 : i64} {
  func.func @_patch_embed_kernel(%arg0: i32, %arg1: memref<3x8x4xf32, #tpu.memory_space<vmem>>, %arg2: memref<4x16xf32, #tpu.memory_space<vmem>>, %arg3: memref<8x16xf32, #tpu.memory_space<vmem>>, %arg4: memref<3x8x16xf32, #tpu.memory_space<vmem>>) attributes {dimension_semantics = [#tpu.dimension_semantics<parallel>], iteration_bounds = array<i64: 2>, scalar_prefetch = 0 : i64, scratch_operands = 0 : i64, tpu.core_type = #tpu.core_type<tc>, window_params = [{transform_indices = @transform_0, window_bounds = array<i64: 3, 8, 4>}, {pipeline_mode = #tpu.pipeline_mode<synchronous>, transform_indices = @transform_1, window_bounds = array<i64: 4, 16>}, {pipeline_mode = #tpu.pipeline_mode<synchronous>, transform_indices = @transform_2, window_bounds = array<i64: 8, 16>}, {transform_indices = @transform_3, window_bounds = array<i64: 3, 8, 16>}]} {
    %c0 = arith.constant 0 : index
    %c0_0 = arith.constant 0 : index
    %c0_1 = arith.constant 0 : index
    %0 = vector.load %arg1[%c0, %c0_0, %c0_1] : memref<3x8x4xf32, #tpu.memory_space<vmem>>, vector<3x8x4xf32>
    %1 = vector.shape_cast %0 : vector<3x8x4xf32> to vector<24x4xf32>
    %c0_2 = arith.constant 0 : index
    %c0_3 = arith.constant 0 : index
    %2 = vector.load %arg2[%c0_2, %c0_3] : memref<4x16xf32, #tpu.memory_space<vmem>>, vector<4x16xf32>
    %cst = arith.constant dense<0.000000e+00> : vector<24x16xf32>
    %3 = tpu.matmul %1, %2, %cst {dimension_numbers = #tpu.dot_dimension_numbers<[1], [0], [0], [1], [0, 0, 1, 1], [], []>} : vector<24x4xf32>, vector<4x16xf32>, vector<24x16xf32> -> vector<24x16xf32>
    %4 = vector.shape_cast %3 : vector<24x16xf32> to vector<3x8x16xf32>
    %c0_4 = arith.constant 0 : index
    %c0_5 = arith.constant 0 : index
    %5 = vector.load %arg3[%c0_4, %c0_5] : memref<8x16xf32, #tpu.memory_space<vmem>>, vector<8x16xf32>
    %6 = vector.shape_cast %5 : vector<8x16xf32> to vector<1x8x16xf32>
    %7 = vector.broadcast %6 : vector<1x8x16xf32> to vector<3x8x16xf32>
    %8 = arith.addf %4, %7 : vector<3x8x16xf32>
    %c0_6 = arith.constant 0 : index
    %c0_7 = arith.constant 0 : index
    %c0_8 = arith.constant 0 : index
    %9 = vector.load %arg4[%c0_6, %c0_7, %c0_8] : memref<3x8x16xf32, #tpu.memory_space<vmem>>, vector<3x8x16xf32>
    tpu.vector_store %arg4[%c0_6, %c0_7, %c0_8], %8 {strides = array<i32>} : memref<3x8x16xf32, #tpu.memory_space<vmem>>, vector<3x8x16xf32>,
    return
  }
  func.func @transform_0(%arg0: i32) -> (i32, i32, i32) {
    %c0_i32 = arith.constant 0 : i32
    %c0_i32_0 = arith.constant 0 : i32
    %c0_i32_1 = arith.constant 0 : i32
    return %arg0, %c0_i32, %c0_i32_0 : i32, i32, i32
  }
  func.func @transform_1(%arg0: i32) -> (i32, i32) {
    %c0_i32 = arith.constant 0 : i32
    %c0_i32_0 = arith.constant 0 : i32
    %c0_i32_1 = arith.constant 0 : i32
    return %c0_i32, %c0_i32_0 : i32, i32
  }
  func.func @transform_2(%arg0: i32) -> (i32, i32) {
    %c0_i32 = arith.constant 0 : i32
    %c0_i32_0 = arith.constant 0 : i32
    %c0_i32_1 = arith.constant 0 : i32
    return %c0_i32, %c0_i32_0 : i32, i32
  }
  func.func @transform_3(%arg0: i32) -> (i32, i32, i32) {
    %c0_i32 = arith.constant 0 : i32
    %c0_i32_0 = arith.constant 0 : i32
    %c0_i32_1 = arith.constant 0 : i32
    return %arg0, %c0_i32, %c0_i32_0 : i32, i32, i32
  }
}

module attributes {stable_mosaic.version = 11 : i64} {
  func.func @_encoder_layer_kernel(%arg0: i32, %arg1: memref<3x8x16xf32, #tpu.memory_space<vmem>>, %arg2: memref<16x48xf32, #tpu.memory_space<vmem>>, %arg3: memref<1x48xf32, #tpu.memory_space<vmem>>, %arg4: memref<16x16xf32, #tpu.memory_space<vmem>>, %arg5: memref<1x16xf32, #tpu.memory_space<vmem>>, %arg6: memref<16x32xf32, #tpu.memory_space<vmem>>, %arg7: memref<1x32xf32, #tpu.memory_space<vmem>>, %arg8: memref<32x16xf32, #tpu.memory_space<vmem>>, %arg9: memref<1x16xf32, #tpu.memory_space<vmem>>, %arg10: memref<1x16xf32, #tpu.memory_space<vmem>>, %arg11: memref<1x16xf32, #tpu.memory_space<vmem>>, %arg12: memref<1x16xf32, #tpu.memory_space<vmem>>, %arg13: memref<1x16xf32, #tpu.memory_space<vmem>>, %arg14: memref<1x16xf32, #tpu.memory_space<vmem>>, %arg15: memref<1x16xf32, #tpu.memory_space<vmem>>, %arg16: memref<3x8x16xf32, #tpu.memory_space<vmem>>) attributes {dimension_semantics = [#tpu.dimension_semantics<parallel>], iteration_bounds = array<i64: 2>, scalar_prefetch = 0 : i64, scratch_operands = 0 : i64, tpu.core_type = #tpu.core_type<tc>, window_params = [{transform_indices = @transform_0, window_bounds = array<i64: 3, 8, 16>}, {pipeline_mode = #tpu.pipeline_mode<synchronous>, transform_indices = @transform_1, window_bounds = array<i64: 16, 48>}, {pipeline_mode = #tpu.pipeline_mode<synchronous>, transform_indices = @transform_2, window_bounds = array<i64: 1, 48>}, {pipeline_mode = #tpu.pipeline_mode<synchronous>, transform_indices = @transform_3, window_bounds = array<i64: 16, 16>}, {pipeline_mode = #tpu.pipeline_mode<synchronous>, transform_indices = @transform_4, window_bounds = array<i64: 1, 16>}, {pipeline_mode = #tpu.pipeline_mode<synchronous>, transform_indices = @transform_5, window_bounds = array<i64: 16, 32>}, {pipeline_mode = #tpu.pipeline_mode<synchronous>, transform_indices = @transform_6, window_bounds = array<i64: 1, 32>}, {pipeline_mode = #tpu.pipeline_mode<synchronous>, transform_indices = @transform_7, window_bounds = array<i64: 32, 16>}, {pipeline_mode = #tpu.pipeline_mode<synchronous>, transform_indices = @transform_8, window_bounds = array<i64: 1, 16>}, {pipeline_mode = #tpu.pipeline_mode<synchronous>, transform_indices = @transform_9, window_bounds = array<i64: 1, 16>}, {pipeline_mode = #tpu.pipeline_mode<synchronous>, transform_indices = @transform_10, window_bounds = array<i64: 1, 16>}, {pipeline_mode = #tpu.pipeline_mode<synchronous>, transform_indices = @transform_11, window_bounds = array<i64: 1, 16>}, {pipeline_mode = #tpu.pipeline_mode<synchronous>, transform_indices = @transform_12, window_bounds = array<i64: 1, 16>}, {pipeline_mode = #tpu.pipeline_mode<synchronous>, transform_indices = @transform_13, window_bounds = array<i64: 1, 16>}, {pipeline_mode = #tpu.pipeline_mode<synchronous>, transform_indices = @transform_14, window_bounds = array<i64: 1, 16>}, {transform_indices = @transform_15, window_bounds = array<i64: 3, 8, 16>}]} {
    %c0 = arith.constant 0 : index
    %c0_0 = arith.constant 0 : index
    %c0_1 = arith.constant 0 : index
    %0 = vector.load %arg1[%c0, %c0_0, %c0_1] : memref<3x8x16xf32, #tpu.memory_space<vmem>>, vector<3x8x16xf32>
    %1 = vector.shape_cast %0 : vector<3x8x16xf32> to vector<24x16xf32>
    %c0_2 = arith.constant 0 : index
    %c0_3 = arith.constant 0 : index
    %2 = vector.load %arg2[%c0_2, %c0_3] : memref<16x48xf32, #tpu.memory_space<vmem>>, vector<16x48xf32>
    %cst = arith.constant dense<0.000000e+00> : vector<24x48xf32>
    %3 = tpu.matmul %1, %2, %cst {dimension_numbers = #tpu.dot_dimension_numbers<[1], [0], [0], [1], [0, 0, 1, 1], [], []>} : vector<24x16xf32>, vector<16x48xf32>, vector<24x48xf32> -> vector<24x48xf32>
    %c0_4 = arith.constant 0 : index
    %c0_5 = arith.constant 0 : index
    %4 = vector.load %arg3[%c0_4, %c0_5] : memref<1x48xf32, #tpu.memory_space<vmem>>, vector<1x48xf32>
    %5 = vector.broadcast %4 : vector<1x48xf32> to vector<24x48xf32>
    %6 = arith.addf %3, %5 : vector<24x48xf32>
    %7 = tpu.iota {dimensions = array<i32: 1>} : vector<8x8xi32>
    %c5_i32 = arith.constant 5 : i32
    %8 = vector.broadcast %c5_i32 : i32 to vector<8x8xi32>
    %9 = arith.cmpi slt, %7, %8 : vector<8x8xi32>
    %10 = vector.extract_strided_slice %6 {offsets = [0, 0], sizes = [24, 4], strides = [1, 1]} : vector<24x48xf32> to vector<24x4xf32>
    %11 = vector.shape_cast %10 : vector<24x4xf32> to vector<3x8x4xf32>
    %12 = vector.extract_strided_slice %6 {offsets = [0, 16], sizes = [24, 4], strides = [1, 1]} : vector<24x48xf32> to vector<24x4xf32>
    %13 = vector.shape_cast %12 : vector<24x4xf32> to vector<3x8x4xf32>
    %14 = vector.extract_strided_slice %6 {offsets = [0, 32], sizes = [24, 4], strides = [1, 1]} : vector<24x48xf32> to vector<24x4xf32>
    %15 = vector.shape_cast %14 : vector<24x4xf32> to vector<3x8x4xf32>
    "tpu.trace_start"() <{level = 10 : i32, message = "bqe,bke->bqk"}> : () -> ()
    %cst_6 = arith.constant dense<0.000000e+00> : vector<3x8x8xf32>
    %16 = tpu.matmul %11, %13, %cst_6 {dimension_numbers = #tpu.dot_dimension_numbers<[2], [2], [1], [1], [0, 0, 0, 1, 1, 1], [0], [0]>} : vector<3x8x4xf32>, vector<3x8x4xf32>, vector<3x8x8xf32> -> vector<3x8x8xf32>
    "tpu.trace_stop"() : () -> ()
    %cst_7 = arith.constant 5.000000e-01 : f32
    %17 = vector.broadcast %cst_7 : f32 to vector<3x8x8xf32>
    %18 = arith.mulf %16, %17 : vector<3x8x8xf32>
    %19 = vector.shape_cast %9 : vector<8x8xi1> to vector<1x8x8xi1>
    %cst_8 = arith.constant -1.000000e+30 : f32
    %20 = vector.shape_cast %19 : vector<1x8x8xi1> to vector<1x8x8xi1>
    %21 = vector.broadcast %20 : vector<1x8x8xi1> to vector<3x8x8xi1>
    %22 = vector.broadcast %cst_8 : f32 to vector<3x8x8xf32>
    %23 = arith.select %21, %18, %22 : vector<3x8x8xi1>, vector<3x8x8xf32>
    %cst_9 = arith.constant dense<0xFF800000> : vector<3x8xf32>
    %24 = vector.multi_reduction <maximumf>, %23, %cst_9 [2] : vector<3x8x8xf32> to vector<3x8xf32>
    %25 = vector.shape_cast %24 : vector<3x8xf32> to vector<3x8x1xf32>
    %26 = vector.broadcast %25 : vector<3x8x1xf32> to vector<3x8x8xf32>
    %27 = arith.subf %23, %26 : vector<3x8x8xf32>
    %28 = math.exp %27 : vector<3x8x8xf32>
    %cst_10 = arith.constant dense<0.000000e+00> : vector<3x8xf32>
    %29 = vector.multi_reduction <add>, %28, %cst_10 [2] : vector<3x8x8xf32> to vector<3x8xf32>
    %30 = vector.shape_cast %29 : vector<3x8xf32> to vector<3x8x1xf32>
    %31 = tpu.reciprocal %30 {approx = true} : vector<3x8x1xf32> -> vector<3x8x1xf32>
    %32 = vector.broadcast %31 : vector<3x8x1xf32> to vector<3x8x8xf32>
    %33 = arith.mulf %28, %32 : vector<3x8x8xf32>
    "tpu.trace_start"() <{level = 10 : i32, message = "bqk,bke->bqe"}> : () -> ()
    %cst_11 = arith.constant dense<0.000000e+00> : vector<3x8x4xf32>
    %34 = tpu.matmul %33, %15, %cst_11 {dimension_numbers = #tpu.dot_dimension_numbers<[2], [1], [1], [2], [0, 0, 0, 1, 1, 2], [0], [0]>} : vector<3x8x8xf32>, vector<3x8x4xf32>, vector<3x8x4xf32> -> vector<3x8x4xf32>
    "tpu.trace_stop"() : () -> ()
    %35 = vector.extract_strided_slice %6 {offsets = [0, 4], sizes = [24, 4], strides = [1, 1]} : vector<24x48xf32> to vector<24x4xf32>
    %36 = vector.shape_cast %35 : vector<24x4xf32> to vector<3x8x4xf32>
    %37 = vector.extract_strided_slice %6 {offsets = [0, 20], sizes = [24, 4], strides = [1, 1]} : vector<24x48xf32> to vector<24x4xf32>
    %38 = vector.shape_cast %37 : vector<24x4xf32> to vector<3x8x4xf32>
    %39 = vector.extract_strided_slice %6 {offsets = [0, 36], sizes = [24, 4], strides = [1, 1]} : vector<24x48xf32> to vector<24x4xf32>
    %40 = vector.shape_cast %39 : vector<24x4xf32> to vector<3x8x4xf32>
    "tpu.trace_start"() <{level = 10 : i32, message = "bqe,bke->bqk"}> : () -> ()
    %cst_12 = arith.constant dense<0.000000e+00> : vector<3x8x8xf32>
    %41 = tpu.matmul %36, %38, %cst_12 {dimension_numbers = #tpu.dot_dimension_numbers<[2], [2], [1], [1], [0, 0, 0, 1, 1, 1], [0], [0]>} : vector<3x8x4xf32>, vector<3x8x4xf32>, vector<3x8x8xf32> -> vector<3x8x8xf32>
    "tpu.trace_stop"() : () -> ()
    %cst_13 = arith.constant 5.000000e-01 : f32
    %42 = vector.broadcast %cst_13 : f32 to vector<3x8x8xf32>
    %43 = arith.mulf %41, %42 : vector<3x8x8xf32>
    %44 = vector.shape_cast %9 : vector<8x8xi1> to vector<1x8x8xi1>
    %cst_14 = arith.constant -1.000000e+30 : f32
    %45 = vector.shape_cast %44 : vector<1x8x8xi1> to vector<1x8x8xi1>
    %46 = vector.broadcast %45 : vector<1x8x8xi1> to vector<3x8x8xi1>
    %47 = vector.broadcast %cst_14 : f32 to vector<3x8x8xf32>
    %48 = arith.select %46, %43, %47 : vector<3x8x8xi1>, vector<3x8x8xf32>
    %cst_15 = arith.constant dense<0xFF800000> : vector<3x8xf32>
    %49 = vector.multi_reduction <maximumf>, %48, %cst_15 [2] : vector<3x8x8xf32> to vector<3x8xf32>
    %50 = vector.shape_cast %49 : vector<3x8xf32> to vector<3x8x1xf32>
    %51 = vector.broadcast %50 : vector<3x8x1xf32> to vector<3x8x8xf32>
    %52 = arith.subf %48, %51 : vector<3x8x8xf32>
    %53 = math.exp %52 : vector<3x8x8xf32>
    %cst_16 = arith.constant dense<0.000000e+00> : vector<3x8xf32>
    %54 = vector.multi_reduction <add>, %53, %cst_16 [2] : vector<3x8x8xf32> to vector<3x8xf32>
    %55 = vector.shape_cast %54 : vector<3x8xf32> to vector<3x8x1xf32>
    %56 = tpu.reciprocal %55 {approx = true} : vector<3x8x1xf32> -> vector<3x8x1xf32>
    %57 = vector.broadcast %56 : vector<3x8x1xf32> to vector<3x8x8xf32>
    %58 = arith.mulf %53, %57 : vector<3x8x8xf32>
    "tpu.trace_start"() <{level = 10 : i32, message = "bqk,bke->bqe"}> : () -> ()
    %cst_17 = arith.constant dense<0.000000e+00> : vector<3x8x4xf32>
    %59 = tpu.matmul %58, %40, %cst_17 {dimension_numbers = #tpu.dot_dimension_numbers<[2], [1], [1], [2], [0, 0, 0, 1, 1, 2], [0], [0]>} : vector<3x8x8xf32>, vector<3x8x4xf32>, vector<3x8x4xf32> -> vector<3x8x4xf32>
    "tpu.trace_stop"() : () -> ()
    %60 = vector.extract_strided_slice %6 {offsets = [0, 8], sizes = [24, 4], strides = [1, 1]} : vector<24x48xf32> to vector<24x4xf32>
    %61 = vector.shape_cast %60 : vector<24x4xf32> to vector<3x8x4xf32>
    %62 = vector.extract_strided_slice %6 {offsets = [0, 24], sizes = [24, 4], strides = [1, 1]} : vector<24x48xf32> to vector<24x4xf32>
    %63 = vector.shape_cast %62 : vector<24x4xf32> to vector<3x8x4xf32>
    %64 = vector.extract_strided_slice %6 {offsets = [0, 40], sizes = [24, 4], strides = [1, 1]} : vector<24x48xf32> to vector<24x4xf32>
    %65 = vector.shape_cast %64 : vector<24x4xf32> to vector<3x8x4xf32>
    "tpu.trace_start"() <{level = 10 : i32, message = "bqe,bke->bqk"}> : () -> ()
    %cst_18 = arith.constant dense<0.000000e+00> : vector<3x8x8xf32>
    %66 = tpu.matmul %61, %63, %cst_18 {dimension_numbers = #tpu.dot_dimension_numbers<[2], [2], [1], [1], [0, 0, 0, 1, 1, 1], [0], [0]>} : vector<3x8x4xf32>, vector<3x8x4xf32>, vector<3x8x8xf32> -> vector<3x8x8xf32>
    "tpu.trace_stop"() : () -> ()
    %cst_19 = arith.constant 5.000000e-01 : f32
    %67 = vector.broadcast %cst_19 : f32 to vector<3x8x8xf32>
    %68 = arith.mulf %66, %67 : vector<3x8x8xf32>
    %69 = vector.shape_cast %9 : vector<8x8xi1> to vector<1x8x8xi1>
    %cst_20 = arith.constant -1.000000e+30 : f32
    %70 = vector.shape_cast %69 : vector<1x8x8xi1> to vector<1x8x8xi1>
    %71 = vector.broadcast %70 : vector<1x8x8xi1> to vector<3x8x8xi1>
    %72 = vector.broadcast %cst_20 : f32 to vector<3x8x8xf32>
    %73 = arith.select %71, %68, %72 : vector<3x8x8xi1>, vector<3x8x8xf32>
    %cst_21 = arith.constant dense<0xFF800000> : vector<3x8xf32>
    %74 = vector.multi_reduction <maximumf>, %73, %cst_21 [2] : vector<3x8x8xf32> to vector<3x8xf32>
    %75 = vector.shape_cast %74 : vector<3x8xf32> to vector<3x8x1xf32>
    %76 = vector.broadcast %75 : vector<3x8x1xf32> to vector<3x8x8xf32>
    %77 = arith.subf %73, %76 : vector<3x8x8xf32>
    %78 = math.exp %77 : vector<3x8x8xf32>
    %cst_22 = arith.constant dense<0.000000e+00> : vector<3x8xf32>
    %79 = vector.multi_reduction <add>, %78, %cst_22 [2] : vector<3x8x8xf32> to vector<3x8xf32>
    %80 = vector.shape_cast %79 : vector<3x8xf32> to vector<3x8x1xf32>
    %81 = tpu.reciprocal %80 {approx = true} : vector<3x8x1xf32> -> vector<3x8x1xf32>
    %82 = vector.broadcast %81 : vector<3x8x1xf32> to vector<3x8x8xf32>
    %83 = arith.mulf %78, %82 : vector<3x8x8xf32>
    "tpu.trace_start"() <{level = 10 : i32, message = "bqk,bke->bqe"}> : () -> ()
    %cst_23 = arith.constant dense<0.000000e+00> : vector<3x8x4xf32>
    %84 = tpu.matmul %83, %65, %cst_23 {dimension_numbers = #tpu.dot_dimension_numbers<[2], [1], [1], [2], [0, 0, 0, 1, 1, 2], [0], [0]>} : vector<3x8x8xf32>, vector<3x8x4xf32>, vector<3x8x4xf32> -> vector<3x8x4xf32>
    "tpu.trace_stop"() : () -> ()
    %85 = vector.extract_strided_slice %6 {offsets = [0, 12], sizes = [24, 4], strides = [1, 1]} : vector<24x48xf32> to vector<24x4xf32>
    %86 = vector.shape_cast %85 : vector<24x4xf32> to vector<3x8x4xf32>
    %87 = vector.extract_strided_slice %6 {offsets = [0, 28], sizes = [24, 4], strides = [1, 1]} : vector<24x48xf32> to vector<24x4xf32>
    %88 = vector.shape_cast %87 : vector<24x4xf32> to vector<3x8x4xf32>
    %89 = vector.extract_strided_slice %6 {offsets = [0, 44], sizes = [24, 4], strides = [1, 1]} : vector<24x48xf32> to vector<24x4xf32>
    %90 = vector.shape_cast %89 : vector<24x4xf32> to vector<3x8x4xf32>
    "tpu.trace_start"() <{level = 10 : i32, message = "bqe,bke->bqk"}> : () -> ()
    %cst_24 = arith.constant dense<0.000000e+00> : vector<3x8x8xf32>
    %91 = tpu.matmul %86, %88, %cst_24 {dimension_numbers = #tpu.dot_dimension_numbers<[2], [2], [1], [1], [0, 0, 0, 1, 1, 1], [0], [0]>} : vector<3x8x4xf32>, vector<3x8x4xf32>, vector<3x8x8xf32> -> vector<3x8x8xf32>
    "tpu.trace_stop"() : () -> ()
    %cst_25 = arith.constant 5.000000e-01 : f32
    %92 = vector.broadcast %cst_25 : f32 to vector<3x8x8xf32>
    %93 = arith.mulf %91, %92 : vector<3x8x8xf32>
    %94 = vector.shape_cast %9 : vector<8x8xi1> to vector<1x8x8xi1>
    %cst_26 = arith.constant -1.000000e+30 : f32
    %95 = vector.shape_cast %94 : vector<1x8x8xi1> to vector<1x8x8xi1>
    %96 = vector.broadcast %95 : vector<1x8x8xi1> to vector<3x8x8xi1>
    %97 = vector.broadcast %cst_26 : f32 to vector<3x8x8xf32>
    %98 = arith.select %96, %93, %97 : vector<3x8x8xi1>, vector<3x8x8xf32>
    %cst_27 = arith.constant dense<0xFF800000> : vector<3x8xf32>
    %99 = vector.multi_reduction <maximumf>, %98, %cst_27 [2] : vector<3x8x8xf32> to vector<3x8xf32>
    %100 = vector.shape_cast %99 : vector<3x8xf32> to vector<3x8x1xf32>
    %101 = vector.broadcast %100 : vector<3x8x1xf32> to vector<3x8x8xf32>
    %102 = arith.subf %98, %101 : vector<3x8x8xf32>
    %103 = math.exp %102 : vector<3x8x8xf32>
    %cst_28 = arith.constant dense<0.000000e+00> : vector<3x8xf32>
    %104 = vector.multi_reduction <add>, %103, %cst_28 [2] : vector<3x8x8xf32> to vector<3x8xf32>
    %105 = vector.shape_cast %104 : vector<3x8xf32> to vector<3x8x1xf32>
    %106 = tpu.reciprocal %105 {approx = true} : vector<3x8x1xf32> -> vector<3x8x1xf32>
    %107 = vector.broadcast %106 : vector<3x8x1xf32> to vector<3x8x8xf32>
    %108 = arith.mulf %103, %107 : vector<3x8x8xf32>
    "tpu.trace_start"() <{level = 10 : i32, message = "bqk,bke->bqe"}> : () -> ()
    %cst_29 = arith.constant dense<0.000000e+00> : vector<3x8x4xf32>
    %109 = tpu.matmul %108, %90, %cst_29 {dimension_numbers = #tpu.dot_dimension_numbers<[2], [1], [1], [2], [0, 0, 0, 1, 1, 2], [0], [0]>} : vector<3x8x8xf32>, vector<3x8x4xf32>, vector<3x8x4xf32> -> vector<3x8x4xf32>
    "tpu.trace_stop"() : () -> ()
    %110 = tpu.concatenate %34, %59, %84, %109 in 2 : vector<3x8x4xf32>, vector<3x8x4xf32>, vector<3x8x4xf32>, vector<3x8x4xf32> -> vector<3x8x16xf32>
    %111 = vector.shape_cast %110 : vector<3x8x16xf32> to vector<24x16xf32>
    %c0_30 = arith.constant 0 : index
    %c0_31 = arith.constant 0 : index
    %112 = vector.load %arg4[%c0_30, %c0_31] : memref<16x16xf32, #tpu.memory_space<vmem>>, vector<16x16xf32>
    %cst_32 = arith.constant dense<0.000000e+00> : vector<24x16xf32>
    %113 = tpu.matmul %111, %112, %cst_32 {dimension_numbers = #tpu.dot_dimension_numbers<[1], [0], [0], [1], [0, 0, 1, 1], [], []>} : vector<24x16xf32>, vector<16x16xf32>, vector<24x16xf32> -> vector<24x16xf32>
    %c0_33 = arith.constant 0 : index
    %c0_34 = arith.constant 0 : index
    %114 = vector.load %arg5[%c0_33, %c0_34] : memref<1x16xf32, #tpu.memory_space<vmem>>, vector<1x16xf32>
    %115 = vector.broadcast %114 : vector<1x16xf32> to vector<24x16xf32>
    %116 = arith.addf %113, %115 : vector<24x16xf32>
    %117 = arith.addf %1, %116 : vector<24x16xf32>
    %c0_35 = arith.constant 0 : index
    %c0_36 = arith.constant 0 : index
    %118 = vector.load %arg10[%c0_35, %c0_36] : memref<1x16xf32, #tpu.memory_space<vmem>>, vector<1x16xf32>
    %c0_37 = arith.constant 0 : index
    %c0_38 = arith.constant 0 : index
    %119 = vector.load %arg11[%c0_37, %c0_38] : memref<1x16xf32, #tpu.memory_space<vmem>>, vector<1x16xf32>
    %cst_39 = arith.constant dense<0.000000e+00> : vector<24xf32>
    %120 = vector.multi_reduction <add>, %117, %cst_39 [1] : vector<24x16xf32> to vector<24xf32>
    %121 = vector.shape_cast %120 : vector<24xf32> to vector<24x1xf32>
    %cst_40 = arith.constant 1.600000e+01 : f32
    %122 = vector.broadcast %cst_40 : f32 to vector<24x1xf32>
    %123 = arith.divf %121, %122 : vector<24x1xf32>
    %124 = vector.broadcast %123 : vector<24x1xf32> to vector<24x16xf32>
    %125 = arith.subf %117, %124 : vector<24x16xf32>
    %126 = arith.mulf %125, %125 : vector<24x16xf32>
    %cst_41 = arith.constant dense<0.000000e+00> : vector<24xf32>
    %127 = vector.multi_reduction <add>, %126, %cst_41 [1] : vector<24x16xf32> to vector<24xf32>
    %128 = vector.shape_cast %127 : vector<24xf32> to vector<24x1xf32>
    %cst_42 = arith.constant 1.600000e+01 : f32
    %129 = vector.broadcast %cst_42 : f32 to vector<24x1xf32>
    %130 = arith.divf %128, %129 : vector<24x1xf32>
    %cst_43 = arith.constant 9.99999974E-6 : f32
    %131 = vector.broadcast %cst_43 : f32 to vector<24x1xf32>
    %132 = arith.addf %130, %131 : vector<24x1xf32>
    %133 = math.rsqrt %132 : vector<24x1xf32>
    %134 = vector.broadcast %133 : vector<24x1xf32> to vector<24x16xf32>
    %135 = arith.mulf %125, %134 : vector<24x16xf32>
    %136 = vector.broadcast %118 : vector<1x16xf32> to vector<24x16xf32>
    %137 = arith.mulf %135, %136 : vector<24x16xf32>
    %138 = vector.broadcast %119 : vector<1x16xf32> to vector<24x16xf32>
    %139 = arith.addf %137, %138 : vector<24x16xf32>
    %c0_44 = arith.constant 0 : index
    %c0_45 = arith.constant 0 : index
    %140 = vector.load %arg6[%c0_44, %c0_45] : memref<16x32xf32, #tpu.memory_space<vmem>>, vector<16x32xf32>
    %cst_46 = arith.constant dense<0.000000e+00> : vector<24x32xf32>
    %141 = tpu.matmul %139, %140, %cst_46 {dimension_numbers = #tpu.dot_dimension_numbers<[1], [0], [0], [1], [0, 0, 1, 1], [], []>} : vector<24x16xf32>, vector<16x32xf32>, vector<24x32xf32> -> vector<24x32xf32>
    %c0_47 = arith.constant 0 : index
    %c0_48 = arith.constant 0 : index
    %142 = vector.load %arg7[%c0_47, %c0_48] : memref<1x32xf32, #tpu.memory_space<vmem>>, vector<1x32xf32>
    %143 = vector.broadcast %142 : vector<1x32xf32> to vector<24x32xf32>
    %144 = arith.addf %141, %143 : vector<24x32xf32>
    %cst_49 = arith.constant 0.000000e+00 : f32
    %145 = vector.broadcast %cst_49 : f32 to vector<24x32xf32>
    %146 = arith.maximumf %144, %145 : vector<24x32xf32>
    %c0_50 = arith.constant 0 : index
    %c0_51 = arith.constant 0 : index
    %147 = vector.load %arg8[%c0_50, %c0_51] : memref<32x16xf32, #tpu.memory_space<vmem>>, vector<32x16xf32>
    %cst_52 = arith.constant dense<0.000000e+00> : vector<24x16xf32>
    %148 = tpu.matmul %146, %147, %cst_52 {dimension_numbers = #tpu.dot_dimension_numbers<[1], [0], [0], [1], [0, 0, 1, 1], [], []>} : vector<24x32xf32>, vector<32x16xf32>, vector<24x16xf32> -> vector<24x16xf32>
    %c0_53 = arith.constant 0 : index
    %c0_54 = arith.constant 0 : index
    %149 = vector.load %arg9[%c0_53, %c0_54] : memref<1x16xf32, #tpu.memory_space<vmem>>, vector<1x16xf32>
    %150 = vector.broadcast %149 : vector<1x16xf32> to vector<24x16xf32>
    %151 = arith.addf %148, %150 : vector<24x16xf32>
    %152 = arith.addf %139, %151 : vector<24x16xf32>
    %c0_55 = arith.constant 0 : index
    %c0_56 = arith.constant 0 : index
    %153 = vector.load %arg12[%c0_55, %c0_56] : memref<1x16xf32, #tpu.memory_space<vmem>>, vector<1x16xf32>
    %c0_57 = arith.constant 0 : index
    %c0_58 = arith.constant 0 : index
    %154 = vector.load %arg13[%c0_57, %c0_58] : memref<1x16xf32, #tpu.memory_space<vmem>>, vector<1x16xf32>
    %cst_59 = arith.constant dense<0.000000e+00> : vector<24xf32>
    %155 = vector.multi_reduction <add>, %152, %cst_59 [1] : vector<24x16xf32> to vector<24xf32>
    %156 = vector.shape_cast %155 : vector<24xf32> to vector<24x1xf32>
    %cst_60 = arith.constant 1.600000e+01 : f32
    %157 = vector.broadcast %cst_60 : f32 to vector<24x1xf32>
    %158 = arith.divf %156, %157 : vector<24x1xf32>
    %159 = vector.broadcast %158 : vector<24x1xf32> to vector<24x16xf32>
    %160 = arith.subf %152, %159 : vector<24x16xf32>
    %161 = arith.mulf %160, %160 : vector<24x16xf32>
    %cst_61 = arith.constant dense<0.000000e+00> : vector<24xf32>
    %162 = vector.multi_reduction <add>, %161, %cst_61 [1] : vector<24x16xf32> to vector<24xf32>
    %163 = vector.shape_cast %162 : vector<24xf32> to vector<24x1xf32>
    %cst_62 = arith.constant 1.600000e+01 : f32
    %164 = vector.broadcast %cst_62 : f32 to vector<24x1xf32>
    %165 = arith.divf %163, %164 : vector<24x1xf32>
    %cst_63 = arith.constant 9.99999974E-6 : f32
    %166 = vector.broadcast %cst_63 : f32 to vector<24x1xf32>
    %167 = arith.addf %165, %166 : vector<24x1xf32>
    %168 = math.rsqrt %167 : vector<24x1xf32>
    %169 = vector.broadcast %168 : vector<24x1xf32> to vector<24x16xf32>
    %170 = arith.mulf %160, %169 : vector<24x16xf32>
    %171 = vector.broadcast %153 : vector<1x16xf32> to vector<24x16xf32>
    %172 = arith.mulf %170, %171 : vector<24x16xf32>
    %173 = vector.broadcast %154 : vector<1x16xf32> to vector<24x16xf32>
    %174 = arith.addf %172, %173 : vector<24x16xf32>
    %175 = vector.shape_cast %174 : vector<24x16xf32> to vector<3x8x16xf32>
    %c0_64 = arith.constant 0 : index
    %c0_65 = arith.constant 0 : index
    %c0_66 = arith.constant 0 : index
    %176 = vector.load %arg16[%c0_64, %c0_65, %c0_66] : memref<3x8x16xf32, #tpu.memory_space<vmem>>, vector<3x8x16xf32>
    tpu.vector_store %arg16[%c0_64, %c0_65, %c0_66], %175 {strides = array<i32>} : memref<3x8x16xf32, #tpu.memory_space<vmem>>, vector<3x8x16xf32>,
    return
  }
  func.func @transform_0(%arg0: i32) -> (i32, i32, i32) {
    %c0_i32 = arith.constant 0 : i32
    %c0_i32_0 = arith.constant 0 : i32
    %c0_i32_1 = arith.constant 0 : i32
    return %arg0, %c0_i32, %c0_i32_0 : i32, i32, i32
  }
  func.func @transform_1(%arg0: i32) -> (i32, i32) {
    %c0_i32 = arith.constant 0 : i32
    %c0_i32_0 = arith.constant 0 : i32
    %c0_i32_1 = arith.constant 0 : i32
    return %c0_i32, %c0_i32_0 : i32, i32
  }
  func.func @transform_2(%arg0: i32) -> (i32, i32) {
    %c0_i32 = arith.constant 0 : i32
    %c0_i32_0 = arith.constant 0 : i32
    %c0_i32_1 = arith.constant 0 : i32
    return %c0_i32, %c0_i32_0 : i32, i32
  }
  func.func @transform_3(%arg0: i32) -> (i32, i32) {
    %c0_i32 = arith.constant 0 : i32
    %c0_i32_0 = arith.constant 0 : i32
    %c0_i32_1 = arith.constant 0 : i32
    return %c0_i32, %c0_i32_0 : i32, i32
  }
  func.func @transform_4(%arg0: i32) -> (i32, i32) {
    %c0_i32 = arith.constant 0 : i32
    %c0_i32_0 = arith.constant 0 : i32
    %c0_i32_1 = arith.constant 0 : i32
    return %c0_i32, %c0_i32_0 : i32, i32
  }
  func.func @transform_5(%arg0: i32) -> (i32, i32) {
    %c0_i32 = arith.constant 0 : i32
    %c0_i32_0 = arith.constant 0 : i32
    %c0_i32_1 = arith.constant 0 : i32
    return %c0_i32, %c0_i32_0 : i32, i32
  }
  func.func @transform_6(%arg0: i32) -> (i32, i32) {
    %c0_i32 = arith.constant 0 : i32
    %c0_i32_0 = arith.constant 0 : i32
    %c0_i32_1 = arith.constant 0 : i32
    return %c0_i32, %c0_i32_0 : i32, i32
  }
  func.func @transform_7(%arg0: i32) -> (i32, i32) {
    %c0_i32 = arith.constant 0 : i32
    %c0_i32_0 = arith.constant 0 : i32
    %c0_i32_1 = arith.constant 0 : i32
    return %c0_i32, %c0_i32_0 : i32, i32
  }
  func.func @transform_8(%arg0: i32) -> (i32, i32) {
    %c0_i32 = arith.constant 0 : i32
    %c0_i32_0 = arith.constant 0 : i32
    %c0_i32_1 = arith.constant 0 : i32
    return %c0_i32, %c0_i32_0 : i32, i32
  }
  func.func @transform_9(%arg0: i32) -> (i32, i32) {
    %c0_i32 = arith.constant 0 : i32
    %c0_i32_0 = arith.constant 0 : i32
    %c0_i32_1 = arith.constant 0 : i32
    return %c0_i32, %c0_i32_0 : i32, i32
  }
  func.func @transform_10(%arg0: i32) -> (i32, i32) {
    %c0_i32 = arith.constant 0 : i32
    %c0_i32_0 = arith.constant 0 : i32
    %c0_i32_1 = arith.constant 0 : i32
    return %c0_i32, %c0_i32_0 : i32, i32
  }
  func.func @transform_11(%arg0: i32) -> (i32, i32) {
    %c0_i32 = arith.constant 0 : i32
    %c0_i32_0 = arith.constant 0 : i32
    %c0_i32_1 = arith.constant 0 : i32
    return %c0_i32, %c0_i32_0 : i32, i32
  }
  func.func @transform_12(%arg0: i32) -> (i32, i32) {
    %c0_i32 = arith.constant 0 : i32
    %c0_i32_0 = arith.constant 0 : i32
    %c0_i32_1 = arith.constant 0 : i32
    return %c0_i32, %c0_i32_0 : i32, i32
  }
  func.func @transform_13(%arg0: i32) -> (i32, i32) {
    %c0_i32 = arith.constant 0 : i32
    %c0_i32_0 = arith.constant 0 : i32
    %c0_i32_1 = arith.constant 0 : i32
    return %c0_i32, %c0_i32_0 : i32, i32
  }
  func.func @transform_14(%arg0: i32) -> (i32, i32) {
    %c0_i32 = arith.constant 0 : i32
    %c0_i32_0 = arith.constant 0 : i32
    %c0_i32_1 = arith.constant 0 : i32
    return %c0_i32, %c0_i32_0 : i32, i32
  }
  func.func @transform_15(%arg0: i32) -> (i32, i32, i32) {
    %c0_i32 = arith.constant 0 : i32
    %c0_i32_0 = arith.constant 0 : i32
    %c0_i32_1 = arith.constant 0 : i32
    return %arg0, %c0_i32, %c0_i32_0 : i32, i32, i32
  }
}

module attributes {stable_mosaic.version = 11 : i64} {
  func.func @_encoder_layer_kernel(%arg0: i32, %arg1: memref<3x8x16xf32, #tpu.memory_space<vmem>>, %arg2: memref<16x48xf32, #tpu.memory_space<vmem>>, %arg3: memref<1x48xf32, #tpu.memory_space<vmem>>, %arg4: memref<16x16xf32, #tpu.memory_space<vmem>>, %arg5: memref<1x16xf32, #tpu.memory_space<vmem>>, %arg6: memref<16x32xf32, #tpu.memory_space<vmem>>, %arg7: memref<1x32xf32, #tpu.memory_space<vmem>>, %arg8: memref<32x16xf32, #tpu.memory_space<vmem>>, %arg9: memref<1x16xf32, #tpu.memory_space<vmem>>, %arg10: memref<1x16xf32, #tpu.memory_space<vmem>>, %arg11: memref<1x16xf32, #tpu.memory_space<vmem>>, %arg12: memref<1x16xf32, #tpu.memory_space<vmem>>, %arg13: memref<1x16xf32, #tpu.memory_space<vmem>>, %arg14: memref<1x16xf32, #tpu.memory_space<vmem>>, %arg15: memref<1x16xf32, #tpu.memory_space<vmem>>, %arg16: memref<3x8x16xf32, #tpu.memory_space<vmem>>) attributes {dimension_semantics = [#tpu.dimension_semantics<parallel>], iteration_bounds = array<i64: 2>, scalar_prefetch = 0 : i64, scratch_operands = 0 : i64, tpu.core_type = #tpu.core_type<tc>, window_params = [{transform_indices = @transform_0, window_bounds = array<i64: 3, 8, 16>}, {pipeline_mode = #tpu.pipeline_mode<synchronous>, transform_indices = @transform_1, window_bounds = array<i64: 16, 48>}, {pipeline_mode = #tpu.pipeline_mode<synchronous>, transform_indices = @transform_2, window_bounds = array<i64: 1, 48>}, {pipeline_mode = #tpu.pipeline_mode<synchronous>, transform_indices = @transform_3, window_bounds = array<i64: 16, 16>}, {pipeline_mode = #tpu.pipeline_mode<synchronous>, transform_indices = @transform_4, window_bounds = array<i64: 1, 16>}, {pipeline_mode = #tpu.pipeline_mode<synchronous>, transform_indices = @transform_5, window_bounds = array<i64: 16, 32>}, {pipeline_mode = #tpu.pipeline_mode<synchronous>, transform_indices = @transform_6, window_bounds = array<i64: 1, 32>}, {pipeline_mode = #tpu.pipeline_mode<synchronous>, transform_indices = @transform_7, window_bounds = array<i64: 32, 16>}, {pipeline_mode = #tpu.pipeline_mode<synchronous>, transform_indices = @transform_8, window_bounds = array<i64: 1, 16>}, {pipeline_mode = #tpu.pipeline_mode<synchronous>, transform_indices = @transform_9, window_bounds = array<i64: 1, 16>}, {pipeline_mode = #tpu.pipeline_mode<synchronous>, transform_indices = @transform_10, window_bounds = array<i64: 1, 16>}, {pipeline_mode = #tpu.pipeline_mode<synchronous>, transform_indices = @transform_11, window_bounds = array<i64: 1, 16>}, {pipeline_mode = #tpu.pipeline_mode<synchronous>, transform_indices = @transform_12, window_bounds = array<i64: 1, 16>}, {pipeline_mode = #tpu.pipeline_mode<synchronous>, transform_indices = @transform_13, window_bounds = array<i64: 1, 16>}, {pipeline_mode = #tpu.pipeline_mode<synchronous>, transform_indices = @transform_14, window_bounds = array<i64: 1, 16>}, {transform_indices = @transform_15, window_bounds = array<i64: 3, 8, 16>}]} {
    %c0 = arith.constant 0 : index
    %c0_0 = arith.constant 0 : index
    %c0_1 = arith.constant 0 : index
    %0 = vector.load %arg1[%c0, %c0_0, %c0_1] : memref<3x8x16xf32, #tpu.memory_space<vmem>>, vector<3x8x16xf32>
    %1 = vector.shape_cast %0 : vector<3x8x16xf32> to vector<24x16xf32>
    %c0_2 = arith.constant 0 : index
    %c0_3 = arith.constant 0 : index
    %2 = vector.load %arg2[%c0_2, %c0_3] : memref<16x48xf32, #tpu.memory_space<vmem>>, vector<16x48xf32>
    %cst = arith.constant dense<0.000000e+00> : vector<24x48xf32>
    %3 = tpu.matmul %1, %2, %cst {dimension_numbers = #tpu.dot_dimension_numbers<[1], [0], [0], [1], [0, 0, 1, 1], [], []>} : vector<24x16xf32>, vector<16x48xf32>, vector<24x48xf32> -> vector<24x48xf32>
    %c0_4 = arith.constant 0 : index
    %c0_5 = arith.constant 0 : index
    %4 = vector.load %arg3[%c0_4, %c0_5] : memref<1x48xf32, #tpu.memory_space<vmem>>, vector<1x48xf32>
    %5 = vector.broadcast %4 : vector<1x48xf32> to vector<24x48xf32>
    %6 = arith.addf %3, %5 : vector<24x48xf32>
    %7 = tpu.iota {dimensions = array<i32: 1>} : vector<8x8xi32>
    %c5_i32 = arith.constant 5 : i32
    %8 = vector.broadcast %c5_i32 : i32 to vector<8x8xi32>
    %9 = arith.cmpi slt, %7, %8 : vector<8x8xi32>
    %10 = vector.extract_strided_slice %6 {offsets = [0, 0], sizes = [24, 4], strides = [1, 1]} : vector<24x48xf32> to vector<24x4xf32>
    %11 = vector.shape_cast %10 : vector<24x4xf32> to vector<3x8x4xf32>
    %12 = vector.extract_strided_slice %6 {offsets = [0, 16], sizes = [24, 4], strides = [1, 1]} : vector<24x48xf32> to vector<24x4xf32>
    %13 = vector.shape_cast %12 : vector<24x4xf32> to vector<3x8x4xf32>
    %14 = vector.extract_strided_slice %6 {offsets = [0, 32], sizes = [24, 4], strides = [1, 1]} : vector<24x48xf32> to vector<24x4xf32>
    %15 = vector.shape_cast %14 : vector<24x4xf32> to vector<3x8x4xf32>
    "tpu.trace_start"() <{level = 10 : i32, message = "bqe,bke->bqk"}> : () -> ()
    %cst_6 = arith.constant dense<0.000000e+00> : vector<3x8x8xf32>
    %16 = tpu.matmul %11, %13, %cst_6 {dimension_numbers = #tpu.dot_dimension_numbers<[2], [2], [1], [1], [0, 0, 0, 1, 1, 1], [0], [0]>} : vector<3x8x4xf32>, vector<3x8x4xf32>, vector<3x8x8xf32> -> vector<3x8x8xf32>
    "tpu.trace_stop"() : () -> ()
    %cst_7 = arith.constant 5.000000e-01 : f32
    %17 = vector.broadcast %cst_7 : f32 to vector<3x8x8xf32>
    %18 = arith.mulf %16, %17 : vector<3x8x8xf32>
    %19 = vector.shape_cast %9 : vector<8x8xi1> to vector<1x8x8xi1>
    %cst_8 = arith.constant -1.000000e+30 : f32
    %20 = vector.shape_cast %19 : vector<1x8x8xi1> to vector<1x8x8xi1>
    %21 = vector.broadcast %20 : vector<1x8x8xi1> to vector<3x8x8xi1>
    %22 = vector.broadcast %cst_8 : f32 to vector<3x8x8xf32>
    %23 = arith.select %21, %18, %22 : vector<3x8x8xi1>, vector<3x8x8xf32>
    %cst_9 = arith.constant dense<0xFF800000> : vector<3x8xf32>
    %24 = vector.multi_reduction <maximumf>, %23, %cst_9 [2] : vector<3x8x8xf32> to vector<3x8xf32>
    %25 = vector.shape_cast %24 : vector<3x8xf32> to vector<3x8x1xf32>
    %26 = vector.broadcast %25 : vector<3x8x1xf32> to vector<3x8x8xf32>
    %27 = arith.subf %23, %26 : vector<3x8x8xf32>
    %28 = math.exp %27 : vector<3x8x8xf32>
    %cst_10 = arith.constant dense<0.000000e+00> : vector<3x8xf32>
    %29 = vector.multi_reduction <add>, %28, %cst_10 [2] : vector<3x8x8xf32> to vector<3x8xf32>
    %30 = vector.shape_cast %29 : vector<3x8xf32> to vector<3x8x1xf32>
    %31 = tpu.reciprocal %30 {approx = true} : vector<3x8x1xf32> -> vector<3x8x1xf32>
    %32 = vector.broadcast %31 : vector<3x8x1xf32> to vector<3x8x8xf32>
    %33 = arith.mulf %28, %32 : vector<3x8x8xf32>
    "tpu.trace_start"() <{level = 10 : i32, message = "bqk,bke->bqe"}> : () -> ()
    %cst_11 = arith.constant dense<0.000000e+00> : vector<3x8x4xf32>
    %34 = tpu.matmul %33, %15, %cst_11 {dimension_numbers = #tpu.dot_dimension_numbers<[2], [1], [1], [2], [0, 0, 0, 1, 1, 2], [0], [0]>} : vector<3x8x8xf32>, vector<3x8x4xf32>, vector<3x8x4xf32> -> vector<3x8x4xf32>
    "tpu.trace_stop"() : () -> ()
    %35 = vector.extract_strided_slice %6 {offsets = [0, 4], sizes = [24, 4], strides = [1, 1]} : vector<24x48xf32> to vector<24x4xf32>
    %36 = vector.shape_cast %35 : vector<24x4xf32> to vector<3x8x4xf32>
    %37 = vector.extract_strided_slice %6 {offsets = [0, 20], sizes = [24, 4], strides = [1, 1]} : vector<24x48xf32> to vector<24x4xf32>
    %38 = vector.shape_cast %37 : vector<24x4xf32> to vector<3x8x4xf32>
    %39 = vector.extract_strided_slice %6 {offsets = [0, 36], sizes = [24, 4], strides = [1, 1]} : vector<24x48xf32> to vector<24x4xf32>
    %40 = vector.shape_cast %39 : vector<24x4xf32> to vector<3x8x4xf32>
    "tpu.trace_start"() <{level = 10 : i32, message = "bqe,bke->bqk"}> : () -> ()
    %cst_12 = arith.constant dense<0.000000e+00> : vector<3x8x8xf32>
    %41 = tpu.matmul %36, %38, %cst_12 {dimension_numbers = #tpu.dot_dimension_numbers<[2], [2], [1], [1], [0, 0, 0, 1, 1, 1], [0], [0]>} : vector<3x8x4xf32>, vector<3x8x4xf32>, vector<3x8x8xf32> -> vector<3x8x8xf32>
    "tpu.trace_stop"() : () -> ()
    %cst_13 = arith.constant 5.000000e-01 : f32
    %42 = vector.broadcast %cst_13 : f32 to vector<3x8x8xf32>
    %43 = arith.mulf %41, %42 : vector<3x8x8xf32>
    %44 = vector.shape_cast %9 : vector<8x8xi1> to vector<1x8x8xi1>
    %cst_14 = arith.constant -1.000000e+30 : f32
    %45 = vector.shape_cast %44 : vector<1x8x8xi1> to vector<1x8x8xi1>
    %46 = vector.broadcast %45 : vector<1x8x8xi1> to vector<3x8x8xi1>
    %47 = vector.broadcast %cst_14 : f32 to vector<3x8x8xf32>
    %48 = arith.select %46, %43, %47 : vector<3x8x8xi1>, vector<3x8x8xf32>
    %cst_15 = arith.constant dense<0xFF800000> : vector<3x8xf32>
    %49 = vector.multi_reduction <maximumf>, %48, %cst_15 [2] : vector<3x8x8xf32> to vector<3x8xf32>
    %50 = vector.shape_cast %49 : vector<3x8xf32> to vector<3x8x1xf32>
    %51 = vector.broadcast %50 : vector<3x8x1xf32> to vector<3x8x8xf32>
    %52 = arith.subf %48, %51 : vector<3x8x8xf32>
    %53 = math.exp %52 : vector<3x8x8xf32>
    %cst_16 = arith.constant dense<0.000000e+00> : vector<3x8xf32>
    %54 = vector.multi_reduction <add>, %53, %cst_16 [2] : vector<3x8x8xf32> to vector<3x8xf32>
    %55 = vector.shape_cast %54 : vector<3x8xf32> to vector<3x8x1xf32>
    %56 = tpu.reciprocal %55 {approx = true} : vector<3x8x1xf32> -> vector<3x8x1xf32>
    %57 = vector.broadcast %56 : vector<3x8x1xf32> to vector<3x8x8xf32>
    %58 = arith.mulf %53, %57 : vector<3x8x8xf32>
    "tpu.trace_start"() <{level = 10 : i32, message = "bqk,bke->bqe"}> : () -> ()
    %cst_17 = arith.constant dense<0.000000e+00> : vector<3x8x4xf32>
    %59 = tpu.matmul %58, %40, %cst_17 {dimension_numbers = #tpu.dot_dimension_numbers<[2], [1], [1], [2], [0, 0, 0, 1, 1, 2], [0], [0]>} : vector<3x8x8xf32>, vector<3x8x4xf32>, vector<3x8x4xf32> -> vector<3x8x4xf32>
    "tpu.trace_stop"() : () -> ()
    %60 = vector.extract_strided_slice %6 {offsets = [0, 8], sizes = [24, 4], strides = [1, 1]} : vector<24x48xf32> to vector<24x4xf32>
    %61 = vector.shape_cast %60 : vector<24x4xf32> to vector<3x8x4xf32>
    %62 = vector.extract_strided_slice %6 {offsets = [0, 24], sizes = [24, 4], strides = [1, 1]} : vector<24x48xf32> to vector<24x4xf32>
    %63 = vector.shape_cast %62 : vector<24x4xf32> to vector<3x8x4xf32>
    %64 = vector.extract_strided_slice %6 {offsets = [0, 40], sizes = [24, 4], strides = [1, 1]} : vector<24x48xf32> to vector<24x4xf32>
    %65 = vector.shape_cast %64 : vector<24x4xf32> to vector<3x8x4xf32>
    "tpu.trace_start"() <{level = 10 : i32, message = "bqe,bke->bqk"}> : () -> ()
    %cst_18 = arith.constant dense<0.000000e+00> : vector<3x8x8xf32>
    %66 = tpu.matmul %61, %63, %cst_18 {dimension_numbers = #tpu.dot_dimension_numbers<[2], [2], [1], [1], [0, 0, 0, 1, 1, 1], [0], [0]>} : vector<3x8x4xf32>, vector<3x8x4xf32>, vector<3x8x8xf32> -> vector<3x8x8xf32>
    "tpu.trace_stop"() : () -> ()
    %cst_19 = arith.constant 5.000000e-01 : f32
    %67 = vector.broadcast %cst_19 : f32 to vector<3x8x8xf32>
    %68 = arith.mulf %66, %67 : vector<3x8x8xf32>
    %69 = vector.shape_cast %9 : vector<8x8xi1> to vector<1x8x8xi1>
    %cst_20 = arith.constant -1.000000e+30 : f32
    %70 = vector.shape_cast %69 : vector<1x8x8xi1> to vector<1x8x8xi1>
    %71 = vector.broadcast %70 : vector<1x8x8xi1> to vector<3x8x8xi1>
    %72 = vector.broadcast %cst_20 : f32 to vector<3x8x8xf32>
    %73 = arith.select %71, %68, %72 : vector<3x8x8xi1>, vector<3x8x8xf32>
    %cst_21 = arith.constant dense<0xFF800000> : vector<3x8xf32>
    %74 = vector.multi_reduction <maximumf>, %73, %cst_21 [2] : vector<3x8x8xf32> to vector<3x8xf32>
    %75 = vector.shape_cast %74 : vector<3x8xf32> to vector<3x8x1xf32>
    %76 = vector.broadcast %75 : vector<3x8x1xf32> to vector<3x8x8xf32>
    %77 = arith.subf %73, %76 : vector<3x8x8xf32>
    %78 = math.exp %77 : vector<3x8x8xf32>
    %cst_22 = arith.constant dense<0.000000e+00> : vector<3x8xf32>
    %79 = vector.multi_reduction <add>, %78, %cst_22 [2] : vector<3x8x8xf32> to vector<3x8xf32>
    %80 = vector.shape_cast %79 : vector<3x8xf32> to vector<3x8x1xf32>
    %81 = tpu.reciprocal %80 {approx = true} : vector<3x8x1xf32> -> vector<3x8x1xf32>
    %82 = vector.broadcast %81 : vector<3x8x1xf32> to vector<3x8x8xf32>
    %83 = arith.mulf %78, %82 : vector<3x8x8xf32>
    "tpu.trace_start"() <{level = 10 : i32, message = "bqk,bke->bqe"}> : () -> ()
    %cst_23 = arith.constant dense<0.000000e+00> : vector<3x8x4xf32>
    %84 = tpu.matmul %83, %65, %cst_23 {dimension_numbers = #tpu.dot_dimension_numbers<[2], [1], [1], [2], [0, 0, 0, 1, 1, 2], [0], [0]>} : vector<3x8x8xf32>, vector<3x8x4xf32>, vector<3x8x4xf32> -> vector<3x8x4xf32>
    "tpu.trace_stop"() : () -> ()
    %85 = vector.extract_strided_slice %6 {offsets = [0, 12], sizes = [24, 4], strides = [1, 1]} : vector<24x48xf32> to vector<24x4xf32>
    %86 = vector.shape_cast %85 : vector<24x4xf32> to vector<3x8x4xf32>
    %87 = vector.extract_strided_slice %6 {offsets = [0, 28], sizes = [24, 4], strides = [1, 1]} : vector<24x48xf32> to vector<24x4xf32>
    %88 = vector.shape_cast %87 : vector<24x4xf32> to vector<3x8x4xf32>
    %89 = vector.extract_strided_slice %6 {offsets = [0, 44], sizes = [24, 4], strides = [1, 1]} : vector<24x48xf32> to vector<24x4xf32>
    %90 = vector.shape_cast %89 : vector<24x4xf32> to vector<3x8x4xf32>
    "tpu.trace_start"() <{level = 10 : i32, message = "bqe,bke->bqk"}> : () -> ()
    %cst_24 = arith.constant dense<0.000000e+00> : vector<3x8x8xf32>
    %91 = tpu.matmul %86, %88, %cst_24 {dimension_numbers = #tpu.dot_dimension_numbers<[2], [2], [1], [1], [0, 0, 0, 1, 1, 1], [0], [0]>} : vector<3x8x4xf32>, vector<3x8x4xf32>, vector<3x8x8xf32> -> vector<3x8x8xf32>
    "tpu.trace_stop"() : () -> ()
    %cst_25 = arith.constant 5.000000e-01 : f32
    %92 = vector.broadcast %cst_25 : f32 to vector<3x8x8xf32>
    %93 = arith.mulf %91, %92 : vector<3x8x8xf32>
    %94 = vector.shape_cast %9 : vector<8x8xi1> to vector<1x8x8xi1>
    %cst_26 = arith.constant -1.000000e+30 : f32
    %95 = vector.shape_cast %94 : vector<1x8x8xi1> to vector<1x8x8xi1>
    %96 = vector.broadcast %95 : vector<1x8x8xi1> to vector<3x8x8xi1>
    %97 = vector.broadcast %cst_26 : f32 to vector<3x8x8xf32>
    %98 = arith.select %96, %93, %97 : vector<3x8x8xi1>, vector<3x8x8xf32>
    %cst_27 = arith.constant dense<0xFF800000> : vector<3x8xf32>
    %99 = vector.multi_reduction <maximumf>, %98, %cst_27 [2] : vector<3x8x8xf32> to vector<3x8xf32>
    %100 = vector.shape_cast %99 : vector<3x8xf32> to vector<3x8x1xf32>
    %101 = vector.broadcast %100 : vector<3x8x1xf32> to vector<3x8x8xf32>
    %102 = arith.subf %98, %101 : vector<3x8x8xf32>
    %103 = math.exp %102 : vector<3x8x8xf32>
    %cst_28 = arith.constant dense<0.000000e+00> : vector<3x8xf32>
    %104 = vector.multi_reduction <add>, %103, %cst_28 [2] : vector<3x8x8xf32> to vector<3x8xf32>
    %105 = vector.shape_cast %104 : vector<3x8xf32> to vector<3x8x1xf32>
    %106 = tpu.reciprocal %105 {approx = true} : vector<3x8x1xf32> -> vector<3x8x1xf32>
    %107 = vector.broadcast %106 : vector<3x8x1xf32> to vector<3x8x8xf32>
    %108 = arith.mulf %103, %107 : vector<3x8x8xf32>
    "tpu.trace_start"() <{level = 10 : i32, message = "bqk,bke->bqe"}> : () -> ()
    %cst_29 = arith.constant dense<0.000000e+00> : vector<3x8x4xf32>
    %109 = tpu.matmul %108, %90, %cst_29 {dimension_numbers = #tpu.dot_dimension_numbers<[2], [1], [1], [2], [0, 0, 0, 1, 1, 2], [0], [0]>} : vector<3x8x8xf32>, vector<3x8x4xf32>, vector<3x8x4xf32> -> vector<3x8x4xf32>
    "tpu.trace_stop"() : () -> ()
    %110 = tpu.concatenate %34, %59, %84, %109 in 2 : vector<3x8x4xf32>, vector<3x8x4xf32>, vector<3x8x4xf32>, vector<3x8x4xf32> -> vector<3x8x16xf32>
    %111 = vector.shape_cast %110 : vector<3x8x16xf32> to vector<24x16xf32>
    %c0_30 = arith.constant 0 : index
    %c0_31 = arith.constant 0 : index
    %112 = vector.load %arg4[%c0_30, %c0_31] : memref<16x16xf32, #tpu.memory_space<vmem>>, vector<16x16xf32>
    %cst_32 = arith.constant dense<0.000000e+00> : vector<24x16xf32>
    %113 = tpu.matmul %111, %112, %cst_32 {dimension_numbers = #tpu.dot_dimension_numbers<[1], [0], [0], [1], [0, 0, 1, 1], [], []>} : vector<24x16xf32>, vector<16x16xf32>, vector<24x16xf32> -> vector<24x16xf32>
    %c0_33 = arith.constant 0 : index
    %c0_34 = arith.constant 0 : index
    %114 = vector.load %arg5[%c0_33, %c0_34] : memref<1x16xf32, #tpu.memory_space<vmem>>, vector<1x16xf32>
    %115 = vector.broadcast %114 : vector<1x16xf32> to vector<24x16xf32>
    %116 = arith.addf %113, %115 : vector<24x16xf32>
    %117 = arith.addf %1, %116 : vector<24x16xf32>
    %c0_35 = arith.constant 0 : index
    %c0_36 = arith.constant 0 : index
    %118 = vector.load %arg10[%c0_35, %c0_36] : memref<1x16xf32, #tpu.memory_space<vmem>>, vector<1x16xf32>
    %c0_37 = arith.constant 0 : index
    %c0_38 = arith.constant 0 : index
    %119 = vector.load %arg11[%c0_37, %c0_38] : memref<1x16xf32, #tpu.memory_space<vmem>>, vector<1x16xf32>
    %cst_39 = arith.constant dense<0.000000e+00> : vector<24xf32>
    %120 = vector.multi_reduction <add>, %117, %cst_39 [1] : vector<24x16xf32> to vector<24xf32>
    %121 = vector.shape_cast %120 : vector<24xf32> to vector<24x1xf32>
    %cst_40 = arith.constant 1.600000e+01 : f32
    %122 = vector.broadcast %cst_40 : f32 to vector<24x1xf32>
    %123 = arith.divf %121, %122 : vector<24x1xf32>
    %124 = vector.broadcast %123 : vector<24x1xf32> to vector<24x16xf32>
    %125 = arith.subf %117, %124 : vector<24x16xf32>
    %126 = arith.mulf %125, %125 : vector<24x16xf32>
    %cst_41 = arith.constant dense<0.000000e+00> : vector<24xf32>
    %127 = vector.multi_reduction <add>, %126, %cst_41 [1] : vector<24x16xf32> to vector<24xf32>
    %128 = vector.shape_cast %127 : vector<24xf32> to vector<24x1xf32>
    %cst_42 = arith.constant 1.600000e+01 : f32
    %129 = vector.broadcast %cst_42 : f32 to vector<24x1xf32>
    %130 = arith.divf %128, %129 : vector<24x1xf32>
    %cst_43 = arith.constant 9.99999974E-6 : f32
    %131 = vector.broadcast %cst_43 : f32 to vector<24x1xf32>
    %132 = arith.addf %130, %131 : vector<24x1xf32>
    %133 = math.rsqrt %132 : vector<24x1xf32>
    %134 = vector.broadcast %133 : vector<24x1xf32> to vector<24x16xf32>
    %135 = arith.mulf %125, %134 : vector<24x16xf32>
    %136 = vector.broadcast %118 : vector<1x16xf32> to vector<24x16xf32>
    %137 = arith.mulf %135, %136 : vector<24x16xf32>
    %138 = vector.broadcast %119 : vector<1x16xf32> to vector<24x16xf32>
    %139 = arith.addf %137, %138 : vector<24x16xf32>
    %c0_44 = arith.constant 0 : index
    %c0_45 = arith.constant 0 : index
    %140 = vector.load %arg6[%c0_44, %c0_45] : memref<16x32xf32, #tpu.memory_space<vmem>>, vector<16x32xf32>
    %cst_46 = arith.constant dense<0.000000e+00> : vector<24x32xf32>
    %141 = tpu.matmul %139, %140, %cst_46 {dimension_numbers = #tpu.dot_dimension_numbers<[1], [0], [0], [1], [0, 0, 1, 1], [], []>} : vector<24x16xf32>, vector<16x32xf32>, vector<24x32xf32> -> vector<24x32xf32>
    %c0_47 = arith.constant 0 : index
    %c0_48 = arith.constant 0 : index
    %142 = vector.load %arg7[%c0_47, %c0_48] : memref<1x32xf32, #tpu.memory_space<vmem>>, vector<1x32xf32>
    %143 = vector.broadcast %142 : vector<1x32xf32> to vector<24x32xf32>
    %144 = arith.addf %141, %143 : vector<24x32xf32>
    %cst_49 = arith.constant 0.000000e+00 : f32
    %145 = vector.broadcast %cst_49 : f32 to vector<24x32xf32>
    %146 = arith.maximumf %144, %145 : vector<24x32xf32>
    %c0_50 = arith.constant 0 : index
    %c0_51 = arith.constant 0 : index
    %147 = vector.load %arg8[%c0_50, %c0_51] : memref<32x16xf32, #tpu.memory_space<vmem>>, vector<32x16xf32>
    %cst_52 = arith.constant dense<0.000000e+00> : vector<24x16xf32>
    %148 = tpu.matmul %146, %147, %cst_52 {dimension_numbers = #tpu.dot_dimension_numbers<[1], [0], [0], [1], [0, 0, 1, 1], [], []>} : vector<24x32xf32>, vector<32x16xf32>, vector<24x16xf32> -> vector<24x16xf32>
    %c0_53 = arith.constant 0 : index
    %c0_54 = arith.constant 0 : index
    %149 = vector.load %arg9[%c0_53, %c0_54] : memref<1x16xf32, #tpu.memory_space<vmem>>, vector<1x16xf32>
    %150 = vector.broadcast %149 : vector<1x16xf32> to vector<24x16xf32>
    %151 = arith.addf %148, %150 : vector<24x16xf32>
    %152 = arith.addf %139, %151 : vector<24x16xf32>
    %c0_55 = arith.constant 0 : index
    %c0_56 = arith.constant 0 : index
    %153 = vector.load %arg12[%c0_55, %c0_56] : memref<1x16xf32, #tpu.memory_space<vmem>>, vector<1x16xf32>
    %c0_57 = arith.constant 0 : index
    %c0_58 = arith.constant 0 : index
    %154 = vector.load %arg13[%c0_57, %c0_58] : memref<1x16xf32, #tpu.memory_space<vmem>>, vector<1x16xf32>
    %cst_59 = arith.constant dense<0.000000e+00> : vector<24xf32>
    %155 = vector.multi_reduction <add>, %152, %cst_59 [1] : vector<24x16xf32> to vector<24xf32>
    %156 = vector.shape_cast %155 : vector<24xf32> to vector<24x1xf32>
    %cst_60 = arith.constant 1.600000e+01 : f32
    %157 = vector.broadcast %cst_60 : f32 to vector<24x1xf32>
    %158 = arith.divf %156, %157 : vector<24x1xf32>
    %159 = vector.broadcast %158 : vector<24x1xf32> to vector<24x16xf32>
    %160 = arith.subf %152, %159 : vector<24x16xf32>
    %161 = arith.mulf %160, %160 : vector<24x16xf32>
    %cst_61 = arith.constant dense<0.000000e+00> : vector<24xf32>
    %162 = vector.multi_reduction <add>, %161, %cst_61 [1] : vector<24x16xf32> to vector<24xf32>
    %163 = vector.shape_cast %162 : vector<24xf32> to vector<24x1xf32>
    %cst_62 = arith.constant 1.600000e+01 : f32
    %164 = vector.broadcast %cst_62 : f32 to vector<24x1xf32>
    %165 = arith.divf %163, %164 : vector<24x1xf32>
    %cst_63 = arith.constant 9.99999974E-6 : f32
    %166 = vector.broadcast %cst_63 : f32 to vector<24x1xf32>
    %167 = arith.addf %165, %166 : vector<24x1xf32>
    %168 = math.rsqrt %167 : vector<24x1xf32>
    %169 = vector.broadcast %168 : vector<24x1xf32> to vector<24x16xf32>
    %170 = arith.mulf %160, %169 : vector<24x16xf32>
    %171 = vector.broadcast %153 : vector<1x16xf32> to vector<24x16xf32>
    %172 = arith.mulf %170, %171 : vector<24x16xf32>
    %173 = vector.broadcast %154 : vector<1x16xf32> to vector<24x16xf32>
    %174 = arith.addf %172, %173 : vector<24x16xf32>
    %c0_64 = arith.constant 0 : index
    %c0_65 = arith.constant 0 : index
    %175 = vector.load %arg14[%c0_64, %c0_65] : memref<1x16xf32, #tpu.memory_space<vmem>>, vector<1x16xf32>
    %c0_66 = arith.constant 0 : index
    %c0_67 = arith.constant 0 : index
    %176 = vector.load %arg15[%c0_66, %c0_67] : memref<1x16xf32, #tpu.memory_space<vmem>>, vector<1x16xf32>
    %cst_68 = arith.constant dense<0.000000e+00> : vector<24xf32>
    %177 = vector.multi_reduction <add>, %174, %cst_68 [1] : vector<24x16xf32> to vector<24xf32>
    %178 = vector.shape_cast %177 : vector<24xf32> to vector<24x1xf32>
    %cst_69 = arith.constant 1.600000e+01 : f32
    %179 = vector.broadcast %cst_69 : f32 to vector<24x1xf32>
    %180 = arith.divf %178, %179 : vector<24x1xf32>
    %181 = vector.broadcast %180 : vector<24x1xf32> to vector<24x16xf32>
    %182 = arith.subf %174, %181 : vector<24x16xf32>
    %183 = arith.mulf %182, %182 : vector<24x16xf32>
    %cst_70 = arith.constant dense<0.000000e+00> : vector<24xf32>
    %184 = vector.multi_reduction <add>, %183, %cst_70 [1] : vector<24x16xf32> to vector<24xf32>
    %185 = vector.shape_cast %184 : vector<24xf32> to vector<24x1xf32>
    %cst_71 = arith.constant 1.600000e+01 : f32
    %186 = vector.broadcast %cst_71 : f32 to vector<24x1xf32>
    %187 = arith.divf %185, %186 : vector<24x1xf32>
    %cst_72 = arith.constant 9.99999974E-6 : f32
    %188 = vector.broadcast %cst_72 : f32 to vector<24x1xf32>
    %189 = arith.addf %187, %188 : vector<24x1xf32>
    %190 = math.rsqrt %189 : vector<24x1xf32>
    %191 = vector.broadcast %190 : vector<24x1xf32> to vector<24x16xf32>
    %192 = arith.mulf %182, %191 : vector<24x16xf32>
    %193 = vector.broadcast %175 : vector<1x16xf32> to vector<24x16xf32>
    %194 = arith.mulf %192, %193 : vector<24x16xf32>
    %195 = vector.broadcast %176 : vector<1x16xf32> to vector<24x16xf32>
    %196 = arith.addf %194, %195 : vector<24x16xf32>
    %197 = vector.shape_cast %196 : vector<24x16xf32> to vector<3x8x16xf32>
    %c0_73 = arith.constant 0 : index
    %c0_74 = arith.constant 0 : index
    %c0_75 = arith.constant 0 : index
    %198 = vector.load %arg16[%c0_73, %c0_74, %c0_75] : memref<3x8x16xf32, #tpu.memory_space<vmem>>, vector<3x8x16xf32>
    tpu.vector_store %arg16[%c0_73, %c0_74, %c0_75], %197 {strides = array<i32>} : memref<3x8x16xf32, #tpu.memory_space<vmem>>, vector<3x8x16xf32>,
    return
  }
  func.func @transform_0(%arg0: i32) -> (i32, i32, i32) {
    %c0_i32 = arith.constant 0 : i32
    %c0_i32_0 = arith.constant 0 : i32
    %c0_i32_1 = arith.constant 0 : i32
    return %arg0, %c0_i32, %c0_i32_0 : i32, i32, i32
  }
  func.func @transform_1(%arg0: i32) -> (i32, i32) {
    %c0_i32 = arith.constant 0 : i32
    %c0_i32_0 = arith.constant 0 : i32
    %c0_i32_1 = arith.constant 0 : i32
    return %c0_i32, %c0_i32_0 : i32, i32
  }
  func.func @transform_2(%arg0: i32) -> (i32, i32) {
    %c0_i32 = arith.constant 0 : i32
    %c0_i32_0 = arith.constant 0 : i32
    %c0_i32_1 = arith.constant 0 : i32
    return %c0_i32, %c0_i32_0 : i32, i32
  }
  func.func @transform_3(%arg0: i32) -> (i32, i32) {
    %c0_i32 = arith.constant 0 : i32
    %c0_i32_0 = arith.constant 0 : i32
    %c0_i32_1 = arith.constant 0 : i32
    return %c0_i32, %c0_i32_0 : i32, i32
  }
  func.func @transform_4(%arg0: i32) -> (i32, i32) {
    %c0_i32 = arith.constant 0 : i32
    %c0_i32_0 = arith.constant 0 : i32
    %c0_i32_1 = arith.constant 0 : i32
    return %c0_i32, %c0_i32_0 : i32, i32
  }
  func.func @transform_5(%arg0: i32) -> (i32, i32) {
    %c0_i32 = arith.constant 0 : i32
    %c0_i32_0 = arith.constant 0 : i32
    %c0_i32_1 = arith.constant 0 : i32
    return %c0_i32, %c0_i32_0 : i32, i32
  }
  func.func @transform_6(%arg0: i32) -> (i32, i32) {
    %c0_i32 = arith.constant 0 : i32
    %c0_i32_0 = arith.constant 0 : i32
    %c0_i32_1 = arith.constant 0 : i32
    return %c0_i32, %c0_i32_0 : i32, i32
  }
  func.func @transform_7(%arg0: i32) -> (i32, i32) {
    %c0_i32 = arith.constant 0 : i32
    %c0_i32_0 = arith.constant 0 : i32
    %c0_i32_1 = arith.constant 0 : i32
    return %c0_i32, %c0_i32_0 : i32, i32
  }
  func.func @transform_8(%arg0: i32) -> (i32, i32) {
    %c0_i32 = arith.constant 0 : i32
    %c0_i32_0 = arith.constant 0 : i32
    %c0_i32_1 = arith.constant 0 : i32
    return %c0_i32, %c0_i32_0 : i32, i32
  }
  func.func @transform_9(%arg0: i32) -> (i32, i32) {
    %c0_i32 = arith.constant 0 : i32
    %c0_i32_0 = arith.constant 0 : i32
    %c0_i32_1 = arith.constant 0 : i32
    return %c0_i32, %c0_i32_0 : i32, i32
  }
  func.func @transform_10(%arg0: i32) -> (i32, i32) {
    %c0_i32 = arith.constant 0 : i32
    %c0_i32_0 = arith.constant 0 : i32
    %c0_i32_1 = arith.constant 0 : i32
    return %c0_i32, %c0_i32_0 : i32, i32
  }
  func.func @transform_11(%arg0: i32) -> (i32, i32) {
    %c0_i32 = arith.constant 0 : i32
    %c0_i32_0 = arith.constant 0 : i32
    %c0_i32_1 = arith.constant 0 : i32
    return %c0_i32, %c0_i32_0 : i32, i32
  }
  func.func @transform_12(%arg0: i32) -> (i32, i32) {
    %c0_i32 = arith.constant 0 : i32
    %c0_i32_0 = arith.constant 0 : i32
    %c0_i32_1 = arith.constant 0 : i32
    return %c0_i32, %c0_i32_0 : i32, i32
  }
  func.func @transform_13(%arg0: i32) -> (i32, i32) {
    %c0_i32 = arith.constant 0 : i32
    %c0_i32_0 = arith.constant 0 : i32
    %c0_i32_1 = arith.constant 0 : i32
    return %c0_i32, %c0_i32_0 : i32, i32
  }
  func.func @transform_14(%arg0: i32) -> (i32, i32) {
    %c0_i32 = arith.constant 0 : i32
    %c0_i32_0 = arith.constant 0 : i32
    %c0_i32_1 = arith.constant 0 : i32
    return %c0_i32, %c0_i32_0 : i32, i32
  }
  func.func @transform_15(%arg0: i32) -> (i32, i32, i32) {
    %c0_i32 = arith.constant 0 : i32
    %c0_i32_0 = arith.constant 0 : i32
    %c0_i32_1 = arith.constant 0 : i32
    return %arg0, %c0_i32, %c0_i32_0 : i32, i32, i32
  }
}

module attributes {stable_mosaic.version = 11 : i64} {
  func.func @_head_kernel(%arg0: i32, %arg1: memref<6x80xf32, #tpu.memory_space<vmem>>, %arg2: memref<80x8xf32, #tpu.memory_space<vmem>>, %arg3: memref<1x8xf32, #tpu.memory_space<vmem>>, %arg4: memref<6x1xf32, #tpu.memory_space<vmem>>, %arg5: memref<6x1xf32, #tpu.memory_space<vmem>>, %arg6: memref<6x8xf32, #tpu.memory_space<vmem>>) attributes {dimension_semantics = [#tpu.dimension_semantics<parallel>], iteration_bounds = array<i64: 1>, scalar_prefetch = 0 : i64, scratch_operands = 0 : i64, tpu.core_type = #tpu.core_type<tc>, window_params = [{transform_indices = @transform_0, window_bounds = array<i64: 6, 80>}, {pipeline_mode = #tpu.pipeline_mode<synchronous>, transform_indices = @transform_1, window_bounds = array<i64: 80, 8>}, {pipeline_mode = #tpu.pipeline_mode<synchronous>, transform_indices = @transform_2, window_bounds = array<i64: 1, 8>}, {transform_indices = @transform_3, window_bounds = array<i64: 6, 1>}, {transform_indices = @transform_4, window_bounds = array<i64: 6, 1>}, {transform_indices = @transform_5, window_bounds = array<i64: 6, 8>}]} {
    %c0 = arith.constant 0 : index
    %c0_0 = arith.constant 0 : index
    %0 = vector.load %arg1[%c0, %c0_0] : memref<6x80xf32, #tpu.memory_space<vmem>>, vector<6x80xf32>
    %c0_1 = arith.constant 0 : index
    %c0_2 = arith.constant 0 : index
    %1 = vector.load %arg2[%c0_1, %c0_2] : memref<80x8xf32, #tpu.memory_space<vmem>>, vector<80x8xf32>
    %cst = arith.constant dense<0.000000e+00> : vector<6x8xf32>
    %2 = tpu.matmul %0, %1, %cst {dimension_numbers = #tpu.dot_dimension_numbers<[1], [0], [0], [1], [0, 0, 1, 1], [], []>} : vector<6x80xf32>, vector<80x8xf32>, vector<6x8xf32> -> vector<6x8xf32>
    %c0_3 = arith.constant 0 : index
    %c0_4 = arith.constant 0 : index
    %3 = vector.load %arg3[%c0_3, %c0_4] : memref<1x8xf32, #tpu.memory_space<vmem>>, vector<1x8xf32>
    %4 = vector.broadcast %3 : vector<1x8xf32> to vector<6x8xf32>
    %5 = arith.addf %2, %4 : vector<6x8xf32>
    %c0_5 = arith.constant 0 : index
    %c0_6 = arith.constant 0 : index
    %6 = vector.load %arg5[%c0_5, %c0_6] : memref<6x1xf32, #tpu.memory_space<vmem>>, vector<6x1xf32>
    %7 = vector.broadcast %6 : vector<6x1xf32> to vector<6x8xf32>
    %8 = arith.mulf %5, %7 : vector<6x8xf32>
    %c0_7 = arith.constant 0 : index
    %c0_8 = arith.constant 0 : index
    %9 = vector.load %arg4[%c0_7, %c0_8] : memref<6x1xf32, #tpu.memory_space<vmem>>, vector<6x1xf32>
    %10 = vector.broadcast %9 : vector<6x1xf32> to vector<6x8xf32>
    %11 = arith.addf %8, %10 : vector<6x8xf32>
    %c0_9 = arith.constant 0 : index
    %c0_10 = arith.constant 0 : index
    %12 = vector.load %arg6[%c0_9, %c0_10] : memref<6x8xf32, #tpu.memory_space<vmem>>, vector<6x8xf32>
    tpu.vector_store %arg6[%c0_9, %c0_10], %11 {strides = array<i32>} : memref<6x8xf32, #tpu.memory_space<vmem>>, vector<6x8xf32>,
    return
  }
  func.func @transform_0(%arg0: i32) -> (i32, i32) {
    %c0_i32 = arith.constant 0 : i32
    %c0_i32_0 = arith.constant 0 : i32
    return %arg0, %c0_i32 : i32, i32
  }
  func.func @transform_1(%arg0: i32) -> (i32, i32) {
    %c0_i32 = arith.constant 0 : i32
    %c0_i32_0 = arith.constant 0 : i32
    %c0_i32_1 = arith.constant 0 : i32
    return %c0_i32, %c0_i32_0 : i32, i32
  }
  func.func @transform_2(%arg0: i32) -> (i32, i32) {
    %c0_i32 = arith.constant 0 : i32
    %c0_i32_0 = arith.constant 0 : i32
    %c0_i32_1 = arith.constant 0 : i32
    return %c0_i32, %c0_i32_0 : i32, i32
  }
  func.func @transform_3(%arg0: i32) -> (i32, i32) {
    %c0_i32 = arith.constant 0 : i32
    %c0_i32_0 = arith.constant 0 : i32
    return %arg0, %c0_i32 : i32, i32
  }
  func.func @transform_4(%arg0: i32) -> (i32, i32) {
    %c0_i32 = arith.constant 0 : i32
    %c0_i32_0 = arith.constant 0 : i32
    return %arg0, %c0_i32 : i32, i32
  }
  func.func @transform_5(%arg0: i32) -> (i32, i32) {
    %c0_i32 = arith.constant 0 : i32
    %c0_i32_0 = arith.constant 0 : i32
    return %arg0, %c0_i32 : i32, i32
  }
}

</mosaic_0001>

<llo_original>
// kernel: model_forward.5
$region0: #{model_forward.5}
  #allocation0 [shape = 'u32[]', space=smem, size = 0x4, offset = 0x4, fixed_abs, tag = 'smem constant byte address 0x4 - core index']
  #allocation1 [shape = 'u32[144,128]{1,0:T(1,128)}', space=vmem, size = 0x12000, scoped, tag = 'internal scratch']
  %s0 = inlined_call_operand.vmem [shape: f32[6,1,16], index: 0, kind: input, shape index: {}]
  %s1 = inlined_call_operand.vmem [shape: f32[6,1,16], index: 1, kind: output, shape index: {0}]
  %s2 = inlined_call_operand.vmem [shape: f32[6,1,1], index: 2, kind: output, shape index: {1}]
  %s3 = inlined_call_operand.vmem [shape: f32[6,1,1], index: 3, kind: output, shape index: {2}]
  %4 = xla_tuple %s1, %s2, %s3
  %s5 = sld [smem:[#allocation0]]
  $region53: #{model_forward.5} parent=0
    _
  %s7 = ssub.s32 1, %s5
  %s8 = scalar_select 0, %s7, %s5
  loop: start=0, step=1, limit=4
  $region2: #{model_forward.5} parent=0 // loop_pre_header
    _
  $region3: #{model_forward.5} parent=0 // loop_header
    %s10 = sphi 0, %s14
    %p11 = scmp.ge.s32.totalorder %s10, 4
    %s20 = sphi 0, %s22
    %s23 = sphi 0, %s20
    %s24 = sphi 0, %s23
    %s40 = sphi 0, %s24
    %s46 = sphi 0, %s48
    %s49 = sphi 0, %s46
    %s50 = sphi 0, %s49
    %s66 = sphi 0, %s50
    %s72 = sphi 0, %s74
    %s75 = sphi 0, %s72
    %s76 = sphi 0, %s75
    %s92 = sphi 0, %s76
    %s98 = sphi 0, %s100
    %s101 = sphi 0, %s98
    %s102 = sphi 0, %s101
    %s118 = sphi 0, %s102
  $region4: #{model_forward.5} parent=0 // loop_header_branch
    %13 = sbr.rel (%p11) target = $region8
  $region5: #{model_forward.5} parent=0 // loop_body
    %s15 = ssub.s32 %s10, 1
    %s16 = ssub.s32 %s10, 2
    %s17 = sadd.s32 %s10, 1
    %s18 = ssub.s32 %s10, %s17
    %p19 = scmp.eq.s32.totalorder %s18, 0
    %s21 = sadd.s32 %s20, 1
    %s22 = scalar_select %p19, %s20, %s21
    %p25 = pneg %p19
    %p26 = scmp.eq.s32.totalorder %s10, 1
    %p27 = por %p25, %p26
    %p28 = scmp.ne.s32.totalorder %s20, %s23
    %p29 = scmp.eq.s32.totalorder %s10, 0
    %p30 = por %p28, %p29
    %p31 = scmp.ne.s32.totalorder %s20, %s23
    %p32 = scmp.eq.s32.totalorder %s15, 1
    %p33 = por %p31, %p32
    %p34 = scmp.ne.s32.totalorder %s23, %s24
    %p35 = scmp.eq.s32.totalorder %s15, 0
    %p36 = por %p34, %p35
    %p37 = scmp.ne.s32.totalorder %s23, %s24
    %p38 = scmp.eq.s32.totalorder %s16, 1
    %p39 = por %p37, %p38
    %p41 = scmp.ne.s32.totalorder %s24, %s40
    %p42 = scmp.eq.s32.totalorder %s16, 0
    %p43 = por %p41, %p42
    %s44 = ssub.s32 %s10, %s17
    %p45 = scmp.eq.s32.totalorder %s44, 0
    %s47 = sadd.s32 %s46, 1
    %s48 = scalar_select %p45, %s46, %s47
    %p51 = pneg %p45
    %p52 = scmp.eq.s32.totalorder %s10, 1
    %p53 = por %p51, %p52
    %p54 = scmp.ne.s32.totalorder %s46, %s49
    %p55 = scmp.eq.s32.totalorder %s10, 0
    %p56 = por %p54, %p55
    %p57 = scmp.ne.s32.totalorder %s46, %s49
    %p58 = scmp.eq.s32.totalorder %s15, 1
    %p59 = por %p57, %p58
    %p60 = scmp.ne.s32.totalorder %s49, %s50
    %p61 = scmp.eq.s32.totalorder %s15, 0
    %p62 = por %p60, %p61
    %p63 = scmp.ne.s32.totalorder %s49, %s50
    %p64 = scmp.eq.s32.totalorder %s16, 1
    %p65 = por %p63, %p64
    %p67 = scmp.ne.s32.totalorder %s50, %s66
    %p68 = scmp.eq.s32.totalorder %s16, 0
    %p69 = por %p67, %p68
    %s70 = ssub.s32 %s10, %s17
    %p71 = scmp.eq.s32.totalorder %s70, 0
    %s73 = sadd.s32 %s72, 1
    %s74 = scalar_select %p71, %s72, %s73
    %p77 = pneg %p71
    %p78 = scmp.eq.s32.totalorder %s10, 1
    %p79 = por %p77, %p78
    %p80 = scmp.ne.s32.totalorder %s72, %s75
    %p81 = scmp.eq.s32.totalorder %s10, 0
    %p82 = por %p80, %p81
    %p83 = scmp.ne.s32.totalorder %s72, %s75
    %p84 = scmp.eq.s32.totalorder %s15, 1
    %p85 = por %p83, %p84
    %p86 = scmp.ne.s32.totalorder %s75, %s76
    %p87 = scmp.eq.s32.totalorder %s15, 0
    %p88 = por %p86, %p87
    %p89 = scmp.ne.s32.totalorder %s75, %s76
    %p90 = scmp.eq.s32.totalorder %s16, 1
    %p91 = por %p89, %p90
    %p93 = scmp.ne.s32.totalorder %s76, %s92
    %p94 = scmp.eq.s32.totalorder %s16, 0
    %p95 = por %p93, %p94
    %s96 = ssub.s32 %s10, %s17
    %p97 = scmp.eq.s32.totalorder %s96, 0
    %s99 = sadd.s32 %s98, 1
    %s100 = scalar_select %p97, %s98, %s99
    %p103 = pneg %p97
    %p104 = scmp.eq.s32.totalorder %s10, 1
    %p105 = por %p103, %p104
    %p106 = scmp.ne.s32.totalorder %s98, %s101
    %p107 = scmp.eq.s32.totalorder %s10, 0
    %p108 = por %p106, %p107
    %p109 = scmp.ne.s32.totalorder %s98, %s101
    %p110 = scmp.eq.s32.totalorder %s15, 1
    %p111 = por %p109, %p110
    %p112 = scmp.ne.s32.totalorder %s101, %s102
    %p113 = scmp.eq.s32.totalorder %s15, 0
    %p114 = por %p112, %p113
    %p115 = scmp.ne.s32.totalorder %s101, %s102
    %p116 = scmp.eq.s32.totalorder %s16, 1
    %p117 = por %p115, %p116
    %p119 = scmp.ne.s32.totalorder %s102, %s118
    %p120 = scmp.eq.s32.totalorder %s16, 0
    %p121 = por %p119, %p120
    %p122 = scmp.le.s32.totalorder 1, %s10
    %p123 = scmp.lt.s32.totalorder %s10, 3
    %p124 = pnand %p122, %p123
    %p125 = pneg %p124
    // Predicated region
    $region9: #{model_forward.5} parent=5 // pred_check
      _
    $region10: #{model_forward.5} parent=5 // pred_check_branch
      %127 = sbr.rel (%p124) target = $region12
    $region11: #{model_forward.5} parent=5 // pred_region
      %s128 = ssub.s32 %s10, 1
    $region12: #{model_forward.5} parent=5 // pred_fallthru
      _
    %p129 = scmp.lt.s32.totalorder %s10, 2
    // Predicated region
    $region13: #{model_forward.5} parent=5 // pred_check
      %p130 = pneg %p129
    $region14: #{model_forward.5} parent=5 // pred_check_branch
      %132 = sbr.rel (%p130) target = $region16
    $region15: #{model_forward.5} parent=5 // pred_region
      // Predicated region
      $region17: #{model_forward.5} parent=15 // pred_check
        %p133 = pneg %p30
      $region18: #{model_forward.5} parent=15 // pred_check_branch
        %135 = sbr.rel (%p133) target = $region20
      $region19: #{model_forward.5} parent=15 // pred_region
        %s136 = smul.u32 3, %s10
        %p137 = scmp.lt.s32.totalorder %s136, 5
        %s138 = scalar_select %p137, %s136, 5
        %s139 = scalar_lea.vmem %s0, %s138
        %s140 = smul.u32 3, %s10
      $region20: #{model_forward.5} parent=15 // pred_fallthru
        _
    $region16: #{model_forward.5} parent=5 // pred_fallthru
      _
    %p141 = scmp.le.s32.totalorder 1, %s10
    %p142 = scmp.lt.s32.totalorder %s10, 3
    %p143 = pnand %p141, %p142
    %p144 = pneg %p143
    // Predicated region
    $region21: #{model_forward.5} parent=5 // pred_check
      _
    $region22: #{model_forward.5} parent=5 // pred_check_branch
      %146 = sbr.rel (%p143) target = $region24
    $region23: #{model_forward.5} parent=5 // pred_region
      %s147 = ssub.s32 %s10, 1
      %s148 = smul.u32 3, %s15
      %p149 = scmp.lt.s32.totalorder %s148, 5
      %s150 = scalar_select %p149, %s148, 5
      %s151 = scalar_lea.vmem %s0, %s150
      %p152 = pneg %p36
      %p153 = pneg %p33
      %p154 = pneg %p62
      %p155 = pneg %p59
      %s156 = smul.u32 3, %s15
      %p157 = scmp.lt.s32.totalorder %s156, 5
      %s158 = scalar_select %p157, %s156, 5
      %s159 = scalar_lea.vmem %s1, %s158
      %p160 = pneg %p88
      %p161 = pneg %p85
      %s162 = smul.u32 3, %s15
      %p163 = scmp.lt.s32.totalorder %s162, 5
      %s164 = scalar_select %p163, %s162, 5
      %s165 = scalar_lea.vmem %s2, %s164
      %p166 = pneg %p114
      %p167 = pneg %p111
      %s168 = smul.u32 3, %s15
      %p169 = scmp.lt.s32.totalorder %s168, 5
      %s170 = scalar_select %p169, %s168, 5
      %s171 = scalar_lea.vmem %s3, %s170
      %s172 = smul.u32 3, %s15
      %p173 = scmp.lt.s32.totalorder %s172, 5
      %s174 = scalar_select %p173, %s172, 5
      %s175 = scalar_lea.vmem %s0, %s174
      %s176 = smul.u32 3, %s15
      %s177 = smul.u32 3, %s15
      %p178 = scmp.lt.s32.totalorder %s177, 5
      %s179 = scalar_select %p178, %s177, 5
      %s180 = scalar_lea.vmem %s1, %s179
      %s181 = smul.u32 3, %s15
      %s182 = smul.u32 3, %s15
      %p183 = scmp.lt.s32.totalorder %s182, 5
      %s184 = scalar_select %p183, %s182, 5
      %s185 = scalar_lea.vmem %s2, %s184
      %s186 = smul.u32 3, %s15
      %s187 = smul.u32 3, %s15
      %p188 = scmp.lt.s32.totalorder %s187, 5
      %s189 = scalar_select %p188, %s187, 5
      %s190 = scalar_lea.vmem %s3, %s189
      %s191 = smul.u32 3, %s15
      %v192 = vld [vmem:[%s175] sm:$0x1]
      %v193 = vld [vmem:[%s175 + $0x1] sm:$0x1]
      %v194 = vld [vmem:[%s175 + $0x2] sm:$0x1]
      %vm195 = vcmask 122880
      %v196 = vsel %vm195, %v192, 0.0
      %197 = vadd.xlane.f32.xlu0 %v196
      %v198 = vpop.xlane.xlu0 %197
      %v199 = vsel %vm195, %v193, 0.0
      %200 = vadd.xlane.f32.xlu0 %v199
      %v201 = vpop.xlane.xlu0 %200
      %v202 = vsel %vm195, %v194, 0.0
      %203 = vadd.xlane.f32.xlu0 %v202
      %v204 = vpop.xlane.xlu0 %203
      %v205 = vrcp.pop 16.0
      %v206 = vmul.f32 %v198, %v205
      %v207 = vmul.f32 %v201, %v205
      %v208 = vmul.f32 %v204, %v205
      %v209 = vsub.f32 %v192, %v206
      %v210 = vsub.f32 %v193, %v207
      %v211 = vsub.f32 %v194, %v208
      %v212 = vmul.f32 %v209, %v209
      %v213 = vmul.f32 %v210, %v210
      %v214 = vmul.f32 %v211, %v211
      %v215 = vsel %vm195, %v212, 0.0
      %216 = vadd.xlane.f32.xlu0 %v215
      %v217 = vpop.xlane.xlu0 %216
      %v218 = vsel %vm195, %v213, 0.0
      %219 = vadd.xlane.f32.xlu0 %v218
      %v220 = vpop.xlane.xlu0 %219
      %v221 = vsel %vm195, %v214, 0.0
      %222 = vadd.xlane.f32.xlu0 %v221
      %v223 = vpop.xlane.xlu0 %222
      %v224 = vmul.f32 %v217, %v205
      %v225 = vmul.f32 %v220, %v205
      %v226 = vmul.f32 %v223, %v205
      %v227 = vadd.f32 %v224, 1e-05
      %v228 = vadd.f32 %v225, 1e-05
      %v229 = vadd.f32 %v226, 1e-05
      %v230 = vrsqrt.pop %v227
      %v231 = vmul.f32 %v227, %v230
      %vm232 = vcmp.eq.f32.partialorder %v227, inf
      %v233 = vsel %vm232, %v227, %v231
      %vm234 = vcmp.eq.f32.partialorder %v227, 0.0
      %v235 = vand.u32 %v227, 2147483648
      %v236 = vsel %vm234, %v235, %v233
      %v237 = vrsqrt.pop %v228
      %v238 = vmul.f32 %v228, %v237
      %vm239 = vcmp.eq.f32.partialorder %v228, inf
      %v240 = vsel %vm239, %v228, %v238
      %vm241 = vcmp.eq.f32.partialorder %v228, 0.0
      %v242 = vand.u32 %v228, 2147483648
      %v243 = vsel %vm241, %v242, %v240
      %v244 = vrsqrt.pop %v229
      %v245 = vmul.f32 %v229, %v244
      %vm246 = vcmp.eq.f32.partialorder %v229, inf
      %v247 = vsel %vm246, %v229, %v245
      %vm248 = vcmp.eq.f32.partialorder %v229, 0.0
      %v249 = vand.u32 %v229, 2147483648
      %v250 = vsel %vm248, %v249, %v247
      %v251 = vrcp.pop %v236
      %v252 = vmul.f32 %v209, %v251
      %v253 = vrcp.pop %v243
      %v254 = vmul.f32 %v210, %v253
      %v255 = vrcp.pop %v250
      %v256 = vmul.f32 %v211, %v255
      %257 = vst.msk [vmem:[%s180] sm:$0x1] %vm195, %v252
      %258 = vst.msk [vmem:[%s180 + $0x1] sm:$0x1] %vm195, %v254
      %259 = vst.msk [vmem:[%s180 + $0x2] sm:$0x1] %vm195, %v256
      %vm260 = vcmask 0
      %261 = vst.msk [vmem:[%s185] sm:$0x1] %vm260, %v206
      %262 = vst.msk [vmem:[%s185 + $0x1] sm:$0x1] %vm260, %v207
      %263 = vst.msk [vmem:[%s185 + $0x2] sm:$0x1] %vm260, %v208
      %264 = vst.msk [vmem:[%s190] sm:$0x1] %vm260, %v236
      %265 = vst.msk [vmem:[%s190 + $0x1] sm:$0x1] %vm260, %v243
      %266 = vst.msk [vmem:[%s190 + $0x2] sm:$0x1] %vm260, %v250
      %s267 = smul.u32 3, %s15
      %p268 = scmp.lt.s32.totalorder %s267, 5
      %s269 = scalar_select %p268, %s267, 5
      %s270 = scalar_lea.vmem %s1, %s269
      %s271 = smul.u32 3, %s15
      %p272 = scmp.lt.s32.totalorder %s271, 5
      %s273 = scalar_select %p272, %s271, 5
      %s274 = scalar_lea.vmem %s2, %s273
      %s275 = smul.u32 3, %s15
      %p276 = scmp.lt.s32.totalorder %s275, 5
      %s277 = scalar_select %p276, %s275, 5
      %s278 = scalar_lea.vmem %s3, %s277
      // Predicated region
      $region25: #{model_forward.5} parent=23 // pred_check
        %p279 = pneg %p59
      $region26: #{model_forward.5} parent=23 // pred_check_branch
        %281 = sbr.rel (%p279) target = $region28
      $region27: #{model_forward.5} parent=23 // pred_region
        %s282 = smul.u32 3, %s15
      $region28: #{model_forward.5} parent=23 // pred_fallthru
        _
      // Predicated region
      $region29: #{model_forward.5} parent=23 // pred_check
        %p283 = pneg %p85
      $region30: #{model_forward.5} parent=23 // pred_check_branch
        %285 = sbr.rel (%p283) target = $region32
      $region31: #{model_forward.5} parent=23 // pred_region
        %s286 = smul.u32 3, %s15
      $region32: #{model_forward.5} parent=23 // pred_fallthru
        _
      // Predicated region
      $region33: #{model_forward.5} parent=23 // pred_check
        %p287 = pneg %p111
      $region34: #{model_forward.5} parent=23 // pred_check_branch
        %289 = sbr.rel (%p287) target = $region36
      $region35: #{model_forward.5} parent=23 // pred_region
        %s290 = smul.u32 3, %s15
      $region36: #{model_forward.5} parent=23 // pred_fallthru
        _
    $region24: #{model_forward.5} parent=5 // pred_fallthru
      _
    %p291 = scmp.le.s32.totalorder 2, %s10
    // Predicated region
    $region37: #{model_forward.5} parent=5 // pred_check
      %p292 = pneg %p291
    $region38: #{model_forward.5} parent=5 // pred_check_branch
      %294 = sbr.rel (%p292) target = $region40
    $region39: #{model_forward.5} parent=5 // pred_region
      %s295 = ssub.s32 %s10, 2
      // Predicated region
      $region41: #{model_forward.5} parent=39 // pred_check
        %p296 = pneg %p65
      $region42: #{model_forward.5} parent=39 // pred_check_branch
        %298 = sbr.rel (%p296) target = $region44
      $region43: #{model_forward.5} parent=39 // pred_region
        %s299 = smul.u32 3, %s16
        %p300 = scmp.lt.s32.totalorder %s299, 5
        %s301 = scalar_select %p300, %s299, 5
        %s302 = scalar_lea.vmem %s1, %s301
      $region44: #{model_forward.5} parent=39 // pred_fallthru
        _
      // Predicated region
      $region45: #{model_forward.5} parent=39 // pred_check
        %p303 = pneg %p91
      $region46: #{model_forward.5} parent=39 // pred_check_branch
        %305 = sbr.rel (%p303) target = $region48
      $region47: #{model_forward.5} parent=39 // pred_region
        %s306 = smul.u32 3, %s16
        %p307 = scmp.lt.s32.totalorder %s306, 5
        %s308 = scalar_select %p307, %s306, 5
        %s309 = scalar_lea.vmem %s2, %s308
      $region48: #{model_forward.5} parent=39 // pred_fallthru
        _
      // Predicated region
      $region49: #{model_forward.5} parent=39 // pred_check
        %p310 = pneg %p117
      $region50: #{model_forward.5} parent=39 // pred_check_branch
        %312 = sbr.rel (%p310) target = $region52
      $region51: #{model_forward.5} parent=39 // pred_region
        %s313 = smul.u32 3, %s16
        %p314 = scmp.lt.s32.totalorder %s313, 5
        %s315 = scalar_select %p314, %s313, 5
        %s316 = scalar_lea.vmem %s3, %s315
      $region52: #{model_forward.5} parent=39 // pred_fallthru
        _
    $region40: #{model_forward.5} parent=5 // pred_fallthru
      _
  $region6: #{model_forward.5} parent=0 // loop_footer
    %s14 = sadd.s32 1, %s10
  $region7: #{model_forward.5} parent=0 // loop_footer_branch
    %9 = sbr.rel target = $region3
  $region8: #{model_forward.5} parent=0 // loop_exit
    _

// kernel: model_forward.6
$region0: #{model_forward.6}
  #allocation0 [shape = 'u32[]', space=smem, size = 0x4, offset = 0x4, fixed_abs, tag = 'smem constant byte address 0x4 - core index']
  #allocation1 [shape = 'u32[144,128]{1,0:T(1,128)}', space=vmem, size = 0x12000, scoped, tag = 'internal scratch']
  %s0 = inlined_call_operand.vmem [shape: f32[6,8,4], index: 0, kind: input, shape index: {}]
  %s1 = inlined_call_operand.vmem [shape: f32[4,16], index: 1, kind: input, shape index: {}]
  %s2 = inlined_call_operand.vmem [shape: f32[8,16], index: 2, kind: input, shape index: {}]
  %s3 = inlined_call_operand.vmem [shape: f32[6,8,16], index: 3, kind: output, shape index: {}]
  %s4 = sld [smem:[#allocation0]]
  $region45: #{model_forward.6} parent=0
    _
  %s6 = ssub.s32 1, %s4
  %s7 = scalar_select 0, %s6, %s4
  loop: start=0, step=1, limit=4
  $region2: #{model_forward.6} parent=0 // loop_pre_header
    _
  $region3: #{model_forward.6} parent=0 // loop_header
    %s9 = sphi 0, %s13
    %p10 = scmp.ge.s32.totalorder %s9, 4
    %s19 = sphi 0, %s21
    %s22 = sphi 0, %s19
    %s23 = sphi 0, %s22
    %s39 = sphi 0, %s23
    %s43 = sphi 0, %s43
    %s45 = sphi 0, %s43
    %s46 = sphi 0, %s45
    %s60 = sphi 0, %s46
    %s64 = sphi 0, %s64
    %s66 = sphi 0, %s64
    %s67 = sphi 0, %s66
    %s81 = sphi 0, %s67
    %s87 = sphi 0, %s89
    %s90 = sphi 0, %s87
    %s91 = sphi 0, %s90
    %s107 = sphi 0, %s91
  $region4: #{model_forward.6} parent=0 // loop_header_branch
    %12 = sbr.rel (%p10) target = $region8
  $region5: #{model_forward.6} parent=0 // loop_body
    %s14 = ssub.s32 %s9, 1
    %s15 = ssub.s32 %s9, 2
    %s16 = sadd.s32 %s9, 1
    %s17 = ssub.s32 %s9, %s16
    %p18 = scmp.eq.s32.totalorder %s17, 0
    %s20 = sadd.s32 %s19, 1
    %s21 = scalar_select %p18, %s19, %s20
    %p24 = pneg %p18
    %p25 = scmp.eq.s32.totalorder %s9, 1
    %p26 = por %p24, %p25
    %p27 = scmp.ne.s32.totalorder %s19, %s22
    %p28 = scmp.eq.s32.totalorder %s9, 0
    %p29 = por %p27, %p28
    %p30 = scmp.ne.s32.totalorder %s19, %s22
    %p31 = scmp.eq.s32.totalorder %s14, 1
    %p32 = por %p30, %p31
    %p33 = scmp.ne.s32.totalorder %s22, %s23
    %p34 = scmp.eq.s32.totalorder %s14, 0
    %p35 = por %p33, %p34
    %p36 = scmp.ne.s32.totalorder %s22, %s23
    %p37 = scmp.eq.s32.totalorder %s15, 1
    %p38 = por %p36, %p37
    %p40 = scmp.ne.s32.totalorder %s23, %s39
    %p41 = scmp.eq.s32.totalorder %s15, 0
    %p42 = por %p40, %p41
    %s44 = sadd.s32 %s43, 1
    %p47 = scmp.eq.s32.totalorder %s9, 1
    %p48 = scmp.ne.s32.totalorder %s43, %s45
    %p49 = scmp.eq.s32.totalorder %s9, 0
    %p50 = por %p48, %p49
    %p51 = scmp.ne.s32.totalorder %s43, %s45
    %p52 = scmp.eq.s32.totalorder %s14, 1
    %p53 = por %p51, %p52
    %p54 = scmp.ne.s32.totalorder %s45, %s46
    %p55 = scmp.eq.s32.totalorder %s14, 0
    %p56 = por %p54, %p55
    %p57 = scmp.ne.s32.totalorder %s45, %s46
    %p58 = scmp.eq.s32.totalorder %s15, 1
    %p59 = por %p57, %p58
    %p61 = scmp.ne.s32.totalorder %s46, %s60
    %p62 = scmp.eq.s32.totalorder %s15, 0
    %p63 = por %p61, %p62
    %s65 = sadd.s32 %s64, 1
    %p68 = scmp.eq.s32.totalorder %s9, 1
    %p69 = scmp.ne.s32.totalorder %s64, %s66
    %p70 = scmp.eq.s32.totalorder %s9, 0
    %p71 = por %p69, %p70
    %p72 = scmp.ne.s32.totalorder %s64, %s66
    %p73 = scmp.eq.s32.totalorder %s14, 1
    %p74 = por %p72, %p73
    %p75 = scmp.ne.s32.totalorder %s66, %s67
    %p76 = scmp.eq.s32.totalorder %s14, 0
    %p77 = por %p75, %p76
    %p78 = scmp.ne.s32.totalorder %s66, %s67
    %p79 = scmp.eq.s32.totalorder %s15, 1
    %p80 = por %p78, %p79
    %p82 = scmp.ne.s32.totalorder %s67, %s81
    %p83 = scmp.eq.s32.totalorder %s15, 0
    %p84 = por %p82, %p83
    %s85 = ssub.s32 %s9, %s16
    %p86 = scmp.eq.s32.totalorder %s85, 0
    %s88 = sadd.s32 %s87, 1
    %s89 = scalar_select %p86, %s87, %s88
    %p92 = pneg %p86
    %p93 = scmp.eq.s32.totalorder %s9, 1
    %p94 = por %p92, %p93
    %p95 = scmp.ne.s32.totalorder %s87, %s90
    %p96 = scmp.eq.s32.totalorder %s9, 0
    %p97 = por %p95, %p96
    %p98 = scmp.ne.s32.totalorder %s87, %s90
    %p99 = scmp.eq.s32.totalorder %s14, 1
    %p100 = por %p98, %p99
    %p101 = scmp.ne.s32.totalorder %s90, %s91
    %p102 = scmp.eq.s32.totalorder %s14, 0
    %p103 = por %p101, %p102
    %p104 = scmp.ne.s32.totalorder %s90, %s91
    %p105 = scmp.eq.s32.totalorder %s15, 1
    %p106 = por %p104, %p105
    %p108 = scmp.ne.s32.totalorder %s91, %s107
    %p109 = scmp.eq.s32.totalorder %s15, 0
    %p110 = por %p108, %p109
    %p111 = scmp.le.s32.totalorder 1, %s9
    %p112 = scmp.lt.s32.totalorder %s9, 3
    %p113 = pnand %p111, %p112
    %p114 = pneg %p113
    // Predicated region
    $region9: #{model_forward.6} parent=5 // pred_check
      _
    $region10: #{model_forward.6} parent=5 // pred_check_branch
      %116 = sbr.rel (%p113) target = $region12
    $region11: #{model_forward.6} parent=5 // pred_region
      %s117 = ssub.s32 %s9, 1
      // Predicated region
      $region13: #{model_forward.6} parent=11 // pred_check
        %p118 = pneg %p56
      $region14: #{model_forward.6} parent=11 // pred_check_branch
        %120 = sbr.rel (%p118) target = $region16
      $region15: #{model_forward.6} parent=11 // pred_region
        _
      $region16: #{model_forward.6} parent=11 // pred_fallthru
        _
      // Predicated region
      $region17: #{model_forward.6} parent=11 // pred_check
        %p121 = pneg %p77
      $region18: #{model_forward.6} parent=11 // pred_check_branch
        %123 = sbr.rel (%p121) target = $region20
      $region19: #{model_forward.6} parent=11 // pred_region
        _
      $region20: #{model_forward.6} parent=11 // pred_fallthru
        _
    $region12: #{model_forward.6} parent=5 // pred_fallthru
      _
    %p124 = scmp.lt.s32.totalorder %s9, 2
    // Predicated region
    $region21: #{model_forward.6} parent=5 // pred_check
      %p125 = pneg %p124
    $region22: #{model_forward.6} parent=5 // pred_check_branch
      %127 = sbr.rel (%p125) target = $region24
    $region23: #{model_forward.6} parent=5 // pred_region
      // Predicated region
      $region25: #{model_forward.6} parent=23 // pred_check
        %p128 = pneg %p29
      $region26: #{model_forward.6} parent=23 // pred_check_branch
        %130 = sbr.rel (%p128) target = $region28
      $region27: #{model_forward.6} parent=23 // pred_region
        %s131 = smul.u32 3, %s9
        %p132 = scmp.lt.s32.totalorder %s131, 5
        %s133 = scalar_select %p132, %s131, 5
        %s134 = smul.addr %s133, 8
        %s135 = scalar_lea.vmem %s0, %s134
        %s136 = smul.u32 3, %s9
      $region28: #{model_forward.6} parent=23 // pred_fallthru
        _
    $region24: #{model_forward.6} parent=5 // pred_fallthru
      _
    %p137 = scmp.le.s32.totalorder 1, %s9
    %p138 = scmp.lt.s32.totalorder %s9, 3
    %p139 = pnand %p137, %p138
    %p140 = pneg %p139
    // Predicated region
    $region29: #{model_forward.6} parent=5 // pred_check
      _
    $region30: #{model_forward.6} parent=5 // pred_check_branch
      %142 = sbr.rel (%p139) target = $region32
    $region31: #{model_forward.6} parent=5 // pred_region
      %s143 = ssub.s32 %s9, 1
      %s144 = smul.u32 3, %s14
      %p145 = scmp.lt.s32.totalorder %s144, 5
      %s146 = scalar_select %p145, %s144, 5
      %s147 = smul.addr %s146, 8
      %s148 = scalar_lea.vmem %s0, %s147
      %p149 = pneg %p35
      %p150 = pneg %p32
      %p151 = pneg %p56
      %p152 = pneg %p53
      %p153 = pneg %p77
      %p154 = pneg %p74
      %p155 = pneg %p103
      %p156 = pneg %p100
      %s157 = smul.u32 3, %s14
      %p158 = scmp.lt.s32.totalorder %s157, 5
      %s159 = scalar_select %p158, %s157, 5
      %s160 = smul.addr %s159, 8
      %s161 = scalar_lea.vmem %s3, %s160
      %s162 = smul.u32 3, %s14
      %p163 = scmp.lt.s32.totalorder %s162, 5
      %s164 = scalar_select %p163, %s162, 5
      %s165 = smul.addr %s164, 8
      %s166 = scalar_lea.vmem %s0, %s165
      %s167 = smul.u32 3, %s14
      %s168 = smul.u32 3, %s14
      %p169 = scmp.lt.s32.totalorder %s168, 5
      %s170 = scalar_select %p169, %s168, 5
      %s171 = smul.addr %s170, 8
      %s172 = scalar_lea.vmem %s3, %s171
      %s173 = smul.u32 3, %s14
      %v174 = vld [vmem:[%s166] sm:$0xff]
      %v175 = vld [vmem:[%s166 + $0x8] sm:$0xff]
      %v176 = vld [vmem:[%s166 + $0x10] sm:$0xff]
      %v177 = vld [vmem:[%s1] sm:$0xf]
      %vm178 = vcmask 31744
      %v180 = vsel %vm178, %v174, 0
      %v183 = vsel %vm178, %v175, 0
      %v186 = vsel %vm178, %v176, 0
      %vm188 = vcmask 1043456
      %v190 = vsel %vm188, %v177, 0
      %192 = vmatprep.subr.mxu0 0.0
      %193 = vmatpush1.msra.mxu0 0.0
      %194 = vmatprep.subr.mxu0 0.0
      %195 = vmatpush1.msra.mxu0 0.0
      %196 = vmatprep.subr.mxu0 0.0
      %197 = vmatpush1.msra.mxu0 0.0
      %198 = vmatprep.subr.mxu0 0.0
      %199 = vmatpush1.msra.mxu0 0.0
      %200 = vmatprep.subr.mxu0 0.0
      %201 = vmatpush1.msra.mxu0 0.0
      %202 = vmatprep.subr.mxu0 0.0
      %203 = vmatpush1.msra.mxu0 0.0
      %204 = vmatprep.subr.mxu0 0.0
      %205 = vmatpush1.msra.mxu0 0.0
      %206 = vmatprep.subr.mxu0 0.0
      %207 = vmatpush1.msra.mxu0 0.0
      %208 = vmatprep.subr.mxu0 0.0
      %209 = vmatpush1.msra.mxu0 0.0
      %210 = vmatprep.subr.mxu0 0.0
      %211 = vmatpush1.msra.mxu0 0.0
      %212 = vmatprep.subr.mxu0 0.0
      %213 = vmatpush1.msra.mxu0 0.0
      %214 = vmatprep.subr.mxu0 0.0
      %215 = vmatpush1.msra.mxu0 0.0
      %216 = vmatprep.subr.mxu0 0.0
      %217 = vmatpush1.msra.mxu0 0.0
      %218 = vmatprep.subr.mxu0 0.0
      %219 = vmatpush1.msra.mxu0 0.0
      %220 = vmatprep.subr.mxu0 0.0
      %221 = vmatpush1.msra.mxu0 0.0
      %222 = vmatprep.subr.mxu0 0.0
      %223 = vmatpush1.msra.mxu0 %v190
      %224 = vmatprep.subr.mxu0 0.0
      %225 = vmatpush2.msra.mxu0 0.0
      %226 = vmatprep.subr.mxu0 0.0
      %227 = vmatpush2.msra.mxu0 0.0
      %228 = vmatprep.subr.mxu0 0.0
      %229 = vmatpush2.msra.mxu0 0.0
      %230 = vmatprep.subr.mxu0 0.0
      %231 = vmatpush2.msra.mxu0 0.0
      %232 = vmatprep.subr.mxu0 0.0
      %233 = vmatpush2.msra.mxu0 0.0
      %234 = vmatprep.subr.mxu0 0.0
      %235 = vmatpush2.msra.mxu0 0.0
      %236 = vmatprep.subr.mxu0 0.0
      %237 = vmatpush2.msra.mxu0 0.0
      %238 = vmatprep.subr.mxu0 0.0
      %239 = vmatpush2.msra.mxu0 0.0
      %240 = vmatprep.subr.mxu0 0.0
      %241 = vmatpush2.msra.mxu0 0.0
      %242 = vmatprep.subr.mxu0 0.0
      %243 = vmatpush2.msra.mxu0 0.0
      %244 = vmatprep.subr.mxu0 0.0
      %245 = vmatpush2.msra.mxu0 0.0
      %246 = vmatprep.subr.mxu0 0.0
      %247 = vmatpush2.msra.mxu0 0.0
      %248 = vmatprep.subr.mxu0 0.0
      %249 = vmatpush2.msra.mxu0 0.0
      %250 = vmatprep.subr.mxu0 0.0
      %251 = vmatpush2.msra.mxu0 0.0
      %252 = vmatprep.subr.mxu0 0.0
      %253 = vmatpush2.msra.mxu0 0.0
      %254 = vmatprep.subr.mxu0 0.0
      %255 = vmatpush2.msra.mxu0 0.0
      %256 = vmatprep.mubr.f32.mxu0 0.0
      %257 = vmatmul.mubr.f32.gmra.mxu0 %v180
      %v258 = vpop.f32.mrf.mxu0
      %v259 = vadd.f32 0.0, %v258
      %v260 = vpop.f32.mrf.mxu0
      %261 = vmatprep.mubr.f32.mxu0 0.0
      %262 = vmatmul.mubr.f32.gmra.mxu0 %v183
      %v263 = vpop.f32.mrf.mxu0
      %v264 = vadd.f32 0.0, %v263
      %v265 = vpop.f32.mrf.mxu0
      %266 = vmatprep.mubr.f32.mxu0 0.0
      %267 = vmatmul.mubr.f32.gmra.mxu0 %v186
      %v268 = vpop.f32.mrf.mxu0
      %v269 = vadd.f32 0.0, %v268
      %v270 = vpop.f32.mrf.mxu0
      %271 = vdwg.mxu0
      %v272 = vld [vmem:[%s2] sm:$0xff]
      %v273 = vadd.f32 %v259, %v272
      %v274 = vadd.f32 %v264, %v272
      %v275 = vadd.f32 %v269, %v272
      %vm276 = vcmask 130048
      %277 = vst.msk [vmem:[%s172] sm:$0xff] %vm276, %v273
      %278 = vst.msk [vmem:[%s172 + $0x8] sm:$0xff] %vm276, %v274
      %279 = vst.msk [vmem:[%s172 + $0x10] sm:$0xff] %vm276, %v275
      %s280 = smul.u32 3, %s14
      %p281 = scmp.lt.s32.totalorder %s280, 5
      %s282 = scalar_select %p281, %s280, 5
      %s283 = smul.addr %s282, 8
      %s284 = scalar_lea.vmem %s3, %s283
      // Predicated region
      $region33: #{model_forward.6} parent=31 // pred_check
        %p285 = pneg %p100
      $region34: #{model_forward.6} parent=31 // pred_check_branch
        %287 = sbr.rel (%p285) target = $region36
      $region35: #{model_forward.6} parent=31 // pred_region
        %s288 = smul.u32 3, %s14
      $region36: #{model_forward.6} parent=31 // pred_fallthru
        _
    $region32: #{model_forward.6} parent=5 // pred_fallthru
      _
    %p289 = scmp.le.s32.totalorder 2, %s9
    // Predicated region
    $region37: #{model_forward.6} parent=5 // pred_check
      %p290 = pneg %p289
    $region38: #{model_forward.6} parent=5 // pred_check_branch
      %292 = sbr.rel (%p290) target = $region40
    $region39: #{model_forward.6} parent=5 // pred_region
      %s293 = ssub.s32 %s9, 2
      // Predicated region
      $region41: #{model_forward.6} parent=39 // pred_check
        %p294 = pneg %p106
      $region42: #{model_forward.6} parent=39 // pred_check_branch
        %296 = sbr.rel (%p294) target = $region44
      $region43: #{model_forward.6} parent=39 // pred_region
        %s297 = smul.u32 3, %s15
        %p298 = scmp.lt.s32.totalorder %s297, 5
        %s299 = scalar_select %p298, %s297, 5
        %s300 = smul.addr %s299, 8
        %s301 = scalar_lea.vmem %s3, %s300
      $region44: #{model_forward.6} parent=39 // pred_fallthru
        _
    $region40: #{model_forward.6} parent=5 // pred_fallthru
      _
  $region6: #{model_forward.6} parent=0 // loop_footer
    %s13 = sadd.s32 1, %s9
  $region7: #{model_forward.6} parent=0 // loop_footer_branch
    %8 = sbr.rel target = $region3
  $region8: #{model_forward.6} parent=0 // loop_exit
    _

// kernel: model_forward.9
$region0: #{model_forward.9}
  #allocation0 [shape = 'u32[]', space=smem, size = 0x4, offset = 0x4, fixed_abs, tag = 'smem constant byte address 0x4 - core index']
  #allocation1 [shape = 'u32[144,128]{1,0:T(1,128)}', space=vmem, size = 0x12000, scoped, tag = 'internal scratch']
  %s0 = inlined_call_operand.vmem [shape: f32[6,80], index: 0, kind: input, shape index: {}]
  %s1 = inlined_call_operand.vmem [shape: f32[80,8], index: 1, kind: input, shape index: {}]
  %s2 = inlined_call_operand.vmem [shape: f32[1,8], index: 2, kind: input, shape index: {}]
  %s3 = inlined_call_operand.vmem [shape: f32[6,1], index: 3, kind: input, shape index: {}]
  %s4 = inlined_call_operand.vmem [shape: f32[6,1], index: 4, kind: input, shape index: {}]
  %s5 = inlined_call_operand.vmem [shape: f32[6,8], index: 5, kind: output, shape index: {}]
  %s6 = sld [smem:[#allocation0]]
  $region30: #{model_forward.9} parent=0
    _
  %s8 = ssub.s32 1, %s6
  %s9 = scalar_select 0, %s8, %s6
  // Predicated region
  $region2: #{model_forward.9} parent=0 // pred_check
    _
  $region3: #{model_forward.9} parent=0 // pred_check_branch
    %11 = sbr.rel (0) target = $region5
  $region4: #{model_forward.9} parent=0 // pred_region
    _
  $region5: #{model_forward.9} parent=0 // pred_fallthru
    _
  // Predicated region
  $region6: #{model_forward.9} parent=0 // pred_check
    _
  $region7: #{model_forward.9} parent=0 // pred_check_branch
    %13 = sbr.rel (0) target = $region9
  $region8: #{model_forward.9} parent=0 // pred_region
    _
  $region9: #{model_forward.9} parent=0 // pred_fallthru
    _
  // Predicated region
  $region10: #{model_forward.9} parent=0 // pred_check
    _
  $region11: #{model_forward.9} parent=0 // pred_check_branch
    %15 = sbr.rel (0) target = $region13
  $region12: #{model_forward.9} parent=0 // pred_region
    _
  $region13: #{model_forward.9} parent=0 // pred_fallthru
    _
  // Predicated region
  $region14: #{model_forward.9} parent=0 // pred_check
    _
  $region15: #{model_forward.9} parent=0 // pred_check_branch
    %17 = sbr.rel (0) target = $region17
  $region16: #{model_forward.9} parent=0 // pred_region
    _
  $region17: #{model_forward.9} parent=0 // pred_fallthru
    _
  // Predicated region
  $region18: #{model_forward.9} parent=0 // pred_check
    _
  $region19: #{model_forward.9} parent=0 // pred_check_branch
    %19 = sbr.rel (0) target = $region21
  $region20: #{model_forward.9} parent=0 // pred_region
    _
  $region21: #{model_forward.9} parent=0 // pred_fallthru
    _
  %v20 = vld [vmem:[%s0] sm:$0x3f]
  %v21 = vld [vmem:[%s1] sm:$0xff]
  %v22 = vld [vmem:[%s1 + $0x8] sm:$0xff]
  %v23 = vld [vmem:[%s1 + $0x10] sm:$0xff]
  %v24 = vld [vmem:[%s1 + $0x18] sm:$0xff]
  %v25 = vld [vmem:[%s1 + $0x20] sm:$0xff]
  %v26 = vld [vmem:[%s1 + $0x28] sm:$0xff]
  %v27 = vld [vmem:[%s1 + $0x30] sm:$0xff]
  %v28 = vld [vmem:[%s1 + $0x38] sm:$0xff]
  %v29 = vld [vmem:[%s1 + $0x40] sm:$0xff]
  %v30 = vld [vmem:[%s1 + $0x48] sm:$0xff]
  %v31 = vld [vmem:[%s2] sm:$0x1]
  %v33 = vlaneseq
  %v34 = vshrl.u32 %v33, 7
  %v35 = vsub.s32 0, %v34
  %v36 = vrot.slane %v31, %v35
  %vm38 = vcmask 654336
  %v40 = vsel %vm38, %v20, 0
  %42 = vmatprep.subr.mxu0 0.0
  %43 = vmatpush1.msra.mxu0 0.0
  %44 = vmatprep.subr.mxu0 0.0
  %45 = vmatpush1.msra.mxu0 0.0
  %46 = vmatprep.subr.mxu0 0.0
  %47 = vmatpush1.msra.mxu0 0.0
  %48 = vmatprep.subr.mxu0 0.0
  %49 = vmatpush1.msra.mxu0 0.0
  %50 = vmatprep.subr.mxu0 0.0
  %51 = vmatpush1.msra.mxu0 0.0
  %52 = vmatprep.subr.mxu0 0.0
  %53 = vmatpush1.msra.mxu0 0.0
  %54 = vmatprep.subr.mxu0 0.0
  %55 = vmatpush1.msra.mxu0 %v30
  %56 = vmatprep.subr.mxu0 0.0
  %57 = vmatpush1.msra.mxu0 %v29
  %58 = vmatprep.subr.mxu0 0.0
  %59 = vmatpush1.msra.mxu0 %v28
  %60 = vmatprep.subr.mxu0 0.0
  %61 = vmatpush1.msra.mxu0 %v27
  %62 = vmatprep.subr.mxu0 0.0
  %63 = vmatpush1.msra.mxu0 %v26
  %64 = vmatprep.subr.mxu0 0.0
  %65 = vmatpush1.msra.mxu0 %v25
  %66 = vmatprep.subr.mxu0 0.0
  %67 = vmatpush1.msra.mxu0 %v24
  %68 = vmatprep.subr.mxu0 0.0
  %69 = vmatpush1.msra.mxu0 %v23
  %70 = vmatprep.subr.mxu0 0.0
  %71 = vmatpush1.msra.mxu0 %v22
  %72 = vmatprep.subr.mxu0 0.0
  %73 = vmatpush1.msra.mxu0 %v21
  %74 = vmatprep.subr.mxu0 0.0
  %75 = vmatpush2.msra.mxu0 0.0
  %76 = vmatprep.subr.mxu0 0.0
  %77 = vmatpush2.msra.mxu0 0.0
  %78 = vmatprep.subr.mxu0 0.0
  %79 = vmatpush2.msra.mxu0 0.0
  %80 = vmatprep.subr.mxu0 0.0
  %81 = vmatpush2.msra.mxu0 0.0
  %82 = vmatprep.subr.mxu0 0.0
  %83 = vmatpush2.msra.mxu0 0.0
  %84 = vmatprep.subr.mxu0 0.0
  %85 = vmatpush2.msra.mxu0 0.0
  %86 = vmatprep.subr.mxu0 0.0
  %87 = vmatpush2.msra.mxu0 0.0
  %88 = vmatprep.subr.mxu0 0.0
  %89 = vmatpush2.msra.mxu0 0.0
  %90 = vmatprep.subr.mxu0 0.0
  %91 = vmatpush2.msra.mxu0 0.0
  %92 = vmatprep.subr.mxu0 0.0
  %93 = vmatpush2.msra.mxu0 0.0
  %94 = vmatprep.subr.mxu0 0.0
  %95 = vmatpush2.msra.mxu0 0.0
  %96 = vmatprep.subr.mxu0 0.0
  %97 = vmatpush2.msra.mxu0 0.0
  %98 = vmatprep.subr.mxu0 0.0
  %99 = vmatpush2.msra.mxu0 0.0
  %100 = vmatprep.subr.mxu0 0.0
  %101 = vmatpush2.msra.mxu0 0.0
  %102 = vmatprep.subr.mxu0 0.0
  %103 = vmatpush2.msra.mxu0 0.0
  %104 = vmatprep.subr.mxu0 0.0
  %105 = vmatpush2.msra.mxu0 0.0
  %106 = vmatprep.mubr.f32.mxu0 0.0
  %107 = vmatmul.mubr.f32.gmra.mxu0 %v40
  %v108 = vpop.f32.mrf.mxu0
  %v109 = vadd.f32 %v36, %v108
  %v110 = vpop.f32.mrf.mxu0
  %111 = vdwg.mxu0
  %v112 = vld [vmem:[%s4] sm:$0x3f]
  %114 = vset.pattern.permute.xlu0 0
  %115 = vperm.xlu0 %114, %v112
  %v116 = vpop.permute.xlu0 %115
  %v118 = vmul.f32 %v109, %v116
  %v119 = vld [vmem:[%s3] sm:$0x3f]
  %121 = vset.pattern.permute.xlu0 0
  %122 = vperm.xlu0 %121, %v119
  %v123 = vpop.permute.xlu0 %122
  %v125 = vadd.f32 %v118, %v123
  %vm126 = vcmask 62464
  %127 = vst.msk [vmem:[%s5] sm:$0x3f] %vm126, %v125
  // Predicated region
  $region22: #{model_forward.9} parent=0 // pred_check
    _
  $region23: #{model_forward.9} parent=0 // pred_check_branch
    %129 = sbr.rel (0) target = $region25
  $region24: #{model_forward.9} parent=0 // pred_region
    _
  $region25: #{model_forward.9} parent=0 // pred_fallthru
    _
  // Predicated region
  $region26: #{model_forward.9} parent=0 // pred_check
    _
  $region27: #{model_forward.9} parent=0 // pred_check_branch
    %131 = sbr.rel (0) target = $region29
  $region28: #{model_forward.9} parent=0 // pred_region
    _
  $region29: #{model_forward.9} parent=0 // pred_fallthru
    _

// kernel: model_forward.7
$region0: #{model_forward.7}
  #allocation0 [shape = 'u32[]', space=smem, size = 0x4, offset = 0x4, fixed_abs, tag = 'smem constant byte address 0x4 - core index']
  #allocation1 [shape = 'u32[144,128]{1,0:T(1,128)}', space=vmem, size = 0x12000, scoped, tag = 'internal scratch']
  %s0 = inlined_call_operand.vmem [shape: f32[6,8,16], index: 0, kind: input, shape index: {}]
  %s1 = inlined_call_operand.vmem [shape: f32[16,48], index: 1, kind: input, shape index: {}]
  %s2 = inlined_call_operand.vmem [shape: f32[1,48], index: 2, kind: input, shape index: {}]
  %s3 = inlined_call_operand.vmem [shape: f32[16,16], index: 3, kind: input, shape index: {}]
  %s4 = inlined_call_operand.vmem [shape: f32[1,16], index: 4, kind: input, shape index: {}]
  %s5 = inlined_call_operand.vmem [shape: f32[16,32], index: 5, kind: input, shape index: {}]
  %s6 = inlined_call_operand.vmem [shape: f32[1,32], index: 6, kind: input, shape index: {}]
  %s7 = inlined_call_operand.vmem [shape: f32[32,16], index: 7, kind: input, shape index: {}]
  %s8 = inlined_call_operand.vmem [shape: f32[1,16], index: 8, kind: input, shape index: {}]
  %s9 = inlined_call_operand.vmem [shape: f32[1,16], index: 9, kind: input, shape index: {}]
  %s10 = inlined_call_operand.vmem [shape: f32[1,16], index: 10, kind: input, shape index: {}]
  %s11 = inlined_call_operand.vmem [shape: f32[1,16], index: 11, kind: input, shape index: {}]
  %s12 = inlined_call_operand.vmem [shape: f32[1,16], index: 12, kind: input, shape index: {}]
  %s13 = inlined_call_operand.vmem [shape: f32[1,16], index: 13, kind: input, shape index: {}]
  %s14 = inlined_call_operand.vmem [shape: f32[1,16], index: 14, kind: input, shape index: {}]
  %s15 = inlined_call_operand.vmem [shape: f32[6,8,16], index: 15, kind: output, shape index: {}]
  %s16 = sld [smem:[#allocation0]]
  $region93: #{model_forward.7} parent=0
    _
  %s18 = ssub.s32 1, %s16
  %s19 = scalar_select 0, %s18, %s16
  loop: start=0, step=1, limit=4
  $region2: #{model_forward.7} parent=0 // loop_pre_header
    _
  $region3: #{model_forward.7} parent=0 // loop_header
    %s21 = sphi 0, %s25
    %p22 = scmp.ge.s32.totalorder %s21, 4
    %s31 = sphi 0, %s33
    %s34 = sphi 0, %s31
    %s35 = sphi 0, %s34
    %s51 = sphi 0, %s35
    %s55 = sphi 0, %s55
    %s57 = sphi 0, %s55
    %s58 = sphi 0, %s57
    %s72 = sphi 0, %s58
    %s76 = sphi 0, %s76
    %s78 = sphi 0, %s76
    %s79 = sphi 0, %s78
    %s93 = sphi 0, %s79
    %s97 = sphi 0, %s97
    %s99 = sphi 0, %s97
    %s100 = sphi 0, %s99
    %s114 = sphi 0, %s100
    %s118 = sphi 0, %s118
    %s120 = sphi 0, %s118
    %s121 = sphi 0, %s120
    %s135 = sphi 0, %s121
    %s139 = sphi 0, %s139
    %s141 = sphi 0, %s139
    %s142 = sphi 0, %s141
    %s156 = sphi 0, %s142
    %s160 = sphi 0, %s160
    %s162 = sphi 0, %s160
    %s163 = sphi 0, %s162
    %s177 = sphi 0, %s163
    %s181 = sphi 0, %s181
    %s183 = sphi 0, %s181
    %s184 = sphi 0, %s183
    %s198 = sphi 0, %s184
    %s202 = sphi 0, %s202
    %s204 = sphi 0, %s202
    %s205 = sphi 0, %s204
    %s219 = sphi 0, %s205
    %s223 = sphi 0, %s223
    %s225 = sphi 0, %s223
    %s226 = sphi 0, %s225
    %s240 = sphi 0, %s226
    %s244 = sphi 0, %s244
    %s246 = sphi 0, %s244
    %s247 = sphi 0, %s246
    %s261 = sphi 0, %s247
    %s265 = sphi 0, %s265
    %s267 = sphi 0, %s265
    %s268 = sphi 0, %s267
    %s282 = sphi 0, %s268
    %s286 = sphi 0, %s286
    %s288 = sphi 0, %s286
    %s289 = sphi 0, %s288
    %s303 = sphi 0, %s289
    %s307 = sphi 0, %s307
    %s309 = sphi 0, %s307
    %s310 = sphi 0, %s309
    %s324 = sphi 0, %s310
    %s328 = sphi 0, %s328
    %s330 = sphi 0, %s328
    %s331 = sphi 0, %s330
    %s345 = sphi 0, %s331
    %s351 = sphi 0, %s353
    %s354 = sphi 0, %s351
    %s355 = sphi 0, %s354
    %s371 = sphi 0, %s355
  $region4: #{model_forward.7} parent=0 // loop_header_branch
    %24 = sbr.rel (%p22) target = $region8
  $region5: #{model_forward.7} parent=0 // loop_body
    %s26 = ssub.s32 %s21, 1
    %s27 = ssub.s32 %s21, 2
    %s28 = sadd.s32 %s21, 1
    %s29 = ssub.s32 %s21, %s28
    %p30 = scmp.eq.s32.totalorder %s29, 0
    %s32 = sadd.s32 %s31, 1
    %s33 = scalar_select %p30, %s31, %s32
    %p36 = pneg %p30
    %p37 = scmp.eq.s32.totalorder %s21, 1
    %p38 = por %p36, %p37
    %p39 = scmp.ne.s32.totalorder %s31, %s34
    %p40 = scmp.eq.s32.totalorder %s21, 0
    %p41 = por %p39, %p40
    %p42 = scmp.ne.s32.totalorder %s31, %s34
    %p43 = scmp.eq.s32.totalorder %s26, 1
    %p44 = por %p42, %p43
    %p45 = scmp.ne.s32.totalorder %s34, %s35
    %p46 = scmp.eq.s32.totalorder %s26, 0
    %p47 = por %p45, %p46
    %p48 = scmp.ne.s32.totalorder %s34, %s35
    %p49 = scmp.eq.s32.totalorder %s27, 1
    %p50 = por %p48, %p49
    %p52 = scmp.ne.s32.totalorder %s35, %s51
    %p53 = scmp.eq.s32.totalorder %s27, 0
    %p54 = por %p52, %p53
    %s56 = sadd.s32 %s55, 1
    %p59 = scmp.eq.s32.totalorder %s21, 1
    %p60 = scmp.ne.s32.totalorder %s55, %s57
    %p61 = scmp.eq.s32.totalorder %s21, 0
    %p62 = por %p60, %p61
    %p63 = scmp.ne.s32.totalorder %s55, %s57
    %p64 = scmp.eq.s32.totalorder %s26, 1
    %p65 = por %p63, %p64
    %p66 = scmp.ne.s32.totalorder %s57, %s58
    %p67 = scmp.eq.s32.totalorder %s26, 0
    %p68 = por %p66, %p67
    %p69 = scmp.ne.s32.totalorder %s57, %s58
    %p70 = scmp.eq.s32.totalorder %s27, 1
    %p71 = por %p69, %p70
    %p73 = scmp.ne.s32.totalorder %s58, %s72
    %p74 = scmp.eq.s32.totalorder %s27, 0
    %p75 = por %p73, %p74
    %s77 = sadd.s32 %s76, 1
    %p80 = scmp.eq.s32.totalorder %s21, 1
    %p81 = scmp.ne.s32.totalorder %s76, %s78
    %p82 = scmp.eq.s32.totalorder %s21, 0
    %p83 = por %p81, %p82
    %p84 = scmp.ne.s32.totalorder %s76, %s78
    %p85 = scmp.eq.s32.totalorder %s26, 1
    %p86 = por %p84, %p85
    %p87 = scmp.ne.s32.totalorder %s78, %s79
    %p88 = scmp.eq.s32.totalorder %s26, 0
    %p89 = por %p87, %p88
    %p90 = scmp.ne.s32.totalorder %s78, %s79
    %p91 = scmp.eq.s32.totalorder %s27, 1
    %p92 = por %p90, %p91
    %p94 = scmp.ne.s32.totalorder %s79, %s93
    %p95 = scmp.eq.s32.totalorder %s27, 0
    %p96 = por %p94, %p95
    %s98 = sadd.s32 %s97, 1
    %p101 = scmp.eq.s32.totalorder %s21, 1
    %p102 = scmp.ne.s32.totalorder %s97, %s99
    %p103 = scmp.eq.s32.totalorder %s21, 0
    %p104 = por %p102, %p103
    %p105 = scmp.ne.s32.totalorder %s97, %s99
    %p106 = scmp.eq.s32.totalorder %s26, 1
    %p107 = por %p105, %p106
    %p108 = scmp.ne.s32.totalorder %s99, %s100
    %p109 = scmp.eq.s32.totalorder %s26, 0
    %p110 = por %p108, %p109
    %p111 = scmp.ne.s32.totalorder %s99, %s100
    %p112 = scmp.eq.s32.totalorder %s27, 1
    %p113 = por %p111, %p112
    %p115 = scmp.ne.s32.totalorder %s100, %s114
    %p116 = scmp.eq.s32.totalorder %s27, 0
    %p117 = por %p115, %p116
    %s119 = sadd.s32 %s118, 1
    %p122 = scmp.eq.s32.totalorder %s21, 1
    %p123 = scmp.ne.s32.totalorder %s118, %s120
    %p124 = scmp.eq.s32.totalorder %s21, 0
    %p125 = por %p123, %p124
    %p126 = scmp.ne.s32.totalorder %s118, %s120
    %p127 = scmp.eq.s32.totalorder %s26, 1
    %p128 = por %p126, %p127
    %p129 = scmp.ne.s32.totalorder %s120, %s121
    %p130 = scmp.eq.s32.totalorder %s26, 0
    %p131 = por %p129, %p130
    %p132 = scmp.ne.s32.totalorder %s120, %s121
    %p133 = scmp.eq.s32.totalorder %s27, 1
    %p134 = por %p132, %p133
    %p136 = scmp.ne.s32.totalorder %s121, %s135
    %p137 = scmp.eq.s32.totalorder %s27, 0
    %p138 = por %p136, %p137
    %s140 = sadd.s32 %s139, 1
    %p143 = scmp.eq.s32.totalorder %s21, 1
    %p144 = scmp.ne.s32.totalorder %s139, %s141
    %p145 = scmp.eq.s32.totalorder %s21, 0
    %p146 = por %p144, %p145
    %p147 = scmp.ne.s32.totalorder %s139, %s141
    %p148 = scmp.eq.s32.totalorder %s26, 1
    %p149 = por %p147, %p148
    %p150 = scmp.ne.s32.totalorder %s141, %s142
    %p151 = scmp.eq.s32.totalorder %s26, 0
    %p152 = por %p150, %p151
    %p153 = scmp.ne.s32.totalorder %s141, %s142
    %p154 = scmp.eq.s32.totalorder %s27, 1
    %p155 = por %p153, %p154
    %p157 = scmp.ne.s32.totalorder %s142, %s156
    %p158 = scmp.eq.s32.totalorder %s27, 0
    %p159 = por %p157, %p158
    %s161 = sadd.s32 %s160, 1
    %p164 = scmp.eq.s32.totalorder %s21, 1
    %p165 = scmp.ne.s32.totalorder %s160, %s162
    %p166 = scmp.eq.s32.totalorder %s21, 0
    %p167 = por %p165, %p166
    %p168 = scmp.ne.s32.totalorder %s160, %s162
    %p169 = scmp.eq.s32.totalorder %s26, 1
    %p170 = por %p168, %p169
    %p171 = scmp.ne.s32.totalorder %s162, %s163
    %p172 = scmp.eq.s32.totalorder %s26, 0
    %p173 = por %p171, %p172
    %p174 = scmp.ne.s32.totalorder %s162, %s163
    %p175 = scmp.eq.s32.totalorder %s27, 1
    %p176 = por %p174, %p175
    %p178 = scmp.ne.s32.totalorder %s163, %s177
    %p179 = scmp.eq.s32.totalorder %s27, 0
    %p180 = por %p178, %p179
    %s182 = sadd.s32 %s181, 1
    %p185 = scmp.eq.s32.totalorder %s21, 1
    %p186 = scmp.ne.s32.totalorder %s181, %s183
    %p187 = scmp.eq.s32.totalorder %s21, 0
    %p188 = por %p186, %p187
    %p189 = scmp.ne.s32.totalorder %s181, %s183
    %p190 = scmp.eq.s32.totalorder %s26, 1
    %p191 = por %p189, %p190
    %p192 = scmp.ne.s32.totalorder %s183, %s184
    %p193 = scmp.eq.s32.totalorder %s26, 0
    %p194 = por %p192, %p193
    %p195 = scmp.ne.s32.totalorder %s183, %s184
    %p196 = scmp.eq.s32.totalorder %s27, 1
    %p197 = por %p195, %p196
    %p199 = scmp.ne.s32.totalorder %s184, %s198
    %p200 = scmp.eq.s32.totalorder %s27, 0
    %p201 = por %p199, %p200
    %s203 = sadd.s32 %s202, 1
    %p206 = scmp.eq.s32.totalorder %s21, 1
    %p207 = scmp.ne.s32.totalorder %s202, %s204
    %p208 = scmp.eq.s32.totalorder %s21, 0
    %p209 = por %p207, %p208
    %p210 = scmp.ne.s32.totalorder %s202, %s204
    %p211 = scmp.eq.s32.totalorder %s26, 1
    %p212 = por %p210, %p211
    %p213 = scmp.ne.s32.totalorder %s204, %s205
    %p214 = scmp.eq.s32.totalorder %s26, 0
    %p215 = por %p213, %p214
    %p216 = scmp.ne.s32.totalorder %s204, %s205
    %p217 = scmp.eq.s32.totalorder %s27, 1
    %p218 = por %p216, %p217
    %p220 = scmp.ne.s32.totalorder %s205, %s219
    %p221 = scmp.eq.s32.totalorder %s27, 0
    %p222 = por %p220, %p221
    %s224 = sadd.s32 %s223, 1
    %p227 = scmp.eq.s32.totalorder %s21, 1
    %p228 = scmp.ne.s32.totalorder %s223, %s225
    %p229 = scmp.eq.s32.totalorder %s21, 0
    %p230 = por %p228, %p229
    %p231 = scmp.ne.s32.totalorder %s223, %s225
    %p232 = scmp.eq.s32.totalorder %s26, 1
    %p233 = por %p231, %p232
    %p234 = scmp.ne.s32.totalorder %s225, %s226
    %p235 = scmp.eq.s32.totalorder %s26, 0
    %p236 = por %p234, %p235
    %p237 = scmp.ne.s32.totalorder %s225, %s226
    %p238 = scmp.eq.s32.totalorder %s27, 1
    %p239 = por %p237, %p238
    %p241 = scmp.ne.s32.totalorder %s226, %s240
    %p242 = scmp.eq.s32.totalorder %s27, 0
    %p243 = por %p241, %p242
    %s245 = sadd.s32 %s244, 1
    %p248 = scmp.eq.s32.totalorder %s21, 1
    %p249 = scmp.ne.s32.totalorder %s244, %s246
    %p250 = scmp.eq.s32.totalorder %s21, 0
    %p251 = por %p249, %p250
    %p252 = scmp.ne.s32.totalorder %s244, %s246
    %p253 = scmp.eq.s32.totalorder %s26, 1
    %p254 = por %p252, %p253
    %p255 = scmp.ne.s32.totalorder %s246, %s247
    %p256 = scmp.eq.s32.totalorder %s26, 0
    %p257 = por %p255, %p256
    %p258 = scmp.ne.s32.totalorder %s246, %s247
    %p259 = scmp.eq.s32.totalorder %s27, 1
    %p260 = por %p258, %p259
    %p262 = scmp.ne.s32.totalorder %s247, %s261
    %p263 = scmp.eq.s32.totalorder %s27, 0
    %p264 = por %p262, %p263
    %s266 = sadd.s32 %s265, 1
    %p269 = scmp.eq.s32.totalorder %s21, 1
    %p270 = scmp.ne.s32.totalorder %s265, %s267
    %p271 = scmp.eq.s32.totalorder %s21, 0
    %p272 = por %p270, %p271
    %p273 = scmp.ne.s32.totalorder %s265, %s267
    %p274 = scmp.eq.s32.totalorder %s26, 1
    %p275 = por %p273, %p274
    %p276 = scmp.ne.s32.totalorder %s267, %s268
    %p277 = scmp.eq.s32.totalorder %s26, 0
    %p278 = por %p276, %p277
    %p279 = scmp.ne.s32.totalorder %s267, %s268
    %p280 = scmp.eq.s32.totalorder %s27, 1
    %p281 = por %p279, %p280
    %p283 = scmp.ne.s32.totalorder %s268, %s282
    %p284 = scmp.eq.s32.totalorder %s27, 0
    %p285 = por %p283, %p284
    %s287 = sadd.s32 %s286, 1
    %p290 = scmp.eq.s32.totalorder %s21, 1
    %p291 = scmp.ne.s32.totalorder %s286, %s288
    %p292 = scmp.eq.s32.totalorder %s21, 0
    %p293 = por %p291, %p292
    %p294 = scmp.ne.s32.totalorder %s286, %s288
    %p295 = scmp.eq.s32.totalorder %s26, 1
    %p296 = por %p294, %p295
    %p297 = scmp.ne.s32.totalorder %s288, %s289
    %p298 = scmp.eq.s32.totalorder %s26, 0
    %p299 = por %p297, %p298
    %p300 = scmp.ne.s32.totalorder %s288, %s289
    %p301 = scmp.eq.s32.totalorder %s27, 1
    %p302 = por %p300, %p301
    %p304 = scmp.ne.s32.totalorder %s289, %s303
    %p305 = scmp.eq.s32.totalorder %s27, 0
    %p306 = por %p304, %p305
    %s308 = sadd.s32 %s307, 1
    %p311 = scmp.eq.s32.totalorder %s21, 1
    %p312 = scmp.ne.s32.totalorder %s307, %s309
    %p313 = scmp.eq.s32.totalorder %s21, 0
    %p314 = por %p312, %p313
    %p315 = scmp.ne.s32.totalorder %s307, %s309
    %p316 = scmp.eq.s32.totalorder %s26, 1
    %p317 = por %p315, %p316
    %p318 = scmp.ne.s32.totalorder %s309, %s310
    %p319 = scmp.eq.s32.totalorder %s26, 0
    %p320 = por %p318, %p319
    %p321 = scmp.ne.s32.totalorder %s309, %s310
    %p322 = scmp.eq.s32.totalorder %s27, 1
    %p323 = por %p321, %p322
    %p325 = scmp.ne.s32.totalorder %s310, %s324
    %p326 = scmp.eq.s32.totalorder %s27, 0
    %p327 = por %p325, %p326
    %s329 = sadd.s32 %s328, 1
    %p332 = scmp.eq.s32.totalorder %s21, 1
    %p333 = scmp.ne.s32.totalorder %s328, %s330
    %p334 = scmp.eq.s32.totalorder %s21, 0
    %p335 = por %p333, %p334
    %p336 = scmp.ne.s32.totalorder %s328, %s330
    %p337 = scmp.eq.s32.totalorder %s26, 1
    %p338 = por %p336, %p337
    %p339 = scmp.ne.s32.totalorder %s330, %s331
    %p340 = scmp.eq.s32.totalorder %s26, 0
    %p341 = por %p339, %p340
    %p342 = scmp.ne.s32.totalorder %s330, %s331
    %p343 = scmp.eq.s32.totalorder %s27, 1
    %p344 = por %p342, %p343
    %p346 = scmp.ne.s32.totalorder %s331, %s345
    %p347 = scmp.eq.s32.totalorder %s27, 0
    %p348 = por %p346, %p347
    %s349 = ssub.s32 %s21, %s28
    %p350 = scmp.eq.s32.totalorder %s349, 0
    %s352 = sadd.s32 %s351, 1
    %s353 = scalar_select %p350, %s351, %s352
    %p356 = pneg %p350
    %p357 = scmp.eq.s32.totalorder %s21, 1
    %p358 = por %p356, %p357
    %p359 = scmp.ne.s32.totalorder %s351, %s354
    %p360 = scmp.eq.s32.totalorder %s21, 0
    %p361 = por %p359, %p360
    %p362 = scmp.ne.s32.totalorder %s351, %s354
    %p363 = scmp.eq.s32.totalorder %s26, 1
    %p364 = por %p362, %p363
    %p365 = scmp.ne.s32.totalorder %s354, %s355
    %p366 = scmp.eq.s32.totalorder %s26, 0
    %p367 = por %p365, %p366
    %p368 = scmp.ne.s32.totalorder %s354, %s355
    %p369 = scmp.eq.s32.totalorder %s27, 1
    %p370 = por %p368, %p369
    %p372 = scmp.ne.s32.totalorder %s355, %s371
    %p373 = scmp.eq.s32.totalorder %s27, 0
    %p374 = por %p372, %p373
    %p375 = scmp.le.s32.totalorder 1, %s21
    %p376 = scmp.lt.s32.totalorder %s21, 3
    %p377 = pnand %p375, %p376
    %p378 = pneg %p377
    // Predicated region
    $region9: #{model_forward.7} parent=5 // pred_check
      _
    $region10: #{model_forward.7} parent=5 // pred_check_branch
      %380 = sbr.rel (%p377) target = $region12
    $region11: #{model_forward.7} parent=5 // pred_region
      %s381 = ssub.s32 %s21, 1
      // Predicated region
      $region13: #{model_forward.7} parent=11 // pred_check
        %p382 = pneg %p68
      $region14: #{model_forward.7} parent=11 // pred_check_branch
        %384 = sbr.rel (%p382) target = $region16
      $region15: #{model_forward.7} parent=11 // pred_region
        _
      $region16: #{model_forward.7} parent=11 // pred_fallthru
        _
      // Predicated region
      $region17: #{model_forward.7} parent=11 // pred_check
        %p385 = pneg %p89
      $region18: #{model_forward.7} parent=11 // pred_check_branch
        %387 = sbr.rel (%p385) target = $region20
      $region19: #{model_forward.7} parent=11 // pred_region
        _
      $region20: #{model_forward.7} parent=11 // pred_fallthru
        _
      // Predicated region
      $region21: #{model_forward.7} parent=11 // pred_check
        %p388 = pneg %p110
      $region22: #{model_forward.7} parent=11 // pred_check_branch
        %390 = sbr.rel (%p388) target = $region24
      $region23: #{model_forward.7} parent=11 // pred_region
        _
      $region24: #{model_forward.7} parent=11 // pred_fallthru
        _
      // Predicated region
      $region25: #{model_forward.7} parent=11 // pred_check
        %p391 = pneg %p131
      $region26: #{model_forward.7} parent=11 // pred_check_branch
        %393 = sbr.rel (%p391) target = $region28
      $region27: #{model_forward.7} parent=11 // pred_region
        _
      $region28: #{model_forward.7} parent=11 // pred_fallthru
        _
      // Predicated region
      $region29: #{model_forward.7} parent=11 // pred_check
        %p394 = pneg %p152
      $region30: #{model_forward.7} parent=11 // pred_check_branch
        %396 = sbr.rel (%p394) target = $region32
      $region31: #{model_forward.7} parent=11 // pred_region
        _
      $region32: #{model_forward.7} parent=11 // pred_fallthru
        _
      // Predicated region
      $region33: #{model_forward.7} parent=11 // pred_check
        %p397 = pneg %p173
      $region34: #{model_forward.7} parent=11 // pred_check_branch
        %399 = sbr.rel (%p397) target = $region36
      $region35: #{model_forward.7} parent=11 // pred_region
        _
      $region36: #{model_forward.7} parent=11 // pred_fallthru
        _
      // Predicated region
      $region37: #{model_forward.7} parent=11 // pred_check
        %p400 = pneg %p194
      $region38: #{model_forward.7} parent=11 // pred_check_branch
        %402 = sbr.rel (%p400) target = $region40
      $region39: #{model_forward.7} parent=11 // pred_region
        _
      $region40: #{model_forward.7} parent=11 // pred_fallthru
        _
      // Predicated region
      $region41: #{model_forward.7} parent=11 // pred_check
        %p403 = pneg %p215
      $region42: #{model_forward.7} parent=11 // pred_check_branch
        %405 = sbr.rel (%p403) target = $region44
      $region43: #{model_forward.7} parent=11 // pred_region
        _
      $region44: #{model_forward.7} parent=11 // pred_fallthru
        _
      // Predicated region
      $region45: #{model_forward.7} parent=11 // pred_check
        %p406 = pneg %p236
      $region46: #{model_forward.7} parent=11 // pred_check_branch
        %408 = sbr.rel (%p406) target = $region48
      $region47: #{model_forward.7} parent=11 // pred_region
        _
      $region48: #{model_forward.7} parent=11 // pred_fallthru
        _
      // Predicated region
      $region49: #{model_forward.7} parent=11 // pred_check
        %p409 = pneg %p257
      $region50: #{model_forward.7} parent=11 // pred_check_branch
        %411 = sbr.rel (%p409) target = $region52
      $region51: #{model_forward.7} parent=11 // pred_region
        _
      $region52: #{model_forward.7} parent=11 // pred_fallthru
        _
      // Predicated region
      $region53: #{model_forward.7} parent=11 // pred_check
        %p412 = pneg %p278
      $region54: #{model_forward.7} parent=11 // pred_check_branch
        %414 = sbr.rel (%p412) target = $region56
      $region55: #{model_forward.7} parent=11 // pred_region
        _
      $region56: #{model_forward.7} parent=11 // pred_fallthru
        _
      // Predicated region
      $region57: #{model_forward.7} parent=11 // pred_check
        %p415 = pneg %p299
      $region58: #{model_forward.7} parent=11 // pred_check_branch
        %417 = sbr.rel (%p415) target = $region60
      $region59: #{model_forward.7} parent=11 // pred_region
        _
      $region60: #{model_forward.7} parent=11 // pred_fallthru
        _
      // Predicated region
      $region61: #{model_forward.7} parent=11 // pred_check
        %p418 = pneg %p320
      $region62: #{model_forward.7} parent=11 // pred_check_branch
        %420 = sbr.rel (%p418) target = $region64
      $region63: #{model_forward.7} parent=11 // pred_region
        _
      $region64: #{model_forward.7} parent=11 // pred_fallthru
        _
      // Predicated region
      $region65: #{model_forward.7} parent=11 // pred_check
        %p421 = pneg %p341
      $region66: #{model_forward.7} parent=11 // pred_check_branch
        %423 = sbr.rel (%p421) target = $region68
      $region67: #{model_forward.7} parent=11 // pred_region
        _
      $region68: #{model_forward.7} parent=11 // pred_fallthru
        _
    $region12: #{model_forward.7} parent=5 // pred_fallthru
      _
    %p424 = scmp.lt.s32.totalorder %s21, 2
    // Predicated region
    $region69: #{model_forward.7} parent=5 // pred_check
      %p425 = pneg %p424
    $region70: #{model_forward.7} parent=5 // pred_check_branch
      %427 = sbr.rel (%p425) target = $region72
    $region71: #{model_forward.7} parent=5 // pred_region
      // Predicated region
      $region73: #{model_forward.7} parent=71 // pred_check
        %p428 = pneg %p41
      $region74: #{model_forward.7} parent=71 // pred_check_branch
        %430 = sbr.rel (%p428) target = $region76
      $region75: #{model_forward.7} parent=71 // pred_region
        %s431 = smul.u32 3, %s21
        %p432 = scmp.lt.s32.totalorder %s431, 5
        %s433 = scalar_select %p432, %s431, 5
        %s434 = smul.addr %s433, 8
        %s435 = scalar_lea.vmem %s0, %s434
        %s436 = smul.u32 3, %s21
      $region76: #{model_forward.7} parent=71 // pred_fallthru
        _
    $region72: #{model_forward.7} parent=5 // pred_fallthru
      _
    %p437 = scmp.le.s32.totalorder 1, %s21
    %p438 = scmp.lt.s32.totalorder %s21, 3
    %p439 = pnand %p437, %p438
    %p440 = pneg %p439
    // Predicated region
    $region77: #{model_forward.7} parent=5 // pred_check
      _
    $region78: #{model_forward.7} parent=5 // pred_check_branch
      %442 = sbr.rel (%p439) target = $region80
    $region79: #{model_forward.7} parent=5 // pred_region
      %s443 = ssub.s32 %s21, 1
      %s444 = smul.u32 3, %s26
      %p445 = scmp.lt.s32.totalorder %s444, 5
      %s446 = scalar_select %p445, %s444, 5
      %s447 = smul.addr %s446, 8
      %s448 = scalar_lea.vmem %s0, %s447
      %p449 = pneg %p47
      %p450 = pneg %p44
      %p451 = pneg %p68
      %p452 = pneg %p65
      %p453 = pneg %p89
      %p454 = pneg %p86
      %p455 = pneg %p110
      %p456 = pneg %p107
      %p457 = pneg %p131
      %p458 = pneg %p128
      %p459 = pneg %p152
      %p460 = pneg %p149
      %p461 = pneg %p173
      %p462 = pneg %p170
      %p463 = pneg %p194
      %p464 = pneg %p191
      %p465 = pneg %p215
      %p466 = pneg %p212
      %p467 = pneg %p236
      %p468 = pneg %p233
      %p469 = pneg %p257
      %p470 = pneg %p254
      %p471 = pneg %p278
      %p472 = pneg %p275
      %p473 = pneg %p299
      %p474 = pneg %p296
      %p475 = pneg %p320
      %p476 = pneg %p317
      %p477 = pneg %p341
      %p478 = pneg %p338
      %p479 = pneg %p367
      %p480 = pneg %p364
      %s481 = smul.u32 3, %s26
      %p482 = scmp.lt.s32.totalorder %s481, 5
      %s483 = scalar_select %p482, %s481, 5
      %s484 = smul.addr %s483, 8
      %s485 = scalar_lea.vmem %s15, %s484
      %s486 = smul.u32 3, %s26
      %p487 = scmp.lt.s32.totalorder %s486, 5
      %s488 = scalar_select %p487, %s486, 5
      %s489 = smul.addr %s488, 8
      %s490 = scalar_lea.vmem %s0, %s489
      %s491 = smul.u32 3, %s26
      %s492 = smul.u32 3, %s26
      %p493 = scmp.lt.s32.totalorder %s492, 5
      %s494 = scalar_select %p493, %s492, 5
      %s495 = smul.addr %s494, 8
      %s496 = scalar_lea.vmem %s15, %s495
      %s497 = smul.u32 3, %s26
      %v498 = vld [vmem:[%s490] sm:$0xff]
      %v499 = vld [vmem:[%s490 + $0x8] sm:$0xff]
      %v500 = vld [vmem:[%s490 + $0x10] sm:$0xff]
      %v501 = vld [vmem:[%s1] sm:$0xff]
      %v502 = vld [vmem:[%s1 + $0x8] sm:$0xff]
      %v503 = vld [vmem:[%s2] sm:$0x1]
      %v505 = vlaneseq
      %v506 = vshrl.u32 %v505, 7
      %v507 = vsub.s32 0, %v506
      %v508 = vrot.slane %v503, %v507
      %vm510 = vcmask 130048
      %v512 = vsel %vm510, %v498, 0
      %v515 = vsel %vm510, %v499, 0
      %v518 = vsel %vm510, %v500, 0
      %520 = vmatprep.subr.mxu0 0.0
      %521 = vmatpush1.msra.mxu0 0.0
      %522 = vmatprep.subr.mxu0 0.0
      %523 = vmatpush1.msra.mxu0 0.0
      %524 = vmatprep.subr.mxu0 0.0
      %525 = vmatpush1.msra.mxu0 0.0
      %526 = vmatprep.subr.mxu0 0.0
      %527 = vmatpush1.msra.mxu0 0.0
      %528 = vmatprep.subr.mxu0 0.0
      %529 = vmatpush1.msra.mxu0 0.0
      %530 = vmatprep.subr.mxu0 0.0
      %531 = vmatpush1.msra.mxu0 0.0
      %532 = vmatprep.subr.mxu0 0.0
      %533 = vmatpush1.msra.mxu0 0.0
      %534 = vmatprep.subr.mxu0 0.0
      %535 = vmatpush1.msra.mxu0 0.0
      %536 = vmatprep.subr.mxu0 0.0
      %537 = vmatpush1.msra.mxu0 0.0
      %538 = vmatprep.subr.mxu0 0.0
      %539 = vmatpush1.msra.mxu0 0.0
      %540 = vmatprep.subr.mxu0 0.0
      %541 = vmatpush1.msra.mxu0 0.0
      %542 = vmatprep.subr.mxu0 0.0
      %543 = vmatpush1.msra.mxu0 0.0
      %544 = vmatprep.subr.mxu0 0.0
      %545 = vmatpush1.msra.mxu0 0.0
      %546 = vmatprep.subr.mxu0 0.0
      %547 = vmatpush1.msra.mxu0 0.0
      %548 = vmatprep.subr.mxu0 0.0
      %549 = vmatpush1.msra.mxu0 %v502
      %550 = vmatprep.subr.mxu0 0.0
      %551 = vmatpush1.msra.mxu0 %v501
      %552 = vmatprep.subr.mxu0 0.0
      %553 = vmatpush2.msra.mxu0 0.0
      %554 = vmatprep.subr.mxu0 0.0
      %555 = vmatpush2.msra.mxu0 0.0
      %556 = vmatprep.subr.mxu0 0.0
      %557 = vmatpush2.msra.mxu0 0.0
      %558 = vmatprep.subr.mxu0 0.0
      %559 = vmatpush2.msra.mxu0 0.0
      %560 = vmatprep.subr.mxu0 0.0
      %561 = vmatpush2.msra.mxu0 0.0
      %562 = vmatprep.subr.mxu0 0.0
      %563 = vmatpush2.msra.mxu0 0.0
      %564 = vmatprep.subr.mxu0 0.0
      %565 = vmatpush2.msra.mxu0 0.0
      %566 = vmatprep.subr.mxu0 0.0
      %567 = vmatpush2.msra.mxu0 0.0
      %568 = vmatprep.subr.mxu0 0.0
      %569 = vmatpush2.msra.mxu0 0.0
      %570 = vmatprep.subr.mxu0 0.0
      %571 = vmatpush2.msra.mxu0 0.0
      %572 = vmatprep.subr.mxu0 0.0
      %573 = vmatpush2.msra.mxu0 0.0
      %574 = vmatprep.subr.mxu0 0.0
      %575 = vmatpush2.msra.mxu0 0.0
      %576 = vmatprep.subr.mxu0 0.0
      %577 = vmatpush2.msra.mxu0 0.0
      %578 = vmatprep.subr.mxu0 0.0
      %579 = vmatpush2.msra.mxu0 0.0
      %580 = vmatprep.subr.mxu0 0.0
      %581 = vmatpush2.msra.mxu0 0.0
      %582 = vmatprep.subr.mxu0 0.0
      %583 = vmatpush2.msra.mxu0 0.0
      %584 = vmatprep.mubr.f32.mxu0 0.0
      %585 = vmatmul.mubr.f32.gmra.mxu0 %v512
      %v586 = vpop.f32.mrf.mxu0
      %v587 = vadd.f32 %v508, %v586
      %v588 = vpop.f32.mrf.mxu0
      %589 = vmatprep.mubr.f32.mxu0 0.0
      %590 = vmatmul.mubr.f32.gmra.mxu0 %v515
      %v591 = vpop.f32.mrf.mxu0
      %v592 = vadd.f32 %v508, %v591
      %v593 = vpop.f32.mrf.mxu0
      %594 = vmatprep.mubr.f32.mxu0 0.0
      %595 = vmatmul.mubr.f32.gmra.mxu0 %v518
      %v596 = vpop.f32.mrf.mxu0
      %v597 = vadd.f32 %v508, %v596
      %v598 = vpop.f32.mrf.mxu0
      %599 = vdwg.mxu0
      %v600 = vlaneseq
      %v601 = vand.u32 %v600, 127
      %vm602 = vcmp.lt.s32.totalorder %v601, 5
      %604 = vrot.lane.b32.xlu0 %v587, 112
      %v605 = vpop.permute.xlu0 %604
      %vm606 = vcmask 31744
      %v607 = vsel %vm606, %v587, 0
      %v609 = vsel %vm606, %v605, 0
      %611 = vmatprep.subr.mxu0 0.0
      %612 = vmatpush1.xpose.msra.mxu0 0.0
      %613 = vmatprep.subr.mxu0 0.0
      %614 = vmatpush1.xpose.msra.mxu0 0.0
      %615 = vmatprep.subr.mxu0 0.0
      %616 = vmatpush1.xpose.msra.mxu0 0.0
      %617 = vmatprep.subr.mxu0 0.0
      %618 = vmatpush1.xpose.msra.mxu0 0.0
      %619 = vmatprep.subr.mxu0 0.0
      %620 = vmatpush1.xpose.msra.mxu0 0.0
      %621 = vmatprep.subr.mxu0 0.0
      %622 = vmatpush1.xpose.msra.mxu0 0.0
      %623 = vmatprep.subr.mxu0 0.0
      %624 = vmatpush1.xpose.msra.mxu0 0.0
      %625 = vmatprep.subr.mxu0 0.0
      %626 = vmatpush1.xpose.msra.mxu0 0.0
      %627 = vmatprep.subr.mxu0 0.0
      %628 = vmatpush1.xpose.msra.mxu0 0.0
      %629 = vmatprep.subr.mxu0 0.0
      %630 = vmatpush1.xpose.msra.mxu0 0.0
      %631 = vmatprep.subr.mxu0 0.0
      %632 = vmatpush1.xpose.msra.mxu0 0.0
      %633 = vmatprep.subr.mxu0 0.0
      %634 = vmatpush1.xpose.msra.mxu0 0.0
      %635 = vmatprep.subr.mxu0 0.0
      %636 = vmatpush1.xpose.msra.mxu0 0.0
      %637 = vmatprep.subr.mxu0 0.0
      %638 = vmatpush1.xpose.msra.mxu0 0.0
      %639 = vmatprep.subr.mxu0 0.0
      %640 = vmatpush1.xpose.msra.mxu0 0.0
      %641 = vmatprep.subr.mxu0 0.0
      %642 = vmatpush1.xpose.msra.mxu0 %v609
      %643 = vmatprep.subr.mxu0 0.0
      %644 = vmatpush2.xpose.msra.mxu0 0.0
      %645 = vmatprep.subr.mxu0 0.0
      %646 = vmatpush2.xpose.msra.mxu0 0.0
      %647 = vmatprep.subr.mxu0 0.0
      %648 = vmatpush2.xpose.msra.mxu0 0.0
      %649 = vmatprep.subr.mxu0 0.0
      %650 = vmatpush2.xpose.msra.mxu0 0.0
      %651 = vmatprep.subr.mxu0 0.0
      %652 = vmatpush2.xpose.msra.mxu0 0.0
      %653 = vmatprep.subr.mxu0 0.0
      %654 = vmatpush2.xpose.msra.mxu0 0.0
      %655 = vmatprep.subr.mxu0 0.0
      %656 = vmatpush2.xpose.msra.mxu0 0.0
      %657 = vmatprep.subr.mxu0 0.0
      %658 = vmatpush2.xpose.msra.mxu0 0.0
      %659 = vmatprep.subr.mxu0 0.0
      %660 = vmatpush2.xpose.msra.mxu0 0.0
      %661 = vmatprep.subr.mxu0 0.0
      %662 = vmatpush2.xpose.msra.mxu0 0.0
      %663 = vmatprep.subr.mxu0 0.0
      %664 = vmatpush2.xpose.msra.mxu0 0.0
      %665 = vmatprep.subr.mxu0 0.0
      %666 = vmatpush2.xpose.msra.mxu0 0.0
      %667 = vmatprep.subr.mxu0 0.0
      %668 = vmatpush2.xpose.msra.mxu0 0.0
      %669 = vmatprep.subr.mxu0 0.0
      %670 = vmatpush2.xpose.msra.mxu0 0.0
      %671 = vmatprep.subr.mxu0 0.0
      %672 = vmatpush2.xpose.msra.mxu0 0.0
      %673 = vmatprep.subr.mxu0 0.0
      %674 = vmatpush2.xpose.msra.mxu0 0.0
      %675 = vmatprep.mubr.f32.mxu0 0.0
      %676 = vmatmul.mubr.f32.gmra.mxu0 %v607
      %v677 = vpop.f32.mrf.mxu0
      %v678 = vadd.f32 0.0, %v677
      %v679 = vpop.f32.mrf.mxu0
      %680 = vdwg.mxu0
      %682 = vrot.lane.b32.xlu0 %v592, 112
      %v683 = vpop.permute.xlu0 %682
      %v684 = vsel %vm606, %v592, 0
      %v686 = vsel %vm606, %v683, 0
      %688 = vmatprep.subr.mxu0 0.0
      %689 = vmatpush1.xpose.msra.mxu0 0.0
      %690 = vmatprep.subr.mxu0 0.0
      %691 = vmatpush1.xpose.msra.mxu0 0.0
      %692 = vmatprep.subr.mxu0 0.0
      %693 = vmatpush1.xpose.msra.mxu0 0.0
      %694 = vmatprep.subr.mxu0 0.0
      %695 = vmatpush1.xpose.msra.mxu0 0.0
      %696 = vmatprep.subr.mxu0 0.0
      %697 = vmatpush1.xpose.msra.mxu0 0.0
      %698 = vmatprep.subr.mxu0 0.0
      %699 = vmatpush1.xpose.msra.mxu0 0.0
      %700 = vmatprep.subr.mxu0 0.0
      %701 = vmatpush1.xpose.msra.mxu0 0.0
      %702 = vmatprep.subr.mxu0 0.0
      %703 = vmatpush1.xpose.msra.mxu0 0.0
      %704 = vmatprep.subr.mxu0 0.0
      %705 = vmatpush1.xpose.msra.mxu0 0.0
      %706 = vmatprep.subr.mxu0 0.0
      %707 = vmatpush1.xpose.msra.mxu0 0.0
      %708 = vmatprep.subr.mxu0 0.0
      %709 = vmatpush1.xpose.msra.mxu0 0.0
      %710 = vmatprep.subr.mxu0 0.0
      %711 = vmatpush1.xpose.msra.mxu0 0.0
      %712 = vmatprep.subr.mxu0 0.0
      %713 = vmatpush1.xpose.msra.mxu0 0.0
      %714 = vmatprep.subr.mxu0 0.0
      %715 = vmatpush1.xpose.msra.mxu0 0.0
      %716 = vmatprep.subr.mxu0 0.0
      %717 = vmatpush1.xpose.msra.mxu0 0.0
      %718 = vmatprep.subr.mxu0 0.0
      %719 = vmatpush1.xpose.msra.mxu0 %v686
      %720 = vmatprep.subr.mxu0 0.0
      %721 = vmatpush2.xpose.msra.mxu0 0.0
      %722 = vmatprep.subr.mxu0 0.0
      %723 = vmatpush2.xpose.msra.mxu0 0.0
      %724 = vmatprep.subr.mxu0 0.0
      %725 = vmatpush2.xpose.msra.mxu0 0.0
      %726 = vmatprep.subr.mxu0 0.0
      %727 = vmatpush2.xpose.msra.mxu0 0.0
      %728 = vmatprep.subr.mxu0 0.0
      %729 = vmatpush2.xpose.msra.mxu0 0.0
      %730 = vmatprep.subr.mxu0 0.0
      %731 = vmatpush2.xpose.msra.mxu0 0.0
      %732 = vmatprep.subr.mxu0 0.0
      %733 = vmatpush2.xpose.msra.mxu0 0.0
      %734 = vmatprep.subr.mxu0 0.0
      %735 = vmatpush2.xpose.msra.mxu0 0.0
      %736 = vmatprep.subr.mxu0 0.0
      %737 = vmatpush2.xpose.msra.mxu0 0.0
      %738 = vmatprep.subr.mxu0 0.0
      %739 = vmatpush2.xpose.msra.mxu0 0.0
      %740 = vmatprep.subr.mxu0 0.0
      %741 = vmatpush2.xpose.msra.mxu0 0.0
      %742 = vmatprep.subr.mxu0 0.0
      %743 = vmatpush2.xpose.msra.mxu0 0.0
      %744 = vmatprep.subr.mxu0 0.0
      %745 = vmatpush2.xpose.msra.mxu0 0.0
      %746 = vmatprep.subr.mxu0 0.0
      %747 = vmatpush2.xpose.msra.mxu0 0.0
      %748 = vmatprep.subr.mxu0 0.0
      %749 = vmatpush2.xpose.msra.mxu0 0.0
      %750 = vmatprep.subr.mxu0 0.0
      %751 = vmatpush2.xpose.msra.mxu0 0.0
      %752 = vmatprep.mubr.f32.mxu0 0.0
      %753 = vmatmul.mubr.f32.gmra.mxu0 %v684
      %v754 = vpop.f32.mrf.mxu0
      %v755 = vadd.f32 0.0, %v754
      %v756 = vpop.f32.mrf.mxu0
      %757 = vdwg.mxu0
      %759 = vrot.lane.b32.xlu0 %v597, 112
      %v760 = vpop.permute.xlu0 %759
      %v761 = vsel %vm606, %v597, 0
      %v763 = vsel %vm606, %v760, 0
      %765 = vmatprep.subr.mxu0 0.0
      %766 = vmatpush1.xpose.msra.mxu0 0.0
      %767 = vmatprep.subr.mxu0 0.0
      %768 = vmatpush1.xpose.msra.mxu0 0.0
      %769 = vmatprep.subr.mxu0 0.0
      %770 = vmatpush1.xpose.msra.mxu0 0.0
      %771 = vmatprep.subr.mxu0 0.0
      %772 = vmatpush1.xpose.msra.mxu0 0.0
      %773 = vmatprep.subr.mxu0 0.0
      %774 = vmatpush1.xpose.msra.mxu0 0.0
      %775 = vmatprep.subr.mxu0 0.0
      %776 = vmatpush1.xpose.msra.mxu0 0.0
      %777 = vmatprep.subr.mxu0 0.0
      %778 = vmatpush1.xpose.msra.mxu0 0.0
      %779 = vmatprep.subr.mxu0 0.0
      %780 = vmatpush1.xpose.msra.mxu0 0.0
      %781 = vmatprep.subr.mxu0 0.0
      %782 = vmatpush1.xpose.msra.mxu0 0.0
      %783 = vmatprep.subr.mxu0 0.0
      %784 = vmatpush1.xpose.msra.mxu0 0.0
      %785 = vmatprep.subr.mxu0 0.0
      %786 = vmatpush1.xpose.msra.mxu0 0.0
      %787 = vmatprep.subr.mxu0 0.0
      %788 = vmatpush1.xpose.msra.mxu0 0.0
      %789 = vmatprep.subr.mxu0 0.0
      %790 = vmatpush1.xpose.msra.mxu0 0.0
      %791 = vmatprep.subr.mxu0 0.0
      %792 = vmatpush1.xpose.msra.mxu0 0.0
      %793 = vmatprep.subr.mxu0 0.0
      %794 = vmatpush1.xpose.msra.mxu0 0.0
      %795 = vmatprep.subr.mxu0 0.0
      %796 = vmatpush1.xpose.msra.mxu0 %v763
      %797 = vmatprep.subr.mxu0 0.0
      %798 = vmatpush2.xpose.msra.mxu0 0.0
      %799 = vmatprep.subr.mxu0 0.0
      %800 = vmatpush2.xpose.msra.mxu0 0.0
      %801 = vmatprep.subr.mxu0 0.0
      %802 = vmatpush2.xpose.msra.mxu0 0.0
      %803 = vmatprep.subr.mxu0 0.0
      %804 = vmatpush2.xpose.msra.mxu0 0.0
      %805 = vmatprep.subr.mxu0 0.0
      %806 = vmatpush2.xpose.msra.mxu0 0.0
      %807 = vmatprep.subr.mxu0 0.0
      %808 = vmatpush2.xpose.msra.mxu0 0.0
      %809 = vmatprep.subr.mxu0 0.0
      %810 = vmatpush2.xpose.msra.mxu0 0.0
      %811 = vmatprep.subr.mxu0 0.0
      %812 = vmatpush2.xpose.msra.mxu0 0.0
      %813 = vmatprep.subr.mxu0 0.0
      %814 = vmatpush2.xpose.msra.mxu0 0.0
      %815 = vmatprep.subr.mxu0 0.0
      %816 = vmatpush2.xpose.msra.mxu0 0.0
      %817 = vmatprep.subr.mxu0 0.0
      %818 = vmatpush2.xpose.msra.mxu0 0.0
      %819 = vmatprep.subr.mxu0 0.0
      %820 = vmatpush2.xpose.msra.mxu0 0.0
      %821 = vmatprep.subr.mxu0 0.0
      %822 = vmatpush2.xpose.msra.mxu0 0.0
      %823 = vmatprep.subr.mxu0 0.0
      %824 = vmatpush2.xpose.msra.mxu0 0.0
      %825 = vmatprep.subr.mxu0 0.0
      %826 = vmatpush2.xpose.msra.mxu0 0.0
      %827 = vmatprep.subr.mxu0 0.0
      %828 = vmatpush2.xpose.msra.mxu0 0.0
      %829 = vmatprep.mubr.f32.mxu0 0.0
      %830 = vmatmul.mubr.f32.gmra.mxu0 %v761
      %v831 = vpop.f32.mrf.mxu0
      %v832 = vadd.f32 0.0, %v831
      %v833 = vpop.f32.mrf.mxu0
      %834 = vdwg.mxu0
      %v835 = vmul.f32 %v678, 0.5
      %v836 = vmul.f32 %v755, 0.5
      %v837 = vmul.f32 %v832, 0.5
      %v838 = vsel %vm602, 1, 0
      %vm839 = vcmp.eq.s32.totalorder %v838, 1
      %v840 = vsel %vm839, %v835, -1e+30
      %v841 = vsel %vm839, %v836, -1e+30
      %v842 = vsel %vm839, %v837, -1e+30
      %vm843 = vcmask 64512
      %v844 = vsel %vm843, %v840, -inf
      %845 = vmax.xlane.f32.xlu0 %v844
      %v846 = vpop.xlane.xlu0 %845
      %v847 = vsel %vm843, %v841, -inf
      %848 = vmax.xlane.f32.xlu0 %v847
      %v849 = vpop.xlane.xlu0 %848
      %v850 = vsel %vm843, %v842, -inf
      %851 = vmax.xlane.f32.xlu0 %v850
      %v852 = vpop.xlane.xlu0 %851
      %v853 = vsub.f32 %v840, %v846
      %v854 = vsub.f32 %v841, %v849
      %v855 = vsub.f32 %v842, %v852
      %v856 = vmul.f32 %v853, 1.442695
      %v857 = vpow.pop %v856
      %v858 = vmul.f32 %v854, 1.442695
      %v859 = vpow.pop %v858
      %v860 = vmul.f32 %v855, 1.442695
      %v861 = vpow.pop %v860
      %v862 = vsel %vm843, %v857, 0.0
      %863 = vadd.xlane.f32.xlu0 %v862
      %v864 = vpop.xlane.xlu0 %863
      %v865 = vsel %vm843, %v859, 0.0
      %866 = vadd.xlane.f32.xlu0 %v865
      %v867 = vpop.xlane.xlu0 %866
      %v868 = vsel %vm843, %v861, 0.0
      %869 = vadd.xlane.f32.xlu0 %v868
      %v870 = vpop.xlane.xlu0 %869
      %v871 = vrcp.pop %v864
      %v872 = vrcp.pop %v867
      %v873 = vrcp.pop %v870
      %v874 = vmul.f32 %v857, %v871
      %v875 = vmul.f32 %v859, %v872
      %v876 = vmul.f32 %v861, %v873
      %877 = vrot.lane.b32.xlu0 %v587, 96
      %v878 = vpop.permute.xlu0 %877
      %v881 = vsel %vm843, %v874, 0
      %883 = vmatprep.subr.mxu0 0.0
      %884 = vmatpush1.msra.mxu0 0.0
      %885 = vmatprep.subr.mxu0 0.0
      %886 = vmatpush1.msra.mxu0 0.0
      %887 = vmatprep.subr.mxu0 0.0
      %888 = vmatpush1.msra.mxu0 0.0
      %889 = vmatprep.subr.mxu0 0.0
      %890 = vmatpush1.msra.mxu0 0.0
      %891 = vmatprep.subr.mxu0 0.0
      %892 = vmatpush1.msra.mxu0 0.0
      %893 = vmatprep.subr.mxu0 0.0
      %894 = vmatpush1.msra.mxu0 0.0
      %895 = vmatprep.subr.mxu0 0.0
      %896 = vmatpush1.msra.mxu0 0.0
      %897 = vmatprep.subr.mxu0 0.0
      %898 = vmatpush1.msra.mxu0 0.0
      %899 = vmatprep.subr.mxu0 0.0
      %900 = vmatpush1.msra.mxu0 0.0
      %901 = vmatprep.subr.mxu0 0.0
      %902 = vmatpush1.msra.mxu0 0.0
      %903 = vmatprep.subr.mxu0 0.0
      %904 = vmatpush1.msra.mxu0 0.0
      %905 = vmatprep.subr.mxu0 0.0
      %906 = vmatpush1.msra.mxu0 0.0
      %907 = vmatprep.subr.mxu0 0.0
      %908 = vmatpush1.msra.mxu0 0.0
      %909 = vmatprep.subr.mxu0 0.0
      %910 = vmatpush1.msra.mxu0 0.0
      %911 = vmatprep.subr.mxu0 0.0
      %912 = vmatpush1.msra.mxu0 0.0
      %913 = vmatprep.subr.mxu0 0.0
      %914 = vmatpush1.msra.mxu0 %v878
      %915 = vmatprep.subr.mxu0 0.0
      %916 = vmatpush2.msra.mxu0 0.0
      %917 = vmatprep.subr.mxu0 0.0
      %918 = vmatpush2.msra.mxu0 0.0
      %919 = vmatprep.subr.mxu0 0.0
      %920 = vmatpush2.msra.mxu0 0.0
      %921 = vmatprep.subr.mxu0 0.0
      %922 = vmatpush2.msra.mxu0 0.0
      %923 = vmatprep.subr.mxu0 0.0
      %924 = vmatpush2.msra.mxu0 0.0
      %925 = vmatprep.subr.mxu0 0.0
      %926 = vmatpush2.msra.mxu0 0.0
      %927 = vmatprep.subr.mxu0 0.0
      %928 = vmatpush2.msra.mxu0 0.0
      %929 = vmatprep.subr.mxu0 0.0
      %930 = vmatpush2.msra.mxu0 0.0
      %931 = vmatprep.subr.mxu0 0.0
      %932 = vmatpush2.msra.mxu0 0.0
      %933 = vmatprep.subr.mxu0 0.0
      %934 = vmatpush2.msra.mxu0 0.0
      %935 = vmatprep.subr.mxu0 0.0
      %936 = vmatpush2.msra.mxu0 0.0
      %937 = vmatprep.subr.mxu0 0.0
      %938 = vmatpush2.msra.mxu0 0.0
      %939 = vmatprep.subr.mxu0 0.0
      %940 = vmatpush2.msra.mxu0 0.0
      %941 = vmatprep.subr.mxu0 0.0
      %942 = vmatpush2.msra.mxu0 0.0
      %943 = vmatprep.subr.mxu0 0.0
      %944 = vmatpush2.msra.mxu0 0.0
      %945 = vmatprep.subr.mxu0 0.0
      %946 = vmatpush2.msra.mxu0 0.0
      %947 = vmatprep.mubr.f32.mxu0 0.0
      %948 = vmatmul.mubr.f32.gmra.mxu0 %v881
      %v949 = vpop.f32.mrf.mxu0
      %v950 = vadd.f32 0.0, %v949
      %v951 = vpop.f32.mrf.mxu0
      %952 = vdwg.mxu0
      %953 = vrot.lane.b32.xlu0 %v592, 96
      %v954 = vpop.permute.xlu0 %953
      %v957 = vsel %vm843, %v875, 0
      %959 = vmatprep.subr.mxu0 0.0
      %960 = vmatpush1.msra.mxu0 0.0
      %961 = vmatprep.subr.mxu0 0.0
      %962 = vmatpush1.msra.mxu0 0.0
      %963 = vmatprep.subr.mxu0 0.0
      %964 = vmatpush1.msra.mxu0 0.0
      %965 = vmatprep.subr.mxu0 0.0
      %966 = vmatpush1.msra.mxu0 0.0
      %967 = vmatprep.subr.mxu0 0.0
      %968 = vmatpush1.msra.mxu0 0.0
      %969 = vmatprep.subr.mxu0 0.0
      %970 = vmatpush1.msra.mxu0 0.0
      %971 = vmatprep.subr.mxu0 0.0
      %972 = vmatpush1.msra.mxu0 0.0
      %973 = vmatprep.subr.mxu0 0.0
      %974 = vmatpush1.msra.mxu0 0.0
      %975 = vmatprep.subr.mxu0 0.0
      %976 = vmatpush1.msra.mxu0 0.0
      %977 = vmatprep.subr.mxu0 0.0
      %978 = vmatpush1.msra.mxu0 0.0
      %979 = vmatprep.subr.mxu0 0.0
      %980 = vmatpush1.msra.mxu0 0.0
      %981 = vmatprep.subr.mxu0 0.0
      %982 = vmatpush1.msra.mxu0 0.0
      %983 = vmatprep.subr.mxu0 0.0
      %984 = vmatpush1.msra.mxu0 0.0
      %985 = vmatprep.subr.mxu0 0.0
      %986 = vmatpush1.msra.mxu0 0.0
      %987 = vmatprep.subr.mxu0 0.0
      %988 = vmatpush1.msra.mxu0 0.0
      %989 = vmatprep.subr.mxu0 0.0
      %990 = vmatpush1.msra.mxu0 %v954
      %991 = vmatprep.subr.mxu0 0.0
      %992 = vmatpush2.msra.mxu0 0.0
      %993 = vmatprep.subr.mxu0 0.0
      %994 = vmatpush2.msra.mxu0 0.0
      %995 = vmatprep.subr.mxu0 0.0
      %996 = vmatpush2.msra.mxu0 0.0
      %997 = vmatprep.subr.mxu0 0.0
      %998 = vmatpush2.msra.mxu0 0.0
      %999 = vmatprep.subr.mxu0 0.0
      %1000 = vmatpush2.msra.mxu0 0.0
      %1001 = vmatprep.subr.mxu0 0.0
      %1002 = vmatpush2.msra.mxu0 0.0
      %1003 = vmatprep.subr.mxu0 0.0
      %1004 = vmatpush2.msra.mxu0 0.0
      %1005 = vmatprep.subr.mxu0 0.0
      %1006 = vmatpush2.msra.mxu0 0.0
      %1007 = vmatprep.subr.mxu0 0.0
      %1008 = vmatpush2.msra.mxu0 0.0
      %1009 = vmatprep.subr.mxu0 0.0
      %1010 = vmatpush2.msra.mxu0 0.0
      %1011 = vmatprep.subr.mxu0 0.0
      %1012 = vmatpush2.msra.mxu0 0.0
      %1013 = vmatprep.subr.mxu0 0.0
      %1014 = vmatpush2.msra.mxu0 0.0
      %1015 = vmatprep.subr.mxu0 0.0
      %1016 = vmatpush2.msra.mxu0 0.0
      %1017 = vmatprep.subr.mxu0 0.0
      %1018 = vmatpush2.msra.mxu0 0.0
      %1019 = vmatprep.subr.mxu0 0.0
      %1020 = vmatpush2.msra.mxu0 0.0
      %1021 = vmatprep.subr.mxu0 0.0
      %1022 = vmatpush2.msra.mxu0 0.0
      %1023 = vmatprep.mubr.f32.mxu0 0.0
      %1024 = vmatmul.mubr.f32.gmra.mxu0 %v957
      %v1025 = vpop.f32.mrf.mxu0
      %v1026 = vadd.f32 0.0, %v1025
      %v1027 = vpop.f32.mrf.mxu0
      %1028 = vdwg.mxu0
      %1029 = vrot.lane.b32.xlu0 %v597, 96
      %v1030 = vpop.permute.xlu0 %1029
      %v1033 = vsel %vm843, %v876, 0
      %1035 = vmatprep.subr.mxu0 0.0
      %1036 = vmatpush1.msra.mxu0 0.0
      %1037 = vmatprep.subr.mxu0 0.0
      %1038 = vmatpush1.msra.mxu0 0.0
      %1039 = vmatprep.subr.mxu0 0.0
      %1040 = vmatpush1.msra.mxu0 0.0
      %1041 = vmatprep.subr.mxu0 0.0
      %1042 = vmatpush1.msra.mxu0 0.0
      %1043 = vmatprep.subr.mxu0 0.0
      %1044 = vmatpush1.msra.mxu0 0.0
      %1045 = vmatprep.subr.mxu0 0.0
      %1046 = vmatpush1.msra.mxu0 0.0
      %1047 = vmatprep.subr.mxu0 0.0
      %1048 = vmatpush1.msra.mxu0 0.0
      %1049 = vmatprep.subr.mxu0 0.0
      %1050 = vmatpush1.msra.mxu0 0.0
      %1051 = vmatprep.subr.mxu0 0.0
      %1052 = vmatpush1.msra.mxu0 0.0
      %1053 = vmatprep.subr.mxu0 0.0
      %1054 = vmatpush1.msra.mxu0 0.0
      %1055 = vmatprep.subr.mxu0 0.0
      %1056 = vmatpush1.msra.mxu0 0.0
      %1057 = vmatprep.subr.mxu0 0.0
      %1058 = vmatpush1.msra.mxu0 0.0
      %1059 = vmatprep.subr.mxu0 0.0
      %1060 = vmatpush1.msra.mxu0 0.0
      %1061 = vmatprep.subr.mxu0 0.0
      %1062 = vmatpush1.msra.mxu0 0.0
      %1063 = vmatprep.subr.mxu0 0.0
      %1064 = vmatpush1.msra.mxu0 0.0
      %1065 = vmatprep.subr.mxu0 0.0
      %1066 = vmatpush1.msra.mxu0 %v1030
      %1067 = vmatprep.subr.mxu0 0.0
      %1068 = vmatpush2.msra.mxu0 0.0
      %1069 = vmatprep.subr.mxu0 0.0
      %1070 = vmatpush2.msra.mxu0 0.0
      %1071 = vmatprep.subr.mxu0 0.0
      %1072 = vmatpush2.msra.mxu0 0.0
      %1073 = vmatprep.subr.mxu0 0.0
      %1074 = vmatpush2.msra.mxu0 0.0
      %1075 = vmatprep.subr.mxu0 0.0
      %1076 = vmatpush2.msra.mxu0 0.0
      %1077 = vmatprep.subr.mxu0 0.0
      %1078 = vmatpush2.msra.mxu0 0.0
      %1079 = vmatprep.subr.mxu0 0.0
      %1080 = vmatpush2.msra.mxu0 0.0
      %1081 = vmatprep.subr.mxu0 0.0
      %1082 = vmatpush2.msra.mxu0 0.0
      %1083 = vmatprep.subr.mxu0 0.0
      %1084 = vmatpush2.msra.mxu0 0.0
      %1085 = vmatprep.subr.mxu0 0.0
      %1086 = vmatpush2.msra.mxu0 0.0
      %1087 = vmatprep.subr.mxu0 0.0
      %1088 = vmatpush2.msra.mxu0 0.0
      %1089 = vmatprep.subr.mxu0 0.0
      %1090 = vmatpush2.msra.mxu0 0.0
      %1091 = vmatprep.subr.mxu0 0.0
      %1092 = vmatpush2.msra.mxu0 0.0
      %1093 = vmatprep.subr.mxu0 0.0
      %1094 = vmatpush2.msra.mxu0 0.0
      %1095 = vmatprep.subr.mxu0 0.0
      %1096 = vmatpush2.msra.mxu0 0.0
      %1097 = vmatprep.subr.mxu0 0.0
      %1098 = vmatpush2.msra.mxu0 0.0
      %1099 = vmatprep.mubr.f32.mxu0 0.0
      %1100 = vmatmul.mubr.f32.gmra.mxu0 %v1033
      %v1101 = vpop.f32.mrf.mxu0
      %v1102 = vadd.f32 0.0, %v1101
      %v1103 = vpop.f32.mrf.mxu0
      %1104 = vdwg.mxu0
      %1105 = vrot.lane.b32.xlu0 %v587, 124
      %v1106 = vpop.permute.xlu0 %1105
      %1107 = vrot.lane.b32.xlu0 %v587, 108
      %v1108 = vpop.permute.xlu0 %1107
      %v1109 = vsel %vm606, %v1106, 0
      %v1111 = vsel %vm606, %v1108, 0
      %1113 = vmatprep.subr.mxu0 0.0
      %1114 = vmatpush1.xpose.msra.mxu0 0.0
      %1115 = vmatprep.subr.mxu0 0.0
      %1116 = vmatpush1.xpose.msra.mxu0 0.0
      %1117 = vmatprep.subr.mxu0 0.0
      %1118 = vmatpush1.xpose.msra.mxu0 0.0
      %1119 = vmatprep.subr.mxu0 0.0
      %1120 = vmatpush1.xpose.msra.mxu0 0.0
      %1121 = vmatprep.subr.mxu0 0.0
      %1122 = vmatpush1.xpose.msra.mxu0 0.0
      %1123 = vmatprep.subr.mxu0 0.0
      %1124 = vmatpush1.xpose.msra.mxu0 0.0
      %1125 = vmatprep.subr.mxu0 0.0
      %1126 = vmatpush1.xpose.msra.mxu0 0.0
      %1127 = vmatprep.subr.mxu0 0.0
      %1128 = vmatpush1.xpose.msra.mxu0 0.0
      %1129 = vmatprep.subr.mxu0 0.0
      %1130 = vmatpush1.xpose.msra.mxu0 0.0
      %1131 = vmatprep.subr.mxu0 0.0
      %1132 = vmatpush1.xpose.msra.mxu0 0.0
      %1133 = vmatprep.subr.mxu0 0.0
      %1134 = vmatpush1.xpose.msra.mxu0 0.0
      %1135 = vmatprep.subr.mxu0 0.0
      %1136 = vmatpush1.xpose.msra.mxu0 0.0
      %1137 = vmatprep.subr.mxu0 0.0
      %1138 = vmatpush1.xpose.msra.mxu0 0.0
      %1139 = vmatprep.subr.mxu0 0.0
      %1140 = vmatpush1.xpose.msra.mxu0 0.0
      %1141 = vmatprep.subr.mxu0 0.0
      %1142 = vmatpush1.xpose.msra.mxu0 0.0
      %1143 = vmatprep.subr.mxu0 0.0
      %1144 = vmatpush1.xpose.msra.mxu0 %v1111
      %1145 = vmatprep.subr.mxu0 0.0
      %1146 = vmatpush2.xpose.msra.mxu0 0.0
      %1147 = vmatprep.subr.mxu0 0.0
      %1148 = vmatpush2.xpose.msra.mxu0 0.0
      %1149 = vmatprep.subr.mxu0 0.0
      %1150 = vmatpush2.xpose.msra.mxu0 0.0
      %1151 = vmatprep.subr.mxu0 0.0
      %1152 = vmatpush2.xpose.msra.mxu0 0.0
      %1153 = vmatprep.subr.mxu0 0.0
      %1154 = vmatpush2.xpose.msra.mxu0 0.0
      %1155 = vmatprep.subr.mxu0 0.0
      %1156 = vmatpush2.xpose.msra.mxu0 0.0
      %1157 = vmatprep.subr.mxu0 0.0
      %1158 = vmatpush2.xpose.msra.mxu0 0.0
      %1159 = vmatprep.subr.mxu0 0.0
      %1160 = vmatpush2.xpose.msra.mxu0 0.0
      %1161 = vmatprep.subr.mxu0 0.0
      %1162 = vmatpush2.xpose.msra.mxu0 0.0
      %1163 = vmatprep.subr.mxu0 0.0
      %1164 = vmatpush2.xpose.msra.mxu0 0.0
      %1165 = vmatprep.subr.mxu0 0.0
      %1166 = vmatpush2.xpose.msra.mxu0 0.0
      %1167 = vmatprep.subr.mxu0 0.0
      %1168 = vmatpush2.xpose.msra.mxu0 0.0
      %1169 = vmatprep.subr.mxu0 0.0
      %1170 = vmatpush2.xpose.msra.mxu0 0.0
      %1171 = vmatprep.subr.mxu0 0.0
      %1172 = vmatpush2.xpose.msra.mxu0 0.0
      %1173 = vmatprep.subr.mxu0 0.0
      %1174 = vmatpush2.xpose.msra.mxu0 0.0
      %1175 = vmatprep.subr.mxu0 0.0
      %1176 = vmatpush2.xpose.msra.mxu0 0.0
      %1177 = vmatprep.mubr.f32.mxu0 0.0
      %1178 = vmatmul.mubr.f32.gmra.mxu0 %v1109
      %v1179 = vpop.f32.mrf.mxu0
      %v1180 = vadd.f32 0.0, %v1179
      %v1181 = vpop.f32.mrf.mxu0
      %1182 = vdwg.mxu0
      %1183 = vrot.lane.b32.xlu0 %v592, 124
      %v1184 = vpop.permute.xlu0 %1183
      %1185 = vrot.lane.b32.xlu0 %v592, 108
      %v1186 = vpop.permute.xlu0 %1185
      %v1187 = vsel %vm606, %v1184, 0
      %v1189 = vsel %vm606, %v1186, 0
      %1191 = vmatprep.subr.mxu0 0.0
      %1192 = vmatpush1.xpose.msra.mxu0 0.0
      %1193 = vmatprep.subr.mxu0 0.0
      %1194 = vmatpush1.xpose.msra.mxu0 0.0
      %1195 = vmatprep.subr.mxu0 0.0
      %1196 = vmatpush1.xpose.msra.mxu0 0.0
      %1197 = vmatprep.subr.mxu0 0.0
      %1198 = vmatpush1.xpose.msra.mxu0 0.0
      %1199 = vmatprep.subr.mxu0 0.0
      %1200 = vmatpush1.xpose.msra.mxu0 0.0
      %1201 = vmatprep.subr.mxu0 0.0
      %1202 = vmatpush1.xpose.msra.mxu0 0.0
      %1203 = vmatprep.subr.mxu0 0.0
      %1204 = vmatpush1.xpose.msra.mxu0 0.0
      %1205 = vmatprep.subr.mxu0 0.0
      %1206 = vmatpush1.xpose.msra.mxu0 0.0
      %1207 = vmatprep.subr.mxu0 0.0
      %1208 = vmatpush1.xpose.msra.mxu0 0.0
      %1209 = vmatprep.subr.mxu0 0.0
      %1210 = vmatpush1.xpose.msra.mxu0 0.0
      %1211 = vmatprep.subr.mxu0 0.0
      %1212 = vmatpush1.xpose.msra.mxu0 0.0
      %1213 = vmatprep.subr.mxu0 0.0
      %1214 = vmatpush1.xpose.msra.mxu0 0.0
      %1215 = vmatprep.subr.mxu0 0.0
      %1216 = vmatpush1.xpose.msra.mxu0 0.0
      %1217 = vmatprep.subr.mxu0 0.0
      %1218 = vmatpush1.xpose.msra.mxu0 0.0
      %1219 = vmatprep.subr.mxu0 0.0
      %1220 = vmatpush1.xpose.msra.mxu0 0.0
      %1221 = vmatprep.subr.mxu0 0.0
      %1222 = vmatpush1.xpose.msra.mxu0 %v1189
      %1223 = vmatprep.subr.mxu0 0.0
      %1224 = vmatpush2.xpose.msra.mxu0 0.0
      %1225 = vmatprep.subr.mxu0 0.0
      %1226 = vmatpush2.xpose.msra.mxu0 0.0
      %1227 = vmatprep.subr.mxu0 0.0
      %1228 = vmatpush2.xpose.msra.mxu0 0.0
      %1229 = vmatprep.subr.mxu0 0.0
      %1230 = vmatpush2.xpose.msra.mxu0 0.0
      %1231 = vmatprep.subr.mxu0 0.0
      %1232 = vmatpush2.xpose.msra.mxu0 0.0
      %1233 = vmatprep.subr.mxu0 0.0
      %1234 = vmatpush2.xpose.msra.mxu0 0.0
      %1235 = vmatprep.subr.mxu0 0.0
      %1236 = vmatpush2.xpose.msra.mxu0 0.0
      %1237 = vmatprep.subr.mxu0 0.0
      %1238 = vmatpush2.xpose.msra.mxu0 0.0
      %1239 = vmatprep.subr.mxu0 0.0
      %1240 = vmatpush2.xpose.msra.mxu0 0.0
      %1241 = vmatprep.subr.mxu0 0.0
      %1242 = vmatpush2.xpose.msra.mxu0 0.0
      %1243 = vmatprep.subr.mxu0 0.0
      %1244 = vmatpush2.xpose.msra.mxu0 0.0
      %1245 = vmatprep.subr.mxu0 0.0
      %1246 = vmatpush2.xpose.msra.mxu0 0.0
      %1247 = vmatprep.subr.mxu0 0.0
      %1248 = vmatpush2.xpose.msra.mxu0 0.0
      %1249 = vmatprep.subr.mxu0 0.0
      %1250 = vmatpush2.xpose.msra.mxu0 0.0
      %1251 = vmatprep.subr.mxu0 0.0
      %1252 = vmatpush2.xpose.msra.mxu0 0.0
      %1253 = vmatprep.subr.mxu0 0.0
      %1254 = vmatpush2.xpose.msra.mxu0 0.0
      %1255 = vmatprep.mubr.f32.mxu0 0.0
      %1256 = vmatmul.mubr.f32.gmra.mxu0 %v1187
      %v1257 = vpop.f32.mrf.mxu0
      %v1258 = vadd.f32 0.0, %v1257
      %v1259 = vpop.f32.mrf.mxu0
      %1260 = vdwg.mxu0
      %1261 = vrot.lane.b32.xlu0 %v597, 124
      %v1262 = vpop.permute.xlu0 %1261
      %1263 = vrot.lane.b32.xlu0 %v597, 108
      %v1264 = vpop.permute.xlu0 %1263
      %v1265 = vsel %vm606, %v1262, 0
      %v1267 = vsel %vm606, %v1264, 0
      %1269 = vmatprep.subr.mxu0 0.0
      %1270 = vmatpush1.xpose.msra.mxu0 0.0
      %1271 = vmatprep.subr.mxu0 0.0
      %1272 = vmatpush1.xpose.msra.mxu0 0.0
      %1273 = vmatprep.subr.mxu0 0.0
      %1274 = vmatpush1.xpose.msra.mxu0 0.0
      %1275 = vmatprep.subr.mxu0 0.0
      %1276 = vmatpush1.xpose.msra.mxu0 0.0
      %1277 = vmatprep.subr.mxu0 0.0
      %1278 = vmatpush1.xpose.msra.mxu0 0.0
      %1279 = vmatprep.subr.mxu0 0.0
      %1280 = vmatpush1.xpose.msra.mxu0 0.0
      %1281 = vmatprep.subr.mxu0 0.0
      %1282 = vmatpush1.xpose.msra.mxu0 0.0
      %1283 = vmatprep.subr.mxu0 0.0
      %1284 = vmatpush1.xpose.msra.mxu0 0.0
      %1285 = vmatprep.subr.mxu0 0.0
      %1286 = vmatpush1.xpose.msra.mxu0 0.0
      %1287 = vmatprep.subr.mxu0 0.0
      %1288 = vmatpush1.xpose.msra.mxu0 0.0
      %1289 = vmatprep.subr.mxu0 0.0
      %1290 = vmatpush1.xpose.msra.mxu0 0.0
      %1291 = vmatprep.subr.mxu0 0.0
      %1292 = vmatpush1.xpose.msra.mxu0 0.0
      %1293 = vmatprep.subr.mxu0 0.0
      %1294 = vmatpush1.xpose.msra.mxu0 0.0
      %1295 = vmatprep.subr.mxu0 0.0
      %1296 = vmatpush1.xpose.msra.mxu0 0.0
      %1297 = vmatprep.subr.mxu0 0.0
      %1298 = vmatpush1.xpose.msra.mxu0 0.0
      %1299 = vmatprep.subr.mxu0 0.0
      %1300 = vmatpush1.xpose.msra.mxu0 %v1267
      %1301 = vmatprep.subr.mxu0 0.0
      %1302 = vmatpush2.xpose.msra.mxu0 0.0
      %1303 = vmatprep.subr.mxu0 0.0
      %1304 = vmatpush2.xpose.msra.mxu0 0.0
      %1305 = vmatprep.subr.mxu0 0.0
      %1306 = vmatpush2.xpose.msra.mxu0 0.0
      %1307 = vmatprep.subr.mxu0 0.0
      %1308 = vmatpush2.xpose.msra.mxu0 0.0
      %1309 = vmatprep.subr.mxu0 0.0
      %1310 = vmatpush2.xpose.msra.mxu0 0.0
      %1311 = vmatprep.subr.mxu0 0.0
      %1312 = vmatpush2.xpose.msra.mxu0 0.0
      %1313 = vmatprep.subr.mxu0 0.0
      %1314 = vmatpush2.xpose.msra.mxu0 0.0
      %1315 = vmatprep.subr.mxu0 0.0
      %1316 = vmatpush2.xpose.msra.mxu0 0.0
      %1317 = vmatprep.subr.mxu0 0.0
      %1318 = vmatpush2.xpose.msra.mxu0 0.0
      %1319 = vmatprep.subr.mxu0 0.0
      %1320 = vmatpush2.xpose.msra.mxu0 0.0
      %1321 = vmatprep.subr.mxu0 0.0
      %1322 = vmatpush2.xpose.msra.mxu0 0.0
      %1323 = vmatprep.subr.mxu0 0.0
      %1324 = vmatpush2.xpose.msra.mxu0 0.0
      %1325 = vmatprep.subr.mxu0 0.0
      %1326 = vmatpush2.xpose.msra.mxu0 0.0
      %1327 = vmatprep.subr.mxu0 0.0
      %1328 = vmatpush2.xpose.msra.mxu0 0.0
      %1329 = vmatprep.subr.mxu0 0.0
      %1330 = vmatpush2.xpose.msra.mxu0 0.0
      %1331 = vmatprep.subr.mxu0 0.0
      %1332 = vmatpush2.xpose.msra.mxu0 0.0
      %1333 = vmatprep.mubr.f32.mxu0 0.0
      %1334 = vmatmul.mubr.f32.gmra.mxu0 %v1265
      %v1335 = vpop.f32.mrf.mxu0
      %v1336 = vadd.f32 0.0, %v1335
      %v1337 = vpop.f32.mrf.mxu0
      %1338 = vdwg.mxu0
      %v1339 = vmul.f32 %v1180, 0.5
      %v1340 = vmul.f32 %v1258, 0.5
      %v1341 = vmul.f32 %v1336, 0.5
      %v1342 = vsel %vm839, %v1339, -1e+30
      %v1343 = vsel %vm839, %v1340, -1e+30
      %v1344 = vsel %vm839, %v1341, -1e+30
      %v1345 = vsel %vm843, %v1342, -inf
      %1346 = vmax.xlane.f32.xlu0 %v1345
      %v1347 = vpop.xlane.xlu0 %1346
      %v1348 = vsel %vm843, %v1343, -inf
      %1349 = vmax.xlane.f32.xlu0 %v1348
      %v1350 = vpop.xlane.xlu0 %1349
      %v1351 = vsel %vm843, %v1344, -inf
      %1352 = vmax.xlane.f32.xlu0 %v1351
      %v1353 = vpop.xlane.xlu0 %1352
      %v1354 = vsub.f32 %v1342, %v1347
      %v1355 = vsub.f32 %v1343, %v1350
      %v1356 = vsub.f32 %v1344, %v1353
      %v1357 = vmul.f32 %v1354, 1.442695
      %v1358 = vpow.pop %v1357
      %v1359 = vmul.f32 %v1355, 1.442695
      %v1360 = vpow.pop %v1359
      %v1361 = vmul.f32 %v1356, 1.442695
      %v1362 = vpow.pop %v1361
      %v1363 = vsel %vm843, %v1358, 0.0
      %1364 = vadd.xlane.f32.xlu0 %v1363
      %v1365 = vpop.xlane.xlu0 %1364
      %v1366 = vsel %vm843, %v1360, 0.0
      %1367 = vadd.xlane.f32.xlu0 %v1366
      %v1368 = vpop.xlane.xlu0 %1367
      %v1369 = vsel %vm843, %v1362, 0.0
      %1370 = vadd.xlane.f32.xlu0 %v1369
      %v1371 = vpop.xlane.xlu0 %1370
      %v1372 = vrcp.pop %v1365
      %v1373 = vrcp.pop %v1368
      %v1374 = vrcp.pop %v1371
      %v1375 = vmul.f32 %v1358, %v1372
      %v1376 = vmul.f32 %v1360, %v1373
      %v1377 = vmul.f32 %v1362, %v1374
      %1378 = vrot.lane.b32.xlu0 %v587, 92
      %v1379 = vpop.permute.xlu0 %1378
      %v1382 = vsel %vm843, %v1375, 0
      %1384 = vmatprep.subr.mxu0 0.0
      %1385 = vmatpush1.msra.mxu0 0.0
      %1386 = vmatprep.subr.mxu0 0.0
      %1387 = vmatpush1.msra.mxu0 0.0
      %1388 = vmatprep.subr.mxu0 0.0
      %1389 = vmatpush1.msra.mxu0 0.0
      %1390 = vmatprep.subr.mxu0 0.0
      %1391 = vmatpush1.msra.mxu0 0.0
      %1392 = vmatprep.subr.mxu0 0.0
      %1393 = vmatpush1.msra.mxu0 0.0
      %1394 = vmatprep.subr.mxu0 0.0
      %1395 = vmatpush1.msra.mxu0 0.0
      %1396 = vmatprep.subr.mxu0 0.0
      %1397 = vmatpush1.msra.mxu0 0.0
      %1398 = vmatprep.subr.mxu0 0.0
      %1399 = vmatpush1.msra.mxu0 0.0
      %1400 = vmatprep.subr.mxu0 0.0
      %1401 = vmatpush1.msra.mxu0 0.0
      %1402 = vmatprep.subr.mxu0 0.0
      %1403 = vmatpush1.msra.mxu0 0.0
      %1404 = vmatprep.subr.mxu0 0.0
      %1405 = vmatpush1.msra.mxu0 0.0
      %1406 = vmatprep.subr.mxu0 0.0
      %1407 = vmatpush1.msra.mxu0 0.0
      %1408 = vmatprep.subr.mxu0 0.0
      %1409 = vmatpush1.msra.mxu0 0.0
      %1410 = vmatprep.subr.mxu0 0.0
      %1411 = vmatpush1.msra.mxu0 0.0
      %1412 = vmatprep.subr.mxu0 0.0
      %1413 = vmatpush1.msra.mxu0 0.0
      %1414 = vmatprep.subr.mxu0 0.0
      %1415 = vmatpush1.msra.mxu0 %v1379
      %1416 = vmatprep.subr.mxu0 0.0
      %1417 = vmatpush2.msra.mxu0 0.0
      %1418 = vmatprep.subr.mxu0 0.0
      %1419 = vmatpush2.msra.mxu0 0.0
      %1420 = vmatprep.subr.mxu0 0.0
      %1421 = vmatpush2.msra.mxu0 0.0
      %1422 = vmatprep.subr.mxu0 0.0
      %1423 = vmatpush2.msra.mxu0 0.0
      %1424 = vmatprep.subr.mxu0 0.0
      %1425 = vmatpush2.msra.mxu0 0.0
      %1426 = vmatprep.subr.mxu0 0.0
      %1427 = vmatpush2.msra.mxu0 0.0
      %1428 = vmatprep.subr.mxu0 0.0
      %1429 = vmatpush2.msra.mxu0 0.0
      %1430 = vmatprep.subr.mxu0 0.0
      %1431 = vmatpush2.msra.mxu0 0.0
      %1432 = vmatprep.subr.mxu0 0.0
      %1433 = vmatpush2.msra.mxu0 0.0
      %1434 = vmatprep.subr.mxu0 0.0
      %1435 = vmatpush2.msra.mxu0 0.0
      %1436 = vmatprep.subr.mxu0 0.0
      %1437 = vmatpush2.msra.mxu0 0.0
      %1438 = vmatprep.subr.mxu0 0.0
      %1439 = vmatpush2.msra.mxu0 0.0
      %1440 = vmatprep.subr.mxu0 0.0
      %1441 = vmatpush2.msra.mxu0 0.0
      %1442 = vmatprep.subr.mxu0 0.0
      %1443 = vmatpush2.msra.mxu0 0.0
      %1444 = vmatprep.subr.mxu0 0.0
      %1445 = vmatpush2.msra.mxu0 0.0
      %1446 = vmatprep.subr.mxu0 0.0
      %1447 = vmatpush2.msra.mxu0 0.0
      %1448 = vmatprep.mubr.f32.mxu0 0.0
      %1449 = vmatmul.mubr.f32.gmra.mxu0 %v1382
      %v1450 = vpop.f32.mrf.mxu0
      %v1451 = vadd.f32 0.0, %v1450
      %v1452 = vpop.f32.mrf.mxu0
      %1453 = vdwg.mxu0
      %1454 = vrot.lane.b32.xlu0 %v592, 92
      %v1455 = vpop.permute.xlu0 %1454
      %v1458 = vsel %vm843, %v1376, 0
      %1460 = vmatprep.subr.mxu0 0.0
      %1461 = vmatpush1.msra.mxu0 0.0
      %1462 = vmatprep.subr.mxu0 0.0
      %1463 = vmatpush1.msra.mxu0 0.0
      %1464 = vmatprep.subr.mxu0 0.0
      %1465 = vmatpush1.msra.mxu0 0.0
      %1466 = vmatprep.subr.mxu0 0.0
      %1467 = vmatpush1.msra.mxu0 0.0
      %1468 = vmatprep.subr.mxu0 0.0
      %1469 = vmatpush1.msra.mxu0 0.0
      %1470 = vmatprep.subr.mxu0 0.0
      %1471 = vmatpush1.msra.mxu0 0.0
      %1472 = vmatprep.subr.mxu0 0.0
      %1473 = vmatpush1.msra.mxu0 0.0
      %1474 = vmatprep.subr.mxu0 0.0
      %1475 = vmatpush1.msra.mxu0 0.0
      %1476 = vmatprep.subr.mxu0 0.0
      %1477 = vmatpush1.msra.mxu0 0.0
      %1478 = vmatprep.subr.mxu0 0.0
      %1479 = vmatpush1.msra.mxu0 0.0
      %1480 = vmatprep.subr.mxu0 0.0
      %1481 = vmatpush1.msra.mxu0 0.0
      %1482 = vmatprep.subr.mxu0 0.0
      %1483 = vmatpush1.msra.mxu0 0.0
      %1484 = vmatprep.subr.mxu0 0.0
      %1485 = vmatpush1.msra.mxu0 0.0
      %1486 = vmatprep.subr.mxu0 0.0
      %1487 = vmatpush1.msra.mxu0 0.0
      %1488 = vmatprep.subr.mxu0 0.0
      %1489 = vmatpush1.msra.mxu0 0.0
      %1490 = vmatprep.subr.mxu0 0.0
      %1491 = vmatpush1.msra.mxu0 %v1455
      %1492 = vmatprep.subr.mxu0 0.0
      %1493 = vmatpush2.msra.mxu0 0.0
      %1494 = vmatprep.subr.mxu0 0.0
      %1495 = vmatpush2.msra.mxu0 0.0
      %1496 = vmatprep.subr.mxu0 0.0
      %1497 = vmatpush2.msra.mxu0 0.0
      %1498 = vmatprep.subr.mxu0 0.0
      %1499 = vmatpush2.msra.mxu0 0.0
      %1500 = vmatprep.subr.mxu0 0.0
      %1501 = vmatpush2.msra.mxu0 0.0
      %1502 = vmatprep.subr.mxu0 0.0
      %1503 = vmatpush2.msra.mxu0 0.0
      %1504 = vmatprep.subr.mxu0 0.0
      %1505 = vmatpush2.msra.mxu0 0.0
      %1506 = vmatprep.subr.mxu0 0.0
      %1507 = vmatpush2.msra.mxu0 0.0
      %1508 = vmatprep.subr.mxu0 0.0
      %1509 = vmatpush2.msra.mxu0 0.0
      %1510 = vmatprep.subr.mxu0 0.0
      %1511 = vmatpush2.msra.mxu0 0.0
      %1512 = vmatprep.subr.mxu0 0.0
      %1513 = vmatpush2.msra.mxu0 0.0
      %1514 = vmatprep.subr.mxu0 0.0
      %1515 = vmatpush2.msra.mxu0 0.0
      %1516 = vmatprep.subr.mxu0 0.0
      %1517 = vmatpush2.msra.mxu0 0.0
      %1518 = vmatprep.subr.mxu0 0.0
      %1519 = vmatpush2.msra.mxu0 0.0
      %1520 = vmatprep.subr.mxu0 0.0
      %1521 = vmatpush2.msra.mxu0 0.0
      %1522 = vmatprep.subr.mxu0 0.0
      %1523 = vmatpush2.msra.mxu0 0.0
      %1524 = vmatprep.mubr.f32.mxu0 0.0
      %1525 = vmatmul.mubr.f32.gmra.mxu0 %v1458
      %v1526 = vpop.f32.mrf.mxu0
      %v1527 = vadd.f32 0.0, %v1526
      %v1528 = vpop.f32.mrf.mxu0
      %1529 = vdwg.mxu0
      %1530 = vrot.lane.b32.xlu0 %v597, 92
      %v1531 = vpop.permute.xlu0 %1530
      %v1534 = vsel %vm843, %v1377, 0
      %1536 = vmatprep.subr.mxu0 0.0
      %1537 = vmatpush1.msra.mxu0 0.0
      %1538 = vmatprep.subr.mxu0 0.0
      %1539 = vmatpush1.msra.mxu0 0.0
      %1540 = vmatprep.subr.mxu0 0.0
      %1541 = vmatpush1.msra.mxu0 0.0
      %1542 = vmatprep.subr.mxu0 0.0
      %1543 = vmatpush1.msra.mxu0 0.0
      %1544 = vmatprep.subr.mxu0 0.0
      %1545 = vmatpush1.msra.mxu0 0.0
      %1546 = vmatprep.subr.mxu0 0.0
      %1547 = vmatpush1.msra.mxu0 0.0
      %1548 = vmatprep.subr.mxu0 0.0
      %1549 = vmatpush1.msra.mxu0 0.0
      %1550 = vmatprep.subr.mxu0 0.0
      %1551 = vmatpush1.msra.mxu0 0.0
      %1552 = vmatprep.subr.mxu0 0.0
      %1553 = vmatpush1.msra.mxu0 0.0
      %1554 = vmatprep.subr.mxu0 0.0
      %1555 = vmatpush1.msra.mxu0 0.0
      %1556 = vmatprep.subr.mxu0 0.0
      %1557 = vmatpush1.msra.mxu0 0.0
      %1558 = vmatprep.subr.mxu0 0.0
      %1559 = vmatpush1.msra.mxu0 0.0
      %1560 = vmatprep.subr.mxu0 0.0
      %1561 = vmatpush1.msra.mxu0 0.0
      %1562 = vmatprep.subr.mxu0 0.0
      %1563 = vmatpush1.msra.mxu0 0.0
      %1564 = vmatprep.subr.mxu0 0.0
      %1565 = vmatpush1.msra.mxu0 0.0
      %1566 = vmatprep.subr.mxu0 0.0
      %1567 = vmatpush1.msra.mxu0 %v1531
      %1568 = vmatprep.subr.mxu0 0.0
      %1569 = vmatpush2.msra.mxu0 0.0
      %1570 = vmatprep.subr.mxu0 0.0
      %1571 = vmatpush2.msra.mxu0 0.0
      %1572 = vmatprep.subr.mxu0 0.0
      %1573 = vmatpush2.msra.mxu0 0.0
      %1574 = vmatprep.subr.mxu0 0.0
      %1575 = vmatpush2.msra.mxu0 0.0
      %1576 = vmatprep.subr.mxu0 0.0
      %1577 = vmatpush2.msra.mxu0 0.0
      %1578 = vmatprep.subr.mxu0 0.0
      %1579 = vmatpush2.msra.mxu0 0.0
      %1580 = vmatprep.subr.mxu0 0.0
      %1581 = vmatpush2.msra.mxu0 0.0
      %1582 = vmatprep.subr.mxu0 0.0
      %1583 = vmatpush2.msra.mxu0 0.0
      %1584 = vmatprep.subr.mxu0 0.0
      %1585 = vmatpush2.msra.mxu0 0.0
      %1586 = vmatprep.subr.mxu0 0.0
      %1587 = vmatpush2.msra.mxu0 0.0
      %1588 = vmatprep.subr.mxu0 0.0
      %1589 = vmatpush2.msra.mxu0 0.0
      %1590 = vmatprep.subr.mxu0 0.0
      %1591 = vmatpush2.msra.mxu0 0.0
      %1592 = vmatprep.subr.mxu0 0.0
      %1593 = vmatpush2.msra.mxu0 0.0
      %1594 = vmatprep.subr.mxu0 0.0
      %1595 = vmatpush2.msra.mxu0 0.0
      %1596 = vmatprep.subr.mxu0 0.0
      %1597 = vmatpush2.msra.mxu0 0.0
      %1598 = vmatprep.subr.mxu0 0.0
      %1599 = vmatpush2.msra.mxu0 0.0
      %1600 = vmatprep.mubr.f32.mxu0 0.0
      %1601 = vmatmul.mubr.f32.gmra.mxu0 %v1534
      %v1602 = vpop.f32.mrf.mxu0
      %v1603 = vadd.f32 0.0, %v1602
      %v1604 = vpop.f32.mrf.mxu0
      %1605 = vdwg.mxu0
      %1606 = vrot.lane.b32.xlu0 %v587, 120
      %v1607 = vpop.permute.xlu0 %1606
      %1608 = vrot.lane.b32.xlu0 %v587, 104
      %v1609 = vpop.permute.xlu0 %1608
      %v1610 = vsel %vm606, %v1607, 0
      %v1612 = vsel %vm606, %v1609, 0
      %1614 = vmatprep.subr.mxu0 0.0
      %1615 = vmatpush1.xpose.msra.mxu0 0.0
      %1616 = vmatprep.subr.mxu0 0.0
      %1617 = vmatpush1.xpose.msra.mxu0 0.0
      %1618 = vmatprep.subr.mxu0 0.0
      %1619 = vmatpush1.xpose.msra.mxu0 0.0
      %1620 = vmatprep.subr.mxu0 0.0
      %1621 = vmatpush1.xpose.msra.mxu0 0.0
      %1622 = vmatprep.subr.mxu0 0.0
      %1623 = vmatpush1.xpose.msra.mxu0 0.0
      %1624 = vmatprep.subr.mxu0 0.0
      %1625 = vmatpush1.xpose.msra.mxu0 0.0
      %1626 = vmatprep.subr.mxu0 0.0
      %1627 = vmatpush1.xpose.msra.mxu0 0.0
      %1628 = vmatprep.subr.mxu0 0.0
      %1629 = vmatpush1.xpose.msra.mxu0 0.0
      %1630 = vmatprep.subr.mxu0 0.0
      %1631 = vmatpush1.xpose.msra.mxu0 0.0
      %1632 = vmatprep.subr.mxu0 0.0
      %1633 = vmatpush1.xpose.msra.mxu0 0.0
      %1634 = vmatprep.subr.mxu0 0.0
      %1635 = vmatpush1.xpose.msra.mxu0 0.0
      %1636 = vmatprep.subr.mxu0 0.0
      %1637 = vmatpush1.xpose.msra.mxu0 0.0
      %1638 = vmatprep.subr.mxu0 0.0
      %1639 = vmatpush1.xpose.msra.mxu0 0.0
      %1640 = vmatprep.subr.mxu0 0.0
      %1641 = vmatpush1.xpose.msra.mxu0 0.0
      %1642 = vmatprep.subr.mxu0 0.0
      %1643 = vmatpush1.xpose.msra.mxu0 0.0
      %1644 = vmatprep.subr.mxu0 0.0
      %1645 = vmatpush1.xpose.msra.mxu0 %v1612
      %1646 = vmatprep.subr.mxu0 0.0
      %1647 = vmatpush2.xpose.msra.mxu0 0.0
      %1648 = vmatprep.subr.mxu0 0.0
      %1649 = vmatpush2.xpose.msra.mxu0 0.0
      %1650 = vmatprep.subr.mxu0 0.0
      %1651 = vmatpush2.xpose.msra.mxu0 0.0
      %1652 = vmatprep.subr.mxu0 0.0
      %1653 = vmatpush2.xpose.msra.mxu0 0.0
      %1654 = vmatprep.subr.mxu0 0.0
      %1655 = vmatpush2.xpose.msra.mxu0 0.0
      %1656 = vmatprep.subr.mxu0 0.0
      %1657 = vmatpush2.xpose.msra.mxu0 0.0
      %1658 = vmatprep.subr.mxu0 0.0
      %1659 = vmatpush2.xpose.msra.mxu0 0.0
      %1660 = vmatprep.subr.mxu0 0.0
      %1661 = vmatpush2.xpose.msra.mxu0 0.0
      %1662 = vmatprep.subr.mxu0 0.0
      %1663 = vmatpush2.xpose.msra.mxu0 0.0
      %1664 = vmatprep.subr.mxu0 0.0
      %1665 = vmatpush2.xpose.msra.mxu0 0.0
      %1666 = vmatprep.subr.mxu0 0.0
      %1667 = vmatpush2.xpose.msra.mxu0 0.0
      %1668 = vmatprep.subr.mxu0 0.0
      %1669 = vmatpush2.xpose.msra.mxu0 0.0
      %1670 = vmatprep.subr.mxu0 0.0
      %1671 = vmatpush2.xpose.msra.mxu0 0.0
      %1672 = vmatprep.subr.mxu0 0.0
      %1673 = vmatpush2.xpose.msra.mxu0 0.0
      %1674 = vmatprep.subr.mxu0 0.0
      %1675 = vmatpush2.xpose.msra.mxu0 0.0
      %1676 = vmatprep.subr.mxu0 0.0
      %1677 = vmatpush2.xpose.msra.mxu0 0.0
      %1678 = vmatprep.mubr.f32.mxu0 0.0
      %1679 = vmatmul.mubr.f32.gmra.mxu0 %v1610
      %v1680 = vpop.f32.mrf.mxu0
      %v1681 = vadd.f32 0.0, %v1680
      %v1682 = vpop.f32.mrf.mxu0
      %1683 = vdwg.mxu0
      %1684 = vrot.lane.b32.xlu0 %v592, 120
      %v1685 = vpop.permute.xlu0 %1684
      %1686 = vrot.lane.b32.xlu0 %v592, 104
      %v1687 = vpop.permute.xlu0 %1686
      %v1688 = vsel %vm606, %v1685, 0
      %v1690 = vsel %vm606, %v1687, 0
      %1692 = vmatprep.subr.mxu0 0.0
      %1693 = vmatpush1.xpose.msra.mxu0 0.0
      %1694 = vmatprep.subr.mxu0 0.0
      %1695 = vmatpush1.xpose.msra.mxu0 0.0
      %1696 = vmatprep.subr.mxu0 0.0
      %1697 = vmatpush1.xpose.msra.mxu0 0.0
      %1698 = vmatprep.subr.mxu0 0.0
      %1699 = vmatpush1.xpose.msra.mxu0 0.0
      %1700 = vmatprep.subr.mxu0 0.0
      %1701 = vmatpush1.xpose.msra.mxu0 0.0
      %1702 = vmatprep.subr.mxu0 0.0
      %1703 = vmatpush1.xpose.msra.mxu0 0.0
      %1704 = vmatprep.subr.mxu0 0.0
      %1705 = vmatpush1.xpose.msra.mxu0 0.0
      %1706 = vmatprep.subr.mxu0 0.0
      %1707 = vmatpush1.xpose.msra.mxu0 0.0
      %1708 = vmatprep.subr.mxu0 0.0
      %1709 = vmatpush1.xpose.msra.mxu0 0.0
      %1710 = vmatprep.subr.mxu0 0.0
      %1711 = vmatpush1.xpose.msra.mxu0 0.0
      %1712 = vmatprep.subr.mxu0 0.0
      %1713 = vmatpush1.xpose.msra.mxu0 0.0
      %1714 = vmatprep.subr.mxu0 0.0
      %1715 = vmatpush1.xpose.msra.mxu0 0.0
      %1716 = vmatprep.subr.mxu0 0.0
      %1717 = vmatpush1.xpose.msra.mxu0 0.0
      %1718 = vmatprep.subr.mxu0 0.0
      %1719 = vmatpush1.xpose.msra.mxu0 0.0
      %1720 = vmatprep.subr.mxu0 0.0
      %1721 = vmatpush1.xpose.msra.mxu0 0.0
      %1722 = vmatprep.subr.mxu0 0.0
      %1723 = vmatpush1.xpose.msra.mxu0 %v1690
      %1724 = vmatprep.subr.mxu0 0.0
      %1725 = vmatpush2.xpose.msra.mxu0 0.0
      %1726 = vmatprep.subr.mxu0 0.0
      %1727 = vmatpush2.xpose.msra.mxu0 0.0
      %1728 = vmatprep.subr.mxu0 0.0
      %1729 = vmatpush2.xpose.msra.mxu0 0.0
      %1730 = vmatprep.subr.mxu0 0.0
      %1731 = vmatpush2.xpose.msra.mxu0 0.0
      %1732 = vmatprep.subr.mxu0 0.0
      %1733 = vmatpush2.xpose.msra.mxu0 0.0
      %1734 = vmatprep.subr.mxu0 0.0
      %1735 = vmatpush2.xpose.msra.mxu0 0.0
      %1736 = vmatprep.subr.mxu0 0.0
      %1737 = vmatpush2.xpose.msra.mxu0 0.0
      %1738 = vmatprep.subr.mxu0 0.0
      %1739 = vmatpush2.xpose.msra.mxu0 0.0
      %1740 = vmatprep.subr.mxu0 0.0
      %1741 = vmatpush2.xpose.msra.mxu0 0.0
      %1742 = vmatprep.subr.mxu0 0.0
      %1743 = vmatpush2.xpose.msra.mxu0 0.0
      %1744 = vmatprep.subr.mxu0 0.0
      %1745 = vmatpush2.xpose.msra.mxu0 0.0
      %1746 = vmatprep.subr.mxu0 0.0
      %1747 = vmatpush2.xpose.msra.mxu0 0.0
      %1748 = vmatprep.subr.mxu0 0.0
      %1749 = vmatpush2.xpose.msra.mxu0 0.0
      %1750 = vmatprep.subr.mxu0 0.0
      %1751 = vmatpush2.xpose.msra.mxu0 0.0
      %1752 = vmatprep.subr.mxu0 0.0
      %1753 = vmatpush2.xpose.msra.mxu0 0.0
      %1754 = vmatprep.subr.mxu0 0.0
      %1755 = vmatpush2.xpose.msra.mxu0 0.0
      %1756 = vmatprep.mubr.f32.mxu0 0.0
      %1757 = vmatmul.mubr.f32.gmra.mxu0 %v1688
      %v1758 = vpop.f32.mrf.mxu0
      %v1759 = vadd.f32 0.0, %v1758
      %v1760 = vpop.f32.mrf.mxu0
      %1761 = vdwg.mxu0
      %1762 = vrot.lane.b32.xlu0 %v597, 120
      %v1763 = vpop.permute.xlu0 %1762
      %1764 = vrot.lane.b32.xlu0 %v597, 104
      %v1765 = vpop.permute.xlu0 %1764
      %v1766 = vsel %vm606, %v1763, 0
      %v1768 = vsel %vm606, %v1765, 0
      %1770 = vmatprep.subr.mxu0 0.0
      %1771 = vmatpush1.xpose.msra.mxu0 0.0
      %1772 = vmatprep.subr.mxu0 0.0
      %1773 = vmatpush1.xpose.msra.mxu0 0.0
      %1774 = vmatprep.subr.mxu0 0.0
      %1775 = vmatpush1.xpose.msra.mxu0 0.0
      %1776 = vmatprep.subr.mxu0 0.0
      %1777 = vmatpush1.xpose.msra.mxu0 0.0
      %1778 = vmatprep.subr.mxu0 0.0
      %1779 = vmatpush1.xpose.msra.mxu0 0.0
      %1780 = vmatprep.subr.mxu0 0.0
      %1781 = vmatpush1.xpose.msra.mxu0 0.0
      %1782 = vmatprep.subr.mxu0 0.0
      %1783 = vmatpush1.xpose.msra.mxu0 0.0
      %1784 = vmatprep.subr.mxu0 0.0
      %1785 = vmatpush1.xpose.msra.mxu0 0.0
      %1786 = vmatprep.subr.mxu0 0.0
      %1787 = vmatpush1.xpose.msra.mxu0 0.0
      %1788 = vmatprep.subr.mxu0 0.0
      %1789 = vmatpush1.xpose.msra.mxu0 0.0
      %1790 = vmatprep.subr.mxu0 0.0
      %1791 = vmatpush1.xpose.msra.mxu0 0.0
      %1792 = vmatprep.subr.mxu0 0.0
      %1793 = vmatpush1.xpose.msra.mxu0 0.0
      %1794 = vmatprep.subr.mxu0 0.0
      %1795 = vmatpush1.xpose.msra.mxu0 0.0
      %1796 = vmatprep.subr.mxu0 0.0
      %1797 = vmatpush1.xpose.msra.mxu0 0.0
      %1798 = vmatprep.subr.mxu0 0.0
      %1799 = vmatpush1.xpose.msra.mxu0 0.0
      %1800 = vmatprep.subr.mxu0 0.0
      %1801 = vmatpush1.xpose.msra.mxu0 %v1768
      %1802 = vmatprep.subr.mxu0 0.0
      %1803 = vmatpush2.xpose.msra.mxu0 0.0
      %1804 = vmatprep.subr.mxu0 0.0
      %1805 = vmatpush2.xpose.msra.mxu0 0.0
      %1806 = vmatprep.subr.mxu0 0.0
      %1807 = vmatpush2.xpose.msra.mxu0 0.0
      %1808 = vmatprep.subr.mxu0 0.0
      %1809 = vmatpush2.xpose.msra.mxu0 0.0
      %1810 = vmatprep.subr.mxu0 0.0
      %1811 = vmatpush2.xpose.msra.mxu0 0.0
      %1812 = vmatprep.subr.mxu0 0.0
      %1813 = vmatpush2.xpose.msra.mxu0 0.0
      %1814 = vmatprep.subr.mxu0 0.0
      %1815 = vmatpush2.xpose.msra.mxu0 0.0
      %1816 = vmatprep.subr.mxu0 0.0
      %1817 = vmatpush2.xpose.msra.mxu0 0.0
      %1818 = vmatprep.subr.mxu0 0.0
      %1819 = vmatpush2.xpose.msra.mxu0 0.0
      %1820 = vmatprep.subr.mxu0 0.0
      %1821 = vmatpush2.xpose.msra.mxu0 0.0
      %1822 = vmatprep.subr.mxu0 0.0
      %1823 = vmatpush2.xpose.msra.mxu0 0.0
      %1824 = vmatprep.subr.mxu0 0.0
      %1825 = vmatpush2.xpose.msra.mxu0 0.0
      %1826 = vmatprep.subr.mxu0 0.0
      %1827 = vmatpush2.xpose.msra.mxu0 0.0
      %1828 = vmatprep.subr.mxu0 0.0
      %1829 = vmatpush2.xpose.msra.mxu0 0.0
      %1830 = vmatprep.subr.mxu0 0.0
      %1831 = vmatpush2.xpose.msra.mxu0 0.0
      %1832 = vmatprep.subr.mxu0 0.0
      %1833 = vmatpush2.xpose.msra.mxu0 0.0
      %1834 = vmatprep.mubr.f32.mxu0 0.0
      %1835 = vmatmul.mubr.f32.gmra.mxu0 %v1766
      %v1836 = vpop.f32.mrf.mxu0
      %v1837 = vadd.f32 0.0, %v1836
      %v1838 = vpop.f32.mrf.mxu0
      %1839 = vdwg.mxu0
      %v1840 = vmul.f32 %v1681, 0.5
      %v1841 = vmul.f32 %v1759, 0.5
      %v1842 = vmul.f32 %v1837, 0.5
      %v1843 = vsel %vm839, %v1840, -1e+30
      %v1844 = vsel %vm839, %v1841, -1e+30
      %v1845 = vsel %vm839, %v1842, -1e+30
      %v1846 = vsel %vm843, %v1843, -inf
      %1847 = vmax.xlane.f32.xlu0 %v1846
      %v1848 = vpop.xlane.xlu0 %1847
      %v1849 = vsel %vm843, %v1844, -inf
      %1850 = vmax.xlane.f32.xlu0 %v1849
      %v1851 = vpop.xlane.xlu0 %1850
      %v1852 = vsel %vm843, %v1845, -inf
      %1853 = vmax.xlane.f32.xlu0 %v1852
      %v1854 = vpop.xlane.xlu0 %1853
      %v1855 = vsub.f32 %v1843, %v1848
      %v1856 = vsub.f32 %v1844, %v1851
      %v1857 = vsub.f32 %v1845, %v1854
      %v1858 = vmul.f32 %v1855, 1.442695
      %v1859 = vpow.pop %v1858
      %v1860 = vmul.f32 %v1856, 1.442695
      %v1861 = vpow.pop %v1860
      %v1862 = vmul.f32 %v1857, 1.442695
      %v1863 = vpow.pop %v1862
      %v1864 = vsel %vm843, %v1859, 0.0
      %1865 = vadd.xlane.f32.xlu0 %v1864
      %v1866 = vpop.xlane.xlu0 %1865
      %v1867 = vsel %vm843, %v1861, 0.0
      %1868 = vadd.xlane.f32.xlu0 %v1867
      %v1869 = vpop.xlane.xlu0 %1868
      %v1870 = vsel %vm843, %v1863, 0.0
      %1871 = vadd.xlane.f32.xlu0 %v1870
      %v1872 = vpop.xlane.xlu0 %1871
      %v1873 = vrcp.pop %v1866
      %v1874 = vrcp.pop %v1869
      %v1875 = vrcp.pop %v1872
      %v1876 = vmul.f32 %v1859, %v1873
      %v1877 = vmul.f32 %v1861, %v1874
      %v1878 = vmul.f32 %v1863, %v1875
      %1879 = vrot.lane.b32.xlu0 %v587, 88
      %v1880 = vpop.permute.xlu0 %1879
      %v1883 = vsel %vm843, %v1876, 0
      %1885 = vmatprep.subr.mxu0 0.0
      %1886 = vmatpush1.msra.mxu0 0.0
      %1887 = vmatprep.subr.mxu0 0.0
      %1888 = vmatpush1.msra.mxu0 0.0
      %1889 = vmatprep.subr.mxu0 0.0
      %1890 = vmatpush1.msra.mxu0 0.0
      %1891 = vmatprep.subr.mxu0 0.0
      %1892 = vmatpush1.msra.mxu0 0.0
      %1893 = vmatprep.subr.mxu0 0.0
      %1894 = vmatpush1.msra.mxu0 0.0
      %1895 = vmatprep.subr.mxu0 0.0
      %1896 = vmatpush1.msra.mxu0 0.0
      %1897 = vmatprep.subr.mxu0 0.0
      %1898 = vmatpush1.msra.mxu0 0.0
      %1899 = vmatprep.subr.mxu0 0.0
      %1900 = vmatpush1.msra.mxu0 0.0
      %1901 = vmatprep.subr.mxu0 0.0
      %1902 = vmatpush1.msra.mxu0 0.0
      %1903 = vmatprep.subr.mxu0 0.0
      %1904 = vmatpush1.msra.mxu0 0.0
      %1905 = vmatprep.subr.mxu0 0.0
      %1906 = vmatpush1.msra.mxu0 0.0
      %1907 = vmatprep.subr.mxu0 0.0
      %1908 = vmatpush1.msra.mxu0 0.0
      %1909 = vmatprep.subr.mxu0 0.0
      %1910 = vmatpush1.msra.mxu0 0.0
      %1911 = vmatprep.subr.mxu0 0.0
      %1912 = vmatpush1.msra.mxu0 0.0
      %1913 = vmatprep.subr.mxu0 0.0
      %1914 = vmatpush1.msra.mxu0 0.0
      %1915 = vmatprep.subr.mxu0 0.0
      %1916 = vmatpush1.msra.mxu0 %v1880
      %1917 = vmatprep.subr.mxu0 0.0
      %1918 = vmatpush2.msra.mxu0 0.0
      %1919 = vmatprep.subr.mxu0 0.0
      %1920 = vmatpush2.msra.mxu0 0.0
      %1921 = vmatprep.subr.mxu0 0.0
      %1922 = vmatpush2.msra.mxu0 0.0
      %1923 = vmatprep.subr.mxu0 0.0
      %1924 = vmatpush2.msra.mxu0 0.0
      %1925 = vmatprep.subr.mxu0 0.0
      %1926 = vmatpush2.msra.mxu0 0.0
      %1927 = vmatprep.subr.mxu0 0.0
      %1928 = vmatpush2.msra.mxu0 0.0
      %1929 = vmatprep.subr.mxu0 0.0
      %1930 = vmatpush2.msra.mxu0 0.0
      %1931 = vmatprep.subr.mxu0 0.0
      %1932 = vmatpush2.msra.mxu0 0.0
      %1933 = vmatprep.subr.mxu0 0.0
      %1934 = vmatpush2.msra.mxu0 0.0
      %1935 = vmatprep.subr.mxu0 0.0
      %1936 = vmatpush2.msra.mxu0 0.0
      %1937 = vmatprep.subr.mxu0 0.0
      %1938 = vmatpush2.msra.mxu0 0.0
      %1939 = vmatprep.subr.mxu0 0.0
      %1940 = vmatpush2.msra.mxu0 0.0
      %1941 = vmatprep.subr.mxu0 0.0
      %1942 = vmatpush2.msra.mxu0 0.0
      %1943 = vmatprep.subr.mxu0 0.0
      %1944 = vmatpush2.msra.mxu0 0.0
      %1945 = vmatprep.subr.mxu0 0.0
      %1946 = vmatpush2.msra.mxu0 0.0
      %1947 = vmatprep.subr.mxu0 0.0
      %1948 = vmatpush2.msra.mxu0 0.0
      %1949 = vmatprep.mubr.f32.mxu0 0.0
      %1950 = vmatmul.mubr.f32.gmra.mxu0 %v1883
      %v1951 = vpop.f32.mrf.mxu0
      %v1952 = vadd.f32 0.0, %v1951
      %v1953 = vpop.f32.mrf.mxu0
      %1954 = vdwg.mxu0
      %1955 = vrot.lane.b32.xlu0 %v592, 88
      %v1956 = vpop.permute.xlu0 %1955
      %v1959 = vsel %vm843, %v1877, 0
      %1961 = vmatprep.subr.mxu0 0.0
      %1962 = vmatpush1.msra.mxu0 0.0
      %1963 = vmatprep.subr.mxu0 0.0
      %1964 = vmatpush1.msra.mxu0 0.0
      %1965 = vmatprep.subr.mxu0 0.0
      %1966 = vmatpush1.msra.mxu0 0.0
      %1967 = vmatprep.subr.mxu0 0.0
      %1968 = vmatpush1.msra.mxu0 0.0
      %1969 = vmatprep.subr.mxu0 0.0
      %1970 = vmatpush1.msra.mxu0 0.0
      %1971 = vmatprep.subr.mxu0 0.0
      %1972 = vmatpush1.msra.mxu0 0.0
      %1973 = vmatprep.subr.mxu0 0.0
      %1974 = vmatpush1.msra.mxu0 0.0
      %1975 = vmatprep.subr.mxu0 0.0
      %1976 = vmatpush1.msra.mxu0 0.0
      %1977 = vmatprep.subr.mxu0 0.0
      %1978 = vmatpush1.msra.mxu0 0.0
      %1979 = vmatprep.subr.mxu0 0.0
      %1980 = vmatpush1.msra.mxu0 0.0
      %1981 = vmatprep.subr.mxu0 0.0
      %1982 = vmatpush1.msra.mxu0 0.0
      %1983 = vmatprep.subr.mxu0 0.0
      %1984 = vmatpush1.msra.mxu0 0.0
      %1985 = vmatprep.subr.mxu0 0.0
      %1986 = vmatpush1.msra.mxu0 0.0
      %1987 = vmatprep.subr.mxu0 0.0
      %1988 = vmatpush1.msra.mxu0 0.0
      %1989 = vmatprep.subr.mxu0 0.0
      %1990 = vmatpush1.msra.mxu0 0.0
      %1991 = vmatprep.subr.mxu0 0.0
      %1992 = vmatpush1.msra.mxu0 %v1956
      %1993 = vmatprep.subr.mxu0 0.0
      %1994 = vmatpush2.msra.mxu0 0.0
      %1995 = vmatprep.subr.mxu0 0.0
      %1996 = vmatpush2.msra.mxu0 0.0
      %1997 = vmatprep.subr.mxu0 0.0
      %1998 = vmatpush2.msra.mxu0 0.0
      %1999 = vmatprep.subr.mxu0 0.0
      %2000 = vmatpush2.msra.mxu0 0.0
      %2001 = vmatprep.subr.mxu0 0.0
      %2002 = vmatpush2.msra.mxu0 0.0
      %2003 = vmatprep.subr.mxu0 0.0
      %2004 = vmatpush2.msra.mxu0 0.0
      %2005 = vmatprep.subr.mxu0 0.0
      %2006 = vmatpush2.msra.mxu0 0.0
      %2007 = vmatprep.subr.mxu0 0.0
      %2008 = vmatpush2.msra.mxu0 0.0
      %2009 = vmatprep.subr.mxu0 0.0
      %2010 = vmatpush2.msra.mxu0 0.0
      %2011 = vmatprep.subr.mxu0 0.0
      %2012 = vmatpush2.msra.mxu0 0.0
      %2013 = vmatprep.subr.mxu0 0.0
      %2014 = vmatpush2.msra.mxu0 0.0
      %2015 = vmatprep.subr.mxu0 0.0
      %2016 = vmatpush2.msra.mxu0 0.0
      %2017 = vmatprep.subr.mxu0 0.0
      %2018 = vmatpush2.msra.mxu0 0.0
      %2019 = vmatprep.subr.mxu0 0.0
      %2020 = vmatpush2.msra.mxu0 0.0
      %2021 = vmatprep.subr.mxu0 0.0
      %2022 = vmatpush2.msra.mxu0 0.0
      %2023 = vmatprep.subr.mxu0 0.0
      %2024 = vmatpush2.msra.mxu0 0.0
      %2025 = vmatprep.mubr.f32.mxu0 0.0
      %2026 = vmatmul.mubr.f32.gmra.mxu0 %v1959
      %v2027 = vpop.f32.mrf.mxu0
      %v2028 = vadd.f32 0.0, %v2027
      %v2029 = vpop.f32.mrf.mxu0
      %2030 = vdwg.mxu0
      %2031 = vrot.lane.b32.xlu0 %v597, 88
      %v2032 = vpop.permute.xlu0 %2031
      %v2035 = vsel %vm843, %v1878, 0
      %2037 = vmatprep.subr.mxu0 0.0
      %2038 = vmatpush1.msra.mxu0 0.0
      %2039 = vmatprep.subr.mxu0 0.0
      %2040 = vmatpush1.msra.mxu0 0.0
      %2041 = vmatprep.subr.mxu0 0.0
      %2042 = vmatpush1.msra.mxu0 0.0
      %2043 = vmatprep.subr.mxu0 0.0
      %2044 = vmatpush1.msra.mxu0 0.0
      %2045 = vmatprep.subr.mxu0 0.0
      %2046 = vmatpush1.msra.mxu0 0.0
      %2047 = vmatprep.subr.mxu0 0.0
      %2048 = vmatpush1.msra.mxu0 0.0
      %2049 = vmatprep.subr.mxu0 0.0
      %2050 = vmatpush1.msra.mxu0 0.0
      %2051 = vmatprep.subr.mxu0 0.0
      %2052 = vmatpush1.msra.mxu0 0.0
      %2053 = vmatprep.subr.mxu0 0.0
      %2054 = vmatpush1.msra.mxu0 0.0
      %2055 = vmatprep.subr.mxu0 0.0
      %2056 = vmatpush1.msra.mxu0 0.0
      %2057 = vmatprep.subr.mxu0 0.0
      %2058 = vmatpush1.msra.mxu0 0.0
      %2059 = vmatprep.subr.mxu0 0.0
      %2060 = vmatpush1.msra.mxu0 0.0
      %2061 = vmatprep.subr.mxu0 0.0
      %2062 = vmatpush1.msra.mxu0 0.0
      %2063 = vmatprep.subr.mxu0 0.0
      %2064 = vmatpush1.msra.mxu0 0.0
      %2065 = vmatprep.subr.mxu0 0.0
      %2066 = vmatpush1.msra.mxu0 0.0
      %2067 = vmatprep.subr.mxu0 0.0
      %2068 = vmatpush1.msra.mxu0 %v2032
      %2069 = vmatprep.subr.mxu0 0.0
      %2070 = vmatpush2.msra.mxu0 0.0
      %2071 = vmatprep.subr.mxu0 0.0
      %2072 = vmatpush2.msra.mxu0 0.0
      %2073 = vmatprep.subr.mxu0 0.0
      %2074 = vmatpush2.msra.mxu0 0.0
      %2075 = vmatprep.subr.mxu0 0.0
      %2076 = vmatpush2.msra.mxu0 0.0
      %2077 = vmatprep.subr.mxu0 0.0
      %2078 = vmatpush2.msra.mxu0 0.0
      %2079 = vmatprep.subr.mxu0 0.0
      %2080 = vmatpush2.msra.mxu0 0.0
      %2081 = vmatprep.subr.mxu0 0.0
      %2082 = vmatpush2.msra.mxu0 0.0
      %2083 = vmatprep.subr.mxu0 0.0
      %2084 = vmatpush2.msra.mxu0 0.0
      %2085 = vmatprep.subr.mxu0 0.0
      %2086 = vmatpush2.msra.mxu0 0.0
      %2087 = vmatprep.subr.mxu0 0.0
      %2088 = vmatpush2.msra.mxu0 0.0
      %2089 = vmatprep.subr.mxu0 0.0
      %2090 = vmatpush2.msra.mxu0 0.0
      %2091 = vmatprep.subr.mxu0 0.0
      %2092 = vmatpush2.msra.mxu0 0.0
      %2093 = vmatprep.subr.mxu0 0.0
      %2094 = vmatpush2.msra.mxu0 0.0
      %2095 = vmatprep.subr.mxu0 0.0
      %2096 = vmatpush2.msra.mxu0 0.0
      %2097 = vmatprep.subr.mxu0 0.0
      %2098 = vmatpush2.msra.mxu0 0.0
      %2099 = vmatprep.subr.mxu0 0.0
      %2100 = vmatpush2.msra.mxu0 0.0
      %2101 = vmatprep.mubr.f32.mxu0 0.0
      %2102 = vmatmul.mubr.f32.gmra.mxu0 %v2035
      %v2103 = vpop.f32.mrf.mxu0
      %v2104 = vadd.f32 0.0, %v2103
      %v2105 = vpop.f32.mrf.mxu0
      %2106 = vdwg.mxu0
      %2107 = vrot.lane.b32.xlu0 %v587, 116
      %v2108 = vpop.permute.xlu0 %2107
      %2109 = vrot.lane.b32.xlu0 %v587, 100
      %v2110 = vpop.permute.xlu0 %2109
      %v2111 = vsel %vm606, %v2108, 0
      %v2113 = vsel %vm606, %v2110, 0
      %2115 = vmatprep.subr.mxu0 0.0
      %2116 = vmatpush1.xpose.msra.mxu0 0.0
      %2117 = vmatprep.subr.mxu0 0.0
      %2118 = vmatpush1.xpose.msra.mxu0 0.0
      %2119 = vmatprep.subr.mxu0 0.0
      %2120 = vmatpush1.xpose.msra.mxu0 0.0
      %2121 = vmatprep.subr.mxu0 0.0
      %2122 = vmatpush1.xpose.msra.mxu0 0.0
      %2123 = vmatprep.subr.mxu0 0.0
      %2124 = vmatpush1.xpose.msra.mxu0 0.0
      %2125 = vmatprep.subr.mxu0 0.0
      %2126 = vmatpush1.xpose.msra.mxu0 0.0
      %2127 = vmatprep.subr.mxu0 0.0
      %2128 = vmatpush1.xpose.msra.mxu0 0.0
      %2129 = vmatprep.subr.mxu0 0.0
      %2130 = vmatpush1.xpose.msra.mxu0 0.0
      %2131 = vmatprep.subr.mxu0 0.0
      %2132 = vmatpush1.xpose.msra.mxu0 0.0
      %2133 = vmatprep.subr.mxu0 0.0
      %2134 = vmatpush1.xpose.msra.mxu0 0.0
      %2135 = vmatprep.subr.mxu0 0.0
      %2136 = vmatpush1.xpose.msra.mxu0 0.0
      %2137 = vmatprep.subr.mxu0 0.0
      %2138 = vmatpush1.xpose.msra.mxu0 0.0
      %2139 = vmatprep.subr.mxu0 0.0
      %2140 = vmatpush1.xpose.msra.mxu0 0.0
      %2141 = vmatprep.subr.mxu0 0.0
      %2142 = vmatpush1.xpose.msra.mxu0 0.0
      %2143 = vmatprep.subr.mxu0 0.0
      %2144 = vmatpush1.xpose.msra.mxu0 0.0
      %2145 = vmatprep.subr.mxu0 0.0
      %2146 = vmatpush1.xpose.msra.mxu0 %v2113
      %2147 = vmatprep.subr.mxu0 0.0
      %2148 = vmatpush2.xpose.msra.mxu0 0.0
      %2149 = vmatprep.subr.mxu0 0.0
      %2150 = vmatpush2.xpose.msra.mxu0 0.0
      %2151 = vmatprep.subr.mxu0 0.0
      %2152 = vmatpush2.xpose.msra.mxu0 0.0
      %2153 = vmatprep.subr.mxu0 0.0
      %2154 = vmatpush2.xpose.msra.mxu0 0.0
      %2155 = vmatprep.subr.mxu0 0.0
      %2156 = vmatpush2.xpose.msra.mxu0 0.0
      %2157 = vmatprep.subr.mxu0 0.0
      %2158 = vmatpush2.xpose.msra.mxu0 0.0
      %2159 = vmatprep.subr.mxu0 0.0
      %2160 = vmatpush2.xpose.msra.mxu0 0.0
      %2161 = vmatprep.subr.mxu0 0.0
      %2162 = vmatpush2.xpose.msra.mxu0 0.0
      %2163 = vmatprep.subr.mxu0 0.0
      %2164 = vmatpush2.xpose.msra.mxu0 0.0
      %2165 = vmatprep.subr.mxu0 0.0
      %2166 = vmatpush2.xpose.msra.mxu0 0.0
      %2167 = vmatprep.subr.mxu0 0.0
      %2168 = vmatpush2.xpose.msra.mxu0 0.0
      %2169 = vmatprep.subr.mxu0 0.0
      %2170 = vmatpush2.xpose.msra.mxu0 0.0
      %2171 = vmatprep.subr.mxu0 0.0
      %2172 = vmatpush2.xpose.msra.mxu0 0.0
      %2173 = vmatprep.subr.mxu0 0.0
      %2174 = vmatpush2.xpose.msra.mxu0 0.0
      %2175 = vmatprep.subr.mxu0 0.0
      %2176 = vmatpush2.xpose.msra.mxu0 0.0
      %2177 = vmatprep.subr.mxu0 0.0
      %2178 = vmatpush2.xpose.msra.mxu0 0.0
      %2179 = vmatprep.mubr.f32.mxu0 0.0
      %2180 = vmatmul.mubr.f32.gmra.mxu0 %v2111
      %v2181 = vpop.f32.mrf.mxu0
      %v2182 = vadd.f32 0.0, %v2181
      %v2183 = vpop.f32.mrf.mxu0
      %2184 = vdwg.mxu0
      %2185 = vrot.lane.b32.xlu0 %v592, 116
      %v2186 = vpop.permute.xlu0 %2185
      %2187 = vrot.lane.b32.xlu0 %v592, 100
      %v2188 = vpop.permute.xlu0 %2187
      %v2189 = vsel %vm606, %v2186, 0
      %v2191 = vsel %vm606, %v2188, 0
      %2193 = vmatprep.subr.mxu0 0.0
      %2194 = vmatpush1.xpose.msra.mxu0 0.0
      %2195 = vmatprep.subr.mxu0 0.0
      %2196 = vmatpush1.xpose.msra.mxu0 0.0
      %2197 = vmatprep.subr.mxu0 0.0
      %2198 = vmatpush1.xpose.msra.mxu0 0.0
      %2199 = vmatprep.subr.mxu0 0.0
      %2200 = vmatpush1.xpose.msra.mxu0 0.0
      %2201 = vmatprep.subr.mxu0 0.0
      %2202 = vmatpush1.xpose.msra.mxu0 0.0
      %2203 = vmatprep.subr.mxu0 0.0
      %2204 = vmatpush1.xpose.msra.mxu0 0.0
      %2205 = vmatprep.subr.mxu0 0.0
      %2206 = vmatpush1.xpose.msra.mxu0 0.0
      %2207 = vmatprep.subr.mxu0 0.0
      %2208 = vmatpush1.xpose.msra.mxu0 0.0
      %2209 = vmatprep.subr.mxu0 0.0
      %2210 = vmatpush1.xpose.msra.mxu0 0.0
      %2211 = vmatprep.subr.mxu0 0.0
      %2212 = vmatpush1.xpose.msra.mxu0 0.0
      %2213 = vmatprep.subr.mxu0 0.0
      %2214 = vmatpush1.xpose.msra.mxu0 0.0
      %2215 = vmatprep.subr.mxu0 0.0
      %2216 = vmatpush1.xpose.msra.mxu0 0.0
      %2217 = vmatprep.subr.mxu0 0.0
      %2218 = vmatpush1.xpose.msra.mxu0 0.0
      %2219 = vmatprep.subr.mxu0 0.0
      %2220 = vmatpush1.xpose.msra.mxu0 0.0
      %2221 = vmatprep.subr.mxu0 0.0
      %2222 = vmatpush1.xpose.msra.mxu0 0.0
      %2223 = vmatprep.subr.mxu0 0.0
      %2224 = vmatpush1.xpose.msra.mxu0 %v2191
      %2225 = vmatprep.subr.mxu0 0.0
      %2226 = vmatpush2.xpose.msra.mxu0 0.0
      %2227 = vmatprep.subr.mxu0 0.0
      %2228 = vmatpush2.xpose.msra.mxu0 0.0
      %2229 = vmatprep.subr.mxu0 0.0
      %2230 = vmatpush2.xpose.msra.mxu0 0.0
      %2231 = vmatprep.subr.mxu0 0.0
      %2232 = vmatpush2.xpose.msra.mxu0 0.0
      %2233 = vmatprep.subr.mxu0 0.0
      %2234 = vmatpush2.xpose.msra.mxu0 0.0
      %2235 = vmatprep.subr.mxu0 0.0
      %2236 = vmatpush2.xpose.msra.mxu0 0.0
      %2237 = vmatprep.subr.mxu0 0.0
      %2238 = vmatpush2.xpose.msra.mxu0 0.0
      %2239 = vmatprep.subr.mxu0 0.0
      %2240 = vmatpush2.xpose.msra.mxu0 0.0
      %2241 = vmatprep.subr.mxu0 0.0
      %2242 = vmatpush2.xpose.msra.mxu0 0.0
      %2243 = vmatprep.subr.mxu0 0.0
      %2244 = vmatpush2.xpose.msra.mxu0 0.0
      %2245 = vmatprep.subr.mxu0 0.0
      %2246 = vmatpush2.xpose.msra.mxu0 0.0
      %2247 = vmatprep.subr.mxu0 0.0
      %2248 = vmatpush2.xpose.msra.mxu0 0.0
      %2249 = vmatprep.subr.mxu0 0.0
      %2250 = vmatpush2.xpose.msra.mxu0 0.0
      %2251 = vmatprep.subr.mxu0 0.0
      %2252 = vmatpush2.xpose.msra.mxu0 0.0
      %2253 = vmatprep.subr.mxu0 0.0
      %2254 = vmatpush2.xpose.msra.mxu0 0.0
      %2255 = vmatprep.subr.mxu0 0.0
      %2256 = vmatpush2.xpose.msra.mxu0 0.0
      %2257 = vmatprep.mubr.f32.mxu0 0.0
      %2258 = vmatmul.mubr.f32.gmra.mxu0 %v2189
      %v2259 = vpop.f32.mrf.mxu0
      %v2260 = vadd.f32 0.0, %v2259
      %v2261 = vpop.f32.mrf.mxu0
      %2262 = vdwg.mxu0
      %2263 = vrot.lane.b32.xlu0 %v597, 116
      %v2264 = vpop.permute.xlu0 %2263
      %2265 = vrot.lane.b32.xlu0 %v597, 100
      %v2266 = vpop.permute.xlu0 %2265
      %v2267 = vsel %vm606, %v2264, 0
      %v2269 = vsel %vm606, %v2266, 0
      %2271 = vmatprep.subr.mxu0 0.0
      %2272 = vmatpush1.xpose.msra.mxu0 0.0
      %2273 = vmatprep.subr.mxu0 0.0
      %2274 = vmatpush1.xpose.msra.mxu0 0.0
      %2275 = vmatprep.subr.mxu0 0.0
      %2276 = vmatpush1.xpose.msra.mxu0 0.0
      %2277 = vmatprep.subr.mxu0 0.0
      %2278 = vmatpush1.xpose.msra.mxu0 0.0
      %2279 = vmatprep.subr.mxu0 0.0
      %2280 = vmatpush1.xpose.msra.mxu0 0.0
      %2281 = vmatprep.subr.mxu0 0.0
      %2282 = vmatpush1.xpose.msra.mxu0 0.0
      %2283 = vmatprep.subr.mxu0 0.0
      %2284 = vmatpush1.xpose.msra.mxu0 0.0
      %2285 = vmatprep.subr.mxu0 0.0
      %2286 = vmatpush1.xpose.msra.mxu0 0.0
      %2287 = vmatprep.subr.mxu0 0.0
      %2288 = vmatpush1.xpose.msra.mxu0 0.0
      %2289 = vmatprep.subr.mxu0 0.0
      %2290 = vmatpush1.xpose.msra.mxu0 0.0
      %2291 = vmatprep.subr.mxu0 0.0
      %2292 = vmatpush1.xpose.msra.mxu0 0.0
      %2293 = vmatprep.subr.mxu0 0.0
      %2294 = vmatpush1.xpose.msra.mxu0 0.0
      %2295 = vmatprep.subr.mxu0 0.0
      %2296 = vmatpush1.xpose.msra.mxu0 0.0
      %2297 = vmatprep.subr.mxu0 0.0
      %2298 = vmatpush1.xpose.msra.mxu0 0.0
      %2299 = vmatprep.subr.mxu0 0.0
      %2300 = vmatpush1.xpose.msra.mxu0 0.0
      %2301 = vmatprep.subr.mxu0 0.0
      %2302 = vmatpush1.xpose.msra.mxu0 %v2269
      %2303 = vmatprep.subr.mxu0 0.0
      %2304 = vmatpush2.xpose.msra.mxu0 0.0
      %2305 = vmatprep.subr.mxu0 0.0
      %2306 = vmatpush2.xpose.msra.mxu0 0.0
      %2307 = vmatprep.subr.mxu0 0.0
      %2308 = vmatpush2.xpose.msra.mxu0 0.0
      %2309 = vmatprep.subr.mxu0 0.0
      %2310 = vmatpush2.xpose.msra.mxu0 0.0
      %2311 = vmatprep.subr.mxu0 0.0
      %2312 = vmatpush2.xpose.msra.mxu0 0.0
      %2313 = vmatprep.subr.mxu0 0.0
      %2314 = vmatpush2.xpose.msra.mxu0 0.0
      %2315 = vmatprep.subr.mxu0 0.0
      %2316 = vmatpush2.xpose.msra.mxu0 0.0
      %2317 = vmatprep.subr.mxu0 0.0
      %2318 = vmatpush2.xpose.msra.mxu0 0.0
      %2319 = vmatprep.subr.mxu0 0.0
      %2320 = vmatpush2.xpose.msra.mxu0 0.0
      %2321 = vmatprep.subr.mxu0 0.0
      %2322 = vmatpush2.xpose.msra.mxu0 0.0
      %2323 = vmatprep.subr.mxu0 0.0
      %2324 = vmatpush2.xpose.msra.mxu0 0.0
      %2325 = vmatprep.subr.mxu0 0.0
      %2326 = vmatpush2.xpose.msra.mxu0 0.0
      %2327 = vmatprep.subr.mxu0 0.0
      %2328 = vmatpush2.xpose.msra.mxu0 0.0
      %2329 = vmatprep.subr.mxu0 0.0
      %2330 = vmatpush2.xpose.msra.mxu0 0.0
      %2331 = vmatprep.subr.mxu0 0.0
      %2332 = vmatpush2.xpose.msra.mxu0 0.0
      %2333 = vmatprep.subr.mxu0 0.0
      %2334 = vmatpush2.xpose.msra.mxu0 0.0
      %2335 = vmatprep.mubr.f32.mxu0 0.0
      %2336 = vmatmul.mubr.f32.gmra.mxu0 %v2267
      %v2337 = vpop.f32.mrf.mxu0
      %v2338 = vadd.f32 0.0, %v2337
      %v2339 = vpop.f32.mrf.mxu0
      %2340 = vdwg.mxu0
      %v2341 = vmul.f32 %v2182, 0.5
      %v2342 = vmul.f32 %v2260, 0.5
      %v2343 = vmul.f32 %v2338, 0.5
      %v2344 = vsel %vm839, %v2341, -1e+30
      %v2345 = vsel %vm839, %v2342, -1e+30
      %v2346 = vsel %vm839, %v2343, -1e+30
      %v2347 = vsel %vm843, %v2344, -inf
      %2348 = vmax.xlane.f32.xlu0 %v2347
      %v2349 = vpop.xlane.xlu0 %2348
      %v2350 = vsel %vm843, %v2345, -inf
      %2351 = vmax.xlane.f32.xlu0 %v2350
      %v2352 = vpop.xlane.xlu0 %2351
      %v2353 = vsel %vm843, %v2346, -inf
      %2354 = vmax.xlane.f32.xlu0 %v2353
      %v2355 = vpop.xlane.xlu0 %2354
      %v2356 = vsub.f32 %v2344, %v2349
      %v2357 = vsub.f32 %v2345, %v2352
      %v2358 = vsub.f32 %v2346, %v2355
      %v2359 = vmul.f32 %v2356, 1.442695
      %v2360 = vpow.pop %v2359
      %v2361 = vmul.f32 %v2357, 1.442695
      %v2362 = vpow.pop %v2361
      %v2363 = vmul.f32 %v2358, 1.442695
      %v2364 = vpow.pop %v2363
      %v2365 = vsel %vm843, %v2360, 0.0
      %2366 = vadd.xlane.f32.xlu0 %v2365
      %v2367 = vpop.xlane.xlu0 %2366
      %v2368 = vsel %vm843, %v2362, 0.0
      %2369 = vadd.xlane.f32.xlu0 %v2368
      %v2370 = vpop.xlane.xlu0 %2369
      %v2371 = vsel %vm843, %v2364, 0.0
      %2372 = vadd.xlane.f32.xlu0 %v2371
      %v2373 = vpop.xlane.xlu0 %2372
      %v2374 = vrcp.pop %v2367
      %v2375 = vrcp.pop %v2370
      %v2376 = vrcp.pop %v2373
      %v2377 = vmul.f32 %v2360, %v2374
      %v2378 = vmul.f32 %v2362, %v2375
      %v2379 = vmul.f32 %v2364, %v2376
      %2380 = vrot.lane.b32.xlu0 %v587, 84
      %v2381 = vpop.permute.xlu0 %2380
      %v2384 = vsel %vm843, %v2377, 0
      %2386 = vmatprep.subr.mxu0 0.0
      %2387 = vmatpush1.msra.mxu0 0.0
      %2388 = vmatprep.subr.mxu0 0.0
      %2389 = vmatpush1.msra.mxu0 0.0
      %2390 = vmatprep.subr.mxu0 0.0
      %2391 = vmatpush1.msra.mxu0 0.0
      %2392 = vmatprep.subr.mxu0 0.0
      %2393 = vmatpush1.msra.mxu0 0.0
      %2394 = vmatprep.subr.mxu0 0.0
      %2395 = vmatpush1.msra.mxu0 0.0
      %2396 = vmatprep.subr.mxu0 0.0
      %2397 = vmatpush1.msra.mxu0 0.0
      %2398 = vmatprep.subr.mxu0 0.0
      %2399 = vmatpush1.msra.mxu0 0.0
      %2400 = vmatprep.subr.mxu0 0.0
      %2401 = vmatpush1.msra.mxu0 0.0
      %2402 = vmatprep.subr.mxu0 0.0
      %2403 = vmatpush1.msra.mxu0 0.0
      %2404 = vmatprep.subr.mxu0 0.0
      %2405 = vmatpush1.msra.mxu0 0.0
      %2406 = vmatprep.subr.mxu0 0.0
      %2407 = vmatpush1.msra.mxu0 0.0
      %2408 = vmatprep.subr.mxu0 0.0
      %2409 = vmatpush1.msra.mxu0 0.0
      %2410 = vmatprep.subr.mxu0 0.0
      %2411 = vmatpush1.msra.mxu0 0.0
      %2412 = vmatprep.subr.mxu0 0.0
      %2413 = vmatpush1.msra.mxu0 0.0
      %2414 = vmatprep.subr.mxu0 0.0
      %2415 = vmatpush1.msra.mxu0 0.0
      %2416 = vmatprep.subr.mxu0 0.0
      %2417 = vmatpush1.msra.mxu0 %v2381
      %2418 = vmatprep.subr.mxu0 0.0
      %2419 = vmatpush2.msra.mxu0 0.0
      %2420 = vmatprep.subr.mxu0 0.0
      %2421 = vmatpush2.msra.mxu0 0.0
      %2422 = vmatprep.subr.mxu0 0.0
      %2423 = vmatpush2.msra.mxu0 0.0
      %2424 = vmatprep.subr.mxu0 0.0
      %2425 = vmatpush2.msra.mxu0 0.0
      %2426 = vmatprep.subr.mxu0 0.0
      %2427 = vmatpush2.msra.mxu0 0.0
      %2428 = vmatprep.subr.mxu0 0.0
      %2429 = vmatpush2.msra.mxu0 0.0
      %2430 = vmatprep.subr.mxu0 0.0
      %2431 = vmatpush2.msra.mxu0 0.0
      %2432 = vmatprep.subr.mxu0 0.0
      %2433 = vmatpush2.msra.mxu0 0.0
      %2434 = vmatprep.subr.mxu0 0.0
      %2435 = vmatpush2.msra.mxu0 0.0
      %2436 = vmatprep.subr.mxu0 0.0
      %2437 = vmatpush2.msra.mxu0 0.0
      %2438 = vmatprep.subr.mxu0 0.0
      %2439 = vmatpush2.msra.mxu0 0.0
      %2440 = vmatprep.subr.mxu0 0.0
      %2441 = vmatpush2.msra.mxu0 0.0
      %2442 = vmatprep.subr.mxu0 0.0
      %2443 = vmatpush2.msra.mxu0 0.0
      %2444 = vmatprep.subr.mxu0 0.0
      %2445 = vmatpush2.msra.mxu0 0.0
      %2446 = vmatprep.subr.mxu0 0.0
      %2447 = vmatpush2.msra.mxu0 0.0
      %2448 = vmatprep.subr.mxu0 0.0
      %2449 = vmatpush2.msra.mxu0 0.0
      %2450 = vmatprep.mubr.f32.mxu0 0.0
      %2451 = vmatmul.mubr.f32.gmra.mxu0 %v2384
      %v2452 = vpop.f32.mrf.mxu0
      %v2453 = vadd.f32 0.0, %v2452
      %v2454 = vpop.f32.mrf.mxu0
      %2455 = vdwg.mxu0
      %2456 = vrot.lane.b32.xlu0 %v592, 84
      %v2457 = vpop.permute.xlu0 %2456
      %v2460 = vsel %vm843, %v2378, 0
      %2462 = vmatprep.subr.mxu0 0.0
      %2463 = vmatpush1.msra.mxu0 0.0
      %2464 = vmatprep.subr.mxu0 0.0
      %2465 = vmatpush1.msra.mxu0 0.0
      %2466 = vmatprep.subr.mxu0 0.0
      %2467 = vmatpush1.msra.mxu0 0.0
      %2468 = vmatprep.subr.mxu0 0.0
      %2469 = vmatpush1.msra.mxu0 0.0
      %2470 = vmatprep.subr.mxu0 0.0
      %2471 = vmatpush1.msra.mxu0 0.0
      %2472 = vmatprep.subr.mxu0 0.0
      %2473 = vmatpush1.msra.mxu0 0.0
      %2474 = vmatprep.subr.mxu0 0.0
      %2475 = vmatpush1.msra.mxu0 0.0
      %2476 = vmatprep.subr.mxu0 0.0
      %2477 = vmatpush1.msra.mxu0 0.0
      %2478 = vmatprep.subr.mxu0 0.0
      %2479 = vmatpush1.msra.mxu0 0.0
      %2480 = vmatprep.subr.mxu0 0.0
      %2481 = vmatpush1.msra.mxu0 0.0
      %2482 = vmatprep.subr.mxu0 0.0
      %2483 = vmatpush1.msra.mxu0 0.0
      %2484 = vmatprep.subr.mxu0 0.0
      %2485 = vmatpush1.msra.mxu0 0.0
      %2486 = vmatprep.subr.mxu0 0.0
      %2487 = vmatpush1.msra.mxu0 0.0
      %2488 = vmatprep.subr.mxu0 0.0
      %2489 = vmatpush1.msra.mxu0 0.0
      %2490 = vmatprep.subr.mxu0 0.0
      %2491 = vmatpush1.msra.mxu0 0.0
      %2492 = vmatprep.subr.mxu0 0.0
      %2493 = vmatpush1.msra.mxu0 %v2457
      %2494 = vmatprep.subr.mxu0 0.0
      %2495 = vmatpush2.msra.mxu0 0.0
      %2496 = vmatprep.subr.mxu0 0.0
      %2497 = vmatpush2.msra.mxu0 0.0
      %2498 = vmatprep.subr.mxu0 0.0
      %2499 = vmatpush2.msra.mxu0 0.0
      %2500 = vmatprep.subr.mxu0 0.0
      %2501 = vmatpush2.msra.mxu0 0.0
      %2502 = vmatprep.subr.mxu0 0.0
      %2503 = vmatpush2.msra.mxu0 0.0
      %2504 = vmatprep.subr.mxu0 0.0
      %2505 = vmatpush2.msra.mxu0 0.0
      %2506 = vmatprep.subr.mxu0 0.0
      %2507 = vmatpush2.msra.mxu0 0.0
      %2508 = vmatprep.subr.mxu0 0.0
      %2509 = vmatpush2.msra.mxu0 0.0
      %2510 = vmatprep.subr.mxu0 0.0
      %2511 = vmatpush2.msra.mxu0 0.0
      %2512 = vmatprep.subr.mxu0 0.0
      %2513 = vmatpush2.msra.mxu0 0.0
      %2514 = vmatprep.subr.mxu0 0.0
      %2515 = vmatpush2.msra.mxu0 0.0
      %2516 = vmatprep.subr.mxu0 0.0
      %2517 = vmatpush2.msra.mxu0 0.0
      %2518 = vmatprep.subr.mxu0 0.0
      %2519 = vmatpush2.msra.mxu0 0.0
      %2520 = vmatprep.subr.mxu0 0.0
      %2521 = vmatpush2.msra.mxu0 0.0
      %2522 = vmatprep.subr.mxu0 0.0
      %2523 = vmatpush2.msra.mxu0 0.0
      %2524 = vmatprep.subr.mxu0 0.0
      %2525 = vmatpush2.msra.mxu0 0.0
      %2526 = vmatprep.mubr.f32.mxu0 0.0
      %2527 = vmatmul.mubr.f32.gmra.mxu0 %v2460
      %v2528 = vpop.f32.mrf.mxu0
      %v2529 = vadd.f32 0.0, %v2528
      %v2530 = vpop.f32.mrf.mxu0
      %2531 = vdwg.mxu0
      %2532 = vrot.lane.b32.xlu0 %v597, 84
      %v2533 = vpop.permute.xlu0 %2532
      %v2536 = vsel %vm843, %v2379, 0
      %2538 = vmatprep.subr.mxu0 0.0
      %2539 = vmatpush1.msra.mxu0 0.0
      %2540 = vmatprep.subr.mxu0 0.0
      %2541 = vmatpush1.msra.mxu0 0.0
      %2542 = vmatprep.subr.mxu0 0.0
      %2543 = vmatpush1.msra.mxu0 0.0
      %2544 = vmatprep.subr.mxu0 0.0
      %2545 = vmatpush1.msra.mxu0 0.0
      %2546 = vmatprep.subr.mxu0 0.0
      %2547 = vmatpush1.msra.mxu0 0.0
      %2548 = vmatprep.subr.mxu0 0.0
      %2549 = vmatpush1.msra.mxu0 0.0
      %2550 = vmatprep.subr.mxu0 0.0
      %2551 = vmatpush1.msra.mxu0 0.0
      %2552 = vmatprep.subr.mxu0 0.0
      %2553 = vmatpush1.msra.mxu0 0.0
      %2554 = vmatprep.subr.mxu0 0.0
      %2555 = vmatpush1.msra.mxu0 0.0
      %2556 = vmatprep.subr.mxu0 0.0
      %2557 = vmatpush1.msra.mxu0 0.0
      %2558 = vmatprep.subr.mxu0 0.0
      %2559 = vmatpush1.msra.mxu0 0.0
      %2560 = vmatprep.subr.mxu0 0.0
      %2561 = vmatpush1.msra.mxu0 0.0
      %2562 = vmatprep.subr.mxu0 0.0
      %2563 = vmatpush1.msra.mxu0 0.0
      %2564 = vmatprep.subr.mxu0 0.0
      %2565 = vmatpush1.msra.mxu0 0.0
      %2566 = vmatprep.subr.mxu0 0.0
      %2567 = vmatpush1.msra.mxu0 0.0
      %2568 = vmatprep.subr.mxu0 0.0
      %2569 = vmatpush1.msra.mxu0 %v2533
      %2570 = vmatprep.subr.mxu0 0.0
      %2571 = vmatpush2.msra.mxu0 0.0
      %2572 = vmatprep.subr.mxu0 0.0
      %2573 = vmatpush2.msra.mxu0 0.0
      %2574 = vmatprep.subr.mxu0 0.0
      %2575 = vmatpush2.msra.mxu0 0.0
      %2576 = vmatprep.subr.mxu0 0.0
      %2577 = vmatpush2.msra.mxu0 0.0
      %2578 = vmatprep.subr.mxu0 0.0
      %2579 = vmatpush2.msra.mxu0 0.0
      %2580 = vmatprep.subr.mxu0 0.0
      %2581 = vmatpush2.msra.mxu0 0.0
      %2582 = vmatprep.subr.mxu0 0.0
      %2583 = vmatpush2.msra.mxu0 0.0
      %2584 = vmatprep.subr.mxu0 0.0
      %2585 = vmatpush2.msra.mxu0 0.0
      %2586 = vmatprep.subr.mxu0 0.0
      %2587 = vmatpush2.msra.mxu0 0.0
      %2588 = vmatprep.subr.mxu0 0.0
      %2589 = vmatpush2.msra.mxu0 0.0
      %2590 = vmatprep.subr.mxu0 0.0
      %2591 = vmatpush2.msra.mxu0 0.0
      %2592 = vmatprep.subr.mxu0 0.0
      %2593 = vmatpush2.msra.mxu0 0.0
      %2594 = vmatprep.subr.mxu0 0.0
      %2595 = vmatpush2.msra.mxu0 0.0
      %2596 = vmatprep.subr.mxu0 0.0
      %2597 = vmatpush2.msra.mxu0 0.0
      %2598 = vmatprep.subr.mxu0 0.0
      %2599 = vmatpush2.msra.mxu0 0.0
      %2600 = vmatprep.subr.mxu0 0.0
      %2601 = vmatpush2.msra.mxu0 0.0
      %2602 = vmatprep.mubr.f32.mxu0 0.0
      %2603 = vmatmul.mubr.f32.gmra.mxu0 %v2536
      %v2604 = vpop.f32.mrf.mxu0
      %v2605 = vadd.f32 0.0, %v2604
      %v2606 = vpop.f32.mrf.mxu0
      %2607 = vdwg.mxu0
      %2611 = vrot.lane.b32.xlu0 %v1451, 4
      %v2612 = vpop.permute.xlu0 %2611
      %2613 = vrot.lane.b32.xlu0 %v1527, 4
      %v2614 = vpop.permute.xlu0 %2613
      %2615 = vrot.lane.b32.xlu0 %v1603, 4
      %v2616 = vpop.permute.xlu0 %2615
      %2623 = vrot.lane.b32.xlu0 %v1952, 8
      %v2624 = vpop.permute.xlu0 %2623
      %2625 = vrot.lane.b32.xlu0 %v2028, 8
      %v2626 = vpop.permute.xlu0 %2625
      %2627 = vrot.lane.b32.xlu0 %v2104, 8
      %v2628 = vpop.permute.xlu0 %2627
      %2635 = vrot.lane.b32.xlu0 %v2453, 12
      %v2636 = vpop.permute.xlu0 %2635
      %2637 = vrot.lane.b32.xlu0 %v2529, 12
      %v2638 = vpop.permute.xlu0 %2637
      %2639 = vrot.lane.b32.xlu0 %v2605, 12
      %v2640 = vpop.permute.xlu0 %2639
      %v2644 = vsel %vm606, %v950, %v2612
      %v2645 = vsel %vm606, %v1026, %v2614
      %v2646 = vsel %vm606, %v1102, %v2616
      %v2647 = vsel %vm843, %v2644, %v2624
      %v2648 = vsel %vm843, %v2645, %v2626
      %v2649 = vsel %vm843, %v2646, %v2628
      %vm2650 = vcmask 97280
      %v2651 = vsel %vm2650, %v2647, %v2636
      %v2652 = vsel %vm2650, %v2648, %v2638
      %v2653 = vsel %vm2650, %v2649, %v2640
      %v2654 = vld [vmem:[%s3] sm:$0xff]
      %v2655 = vld [vmem:[%s3 + $0x8] sm:$0xff]
      %v2656 = vld [vmem:[%s4] sm:$0x1]
      %v2658 = vlaneseq
      %v2659 = vshrl.u32 %v2658, 7
      %v2660 = vsub.s32 0, %v2659
      %v2661 = vrot.slane %v2656, %v2660
      %v2664 = vsel %vm510, %v2651, 0
      %v2667 = vsel %vm510, %v2652, 0
      %v2670 = vsel %vm510, %v2653, 0
      %2672 = vmatprep.subr.mxu0 0.0
      %2673 = vmatpush1.msra.mxu0 0.0
      %2674 = vmatprep.subr.mxu0 0.0
      %2675 = vmatpush1.msra.mxu0 0.0
      %2676 = vmatprep.subr.mxu0 0.0
      %2677 = vmatpush1.msra.mxu0 0.0
      %2678 = vmatprep.subr.mxu0 0.0
      %2679 = vmatpush1.msra.mxu0 0.0
      %2680 = vmatprep.subr.mxu0 0.0
      %2681 = vmatpush1.msra.mxu0 0.0
      %2682 = vmatprep.subr.mxu0 0.0
      %2683 = vmatpush1.msra.mxu0 0.0
      %2684 = vmatprep.subr.mxu0 0.0
      %2685 = vmatpush1.msra.mxu0 0.0
      %2686 = vmatprep.subr.mxu0 0.0
      %2687 = vmatpush1.msra.mxu0 0.0
      %2688 = vmatprep.subr.mxu0 0.0
      %2689 = vmatpush1.msra.mxu0 0.0
      %2690 = vmatprep.subr.mxu0 0.0
      %2691 = vmatpush1.msra.mxu0 0.0
      %2692 = vmatprep.subr.mxu0 0.0
      %2693 = vmatpush1.msra.mxu0 0.0
      %2694 = vmatprep.subr.mxu0 0.0
      %2695 = vmatpush1.msra.mxu0 0.0
      %2696 = vmatprep.subr.mxu0 0.0
      %2697 = vmatpush1.msra.mxu0 0.0
      %2698 = vmatprep.subr.mxu0 0.0
      %2699 = vmatpush1.msra.mxu0 0.0
      %2700 = vmatprep.subr.mxu0 0.0
      %2701 = vmatpush1.msra.mxu0 %v2655
      %2702 = vmatprep.subr.mxu0 0.0
      %2703 = vmatpush1.msra.mxu0 %v2654
      %2704 = vmatprep.subr.mxu0 0.0
      %2705 = vmatpush2.msra.mxu0 0.0
      %2706 = vmatprep.subr.mxu0 0.0
      %2707 = vmatpush2.msra.mxu0 0.0
      %2708 = vmatprep.subr.mxu0 0.0
      %2709 = vmatpush2.msra.mxu0 0.0
      %2710 = vmatprep.subr.mxu0 0.0
      %2711 = vmatpush2.msra.mxu0 0.0
      %2712 = vmatprep.subr.mxu0 0.0
      %2713 = vmatpush2.msra.mxu0 0.0
      %2714 = vmatprep.subr.mxu0 0.0
      %2715 = vmatpush2.msra.mxu0 0.0
      %2716 = vmatprep.subr.mxu0 0.0
      %2717 = vmatpush2.msra.mxu0 0.0
      %2718 = vmatprep.subr.mxu0 0.0
      %2719 = vmatpush2.msra.mxu0 0.0
      %2720 = vmatprep.subr.mxu0 0.0
      %2721 = vmatpush2.msra.mxu0 0.0
      %2722 = vmatprep.subr.mxu0 0.0
      %2723 = vmatpush2.msra.mxu0 0.0
      %2724 = vmatprep.subr.mxu0 0.0
      %2725 = vmatpush2.msra.mxu0 0.0
      %2726 = vmatprep.subr.mxu0 0.0
      %2727 = vmatpush2.msra.mxu0 0.0
      %2728 = vmatprep.subr.mxu0 0.0
      %2729 = vmatpush2.msra.mxu0 0.0
      %2730 = vmatprep.subr.mxu0 0.0
      %2731 = vmatpush2.msra.mxu0 0.0
      %2732 = vmatprep.subr.mxu0 0.0
      %2733 = vmatpush2.msra.mxu0 0.0
      %2734 = vmatprep.subr.mxu0 0.0
      %2735 = vmatpush2.msra.mxu0 0.0
      %2736 = vmatprep.mubr.f32.mxu0 0.0
      %2737 = vmatmul.mubr.f32.gmra.mxu0 %v2664
      %v2738 = vpop.f32.mrf.mxu0
      %v2739 = vadd.f32 %v2661, %v2738
      %v2740 = vpop.f32.mrf.mxu0
      %2741 = vmatprep.mubr.f32.mxu0 0.0
      %2742 = vmatmul.mubr.f32.gmra.mxu0 %v2667
      %v2743 = vpop.f32.mrf.mxu0
      %v2744 = vadd.f32 %v2661, %v2743
      %v2745 = vpop.f32.mrf.mxu0
      %2746 = vmatprep.mubr.f32.mxu0 0.0
      %2747 = vmatmul.mubr.f32.gmra.mxu0 %v2670
      %v2748 = vpop.f32.mrf.mxu0
      %v2749 = vadd.f32 %v2661, %v2748
      %v2750 = vpop.f32.mrf.mxu0
      %2751 = vdwg.mxu0
      %v2752 = vadd.f32 %v498, %v2739
      %v2753 = vadd.f32 %v499, %v2744
      %v2754 = vadd.f32 %v500, %v2749
      %v2755 = vld [vmem:[%s9] sm:$0x1]
      %v2756 = vld [vmem:[%s10] sm:$0x1]
      %v2757 = vsel %vm510, %v2752, 0.0
      %2758 = vadd.xlane.f32.xlu0 %v2757
      %v2759 = vpop.xlane.xlu0 %2758
      %v2760 = vsel %vm510, %v2753, 0.0
      %2761 = vadd.xlane.f32.xlu0 %v2760
      %v2762 = vpop.xlane.xlu0 %2761
      %v2763 = vsel %vm510, %v2754, 0.0
      %2764 = vadd.xlane.f32.xlu0 %v2763
      %v2765 = vpop.xlane.xlu0 %2764
      %v2766 = vrcp.pop 16.0
      %v2767 = vmul.f32 %v2759, %v2766
      %v2768 = vmul.f32 %v2762, %v2766
      %v2769 = vmul.f32 %v2765, %v2766
      %v2770 = vsub.f32 %v2752, %v2767
      %v2771 = vsub.f32 %v2753, %v2768
      %v2772 = vsub.f32 %v2754, %v2769
      %v2773 = vmul.f32 %v2770, %v2770
      %v2774 = vmul.f32 %v2771, %v2771
      %v2775 = vmul.f32 %v2772, %v2772
      %v2776 = vsel %vm510, %v2773, 0.0
      %2777 = vadd.xlane.f32.xlu0 %v2776
      %v2778 = vpop.xlane.xlu0 %2777
      %v2779 = vsel %vm510, %v2774, 0.0
      %2780 = vadd.xlane.f32.xlu0 %v2779
      %v2781 = vpop.xlane.xlu0 %2780
      %v2782 = vsel %vm510, %v2775, 0.0
      %2783 = vadd.xlane.f32.xlu0 %v2782
      %v2784 = vpop.xlane.xlu0 %2783
      %v2785 = vmul.f32 %v2778, %v2766
      %v2786 = vmul.f32 %v2781, %v2766
      %v2787 = vmul.f32 %v2784, %v2766
      %v2788 = vadd.f32 %v2785, 1e-05
      %v2789 = vadd.f32 %v2786, 1e-05
      %v2790 = vadd.f32 %v2787, 1e-05
      %v2791 = vrsqrt.pop %v2788
      %v2792 = vrsqrt.pop %v2789
      %v2793 = vrsqrt.pop %v2790
      %v2794 = vmul.f32 %v2770, %v2791
      %v2795 = vmul.f32 %v2771, %v2792
      %v2796 = vmul.f32 %v2772, %v2793
      %v2798 = vlaneseq
      %v2799 = vshrl.u32 %v2798, 7
      %v2800 = vsub.s32 0, %v2799
      %v2801 = vrot.slane %v2755, %v2800
      %v2803 = vmul.f32 %v2794, %v2801
      %v2804 = vmul.f32 %v2795, %v2801
      %v2805 = vmul.f32 %v2796, %v2801
      %v2807 = vlaneseq
      %v2808 = vshrl.u32 %v2807, 7
      %v2809 = vsub.s32 0, %v2808
      %v2810 = vrot.slane %v2756, %v2809
      %v2812 = vadd.f32 %v2803, %v2810
      %v2813 = vadd.f32 %v2804, %v2810
      %v2814 = vadd.f32 %v2805, %v2810
      %v2815 = vld [vmem:[%s5] sm:$0xff]
      %v2816 = vld [vmem:[%s5 + $0x8] sm:$0xff]
      %v2817 = vld [vmem:[%s6] sm:$0x1]
      %v2819 = vlaneseq
      %v2820 = vshrl.u32 %v2819, 7
      %v2821 = vsub.s32 0, %v2820
      %v2822 = vrot.slane %v2817, %v2821
      %v2825 = vsel %vm510, %v2812, 0
      %v2828 = vsel %vm510, %v2813, 0
      %v2831 = vsel %vm510, %v2814, 0
      %2833 = vmatprep.subr.mxu0 0.0
      %2834 = vmatpush1.msra.mxu0 0.0
      %2835 = vmatprep.subr.mxu0 0.0
      %2836 = vmatpush1.msra.mxu0 0.0
      %2837 = vmatprep.subr.mxu0 0.0
      %2838 = vmatpush1.msra.mxu0 0.0
      %2839 = vmatprep.subr.mxu0 0.0
      %2840 = vmatpush1.msra.mxu0 0.0
      %2841 = vmatprep.subr.mxu0 0.0
      %2842 = vmatpush1.msra.mxu0 0.0
      %2843 = vmatprep.subr.mxu0 0.0
      %2844 = vmatpush1.msra.mxu0 0.0
      %2845 = vmatprep.subr.mxu0 0.0
      %2846 = vmatpush1.msra.mxu0 0.0
      %2847 = vmatprep.subr.mxu0 0.0
      %2848 = vmatpush1.msra.mxu0 0.0
      %2849 = vmatprep.subr.mxu0 0.0
      %2850 = vmatpush1.msra.mxu0 0.0
      %2851 = vmatprep.subr.mxu0 0.0
      %2852 = vmatpush1.msra.mxu0 0.0
      %2853 = vmatprep.subr.mxu0 0.0
      %2854 = vmatpush1.msra.mxu0 0.0
      %2855 = vmatprep.subr.mxu0 0.0
      %2856 = vmatpush1.msra.mxu0 0.0
      %2857 = vmatprep.subr.mxu0 0.0
      %2858 = vmatpush1.msra.mxu0 0.0
      %2859 = vmatprep.subr.mxu0 0.0
      %2860 = vmatpush1.msra.mxu0 0.0
      %2861 = vmatprep.subr.mxu0 0.0
      %2862 = vmatpush1.msra.mxu0 %v2816
      %2863 = vmatprep.subr.mxu0 0.0
      %2864 = vmatpush1.msra.mxu0 %v2815
      %2865 = vmatprep.subr.mxu0 0.0
      %2866 = vmatpush2.msra.mxu0 0.0
      %2867 = vmatprep.subr.mxu0 0.0
      %2868 = vmatpush2.msra.mxu0 0.0
      %2869 = vmatprep.subr.mxu0 0.0
      %2870 = vmatpush2.msra.mxu0 0.0
      %2871 = vmatprep.subr.mxu0 0.0
      %2872 = vmatpush2.msra.mxu0 0.0
      %2873 = vmatprep.subr.mxu0 0.0
      %2874 = vmatpush2.msra.mxu0 0.0
      %2875 = vmatprep.subr.mxu0 0.0
      %2876 = vmatpush2.msra.mxu0 0.0
      %2877 = vmatprep.subr.mxu0 0.0
      %2878 = vmatpush2.msra.mxu0 0.0
      %2879 = vmatprep.subr.mxu0 0.0
      %2880 = vmatpush2.msra.mxu0 0.0
      %2881 = vmatprep.subr.mxu0 0.0
      %2882 = vmatpush2.msra.mxu0 0.0
      %2883 = vmatprep.subr.mxu0 0.0
      %2884 = vmatpush2.msra.mxu0 0.0
      %2885 = vmatprep.subr.mxu0 0.0
      %2886 = vmatpush2.msra.mxu0 0.0
      %2887 = vmatprep.subr.mxu0 0.0
      %2888 = vmatpush2.msra.mxu0 0.0
      %2889 = vmatprep.subr.mxu0 0.0
      %2890 = vmatpush2.msra.mxu0 0.0
      %2891 = vmatprep.subr.mxu0 0.0
      %2892 = vmatpush2.msra.mxu0 0.0
      %2893 = vmatprep.subr.mxu0 0.0
      %2894 = vmatpush2.msra.mxu0 0.0
      %2895 = vmatprep.subr.mxu0 0.0
      %2896 = vmatpush2.msra.mxu0 0.0
      %2897 = vmatprep.mubr.f32.mxu0 0.0
      %2898 = vmatmul.mubr.f32.gmra.mxu0 %v2825
      %v2899 = vpop.f32.mrf.mxu0
      %v2900 = vadd.f32 %v2822, %v2899
      %v2901 = vpop.f32.mrf.mxu0
      %2902 = vmatprep.mubr.f32.mxu0 0.0
      %2903 = vmatmul.mubr.f32.gmra.mxu0 %v2828
      %v2904 = vpop.f32.mrf.mxu0
      %v2905 = vadd.f32 %v2822, %v2904
      %v2906 = vpop.f32.mrf.mxu0
      %2907 = vmatprep.mubr.f32.mxu0 0.0
      %2908 = vmatmul.mubr.f32.gmra.mxu0 %v2831
      %v2909 = vpop.f32.mrf.mxu0
      %v2910 = vadd.f32 %v2822, %v2909
      %v2911 = vpop.f32.mrf.mxu0
      %2912 = vdwg.mxu0
      %v2913 = vmax.f32 %v2900, 0.0
      %v2914 = vmax.f32 %v2905, 0.0
      %v2915 = vmax.f32 %v2910, 0.0
      %v2916 = vld [vmem:[%s7] sm:$0xff]
      %v2917 = vld [vmem:[%s7 + $0x8] sm:$0xff]
      %v2918 = vld [vmem:[%s7 + $0x10] sm:$0xff]
      %v2919 = vld [vmem:[%s7 + $0x18] sm:$0xff]
      %v2920 = vld [vmem:[%s8] sm:$0x1]
      %v2922 = vlaneseq
      %v2923 = vshrl.u32 %v2922, 7
      %v2924 = vsub.s32 0, %v2923
      %v2925 = vrot.slane %v2920, %v2924
      %vm2927 = vcmask 261120
      %v2929 = vsel %vm2927, %v2913, 0
      %v2932 = vsel %vm2927, %v2914, 0
      %v2935 = vsel %vm2927, %v2915, 0
      %2937 = vmatprep.subr.mxu0 0.0
      %2938 = vmatpush1.msra.mxu0 0.0
      %2939 = vmatprep.subr.mxu0 0.0
      %2940 = vmatpush1.msra.mxu0 0.0
      %2941 = vmatprep.subr.mxu0 0.0
      %2942 = vmatpush1.msra.mxu0 0.0
      %2943 = vmatprep.subr.mxu0 0.0
      %2944 = vmatpush1.msra.mxu0 0.0
      %2945 = vmatprep.subr.mxu0 0.0
      %2946 = vmatpush1.msra.mxu0 0.0
      %2947 = vmatprep.subr.mxu0 0.0
      %2948 = vmatpush1.msra.mxu0 0.0
      %2949 = vmatprep.subr.mxu0 0.0
      %2950 = vmatpush1.msra.mxu0 0.0
      %2951 = vmatprep.subr.mxu0 0.0
      %2952 = vmatpush1.msra.mxu0 0.0
      %2953 = vmatprep.subr.mxu0 0.0
      %2954 = vmatpush1.msra.mxu0 0.0
      %2955 = vmatprep.subr.mxu0 0.0
      %2956 = vmatpush1.msra.mxu0 0.0
      %2957 = vmatprep.subr.mxu0 0.0
      %2958 = vmatpush1.msra.mxu0 0.0
      %2959 = vmatprep.subr.mxu0 0.0
      %2960 = vmatpush1.msra.mxu0 0.0
      %2961 = vmatprep.subr.mxu0 0.0
      %2962 = vmatpush1.msra.mxu0 %v2919
      %2963 = vmatprep.subr.mxu0 0.0
      %2964 = vmatpush1.msra.mxu0 %v2918
      %2965 = vmatprep.subr.mxu0 0.0
      %2966 = vmatpush1.msra.mxu0 %v2917
      %2967 = vmatprep.subr.mxu0 0.0
      %2968 = vmatpush1.msra.mxu0 %v2916
      %2969 = vmatprep.subr.mxu0 0.0
      %2970 = vmatpush2.msra.mxu0 0.0
      %2971 = vmatprep.subr.mxu0 0.0
      %2972 = vmatpush2.msra.mxu0 0.0
      %2973 = vmatprep.subr.mxu0 0.0
      %2974 = vmatpush2.msra.mxu0 0.0
      %2975 = vmatprep.subr.mxu0 0.0
      %2976 = vmatpush2.msra.mxu0 0.0
      %2977 = vmatprep.subr.mxu0 0.0
      %2978 = vmatpush2.msra.mxu0 0.0
      %2979 = vmatprep.subr.mxu0 0.0
      %2980 = vmatpush2.msra.mxu0 0.0
      %2981 = vmatprep.subr.mxu0 0.0
      %2982 = vmatpush2.msra.mxu0 0.0
      %2983 = vmatprep.subr.mxu0 0.0
      %2984 = vmatpush2.msra.mxu0 0.0
      %2985 = vmatprep.subr.mxu0 0.0
      %2986 = vmatpush2.msra.mxu0 0.0
      %2987 = vmatprep.subr.mxu0 0.0
      %2988 = vmatpush2.msra.mxu0 0.0
      %2989 = vmatprep.subr.mxu0 0.0
      %2990 = vmatpush2.msra.mxu0 0.0
      %2991 = vmatprep.subr.mxu0 0.0
      %2992 = vmatpush2.msra.mxu0 0.0
      %2993 = vmatprep.subr.mxu0 0.0
      %2994 = vmatpush2.msra.mxu0 0.0
      %2995 = vmatprep.subr.mxu0 0.0
      %2996 = vmatpush2.msra.mxu0 0.0
      %2997 = vmatprep.subr.mxu0 0.0
      %2998 = vmatpush2.msra.mxu0 0.0
      %2999 = vmatprep.subr.mxu0 0.0
      %3000 = vmatpush2.msra.mxu0 0.0
      %3001 = vmatprep.mubr.f32.mxu0 0.0
      %3002 = vmatmul.mubr.f32.gmra.mxu0 %v2929
      %v3003 = vpop.f32.mrf.mxu0
      %v3004 = vadd.f32 %v2925, %v3003
      %v3005 = vpop.f32.mrf.mxu0
      %3006 = vmatprep.mubr.f32.mxu0 0.0
      %3007 = vmatmul.mubr.f32.gmra.mxu0 %v2932
      %v3008 = vpop.f32.mrf.mxu0
      %v3009 = vadd.f32 %v2925, %v3008
      %v3010 = vpop.f32.mrf.mxu0
      %3011 = vmatprep.mubr.f32.mxu0 0.0
      %3012 = vmatmul.mubr.f32.gmra.mxu0 %v2935
      %v3013 = vpop.f32.mrf.mxu0
      %v3014 = vadd.f32 %v2925, %v3013
      %v3015 = vpop.f32.mrf.mxu0
      %3016 = vdwg.mxu0
      %v3017 = vadd.f32 %v2812, %v3004
      %v3018 = vadd.f32 %v2813, %v3009
      %v3019 = vadd.f32 %v2814, %v3014
      %v3020 = vld [vmem:[%s11] sm:$0x1]
      %v3021 = vld [vmem:[%s12] sm:$0x1]
      %v3022 = vsel %vm510, %v3017, 0.0
      %3023 = vadd.xlane.f32.xlu0 %v3022
      %v3024 = vpop.xlane.xlu0 %3023
      %v3025 = vsel %vm510, %v3018, 0.0
      %3026 = vadd.xlane.f32.xlu0 %v3025
      %v3027 = vpop.xlane.xlu0 %3026
      %v3028 = vsel %vm510, %v3019, 0.0
      %3029 = vadd.xlane.f32.xlu0 %v3028
      %v3030 = vpop.xlane.xlu0 %3029
      %v3031 = vmul.f32 %v3024, %v2766
      %v3032 = vmul.f32 %v3027, %v2766
      %v3033 = vmul.f32 %v3030, %v2766
      %v3034 = vsub.f32 %v3017, %v3031
      %v3035 = vsub.f32 %v3018, %v3032
      %v3036 = vsub.f32 %v3019, %v3033
      %v3037 = vmul.f32 %v3034, %v3034
      %v3038 = vmul.f32 %v3035, %v3035
      %v3039 = vmul.f32 %v3036, %v3036
      %v3040 = vsel %vm510, %v3037, 0.0
      %3041 = vadd.xlane.f32.xlu0 %v3040
      %v3042 = vpop.xlane.xlu0 %3041
      %v3043 = vsel %vm510, %v3038, 0.0
      %3044 = vadd.xlane.f32.xlu0 %v3043
      %v3045 = vpop.xlane.xlu0 %3044
      %v3046 = vsel %vm510, %v3039, 0.0
      %3047 = vadd.xlane.f32.xlu0 %v3046
      %v3048 = vpop.xlane.xlu0 %3047
      %v3049 = vmul.f32 %v3042, %v2766
      %v3050 = vmul.f32 %v3045, %v2766
      %v3051 = vmul.f32 %v3048, %v2766
      %v3052 = vadd.f32 %v3049, 1e-05
      %v3053 = vadd.f32 %v3050, 1e-05
      %v3054 = vadd.f32 %v3051, 1e-05
      %v3055 = vrsqrt.pop %v3052
      %v3056 = vrsqrt.pop %v3053
      %v3057 = vrsqrt.pop %v3054
      %v3058 = vmul.f32 %v3034, %v3055
      %v3059 = vmul.f32 %v3035, %v3056
      %v3060 = vmul.f32 %v3036, %v3057
      %v3062 = vlaneseq
      %v3063 = vshrl.u32 %v3062, 7
      %v3064 = vsub.s32 0, %v3063
      %v3065 = vrot.slane %v3020, %v3064
      %v3067 = vmul.f32 %v3058, %v3065
      %v3068 = vmul.f32 %v3059, %v3065
      %v3069 = vmul.f32 %v3060, %v3065
      %v3071 = vlaneseq
      %v3072 = vshrl.u32 %v3071, 7
      %v3073 = vsub.s32 0, %v3072
      %v3074 = vrot.slane %v3021, %v3073
      %v3076 = vadd.f32 %v3067, %v3074
      %v3077 = vadd.f32 %v3068, %v3074
      %v3078 = vadd.f32 %v3069, %v3074
      %3079 = vst.msk [vmem:[%s496] sm:$0xff] %vm510, %v3076
      %3080 = vst.msk [vmem:[%s496 + $0x8] sm:$0xff] %vm510, %v3077
      %3081 = vst.msk [vmem:[%s496 + $0x10] sm:$0xff] %vm510, %v3078
      %s3082 = smul.u32 3, %s26
      %p3083 = scmp.lt.s32.totalorder %s3082, 5
      %s3084 = scalar_select %p3083, %s3082, 5
      %s3085 = smul.addr %s3084, 8
      %s3086 = scalar_lea.vmem %s15, %s3085
      // Predicated region
      $region81: #{model_forward.7} parent=79 // pred_check
        %p3087 = pneg %p364
      $region82: #{model_forward.7} parent=79 // pred_check_branch
        %3089 = sbr.rel (%p3087) target = $region84
      $region83: #{model_forward.7} parent=79 // pred_region
        %s3090 = smul.u32 3, %s26
      $region84: #{model_forward.7} parent=79 // pred_fallthru
        _
    $region80: #{model_forward.7} parent=5 // pred_fallthru
      _
    %p3091 = scmp.le.s32.totalorder 2, %s21
    // Predicated region
    $region85: #{model_forward.7} parent=5 // pred_check
      %p3092 = pneg %p3091
    $region86: #{model_forward.7} parent=5 // pred_check_branch
      %3094 = sbr.rel (%p3092) target = $region88
    $region87: #{model_forward.7} parent=5 // pred_region
      %s3095 = ssub.s32 %s21, 2
      // Predicated region
      $region89: #{model_forward.7} parent=87 // pred_check
        %p3096 = pneg %p370
      $region90: #{model_forward.7} parent=87 // pred_check_branch
        %3098 = sbr.rel (%p3096) target = $region92
      $region91: #{model_forward.7} parent=87 // pred_region
        %s3099 = smul.u32 3, %s27
        %p3100 = scmp.lt.s32.totalorder %s3099, 5
        %s3101 = scalar_select %p3100, %s3099, 5
        %s3102 = smul.addr %s3101, 8
        %s3103 = scalar_lea.vmem %s15, %s3102
      $region92: #{model_forward.7} parent=87 // pred_fallthru
        _
    $region88: #{model_forward.7} parent=5 // pred_fallthru
      _
  $region6: #{model_forward.7} parent=0 // loop_footer
    %s25 = sadd.s32 1, %s21
  $region7: #{model_forward.7} parent=0 // loop_footer_branch
    %20 = sbr.rel target = $region3
  $region8: #{model_forward.7} parent=0 // loop_exit
    _

// kernel: model_forward.8
$region0: #{model_forward.8}
  #allocation0 [shape = 'u32[]', space=smem, size = 0x4, offset = 0x4, fixed_abs, tag = 'smem constant byte address 0x4 - core index']
  #allocation1 [shape = 'u32[144,128]{1,0:T(1,128)}', space=vmem, size = 0x12000, scoped, tag = 'internal scratch']
  %s0 = inlined_call_operand.vmem [shape: f32[6,8,16], index: 0, kind: input, shape index: {}]
  %s1 = inlined_call_operand.vmem [shape: f32[16,48], index: 1, kind: input, shape index: {}]
  %s2 = inlined_call_operand.vmem [shape: f32[1,48], index: 2, kind: input, shape index: {}]
  %s3 = inlined_call_operand.vmem [shape: f32[16,16], index: 3, kind: input, shape index: {}]
  %s4 = inlined_call_operand.vmem [shape: f32[1,16], index: 4, kind: input, shape index: {}]
  %s5 = inlined_call_operand.vmem [shape: f32[16,32], index: 5, kind: input, shape index: {}]
  %s6 = inlined_call_operand.vmem [shape: f32[1,32], index: 6, kind: input, shape index: {}]
  %s7 = inlined_call_operand.vmem [shape: f32[32,16], index: 7, kind: input, shape index: {}]
  %s8 = inlined_call_operand.vmem [shape: f32[1,16], index: 8, kind: input, shape index: {}]
  %s9 = inlined_call_operand.vmem [shape: f32[1,16], index: 9, kind: input, shape index: {}]
  %s10 = inlined_call_operand.vmem [shape: f32[1,16], index: 10, kind: input, shape index: {}]
  %s11 = inlined_call_operand.vmem [shape: f32[1,16], index: 11, kind: input, shape index: {}]
  %s12 = inlined_call_operand.vmem [shape: f32[1,16], index: 12, kind: input, shape index: {}]
  %s13 = inlined_call_operand.vmem [shape: f32[1,16], index: 13, kind: input, shape index: {}]
  %s14 = inlined_call_operand.vmem [shape: f32[1,16], index: 14, kind: input, shape index: {}]
  %s15 = inlined_call_operand.vmem [shape: f32[6,8,16], index: 15, kind: output, shape index: {}]
  %s16 = sld [smem:[#allocation0]]
  $region93: #{model_forward.8} parent=0
    _
  %s18 = ssub.s32 1, %s16
  %s19 = scalar_select 0, %s18, %s16
  loop: start=0, step=1, limit=4
  $region2: #{model_forward.8} parent=0 // loop_pre_header
    _
  $region3: #{model_forward.8} parent=0 // loop_header
    %s21 = sphi 0, %s25
    %p22 = scmp.ge.s32.totalorder %s21, 4
    %s31 = sphi 0, %s33
    %s34 = sphi 0, %s31
    %s35 = sphi 0, %s34
    %s51 = sphi 0, %s35
    %s55 = sphi 0, %s55
    %s57 = sphi 0, %s55
    %s58 = sphi 0, %s57
    %s72 = sphi 0, %s58
    %s76 = sphi 0, %s76
    %s78 = sphi 0, %s76
    %s79 = sphi 0, %s78
    %s93 = sphi 0, %s79
    %s97 = sphi 0, %s97
    %s99 = sphi 0, %s97
    %s100 = sphi 0, %s99
    %s114 = sphi 0, %s100
    %s118 = sphi 0, %s118
    %s120 = sphi 0, %s118
    %s121 = sphi 0, %s120
    %s135 = sphi 0, %s121
    %s139 = sphi 0, %s139
    %s141 = sphi 0, %s139
    %s142 = sphi 0, %s141
    %s156 = sphi 0, %s142
    %s160 = sphi 0, %s160
    %s162 = sphi 0, %s160
    %s163 = sphi 0, %s162
    %s177 = sphi 0, %s163
    %s181 = sphi 0, %s181
    %s183 = sphi 0, %s181
    %s184 = sphi 0, %s183
    %s198 = sphi 0, %s184
    %s202 = sphi 0, %s202
    %s204 = sphi 0, %s202
    %s205 = sphi 0, %s204
    %s219 = sphi 0, %s205
    %s223 = sphi 0, %s223
    %s225 = sphi 0, %s223
    %s226 = sphi 0, %s225
    %s240 = sphi 0, %s226
    %s244 = sphi 0, %s244
    %s246 = sphi 0, %s244
    %s247 = sphi 0, %s246
    %s261 = sphi 0, %s247
    %s265 = sphi 0, %s265
    %s267 = sphi 0, %s265
    %s268 = sphi 0, %s267
    %s282 = sphi 0, %s268
    %s286 = sphi 0, %s286
    %s288 = sphi 0, %s286
    %s289 = sphi 0, %s288
    %s303 = sphi 0, %s289
    %s307 = sphi 0, %s307
    %s309 = sphi 0, %s307
    %s310 = sphi 0, %s309
    %s324 = sphi 0, %s310
    %s328 = sphi 0, %s328
    %s330 = sphi 0, %s328
    %s331 = sphi 0, %s330
    %s345 = sphi 0, %s331
    %s351 = sphi 0, %s353
    %s354 = sphi 0, %s351
    %s355 = sphi 0, %s354
    %s371 = sphi 0, %s355
  $region4: #{model_forward.8} parent=0 // loop_header_branch
    %24 = sbr.rel (%p22) target = $region8
  $region5: #{model_forward.8} parent=0 // loop_body
    %s26 = ssub.s32 %s21, 1
    %s27 = ssub.s32 %s21, 2
    %s28 = sadd.s32 %s21, 1
    %s29 = ssub.s32 %s21, %s28
    %p30 = scmp.eq.s32.totalorder %s29, 0
    %s32 = sadd.s32 %s31, 1
    %s33 = scalar_select %p30, %s31, %s32
    %p36 = pneg %p30
    %p37 = scmp.eq.s32.totalorder %s21, 1
    %p38 = por %p36, %p37
    %p39 = scmp.ne.s32.totalorder %s31, %s34
    %p40 = scmp.eq.s32.totalorder %s21, 0
    %p41 = por %p39, %p40
    %p42 = scmp.ne.s32.totalorder %s31, %s34
    %p43 = scmp.eq.s32.totalorder %s26, 1
    %p44 = por %p42, %p43
    %p45 = scmp.ne.s32.totalorder %s34, %s35
    %p46 = scmp.eq.s32.totalorder %s26, 0
    %p47 = por %p45, %p46
    %p48 = scmp.ne.s32.totalorder %s34, %s35
    %p49 = scmp.eq.s32.totalorder %s27, 1
    %p50 = por %p48, %p49
    %p52 = scmp.ne.s32.totalorder %s35, %s51
    %p53 = scmp.eq.s32.totalorder %s27, 0
    %p54 = por %p52, %p53
    %s56 = sadd.s32 %s55, 1
    %p59 = scmp.eq.s32.totalorder %s21, 1
    %p60 = scmp.ne.s32.totalorder %s55, %s57
    %p61 = scmp.eq.s32.totalorder %s21, 0
    %p62 = por %p60, %p61
    %p63 = scmp.ne.s32.totalorder %s55, %s57
    %p64 = scmp.eq.s32.totalorder %s26, 1
    %p65 = por %p63, %p64
    %p66 = scmp.ne.s32.totalorder %s57, %s58
    %p67 = scmp.eq.s32.totalorder %s26, 0
    %p68 = por %p66, %p67
    %p69 = scmp.ne.s32.totalorder %s57, %s58
    %p70 = scmp.eq.s32.totalorder %s27, 1
    %p71 = por %p69, %p70
    %p73 = scmp.ne.s32.totalorder %s58, %s72
    %p74 = scmp.eq.s32.totalorder %s27, 0
    %p75 = por %p73, %p74
    %s77 = sadd.s32 %s76, 1
    %p80 = scmp.eq.s32.totalorder %s21, 1
    %p81 = scmp.ne.s32.totalorder %s76, %s78
    %p82 = scmp.eq.s32.totalorder %s21, 0
    %p83 = por %p81, %p82
    %p84 = scmp.ne.s32.totalorder %s76, %s78
    %p85 = scmp.eq.s32.totalorder %s26, 1
    %p86 = por %p84, %p85
    %p87 = scmp.ne.s32.totalorder %s78, %s79
    %p88 = scmp.eq.s32.totalorder %s26, 0
    %p89 = por %p87, %p88
    %p90 = scmp.ne.s32.totalorder %s78, %s79
    %p91 = scmp.eq.s32.totalorder %s27, 1
    %p92 = por %p90, %p91
    %p94 = scmp.ne.s32.totalorder %s79, %s93
    %p95 = scmp.eq.s32.totalorder %s27, 0
    %p96 = por %p94, %p95
    %s98 = sadd.s32 %s97, 1
    %p101 = scmp.eq.s32.totalorder %s21, 1
    %p102 = scmp.ne.s32.totalorder %s97, %s99
    %p103 = scmp.eq.s32.totalorder %s21, 0
    %p104 = por %p102, %p103
    %p105 = scmp.ne.s32.totalorder %s97, %s99
    %p106 = scmp.eq.s32.totalorder %s26, 1
    %p107 = por %p105, %p106
    %p108 = scmp.ne.s32.totalorder %s99, %s100
    %p109 = scmp.eq.s32.totalorder %s26, 0
    %p110 = por %p108, %p109
    %p111 = scmp.ne.s32.totalorder %s99, %s100
    %p112 = scmp.eq.s32.totalorder %s27, 1
    %p113 = por %p111, %p112
    %p115 = scmp.ne.s32.totalorder %s100, %s114
    %p116 = scmp.eq.s32.totalorder %s27, 0
    %p117 = por %p115, %p116
    %s119 = sadd.s32 %s118, 1
    %p122 = scmp.eq.s32.totalorder %s21, 1
    %p123 = scmp.ne.s32.totalorder %s118, %s120
    %p124 = scmp.eq.s32.totalorder %s21, 0
    %p125 = por %p123, %p124
    %p126 = scmp.ne.s32.totalorder %s118, %s120
    %p127 = scmp.eq.s32.totalorder %s26, 1
    %p128 = por %p126, %p127
    %p129 = scmp.ne.s32.totalorder %s120, %s121
    %p130 = scmp.eq.s32.totalorder %s26, 0
    %p131 = por %p129, %p130
    %p132 = scmp.ne.s32.totalorder %s120, %s121
    %p133 = scmp.eq.s32.totalorder %s27, 1
    %p134 = por %p132, %p133
    %p136 = scmp.ne.s32.totalorder %s121, %s135
    %p137 = scmp.eq.s32.totalorder %s27, 0
    %p138 = por %p136, %p137
    %s140 = sadd.s32 %s139, 1
    %p143 = scmp.eq.s32.totalorder %s21, 1
    %p144 = scmp.ne.s32.totalorder %s139, %s141
    %p145 = scmp.eq.s32.totalorder %s21, 0
    %p146 = por %p144, %p145
    %p147 = scmp.ne.s32.totalorder %s139, %s141
    %p148 = scmp.eq.s32.totalorder %s26, 1
    %p149 = por %p147, %p148
    %p150 = scmp.ne.s32.totalorder %s141, %s142
    %p151 = scmp.eq.s32.totalorder %s26, 0
    %p152 = por %p150, %p151
    %p153 = scmp.ne.s32.totalorder %s141, %s142
    %p154 = scmp.eq.s32.totalorder %s27, 1
    %p155 = por %p153, %p154
    %p157 = scmp.ne.s32.totalorder %s142, %s156
    %p158 = scmp.eq.s32.totalorder %s27, 0
    %p159 = por %p157, %p158
    %s161 = sadd.s32 %s160, 1
    %p164 = scmp.eq.s32.totalorder %s21, 1
    %p165 = scmp.ne.s32.totalorder %s160, %s162
    %p166 = scmp.eq.s32.totalorder %s21, 0
    %p167 = por %p165, %p166
    %p168 = scmp.ne.s32.totalorder %s160, %s162
    %p169 = scmp.eq.s32.totalorder %s26, 1
    %p170 = por %p168, %p169
    %p171 = scmp.ne.s32.totalorder %s162, %s163
    %p172 = scmp.eq.s32.totalorder %s26, 0
    %p173 = por %p171, %p172
    %p174 = scmp.ne.s32.totalorder %s162, %s163
    %p175 = scmp.eq.s32.totalorder %s27, 1
    %p176 = por %p174, %p175
    %p178 = scmp.ne.s32.totalorder %s163, %s177
    %p179 = scmp.eq.s32.totalorder %s27, 0
    %p180 = por %p178, %p179
    %s182 = sadd.s32 %s181, 1
    %p185 = scmp.eq.s32.totalorder %s21, 1
    %p186 = scmp.ne.s32.totalorder %s181, %s183
    %p187 = scmp.eq.s32.totalorder %s21, 0
    %p188 = por %p186, %p187
    %p189 = scmp.ne.s32.totalorder %s181, %s183
    %p190 = scmp.eq.s32.totalorder %s26, 1
    %p191 = por %p189, %p190
    %p192 = scmp.ne.s32.totalorder %s183, %s184
    %p193 = scmp.eq.s32.totalorder %s26, 0
    %p194 = por %p192, %p193
    %p195 = scmp.ne.s32.totalorder %s183, %s184
    %p196 = scmp.eq.s32.totalorder %s27, 1
    %p197 = por %p195, %p196
    %p199 = scmp.ne.s32.totalorder %s184, %s198
    %p200 = scmp.eq.s32.totalorder %s27, 0
    %p201 = por %p199, %p200
    %s203 = sadd.s32 %s202, 1
    %p206 = scmp.eq.s32.totalorder %s21, 1
    %p207 = scmp.ne.s32.totalorder %s202, %s204
    %p208 = scmp.eq.s32.totalorder %s21, 0
    %p209 = por %p207, %p208
    %p210 = scmp.ne.s32.totalorder %s202, %s204
    %p211 = scmp.eq.s32.totalorder %s26, 1
    %p212 = por %p210, %p211
    %p213 = scmp.ne.s32.totalorder %s204, %s205
    %p214 = scmp.eq.s32.totalorder %s26, 0
    %p215 = por %p213, %p214
    %p216 = scmp.ne.s32.totalorder %s204, %s205
    %p217 = scmp.eq.s32.totalorder %s27, 1
    %p218 = por %p216, %p217
    %p220 = scmp.ne.s32.totalorder %s205, %s219
    %p221 = scmp.eq.s32.totalorder %s27, 0
    %p222 = por %p220, %p221
    %s224 = sadd.s32 %s223, 1
    %p227 = scmp.eq.s32.totalorder %s21, 1
    %p228 = scmp.ne.s32.totalorder %s223, %s225
    %p229 = scmp.eq.s32.totalorder %s21, 0
    %p230 = por %p228, %p229
    %p231 = scmp.ne.s32.totalorder %s223, %s225
    %p232 = scmp.eq.s32.totalorder %s26, 1
    %p233 = por %p231, %p232
    %p234 = scmp.ne.s32.totalorder %s225, %s226
    %p235 = scmp.eq.s32.totalorder %s26, 0
    %p236 = por %p234, %p235
    %p237 = scmp.ne.s32.totalorder %s225, %s226
    %p238 = scmp.eq.s32.totalorder %s27, 1
    %p239 = por %p237, %p238
    %p241 = scmp.ne.s32.totalorder %s226, %s240
    %p242 = scmp.eq.s32.totalorder %s27, 0
    %p243 = por %p241, %p242
    %s245 = sadd.s32 %s244, 1
    %p248 = scmp.eq.s32.totalorder %s21, 1
    %p249 = scmp.ne.s32.totalorder %s244, %s246
    %p250 = scmp.eq.s32.totalorder %s21, 0
    %p251 = por %p249, %p250
    %p252 = scmp.ne.s32.totalorder %s244, %s246
    %p253 = scmp.eq.s32.totalorder %s26, 1
    %p254 = por %p252, %p253
    %p255 = scmp.ne.s32.totalorder %s246, %s247
    %p256 = scmp.eq.s32.totalorder %s26, 0
    %p257 = por %p255, %p256
    %p258 = scmp.ne.s32.totalorder %s246, %s247
    %p259 = scmp.eq.s32.totalorder %s27, 1
    %p260 = por %p258, %p259
    %p262 = scmp.ne.s32.totalorder %s247, %s261
    %p263 = scmp.eq.s32.totalorder %s27, 0
    %p264 = por %p262, %p263
    %s266 = sadd.s32 %s265, 1
    %p269 = scmp.eq.s32.totalorder %s21, 1
    %p270 = scmp.ne.s32.totalorder %s265, %s267
    %p271 = scmp.eq.s32.totalorder %s21, 0
    %p272 = por %p270, %p271
    %p273 = scmp.ne.s32.totalorder %s265, %s267
    %p274 = scmp.eq.s32.totalorder %s26, 1
    %p275 = por %p273, %p274
    %p276 = scmp.ne.s32.totalorder %s267, %s268
    %p277 = scmp.eq.s32.totalorder %s26, 0
    %p278 = por %p276, %p277
    %p279 = scmp.ne.s32.totalorder %s267, %s268
    %p280 = scmp.eq.s32.totalorder %s27, 1
    %p281 = por %p279, %p280
    %p283 = scmp.ne.s32.totalorder %s268, %s282
    %p284 = scmp.eq.s32.totalorder %s27, 0
    %p285 = por %p283, %p284
    %s287 = sadd.s32 %s286, 1
    %p290 = scmp.eq.s32.totalorder %s21, 1
    %p291 = scmp.ne.s32.totalorder %s286, %s288
    %p292 = scmp.eq.s32.totalorder %s21, 0
    %p293 = por %p291, %p292
    %p294 = scmp.ne.s32.totalorder %s286, %s288
    %p295 = scmp.eq.s32.totalorder %s26, 1
    %p296 = por %p294, %p295
    %p297 = scmp.ne.s32.totalorder %s288, %s289
    %p298 = scmp.eq.s32.totalorder %s26, 0
    %p299 = por %p297, %p298
    %p300 = scmp.ne.s32.totalorder %s288, %s289
    %p301 = scmp.eq.s32.totalorder %s27, 1
    %p302 = por %p300, %p301
    %p304 = scmp.ne.s32.totalorder %s289, %s303
    %p305 = scmp.eq.s32.totalorder %s27, 0
    %p306 = por %p304, %p305
    %s308 = sadd.s32 %s307, 1
    %p311 = scmp.eq.s32.totalorder %s21, 1
    %p312 = scmp.ne.s32.totalorder %s307, %s309
    %p313 = scmp.eq.s32.totalorder %s21, 0
    %p314 = por %p312, %p313
    %p315 = scmp.ne.s32.totalorder %s307, %s309
    %p316 = scmp.eq.s32.totalorder %s26, 1
    %p317 = por %p315, %p316
    %p318 = scmp.ne.s32.totalorder %s309, %s310
    %p319 = scmp.eq.s32.totalorder %s26, 0
    %p320 = por %p318, %p319
    %p321 = scmp.ne.s32.totalorder %s309, %s310
    %p322 = scmp.eq.s32.totalorder %s27, 1
    %p323 = por %p321, %p322
    %p325 = scmp.ne.s32.totalorder %s310, %s324
    %p326 = scmp.eq.s32.totalorder %s27, 0
    %p327 = por %p325, %p326
    %s329 = sadd.s32 %s328, 1
    %p332 = scmp.eq.s32.totalorder %s21, 1
    %p333 = scmp.ne.s32.totalorder %s328, %s330
    %p334 = scmp.eq.s32.totalorder %s21, 0
    %p335 = por %p333, %p334
    %p336 = scmp.ne.s32.totalorder %s328, %s330
    %p337 = scmp.eq.s32.totalorder %s26, 1
    %p338 = por %p336, %p337
    %p339 = scmp.ne.s32.totalorder %s330, %s331
    %p340 = scmp.eq.s32.totalorder %s26, 0
    %p341 = por %p339, %p340
    %p342 = scmp.ne.s32.totalorder %s330, %s331
    %p343 = scmp.eq.s32.totalorder %s27, 1
    %p344 = por %p342, %p343
    %p346 = scmp.ne.s32.totalorder %s331, %s345
    %p347 = scmp.eq.s32.totalorder %s27, 0
    %p348 = por %p346, %p347
    %s349 = ssub.s32 %s21, %s28
    %p350 = scmp.eq.s32.totalorder %s349, 0
    %s352 = sadd.s32 %s351, 1
    %s353 = scalar_select %p350, %s351, %s352
    %p356 = pneg %p350
    %p357 = scmp.eq.s32.totalorder %s21, 1
    %p358 = por %p356, %p357
    %p359 = scmp.ne.s32.totalorder %s351, %s354
    %p360 = scmp.eq.s32.totalorder %s21, 0
    %p361 = por %p359, %p360
    %p362 = scmp.ne.s32.totalorder %s351, %s354
    %p363 = scmp.eq.s32.totalorder %s26, 1
    %p364 = por %p362, %p363
    %p365 = scmp.ne.s32.totalorder %s354, %s355
    %p366 = scmp.eq.s32.totalorder %s26, 0
    %p367 = por %p365, %p366
    %p368 = scmp.ne.s32.totalorder %s354, %s355
    %p369 = scmp.eq.s32.totalorder %s27, 1
    %p370 = por %p368, %p369
    %p372 = scmp.ne.s32.totalorder %s355, %s371
    %p373 = scmp.eq.s32.totalorder %s27, 0
    %p374 = por %p372, %p373
    %p375 = scmp.le.s32.totalorder 1, %s21
    %p376 = scmp.lt.s32.totalorder %s21, 3
    %p377 = pnand %p375, %p376
    %p378 = pneg %p377
    // Predicated region
    $region9: #{model_forward.8} parent=5 // pred_check
      _
    $region10: #{model_forward.8} parent=5 // pred_check_branch
      %380 = sbr.rel (%p377) target = $region12
    $region11: #{model_forward.8} parent=5 // pred_region
      %s381 = ssub.s32 %s21, 1
      // Predicated region
      $region13: #{model_forward.8} parent=11 // pred_check
        %p382 = pneg %p68
      $region14: #{model_forward.8} parent=11 // pred_check_branch
        %384 = sbr.rel (%p382) target = $region16
      $region15: #{model_forward.8} parent=11 // pred_region
        _
      $region16: #{model_forward.8} parent=11 // pred_fallthru
        _
      // Predicated region
      $region17: #{model_forward.8} parent=11 // pred_check
        %p385 = pneg %p89
      $region18: #{model_forward.8} parent=11 // pred_check_branch
        %387 = sbr.rel (%p385) target = $region20
      $region19: #{model_forward.8} parent=11 // pred_region
        _
      $region20: #{model_forward.8} parent=11 // pred_fallthru
        _
      // Predicated region
      $region21: #{model_forward.8} parent=11 // pred_check
        %p388 = pneg %p110
      $region22: #{model_forward.8} parent=11 // pred_check_branch
        %390 = sbr.rel (%p388) target = $region24
      $region23: #{model_forward.8} parent=11 // pred_region
        _
      $region24: #{model_forward.8} parent=11 // pred_fallthru
        _
      // Predicated region
      $region25: #{model_forward.8} parent=11 // pred_check
        %p391 = pneg %p131
      $region26: #{model_forward.8} parent=11 // pred_check_branch
        %393 = sbr.rel (%p391) target = $region28
      $region27: #{model_forward.8} parent=11 // pred_region
        _
      $region28: #{model_forward.8} parent=11 // pred_fallthru
        _
      // Predicated region
      $region29: #{model_forward.8} parent=11 // pred_check
        %p394 = pneg %p152
      $region30: #{model_forward.8} parent=11 // pred_check_branch
        %396 = sbr.rel (%p394) target = $region32
      $region31: #{model_forward.8} parent=11 // pred_region
        _
      $region32: #{model_forward.8} parent=11 // pred_fallthru
        _
      // Predicated region
      $region33: #{model_forward.8} parent=11 // pred_check
        %p397 = pneg %p173
      $region34: #{model_forward.8} parent=11 // pred_check_branch
        %399 = sbr.rel (%p397) target = $region36
      $region35: #{model_forward.8} parent=11 // pred_region
        _
      $region36: #{model_forward.8} parent=11 // pred_fallthru
        _
      // Predicated region
      $region37: #{model_forward.8} parent=11 // pred_check
        %p400 = pneg %p194
      $region38: #{model_forward.8} parent=11 // pred_check_branch
        %402 = sbr.rel (%p400) target = $region40
      $region39: #{model_forward.8} parent=11 // pred_region
        _
      $region40: #{model_forward.8} parent=11 // pred_fallthru
        _
      // Predicated region
      $region41: #{model_forward.8} parent=11 // pred_check
        %p403 = pneg %p215
      $region42: #{model_forward.8} parent=11 // pred_check_branch
        %405 = sbr.rel (%p403) target = $region44
      $region43: #{model_forward.8} parent=11 // pred_region
        _
      $region44: #{model_forward.8} parent=11 // pred_fallthru
        _
      // Predicated region
      $region45: #{model_forward.8} parent=11 // pred_check
        %p406 = pneg %p236
      $region46: #{model_forward.8} parent=11 // pred_check_branch
        %408 = sbr.rel (%p406) target = $region48
      $region47: #{model_forward.8} parent=11 // pred_region
        _
      $region48: #{model_forward.8} parent=11 // pred_fallthru
        _
      // Predicated region
      $region49: #{model_forward.8} parent=11 // pred_check
        %p409 = pneg %p257
      $region50: #{model_forward.8} parent=11 // pred_check_branch
        %411 = sbr.rel (%p409) target = $region52
      $region51: #{model_forward.8} parent=11 // pred_region
        _
      $region52: #{model_forward.8} parent=11 // pred_fallthru
        _
      // Predicated region
      $region53: #{model_forward.8} parent=11 // pred_check
        %p412 = pneg %p278
      $region54: #{model_forward.8} parent=11 // pred_check_branch
        %414 = sbr.rel (%p412) target = $region56
      $region55: #{model_forward.8} parent=11 // pred_region
        _
      $region56: #{model_forward.8} parent=11 // pred_fallthru
        _
      // Predicated region
      $region57: #{model_forward.8} parent=11 // pred_check
        %p415 = pneg %p299
      $region58: #{model_forward.8} parent=11 // pred_check_branch
        %417 = sbr.rel (%p415) target = $region60
      $region59: #{model_forward.8} parent=11 // pred_region
        _
      $region60: #{model_forward.8} parent=11 // pred_fallthru
        _
      // Predicated region
      $region61: #{model_forward.8} parent=11 // pred_check
        %p418 = pneg %p320
      $region62: #{model_forward.8} parent=11 // pred_check_branch
        %420 = sbr.rel (%p418) target = $region64
      $region63: #{model_forward.8} parent=11 // pred_region
        _
      $region64: #{model_forward.8} parent=11 // pred_fallthru
        _
      // Predicated region
      $region65: #{model_forward.8} parent=11 // pred_check
        %p421 = pneg %p341
      $region66: #{model_forward.8} parent=11 // pred_check_branch
        %423 = sbr.rel (%p421) target = $region68
      $region67: #{model_forward.8} parent=11 // pred_region
        _
      $region68: #{model_forward.8} parent=11 // pred_fallthru
        _
    $region12: #{model_forward.8} parent=5 // pred_fallthru
      _
    %p424 = scmp.lt.s32.totalorder %s21, 2
    // Predicated region
    $region69: #{model_forward.8} parent=5 // pred_check
      %p425 = pneg %p424
    $region70: #{model_forward.8} parent=5 // pred_check_branch
      %427 = sbr.rel (%p425) target = $region72
    $region71: #{model_forward.8} parent=5 // pred_region
      // Predicated region
      $region73: #{model_forward.8} parent=71 // pred_check
        %p428 = pneg %p41
      $region74: #{model_forward.8} parent=71 // pred_check_branch
        %430 = sbr.rel (%p428) target = $region76
      $region75: #{model_forward.8} parent=71 // pred_region
        %s431 = smul.u32 3, %s21
        %p432 = scmp.lt.s32.totalorder %s431, 5
        %s433 = scalar_select %p432, %s431, 5
        %s434 = smul.addr %s433, 8
        %s435 = scalar_lea.vmem %s0, %s434
        %s436 = smul.u32 3, %s21
      $region76: #{model_forward.8} parent=71 // pred_fallthru
        _
    $region72: #{model_forward.8} parent=5 // pred_fallthru
      _
    %p437 = scmp.le.s32.totalorder 1, %s21
    %p438 = scmp.lt.s32.totalorder %s21, 3
    %p439 = pnand %p437, %p438
    %p440 = pneg %p439
    // Predicated region
    $region77: #{model_forward.8} parent=5 // pred_check
      _
    $region78: #{model_forward.8} parent=5 // pred_check_branch
      %442 = sbr.rel (%p439) target = $region80
    $region79: #{model_forward.8} parent=5 // pred_region
      %s443 = ssub.s32 %s21, 1
      %s444 = smul.u32 3, %s26
      %p445 = scmp.lt.s32.totalorder %s444, 5
      %s446 = scalar_select %p445, %s444, 5
      %s447 = smul.addr %s446, 8
      %s448 = scalar_lea.vmem %s0, %s447
      %p449 = pneg %p47
      %p450 = pneg %p44
      %p451 = pneg %p68
      %p452 = pneg %p65
      %p453 = pneg %p89
      %p454 = pneg %p86
      %p455 = pneg %p110
      %p456 = pneg %p107
      %p457 = pneg %p131
      %p458 = pneg %p128
      %p459 = pneg %p152
      %p460 = pneg %p149
      %p461 = pneg %p173
      %p462 = pneg %p170
      %p463 = pneg %p194
      %p464 = pneg %p191
      %p465 = pneg %p215
      %p466 = pneg %p212
      %p467 = pneg %p236
      %p468 = pneg %p233
      %p469 = pneg %p257
      %p470 = pneg %p254
      %p471 = pneg %p278
      %p472 = pneg %p275
      %p473 = pneg %p299
      %p474 = pneg %p296
      %p475 = pneg %p320
      %p476 = pneg %p317
      %p477 = pneg %p341
      %p478 = pneg %p338
      %p479 = pneg %p367
      %p480 = pneg %p364
      %s481 = smul.u32 3, %s26
      %p482 = scmp.lt.s32.totalorder %s481, 5
      %s483 = scalar_select %p482, %s481, 5
      %s484 = smul.addr %s483, 8
      %s485 = scalar_lea.vmem %s15, %s484
      %s486 = smul.u32 3, %s26
      %p487 = scmp.lt.s32.totalorder %s486, 5
      %s488 = scalar_select %p487, %s486, 5
      %s489 = smul.addr %s488, 8
      %s490 = scalar_lea.vmem %s0, %s489
      %s491 = smul.u32 3, %s26
      %s492 = smul.u32 3, %s26
      %p493 = scmp.lt.s32.totalorder %s492, 5
      %s494 = scalar_select %p493, %s492, 5
      %s495 = smul.addr %s494, 8
      %s496 = scalar_lea.vmem %s15, %s495
      %s497 = smul.u32 3, %s26
      %v498 = vld [vmem:[%s490] sm:$0xff]
      %v499 = vld [vmem:[%s490 + $0x8] sm:$0xff]
      %v500 = vld [vmem:[%s490 + $0x10] sm:$0xff]
      %v501 = vld [vmem:[%s1] sm:$0xff]
      %v502 = vld [vmem:[%s1 + $0x8] sm:$0xff]
      %v503 = vld [vmem:[%s2] sm:$0x1]
      %v505 = vlaneseq
      %v506 = vshrl.u32 %v505, 7
      %v507 = vsub.s32 0, %v506
      %v508 = vrot.slane %v503, %v507
      %vm510 = vcmask 130048
      %v512 = vsel %vm510, %v498, 0
      %v515 = vsel %vm510, %v499, 0
      %v518 = vsel %vm510, %v500, 0
      %520 = vmatprep.subr.mxu0 0.0
      %521 = vmatpush1.msra.mxu0 0.0
      %522 = vmatprep.subr.mxu0 0.0
      %523 = vmatpush1.msra.mxu0 0.0
      %524 = vmatprep.subr.mxu0 0.0
      %525 = vmatpush1.msra.mxu0 0.0
      %526 = vmatprep.subr.mxu0 0.0
      %527 = vmatpush1.msra.mxu0 0.0
      %528 = vmatprep.subr.mxu0 0.0
      %529 = vmatpush1.msra.mxu0 0.0
      %530 = vmatprep.subr.mxu0 0.0
      %531 = vmatpush1.msra.mxu0 0.0
      %532 = vmatprep.subr.mxu0 0.0
      %533 = vmatpush1.msra.mxu0 0.0
      %534 = vmatprep.subr.mxu0 0.0
      %535 = vmatpush1.msra.mxu0 0.0
      %536 = vmatprep.subr.mxu0 0.0
      %537 = vmatpush1.msra.mxu0 0.0
      %538 = vmatprep.subr.mxu0 0.0
      %539 = vmatpush1.msra.mxu0 0.0
      %540 = vmatprep.subr.mxu0 0.0
      %541 = vmatpush1.msra.mxu0 0.0
      %542 = vmatprep.subr.mxu0 0.0
      %543 = vmatpush1.msra.mxu0 0.0
      %544 = vmatprep.subr.mxu0 0.0
      %545 = vmatpush1.msra.mxu0 0.0
      %546 = vmatprep.subr.mxu0 0.0
      %547 = vmatpush1.msra.mxu0 0.0
      %548 = vmatprep.subr.mxu0 0.0
      %549 = vmatpush1.msra.mxu0 %v502
      %550 = vmatprep.subr.mxu0 0.0
      %551 = vmatpush1.msra.mxu0 %v501
      %552 = vmatprep.subr.mxu0 0.0
      %553 = vmatpush2.msra.mxu0 0.0
      %554 = vmatprep.subr.mxu0 0.0
      %555 = vmatpush2.msra.mxu0 0.0
      %556 = vmatprep.subr.mxu0 0.0
      %557 = vmatpush2.msra.mxu0 0.0
      %558 = vmatprep.subr.mxu0 0.0
      %559 = vmatpush2.msra.mxu0 0.0
      %560 = vmatprep.subr.mxu0 0.0
      %561 = vmatpush2.msra.mxu0 0.0
      %562 = vmatprep.subr.mxu0 0.0
      %563 = vmatpush2.msra.mxu0 0.0
      %564 = vmatprep.subr.mxu0 0.0
      %565 = vmatpush2.msra.mxu0 0.0
      %566 = vmatprep.subr.mxu0 0.0
      %567 = vmatpush2.msra.mxu0 0.0
      %568 = vmatprep.subr.mxu0 0.0
      %569 = vmatpush2.msra.mxu0 0.0
      %570 = vmatprep.subr.mxu0 0.0
      %571 = vmatpush2.msra.mxu0 0.0
      %572 = vmatprep.subr.mxu0 0.0
      %573 = vmatpush2.msra.mxu0 0.0
      %574 = vmatprep.subr.mxu0 0.0
      %575 = vmatpush2.msra.mxu0 0.0
      %576 = vmatprep.subr.mxu0 0.0
      %577 = vmatpush2.msra.mxu0 0.0
      %578 = vmatprep.subr.mxu0 0.0
      %579 = vmatpush2.msra.mxu0 0.0
      %580 = vmatprep.subr.mxu0 0.0
      %581 = vmatpush2.msra.mxu0 0.0
      %582 = vmatprep.subr.mxu0 0.0
      %583 = vmatpush2.msra.mxu0 0.0
      %584 = vmatprep.mubr.f32.mxu0 0.0
      %585 = vmatmul.mubr.f32.gmra.mxu0 %v512
      %v586 = vpop.f32.mrf.mxu0
      %v587 = vadd.f32 %v508, %v586
      %v588 = vpop.f32.mrf.mxu0
      %589 = vmatprep.mubr.f32.mxu0 0.0
      %590 = vmatmul.mubr.f32.gmra.mxu0 %v515
      %v591 = vpop.f32.mrf.mxu0
      %v592 = vadd.f32 %v508, %v591
      %v593 = vpop.f32.mrf.mxu0
      %594 = vmatprep.mubr.f32.mxu0 0.0
      %595 = vmatmul.mubr.f32.gmra.mxu0 %v518
      %v596 = vpop.f32.mrf.mxu0
      %v597 = vadd.f32 %v508, %v596
      %v598 = vpop.f32.mrf.mxu0
      %599 = vdwg.mxu0
      %v600 = vlaneseq
      %v601 = vand.u32 %v600, 127
      %vm602 = vcmp.lt.s32.totalorder %v601, 5
      %604 = vrot.lane.b32.xlu0 %v587, 112
      %v605 = vpop.permute.xlu0 %604
      %vm606 = vcmask 31744
      %v607 = vsel %vm606, %v587, 0
      %v609 = vsel %vm606, %v605, 0
      %611 = vmatprep.subr.mxu0 0.0
      %612 = vmatpush1.xpose.msra.mxu0 0.0
      %613 = vmatprep.subr.mxu0 0.0
      %614 = vmatpush1.xpose.msra.mxu0 0.0
      %615 = vmatprep.subr.mxu0 0.0
      %616 = vmatpush1.xpose.msra.mxu0 0.0
      %617 = vmatprep.subr.mxu0 0.0
      %618 = vmatpush1.xpose.msra.mxu0 0.0
      %619 = vmatprep.subr.mxu0 0.0
      %620 = vmatpush1.xpose.msra.mxu0 0.0
      %621 = vmatprep.subr.mxu0 0.0
      %622 = vmatpush1.xpose.msra.mxu0 0.0
      %623 = vmatprep.subr.mxu0 0.0
      %624 = vmatpush1.xpose.msra.mxu0 0.0
      %625 = vmatprep.subr.mxu0 0.0
      %626 = vmatpush1.xpose.msra.mxu0 0.0
      %627 = vmatprep.subr.mxu0 0.0
      %628 = vmatpush1.xpose.msra.mxu0 0.0
      %629 = vmatprep.subr.mxu0 0.0
      %630 = vmatpush1.xpose.msra.mxu0 0.0
      %631 = vmatprep.subr.mxu0 0.0
      %632 = vmatpush1.xpose.msra.mxu0 0.0
      %633 = vmatprep.subr.mxu0 0.0
      %634 = vmatpush1.xpose.msra.mxu0 0.0
      %635 = vmatprep.subr.mxu0 0.0
      %636 = vmatpush1.xpose.msra.mxu0 0.0
      %637 = vmatprep.subr.mxu0 0.0
      %638 = vmatpush1.xpose.msra.mxu0 0.0
      %639 = vmatprep.subr.mxu0 0.0
      %640 = vmatpush1.xpose.msra.mxu0 0.0
      %641 = vmatprep.subr.mxu0 0.0
      %642 = vmatpush1.xpose.msra.mxu0 %v609
      %643 = vmatprep.subr.mxu0 0.0
      %644 = vmatpush2.xpose.msra.mxu0 0.0
      %645 = vmatprep.subr.mxu0 0.0
      %646 = vmatpush2.xpose.msra.mxu0 0.0
      %647 = vmatprep.subr.mxu0 0.0
      %648 = vmatpush2.xpose.msra.mxu0 0.0
      %649 = vmatprep.subr.mxu0 0.0
      %650 = vmatpush2.xpose.msra.mxu0 0.0
      %651 = vmatprep.subr.mxu0 0.0
      %652 = vmatpush2.xpose.msra.mxu0 0.0
      %653 = vmatprep.subr.mxu0 0.0
      %654 = vmatpush2.xpose.msra.mxu0 0.0
      %655 = vmatprep.subr.mxu0 0.0
      %656 = vmatpush2.xpose.msra.mxu0 0.0
      %657 = vmatprep.subr.mxu0 0.0
      %658 = vmatpush2.xpose.msra.mxu0 0.0
      %659 = vmatprep.subr.mxu0 0.0
      %660 = vmatpush2.xpose.msra.mxu0 0.0
      %661 = vmatprep.subr.mxu0 0.0
      %662 = vmatpush2.xpose.msra.mxu0 0.0
      %663 = vmatprep.subr.mxu0 0.0
      %664 = vmatpush2.xpose.msra.mxu0 0.0
      %665 = vmatprep.subr.mxu0 0.0
      %666 = vmatpush2.xpose.msra.mxu0 0.0
      %667 = vmatprep.subr.mxu0 0.0
      %668 = vmatpush2.xpose.msra.mxu0 0.0
      %669 = vmatprep.subr.mxu0 0.0
      %670 = vmatpush2.xpose.msra.mxu0 0.0
      %671 = vmatprep.subr.mxu0 0.0
      %672 = vmatpush2.xpose.msra.mxu0 0.0
      %673 = vmatprep.subr.mxu0 0.0
      %674 = vmatpush2.xpose.msra.mxu0 0.0
      %675 = vmatprep.mubr.f32.mxu0 0.0
      %676 = vmatmul.mubr.f32.gmra.mxu0 %v607
      %v677 = vpop.f32.mrf.mxu0
      %v678 = vadd.f32 0.0, %v677
      %v679 = vpop.f32.mrf.mxu0
      %680 = vdwg.mxu0
      %682 = vrot.lane.b32.xlu0 %v592, 112
      %v683 = vpop.permute.xlu0 %682
      %v684 = vsel %vm606, %v592, 0
      %v686 = vsel %vm606, %v683, 0
      %688 = vmatprep.subr.mxu0 0.0
      %689 = vmatpush1.xpose.msra.mxu0 0.0
      %690 = vmatprep.subr.mxu0 0.0
      %691 = vmatpush1.xpose.msra.mxu0 0.0
      %692 = vmatprep.subr.mxu0 0.0
      %693 = vmatpush1.xpose.msra.mxu0 0.0
      %694 = vmatprep.subr.mxu0 0.0
      %695 = vmatpush1.xpose.msra.mxu0 0.0
      %696 = vmatprep.subr.mxu0 0.0
      %697 = vmatpush1.xpose.msra.mxu0 0.0
      %698 = vmatprep.subr.mxu0 0.0
      %699 = vmatpush1.xpose.msra.mxu0 0.0
      %700 = vmatprep.subr.mxu0 0.0
      %701 = vmatpush1.xpose.msra.mxu0 0.0
      %702 = vmatprep.subr.mxu0 0.0
      %703 = vmatpush1.xpose.msra.mxu0 0.0
      %704 = vmatprep.subr.mxu0 0.0
      %705 = vmatpush1.xpose.msra.mxu0 0.0
      %706 = vmatprep.subr.mxu0 0.0
      %707 = vmatpush1.xpose.msra.mxu0 0.0
      %708 = vmatprep.subr.mxu0 0.0
      %709 = vmatpush1.xpose.msra.mxu0 0.0
      %710 = vmatprep.subr.mxu0 0.0
      %711 = vmatpush1.xpose.msra.mxu0 0.0
      %712 = vmatprep.subr.mxu0 0.0
      %713 = vmatpush1.xpose.msra.mxu0 0.0
      %714 = vmatprep.subr.mxu0 0.0
      %715 = vmatpush1.xpose.msra.mxu0 0.0
      %716 = vmatprep.subr.mxu0 0.0
      %717 = vmatpush1.xpose.msra.mxu0 0.0
      %718 = vmatprep.subr.mxu0 0.0
      %719 = vmatpush1.xpose.msra.mxu0 %v686
      %720 = vmatprep.subr.mxu0 0.0
      %721 = vmatpush2.xpose.msra.mxu0 0.0
      %722 = vmatprep.subr.mxu0 0.0
      %723 = vmatpush2.xpose.msra.mxu0 0.0
      %724 = vmatprep.subr.mxu0 0.0
      %725 = vmatpush2.xpose.msra.mxu0 0.0
      %726 = vmatprep.subr.mxu0 0.0
      %727 = vmatpush2.xpose.msra.mxu0 0.0
      %728 = vmatprep.subr.mxu0 0.0
      %729 = vmatpush2.xpose.msra.mxu0 0.0
      %730 = vmatprep.subr.mxu0 0.0
      %731 = vmatpush2.xpose.msra.mxu0 0.0
      %732 = vmatprep.subr.mxu0 0.0
      %733 = vmatpush2.xpose.msra.mxu0 0.0
      %734 = vmatprep.subr.mxu0 0.0
      %735 = vmatpush2.xpose.msra.mxu0 0.0
      %736 = vmatprep.subr.mxu0 0.0
      %737 = vmatpush2.xpose.msra.mxu0 0.0
      %738 = vmatprep.subr.mxu0 0.0
      %739 = vmatpush2.xpose.msra.mxu0 0.0
      %740 = vmatprep.subr.mxu0 0.0
      %741 = vmatpush2.xpose.msra.mxu0 0.0
      %742 = vmatprep.subr.mxu0 0.0
      %743 = vmatpush2.xpose.msra.mxu0 0.0
      %744 = vmatprep.subr.mxu0 0.0
      %745 = vmatpush2.xpose.msra.mxu0 0.0
      %746 = vmatprep.subr.mxu0 0.0
      %747 = vmatpush2.xpose.msra.mxu0 0.0
      %748 = vmatprep.subr.mxu0 0.0
      %749 = vmatpush2.xpose.msra.mxu0 0.0
      %750 = vmatprep.subr.mxu0 0.0
      %751 = vmatpush2.xpose.msra.mxu0 0.0
      %752 = vmatprep.mubr.f32.mxu0 0.0
      %753 = vmatmul.mubr.f32.gmra.mxu0 %v684
      %v754 = vpop.f32.mrf.mxu0
      %v755 = vadd.f32 0.0, %v754
      %v756 = vpop.f32.mrf.mxu0
      %757 = vdwg.mxu0
      %759 = vrot.lane.b32.xlu0 %v597, 112
      %v760 = vpop.permute.xlu0 %759
      %v761 = vsel %vm606, %v597, 0
      %v763 = vsel %vm606, %v760, 0
      %765 = vmatprep.subr.mxu0 0.0
      %766 = vmatpush1.xpose.msra.mxu0 0.0
      %767 = vmatprep.subr.mxu0 0.0
      %768 = vmatpush1.xpose.msra.mxu0 0.0
      %769 = vmatprep.subr.mxu0 0.0
      %770 = vmatpush1.xpose.msra.mxu0 0.0
      %771 = vmatprep.subr.mxu0 0.0
      %772 = vmatpush1.xpose.msra.mxu0 0.0
      %773 = vmatprep.subr.mxu0 0.0
      %774 = vmatpush1.xpose.msra.mxu0 0.0
      %775 = vmatprep.subr.mxu0 0.0
      %776 = vmatpush1.xpose.msra.mxu0 0.0
      %777 = vmatprep.subr.mxu0 0.0
      %778 = vmatpush1.xpose.msra.mxu0 0.0
      %779 = vmatprep.subr.mxu0 0.0
      %780 = vmatpush1.xpose.msra.mxu0 0.0
      %781 = vmatprep.subr.mxu0 0.0
      %782 = vmatpush1.xpose.msra.mxu0 0.0
      %783 = vmatprep.subr.mxu0 0.0
      %784 = vmatpush1.xpose.msra.mxu0 0.0
      %785 = vmatprep.subr.mxu0 0.0
      %786 = vmatpush1.xpose.msra.mxu0 0.0
      %787 = vmatprep.subr.mxu0 0.0
      %788 = vmatpush1.xpose.msra.mxu0 0.0
      %789 = vmatprep.subr.mxu0 0.0
      %790 = vmatpush1.xpose.msra.mxu0 0.0
      %791 = vmatprep.subr.mxu0 0.0
      %792 = vmatpush1.xpose.msra.mxu0 0.0
      %793 = vmatprep.subr.mxu0 0.0
      %794 = vmatpush1.xpose.msra.mxu0 0.0
      %795 = vmatprep.subr.mxu0 0.0
      %796 = vmatpush1.xpose.msra.mxu0 %v763
      %797 = vmatprep.subr.mxu0 0.0
      %798 = vmatpush2.xpose.msra.mxu0 0.0
      %799 = vmatprep.subr.mxu0 0.0
      %800 = vmatpush2.xpose.msra.mxu0 0.0
      %801 = vmatprep.subr.mxu0 0.0
      %802 = vmatpush2.xpose.msra.mxu0 0.0
      %803 = vmatprep.subr.mxu0 0.0
      %804 = vmatpush2.xpose.msra.mxu0 0.0
      %805 = vmatprep.subr.mxu0 0.0
      %806 = vmatpush2.xpose.msra.mxu0 0.0
      %807 = vmatprep.subr.mxu0 0.0
      %808 = vmatpush2.xpose.msra.mxu0 0.0
      %809 = vmatprep.subr.mxu0 0.0
      %810 = vmatpush2.xpose.msra.mxu0 0.0
      %811 = vmatprep.subr.mxu0 0.0
      %812 = vmatpush2.xpose.msra.mxu0 0.0
      %813 = vmatprep.subr.mxu0 0.0
      %814 = vmatpush2.xpose.msra.mxu0 0.0
      %815 = vmatprep.subr.mxu0 0.0
      %816 = vmatpush2.xpose.msra.mxu0 0.0
      %817 = vmatprep.subr.mxu0 0.0
      %818 = vmatpush2.xpose.msra.mxu0 0.0
      %819 = vmatprep.subr.mxu0 0.0
      %820 = vmatpush2.xpose.msra.mxu0 0.0
      %821 = vmatprep.subr.mxu0 0.0
      %822 = vmatpush2.xpose.msra.mxu0 0.0
      %823 = vmatprep.subr.mxu0 0.0
      %824 = vmatpush2.xpose.msra.mxu0 0.0
      %825 = vmatprep.subr.mxu0 0.0
      %826 = vmatpush2.xpose.msra.mxu0 0.0
      %827 = vmatprep.subr.mxu0 0.0
      %828 = vmatpush2.xpose.msra.mxu0 0.0
      %829 = vmatprep.mubr.f32.mxu0 0.0
      %830 = vmatmul.mubr.f32.gmra.mxu0 %v761
      %v831 = vpop.f32.mrf.mxu0
      %v832 = vadd.f32 0.0, %v831
      %v833 = vpop.f32.mrf.mxu0
      %834 = vdwg.mxu0
      %v835 = vmul.f32 %v678, 0.5
      %v836 = vmul.f32 %v755, 0.5
      %v837 = vmul.f32 %v832, 0.5
      %v838 = vsel %vm602, 1, 0
      %vm839 = vcmp.eq.s32.totalorder %v838, 1
      %v840 = vsel %vm839, %v835, -1e+30
      %v841 = vsel %vm839, %v836, -1e+30
      %v842 = vsel %vm839, %v837, -1e+30
      %vm843 = vcmask 64512
      %v844 = vsel %vm843, %v840, -inf
      %845 = vmax.xlane.f32.xlu0 %v844
      %v846 = vpop.xlane.xlu0 %845
      %v847 = vsel %vm843, %v841, -inf
      %848 = vmax.xlane.f32.xlu0 %v847
      %v849 = vpop.xlane.xlu0 %848
      %v850 = vsel %vm843, %v842, -inf
      %851 = vmax.xlane.f32.xlu0 %v850
      %v852 = vpop.xlane.xlu0 %851
      %v853 = vsub.f32 %v840, %v846
      %v854 = vsub.f32 %v841, %v849
      %v855 = vsub.f32 %v842, %v852
      %v856 = vmul.f32 %v853, 1.442695
      %v857 = vpow.pop %v856
      %v858 = vmul.f32 %v854, 1.442695
      %v859 = vpow.pop %v858
      %v860 = vmul.f32 %v855, 1.442695
      %v861 = vpow.pop %v860
      %v862 = vsel %vm843, %v857, 0.0
      %863 = vadd.xlane.f32.xlu0 %v862
      %v864 = vpop.xlane.xlu0 %863
      %v865 = vsel %vm843, %v859, 0.0
      %866 = vadd.xlane.f32.xlu0 %v865
      %v867 = vpop.xlane.xlu0 %866
      %v868 = vsel %vm843, %v861, 0.0
      %869 = vadd.xlane.f32.xlu0 %v868
      %v870 = vpop.xlane.xlu0 %869
      %v871 = vrcp.pop %v864
      %v872 = vrcp.pop %v867
      %v873 = vrcp.pop %v870
      %v874 = vmul.f32 %v857, %v871
      %v875 = vmul.f32 %v859, %v872
      %v876 = vmul.f32 %v861, %v873
      %877 = vrot.lane.b32.xlu0 %v587, 96
      %v878 = vpop.permute.xlu0 %877
      %v881 = vsel %vm843, %v874, 0
      %883 = vmatprep.subr.mxu0 0.0
      %884 = vmatpush1.msra.mxu0 0.0
      %885 = vmatprep.subr.mxu0 0.0
      %886 = vmatpush1.msra.mxu0 0.0
      %887 = vmatprep.subr.mxu0 0.0
      %888 = vmatpush1.msra.mxu0 0.0
      %889 = vmatprep.subr.mxu0 0.0
      %890 = vmatpush1.msra.mxu0 0.0
      %891 = vmatprep.subr.mxu0 0.0
      %892 = vmatpush1.msra.mxu0 0.0
      %893 = vmatprep.subr.mxu0 0.0
      %894 = vmatpush1.msra.mxu0 0.0
      %895 = vmatprep.subr.mxu0 0.0
      %896 = vmatpush1.msra.mxu0 0.0
      %897 = vmatprep.subr.mxu0 0.0
      %898 = vmatpush1.msra.mxu0 0.0
      %899 = vmatprep.subr.mxu0 0.0
      %900 = vmatpush1.msra.mxu0 0.0
      %901 = vmatprep.subr.mxu0 0.0
      %902 = vmatpush1.msra.mxu0 0.0
      %903 = vmatprep.subr.mxu0 0.0
      %904 = vmatpush1.msra.mxu0 0.0
      %905 = vmatprep.subr.mxu0 0.0
      %906 = vmatpush1.msra.mxu0 0.0
      %907 = vmatprep.subr.mxu0 0.0
      %908 = vmatpush1.msra.mxu0 0.0
      %909 = vmatprep.subr.mxu0 0.0
      %910 = vmatpush1.msra.mxu0 0.0
      %911 = vmatprep.subr.mxu0 0.0
      %912 = vmatpush1.msra.mxu0 0.0
      %913 = vmatprep.subr.mxu0 0.0
      %914 = vmatpush1.msra.mxu0 %v878
      %915 = vmatprep.subr.mxu0 0.0
      %916 = vmatpush2.msra.mxu0 0.0
      %917 = vmatprep.subr.mxu0 0.0
      %918 = vmatpush2.msra.mxu0 0.0
      %919 = vmatprep.subr.mxu0 0.0
      %920 = vmatpush2.msra.mxu0 0.0
      %921 = vmatprep.subr.mxu0 0.0
      %922 = vmatpush2.msra.mxu0 0.0
      %923 = vmatprep.subr.mxu0 0.0
      %924 = vmatpush2.msra.mxu0 0.0
      %925 = vmatprep.subr.mxu0 0.0
      %926 = vmatpush2.msra.mxu0 0.0
      %927 = vmatprep.subr.mxu0 0.0
      %928 = vmatpush2.msra.mxu0 0.0
      %929 = vmatprep.subr.mxu0 0.0
      %930 = vmatpush2.msra.mxu0 0.0
      %931 = vmatprep.subr.mxu0 0.0
      %932 = vmatpush2.msra.mxu0 0.0
      %933 = vmatprep.subr.mxu0 0.0
      %934 = vmatpush2.msra.mxu0 0.0
      %935 = vmatprep.subr.mxu0 0.0
      %936 = vmatpush2.msra.mxu0 0.0
      %937 = vmatprep.subr.mxu0 0.0
      %938 = vmatpush2.msra.mxu0 0.0
      %939 = vmatprep.subr.mxu0 0.0
      %940 = vmatpush2.msra.mxu0 0.0
      %941 = vmatprep.subr.mxu0 0.0
      %942 = vmatpush2.msra.mxu0 0.0
      %943 = vmatprep.subr.mxu0 0.0
      %944 = vmatpush2.msra.mxu0 0.0
      %945 = vmatprep.subr.mxu0 0.0
      %946 = vmatpush2.msra.mxu0 0.0
      %947 = vmatprep.mubr.f32.mxu0 0.0
      %948 = vmatmul.mubr.f32.gmra.mxu0 %v881
      %v949 = vpop.f32.mrf.mxu0
      %v950 = vadd.f32 0.0, %v949
      %v951 = vpop.f32.mrf.mxu0
      %952 = vdwg.mxu0
      %953 = vrot.lane.b32.xlu0 %v592, 96
      %v954 = vpop.permute.xlu0 %953
      %v957 = vsel %vm843, %v875, 0
      %959 = vmatprep.subr.mxu0 0.0
      %960 = vmatpush1.msra.mxu0 0.0
      %961 = vmatprep.subr.mxu0 0.0
      %962 = vmatpush1.msra.mxu0 0.0
      %963 = vmatprep.subr.mxu0 0.0
      %964 = vmatpush1.msra.mxu0 0.0
      %965 = vmatprep.subr.mxu0 0.0
      %966 = vmatpush1.msra.mxu0 0.0
      %967 = vmatprep.subr.mxu0 0.0
      %968 = vmatpush1.msra.mxu0 0.0
      %969 = vmatprep.subr.mxu0 0.0
      %970 = vmatpush1.msra.mxu0 0.0
      %971 = vmatprep.subr.mxu0 0.0
      %972 = vmatpush1.msra.mxu0 0.0
      %973 = vmatprep.subr.mxu0 0.0
      %974 = vmatpush1.msra.mxu0 0.0
      %975 = vmatprep.subr.mxu0 0.0
      %976 = vmatpush1.msra.mxu0 0.0
      %977 = vmatprep.subr.mxu0 0.0
      %978 = vmatpush1.msra.mxu0 0.0
      %979 = vmatprep.subr.mxu0 0.0
      %980 = vmatpush1.msra.mxu0 0.0
      %981 = vmatprep.subr.mxu0 0.0
      %982 = vmatpush1.msra.mxu0 0.0
      %983 = vmatprep.subr.mxu0 0.0
      %984 = vmatpush1.msra.mxu0 0.0
      %985 = vmatprep.subr.mxu0 0.0
      %986 = vmatpush1.msra.mxu0 0.0
      %987 = vmatprep.subr.mxu0 0.0
      %988 = vmatpush1.msra.mxu0 0.0
      %989 = vmatprep.subr.mxu0 0.0
      %990 = vmatpush1.msra.mxu0 %v954
      %991 = vmatprep.subr.mxu0 0.0
      %992 = vmatpush2.msra.mxu0 0.0
      %993 = vmatprep.subr.mxu0 0.0
      %994 = vmatpush2.msra.mxu0 0.0
      %995 = vmatprep.subr.mxu0 0.0
      %996 = vmatpush2.msra.mxu0 0.0
      %997 = vmatprep.subr.mxu0 0.0
      %998 = vmatpush2.msra.mxu0 0.0
      %999 = vmatprep.subr.mxu0 0.0
      %1000 = vmatpush2.msra.mxu0 0.0
      %1001 = vmatprep.subr.mxu0 0.0
      %1002 = vmatpush2.msra.mxu0 0.0
      %1003 = vmatprep.subr.mxu0 0.0
      %1004 = vmatpush2.msra.mxu0 0.0
      %1005 = vmatprep.subr.mxu0 0.0
      %1006 = vmatpush2.msra.mxu0 0.0
      %1007 = vmatprep.subr.mxu0 0.0
      %1008 = vmatpush2.msra.mxu0 0.0
      %1009 = vmatprep.subr.mxu0 0.0
      %1010 = vmatpush2.msra.mxu0 0.0
      %1011 = vmatprep.subr.mxu0 0.0
      %1012 = vmatpush2.msra.mxu0 0.0
      %1013 = vmatprep.subr.mxu0 0.0
      %1014 = vmatpush2.msra.mxu0 0.0
      %1015 = vmatprep.subr.mxu0 0.0
      %1016 = vmatpush2.msra.mxu0 0.0
      %1017 = vmatprep.subr.mxu0 0.0
      %1018 = vmatpush2.msra.mxu0 0.0
      %1019 = vmatprep.subr.mxu0 0.0
      %1020 = vmatpush2.msra.mxu0 0.0
      %1021 = vmatprep.subr.mxu0 0.0
      %1022 = vmatpush2.msra.mxu0 0.0
      %1023 = vmatprep.mubr.f32.mxu0 0.0
      %1024 = vmatmul.mubr.f32.gmra.mxu0 %v957
      %v1025 = vpop.f32.mrf.mxu0
      %v1026 = vadd.f32 0.0, %v1025
      %v1027 = vpop.f32.mrf.mxu0
      %1028 = vdwg.mxu0
      %1029 = vrot.lane.b32.xlu0 %v597, 96
      %v1030 = vpop.permute.xlu0 %1029
      %v1033 = vsel %vm843, %v876, 0
      %1035 = vmatprep.subr.mxu0 0.0
      %1036 = vmatpush1.msra.mxu0 0.0
      %1037 = vmatprep.subr.mxu0 0.0
      %1038 = vmatpush1.msra.mxu0 0.0
      %1039 = vmatprep.subr.mxu0 0.0
      %1040 = vmatpush1.msra.mxu0 0.0
      %1041 = vmatprep.subr.mxu0 0.0
      %1042 = vmatpush1.msra.mxu0 0.0
      %1043 = vmatprep.subr.mxu0 0.0
      %1044 = vmatpush1.msra.mxu0 0.0
      %1045 = vmatprep.subr.mxu0 0.0
      %1046 = vmatpush1.msra.mxu0 0.0
      %1047 = vmatprep.subr.mxu0 0.0
      %1048 = vmatpush1.msra.mxu0 0.0
      %1049 = vmatprep.subr.mxu0 0.0
      %1050 = vmatpush1.msra.mxu0 0.0
      %1051 = vmatprep.subr.mxu0 0.0
      %1052 = vmatpush1.msra.mxu0 0.0
      %1053 = vmatprep.subr.mxu0 0.0
      %1054 = vmatpush1.msra.mxu0 0.0
      %1055 = vmatprep.subr.mxu0 0.0
      %1056 = vmatpush1.msra.mxu0 0.0
      %1057 = vmatprep.subr.mxu0 0.0
      %1058 = vmatpush1.msra.mxu0 0.0
      %1059 = vmatprep.subr.mxu0 0.0
      %1060 = vmatpush1.msra.mxu0 0.0
      %1061 = vmatprep.subr.mxu0 0.0
      %1062 = vmatpush1.msra.mxu0 0.0
      %1063 = vmatprep.subr.mxu0 0.0
      %1064 = vmatpush1.msra.mxu0 0.0
      %1065 = vmatprep.subr.mxu0 0.0
      %1066 = vmatpush1.msra.mxu0 %v1030
      %1067 = vmatprep.subr.mxu0 0.0
      %1068 = vmatpush2.msra.mxu0 0.0
      %1069 = vmatprep.subr.mxu0 0.0
      %1070 = vmatpush2.msra.mxu0 0.0
      %1071 = vmatprep.subr.mxu0 0.0
      %1072 = vmatpush2.msra.mxu0 0.0
      %1073 = vmatprep.subr.mxu0 0.0
      %1074 = vmatpush2.msra.mxu0 0.0
      %1075 = vmatprep.subr.mxu0 0.0
      %1076 = vmatpush2.msra.mxu0 0.0
      %1077 = vmatprep.subr.mxu0 0.0
      %1078 = vmatpush2.msra.mxu0 0.0
      %1079 = vmatprep.subr.mxu0 0.0
      %1080 = vmatpush2.msra.mxu0 0.0
      %1081 = vmatprep.subr.mxu0 0.0
      %1082 = vmatpush2.msra.mxu0 0.0
      %1083 = vmatprep.subr.mxu0 0.0
      %1084 = vmatpush2.msra.mxu0 0.0
      %1085 = vmatprep.subr.mxu0 0.0
      %1086 = vmatpush2.msra.mxu0 0.0
      %1087 = vmatprep.subr.mxu0 0.0
      %1088 = vmatpush2.msra.mxu0 0.0
      %1089 = vmatprep.subr.mxu0 0.0
      %1090 = vmatpush2.msra.mxu0 0.0
      %1091 = vmatprep.subr.mxu0 0.0
      %1092 = vmatpush2.msra.mxu0 0.0
      %1093 = vmatprep.subr.mxu0 0.0
      %1094 = vmatpush2.msra.mxu0 0.0
      %1095 = vmatprep.subr.mxu0 0.0
      %1096 = vmatpush2.msra.mxu0 0.0
      %1097 = vmatprep.subr.mxu0 0.0
      %1098 = vmatpush2.msra.mxu0 0.0
      %1099 = vmatprep.mubr.f32.mxu0 0.0
      %1100 = vmatmul.mubr.f32.gmra.mxu0 %v1033
      %v1101 = vpop.f32.mrf.mxu0
      %v1102 = vadd.f32 0.0, %v1101
      %v1103 = vpop.f32.mrf.mxu0
      %1104 = vdwg.mxu0
      %1105 = vrot.lane.b32.xlu0 %v587, 124
      %v1106 = vpop.permute.xlu0 %1105
      %1107 = vrot.lane.b32.xlu0 %v587, 108
      %v1108 = vpop.permute.xlu0 %1107
      %v1109 = vsel %vm606, %v1106, 0
      %v1111 = vsel %vm606, %v1108, 0
      %1113 = vmatprep.subr.mxu0 0.0
      %1114 = vmatpush1.xpose.msra.mxu0 0.0
      %1115 = vmatprep.subr.mxu0 0.0
      %1116 = vmatpush1.xpose.msra.mxu0 0.0
      %1117 = vmatprep.subr.mxu0 0.0
      %1118 = vmatpush1.xpose.msra.mxu0 0.0
      %1119 = vmatprep.subr.mxu0 0.0
      %1120 = vmatpush1.xpose.msra.mxu0 0.0
      %1121 = vmatprep.subr.mxu0 0.0
      %1122 = vmatpush1.xpose.msra.mxu0 0.0
      %1123 = vmatprep.subr.mxu0 0.0
      %1124 = vmatpush1.xpose.msra.mxu0 0.0
      %1125 = vmatprep.subr.mxu0 0.0
      %1126 = vmatpush1.xpose.msra.mxu0 0.0
      %1127 = vmatprep.subr.mxu0 0.0
      %1128 = vmatpush1.xpose.msra.mxu0 0.0
      %1129 = vmatprep.subr.mxu0 0.0
      %1130 = vmatpush1.xpose.msra.mxu0 0.0
      %1131 = vmatprep.subr.mxu0 0.0
      %1132 = vmatpush1.xpose.msra.mxu0 0.0
      %1133 = vmatprep.subr.mxu0 0.0
      %1134 = vmatpush1.xpose.msra.mxu0 0.0
      %1135 = vmatprep.subr.mxu0 0.0
      %1136 = vmatpush1.xpose.msra.mxu0 0.0
      %1137 = vmatprep.subr.mxu0 0.0
      %1138 = vmatpush1.xpose.msra.mxu0 0.0
      %1139 = vmatprep.subr.mxu0 0.0
      %1140 = vmatpush1.xpose.msra.mxu0 0.0
      %1141 = vmatprep.subr.mxu0 0.0
      %1142 = vmatpush1.xpose.msra.mxu0 0.0
      %1143 = vmatprep.subr.mxu0 0.0
      %1144 = vmatpush1.xpose.msra.mxu0 %v1111
      %1145 = vmatprep.subr.mxu0 0.0
      %1146 = vmatpush2.xpose.msra.mxu0 0.0
      %1147 = vmatprep.subr.mxu0 0.0
      %1148 = vmatpush2.xpose.msra.mxu0 0.0
      %1149 = vmatprep.subr.mxu0 0.0
      %1150 = vmatpush2.xpose.msra.mxu0 0.0
      %1151 = vmatprep.subr.mxu0 0.0
      %1152 = vmatpush2.xpose.msra.mxu0 0.0
      %1153 = vmatprep.subr.mxu0 0.0
      %1154 = vmatpush2.xpose.msra.mxu0 0.0
      %1155 = vmatprep.subr.mxu0 0.0
      %1156 = vmatpush2.xpose.msra.mxu0 0.0
      %1157 = vmatprep.subr.mxu0 0.0
      %1158 = vmatpush2.xpose.msra.mxu0 0.0
      %1159 = vmatprep.subr.mxu0 0.0
      %1160 = vmatpush2.xpose.msra.mxu0 0.0
      %1161 = vmatprep.subr.mxu0 0.0
      %1162 = vmatpush2.xpose.msra.mxu0 0.0
      %1163 = vmatprep.subr.mxu0 0.0
      %1164 = vmatpush2.xpose.msra.mxu0 0.0
      %1165 = vmatprep.subr.mxu0 0.0
      %1166 = vmatpush2.xpose.msra.mxu0 0.0
      %1167 = vmatprep.subr.mxu0 0.0
      %1168 = vmatpush2.xpose.msra.mxu0 0.0
      %1169 = vmatprep.subr.mxu0 0.0
      %1170 = vmatpush2.xpose.msra.mxu0 0.0
      %1171 = vmatprep.subr.mxu0 0.0
      %1172 = vmatpush2.xpose.msra.mxu0 0.0
      %1173 = vmatprep.subr.mxu0 0.0
      %1174 = vmatpush2.xpose.msra.mxu0 0.0
      %1175 = vmatprep.subr.mxu0 0.0
      %1176 = vmatpush2.xpose.msra.mxu0 0.0
      %1177 = vmatprep.mubr.f32.mxu0 0.0
      %1178 = vmatmul.mubr.f32.gmra.mxu0 %v1109
      %v1179 = vpop.f32.mrf.mxu0
      %v1180 = vadd.f32 0.0, %v1179
      %v1181 = vpop.f32.mrf.mxu0
      %1182 = vdwg.mxu0
      %1183 = vrot.lane.b32.xlu0 %v592, 124
      %v1184 = vpop.permute.xlu0 %1183
      %1185 = vrot.lane.b32.xlu0 %v592, 108
      %v1186 = vpop.permute.xlu0 %1185
      %v1187 = vsel %vm606, %v1184, 0
      %v1189 = vsel %vm606, %v1186, 0
      %1191 = vmatprep.subr.mxu0 0.0
      %1192 = vmatpush1.xpose.msra.mxu0 0.0
      %1193 = vmatprep.subr.mxu0 0.0
      %1194 = vmatpush1.xpose.msra.mxu0 0.0
      %1195 = vmatprep.subr.mxu0 0.0
      %1196 = vmatpush1.xpose.msra.mxu0 0.0
      %1197 = vmatprep.subr.mxu0 0.0
      %1198 = vmatpush1.xpose.msra.mxu0 0.0
      %1199 = vmatprep.subr.mxu0 0.0
      %1200 = vmatpush1.xpose.msra.mxu0 0.0
      %1201 = vmatprep.subr.mxu0 0.0
      %1202 = vmatpush1.xpose.msra.mxu0 0.0
      %1203 = vmatprep.subr.mxu0 0.0
      %1204 = vmatpush1.xpose.msra.mxu0 0.0
      %1205 = vmatprep.subr.mxu0 0.0
      %1206 = vmatpush1.xpose.msra.mxu0 0.0
      %1207 = vmatprep.subr.mxu0 0.0
      %1208 = vmatpush1.xpose.msra.mxu0 0.0
      %1209 = vmatprep.subr.mxu0 0.0
      %1210 = vmatpush1.xpose.msra.mxu0 0.0
      %1211 = vmatprep.subr.mxu0 0.0
      %1212 = vmatpush1.xpose.msra.mxu0 0.0
      %1213 = vmatprep.subr.mxu0 0.0
      %1214 = vmatpush1.xpose.msra.mxu0 0.0
      %1215 = vmatprep.subr.mxu0 0.0
      %1216 = vmatpush1.xpose.msra.mxu0 0.0
      %1217 = vmatprep.subr.mxu0 0.0
      %1218 = vmatpush1.xpose.msra.mxu0 0.0
      %1219 = vmatprep.subr.mxu0 0.0
      %1220 = vmatpush1.xpose.msra.mxu0 0.0
      %1221 = vmatprep.subr.mxu0 0.0
      %1222 = vmatpush1.xpose.msra.mxu0 %v1189
      %1223 = vmatprep.subr.mxu0 0.0
      %1224 = vmatpush2.xpose.msra.mxu0 0.0
      %1225 = vmatprep.subr.mxu0 0.0
      %1226 = vmatpush2.xpose.msra.mxu0 0.0
      %1227 = vmatprep.subr.mxu0 0.0
      %1228 = vmatpush2.xpose.msra.mxu0 0.0
      %1229 = vmatprep.subr.mxu0 0.0
      %1230 = vmatpush2.xpose.msra.mxu0 0.0
      %1231 = vmatprep.subr.mxu0 0.0
      %1232 = vmatpush2.xpose.msra.mxu0 0.0
      %1233 = vmatprep.subr.mxu0 0.0
      %1234 = vmatpush2.xpose.msra.mxu0 0.0
      %1235 = vmatprep.subr.mxu0 0.0
      %1236 = vmatpush2.xpose.msra.mxu0 0.0
      %1237 = vmatprep.subr.mxu0 0.0
      %1238 = vmatpush2.xpose.msra.mxu0 0.0
      %1239 = vmatprep.subr.mxu0 0.0
      %1240 = vmatpush2.xpose.msra.mxu0 0.0
      %1241 = vmatprep.subr.mxu0 0.0
      %1242 = vmatpush2.xpose.msra.mxu0 0.0
      %1243 = vmatprep.subr.mxu0 0.0
      %1244 = vmatpush2.xpose.msra.mxu0 0.0
      %1245 = vmatprep.subr.mxu0 0.0
      %1246 = vmatpush2.xpose.msra.mxu0 0.0
      %1247 = vmatprep.subr.mxu0 0.0
      %1248 = vmatpush2.xpose.msra.mxu0 0.0
      %1249 = vmatprep.subr.mxu0 0.0
      %1250 = vmatpush2.xpose.msra.mxu0 0.0
      %1251 = vmatprep.subr.mxu0 0.0
      %1252 = vmatpush2.xpose.msra.mxu0 0.0
      %1253 = vmatprep.subr.mxu0 0.0
      %1254 = vmatpush2.xpose.msra.mxu0 0.0
      %1255 = vmatprep.mubr.f32.mxu0 0.0
      %1256 = vmatmul.mubr.f32.gmra.mxu0 %v1187
      %v1257 = vpop.f32.mrf.mxu0
      %v1258 = vadd.f32 0.0, %v1257
      %v1259 = vpop.f32.mrf.mxu0
      %1260 = vdwg.mxu0
      %1261 = vrot.lane.b32.xlu0 %v597, 124
      %v1262 = vpop.permute.xlu0 %1261
      %1263 = vrot.lane.b32.xlu0 %v597, 108
      %v1264 = vpop.permute.xlu0 %1263
      %v1265 = vsel %vm606, %v1262, 0
      %v1267 = vsel %vm606, %v1264, 0
      %1269 = vmatprep.subr.mxu0 0.0
      %1270 = vmatpush1.xpose.msra.mxu0 0.0
      %1271 = vmatprep.subr.mxu0 0.0
      %1272 = vmatpush1.xpose.msra.mxu0 0.0
      %1273 = vmatprep.subr.mxu0 0.0
      %1274 = vmatpush1.xpose.msra.mxu0 0.0
      %1275 = vmatprep.subr.mxu0 0.0
      %1276 = vmatpush1.xpose.msra.mxu0 0.0
      %1277 = vmatprep.subr.mxu0 0.0
      %1278 = vmatpush1.xpose.msra.mxu0 0.0
      %1279 = vmatprep.subr.mxu0 0.0
      %1280 = vmatpush1.xpose.msra.mxu0 0.0
      %1281 = vmatprep.subr.mxu0 0.0
      %1282 = vmatpush1.xpose.msra.mxu0 0.0
      %1283 = vmatprep.subr.mxu0 0.0
      %1284 = vmatpush1.xpose.msra.mxu0 0.0
      %1285 = vmatprep.subr.mxu0 0.0
      %1286 = vmatpush1.xpose.msra.mxu0 0.0
      %1287 = vmatprep.subr.mxu0 0.0
      %1288 = vmatpush1.xpose.msra.mxu0 0.0
      %1289 = vmatprep.subr.mxu0 0.0
      %1290 = vmatpush1.xpose.msra.mxu0 0.0
      %1291 = vmatprep.subr.mxu0 0.0
      %1292 = vmatpush1.xpose.msra.mxu0 0.0
      %1293 = vmatprep.subr.mxu0 0.0
      %1294 = vmatpush1.xpose.msra.mxu0 0.0
      %1295 = vmatprep.subr.mxu0 0.0
      %1296 = vmatpush1.xpose.msra.mxu0 0.0
      %1297 = vmatprep.subr.mxu0 0.0
      %1298 = vmatpush1.xpose.msra.mxu0 0.0
      %1299 = vmatprep.subr.mxu0 0.0
      %1300 = vmatpush1.xpose.msra.mxu0 %v1267
      %1301 = vmatprep.subr.mxu0 0.0
      %1302 = vmatpush2.xpose.msra.mxu0 0.0
      %1303 = vmatprep.subr.mxu0 0.0
      %1304 = vmatpush2.xpose.msra.mxu0 0.0
      %1305 = vmatprep.subr.mxu0 0.0
      %1306 = vmatpush2.xpose.msra.mxu0 0.0
      %1307 = vmatprep.subr.mxu0 0.0
      %1308 = vmatpush2.xpose.msra.mxu0 0.0
      %1309 = vmatprep.subr.mxu0 0.0
      %1310 = vmatpush2.xpose.msra.mxu0 0.0
      %1311 = vmatprep.subr.mxu0 0.0
      %1312 = vmatpush2.xpose.msra.mxu0 0.0
      %1313 = vmatprep.subr.mxu0 0.0
      %1314 = vmatpush2.xpose.msra.mxu0 0.0
      %1315 = vmatprep.subr.mxu0 0.0
      %1316 = vmatpush2.xpose.msra.mxu0 0.0
      %1317 = vmatprep.subr.mxu0 0.0
      %1318 = vmatpush2.xpose.msra.mxu0 0.0
      %1319 = vmatprep.subr.mxu0 0.0
      %1320 = vmatpush2.xpose.msra.mxu0 0.0
      %1321 = vmatprep.subr.mxu0 0.0
      %1322 = vmatpush2.xpose.msra.mxu0 0.0
      %1323 = vmatprep.subr.mxu0 0.0
      %1324 = vmatpush2.xpose.msra.mxu0 0.0
      %1325 = vmatprep.subr.mxu0 0.0
      %1326 = vmatpush2.xpose.msra.mxu0 0.0
      %1327 = vmatprep.subr.mxu0 0.0
      %1328 = vmatpush2.xpose.msra.mxu0 0.0
      %1329 = vmatprep.subr.mxu0 0.0
      %1330 = vmatpush2.xpose.msra.mxu0 0.0
      %1331 = vmatprep.subr.mxu0 0.0
      %1332 = vmatpush2.xpose.msra.mxu0 0.0
      %1333 = vmatprep.mubr.f32.mxu0 0.0
      %1334 = vmatmul.mubr.f32.gmra.mxu0 %v1265
      %v1335 = vpop.f32.mrf.mxu0
      %v1336 = vadd.f32 0.0, %v1335
      %v1337 = vpop.f32.mrf.mxu0
      %1338 = vdwg.mxu0
      %v1339 = vmul.f32 %v1180, 0.5
      %v1340 = vmul.f32 %v1258, 0.5
      %v1341 = vmul.f32 %v1336, 0.5
      %v1342 = vsel %vm839, %v1339, -1e+30
      %v1343 = vsel %vm839, %v1340, -1e+30
      %v1344 = vsel %vm839, %v1341, -1e+30
      %v1345 = vsel %vm843, %v1342, -inf
      %1346 = vmax.xlane.f32.xlu0 %v1345
      %v1347 = vpop.xlane.xlu0 %1346
      %v1348 = vsel %vm843, %v1343, -inf
      %1349 = vmax.xlane.f32.xlu0 %v1348
      %v1350 = vpop.xlane.xlu0 %1349
      %v1351 = vsel %vm843, %v1344, -inf
      %1352 = vmax.xlane.f32.xlu0 %v1351
      %v1353 = vpop.xlane.xlu0 %1352
      %v1354 = vsub.f32 %v1342, %v1347
      %v1355 = vsub.f32 %v1343, %v1350
      %v1356 = vsub.f32 %v1344, %v1353
      %v1357 = vmul.f32 %v1354, 1.442695
      %v1358 = vpow.pop %v1357
      %v1359 = vmul.f32 %v1355, 1.442695
      %v1360 = vpow.pop %v1359
      %v1361 = vmul.f32 %v1356, 1.442695
      %v1362 = vpow.pop %v1361
      %v1363 = vsel %vm843, %v1358, 0.0
      %1364 = vadd.xlane.f32.xlu0 %v1363
      %v1365 = vpop.xlane.xlu0 %1364
      %v1366 = vsel %vm843, %v1360, 0.0
      %1367 = vadd.xlane.f32.xlu0 %v1366
      %v1368 = vpop.xlane.xlu0 %1367
      %v1369 = vsel %vm843, %v1362, 0.0
      %1370 = vadd.xlane.f32.xlu0 %v1369
      %v1371 = vpop.xlane.xlu0 %1370
      %v1372 = vrcp.pop %v1365
      %v1373 = vrcp.pop %v1368
      %v1374 = vrcp.pop %v1371
      %v1375 = vmul.f32 %v1358, %v1372
      %v1376 = vmul.f32 %v1360, %v1373
      %v1377 = vmul.f32 %v1362, %v1374
      %1378 = vrot.lane.b32.xlu0 %v587, 92
      %v1379 = vpop.permute.xlu0 %1378
      %v1382 = vsel %vm843, %v1375, 0
      %1384 = vmatprep.subr.mxu0 0.0
      %1385 = vmatpush1.msra.mxu0 0.0
      %1386 = vmatprep.subr.mxu0 0.0
      %1387 = vmatpush1.msra.mxu0 0.0
      %1388 = vmatprep.subr.mxu0 0.0
      %1389 = vmatpush1.msra.mxu0 0.0
      %1390 = vmatprep.subr.mxu0 0.0
      %1391 = vmatpush1.msra.mxu0 0.0
      %1392 = vmatprep.subr.mxu0 0.0
      %1393 = vmatpush1.msra.mxu0 0.0
      %1394 = vmatprep.subr.mxu0 0.0
      %1395 = vmatpush1.msra.mxu0 0.0
      %1396 = vmatprep.subr.mxu0 0.0
      %1397 = vmatpush1.msra.mxu0 0.0
      %1398 = vmatprep.subr.mxu0 0.0
      %1399 = vmatpush1.msra.mxu0 0.0
      %1400 = vmatprep.subr.mxu0 0.0
      %1401 = vmatpush1.msra.mxu0 0.0
      %1402 = vmatprep.subr.mxu0 0.0
      %1403 = vmatpush1.msra.mxu0 0.0
      %1404 = vmatprep.subr.mxu0 0.0
      %1405 = vmatpush1.msra.mxu0 0.0
      %1406 = vmatprep.subr.mxu0 0.0
      %1407 = vmatpush1.msra.mxu0 0.0
      %1408 = vmatprep.subr.mxu0 0.0
      %1409 = vmatpush1.msra.mxu0 0.0
      %1410 = vmatprep.subr.mxu0 0.0
      %1411 = vmatpush1.msra.mxu0 0.0
      %1412 = vmatprep.subr.mxu0 0.0
      %1413 = vmatpush1.msra.mxu0 0.0
      %1414 = vmatprep.subr.mxu0 0.0
      %1415 = vmatpush1.msra.mxu0 %v1379
      %1416 = vmatprep.subr.mxu0 0.0
      %1417 = vmatpush2.msra.mxu0 0.0
      %1418 = vmatprep.subr.mxu0 0.0
      %1419 = vmatpush2.msra.mxu0 0.0
      %1420 = vmatprep.subr.mxu0 0.0
      %1421 = vmatpush2.msra.mxu0 0.0
      %1422 = vmatprep.subr.mxu0 0.0
      %1423 = vmatpush2.msra.mxu0 0.0
      %1424 = vmatprep.subr.mxu0 0.0
      %1425 = vmatpush2.msra.mxu0 0.0
      %1426 = vmatprep.subr.mxu0 0.0
      %1427 = vmatpush2.msra.mxu0 0.0
      %1428 = vmatprep.subr.mxu0 0.0
      %1429 = vmatpush2.msra.mxu0 0.0
      %1430 = vmatprep.subr.mxu0 0.0
      %1431 = vmatpush2.msra.mxu0 0.0
      %1432 = vmatprep.subr.mxu0 0.0
      %1433 = vmatpush2.msra.mxu0 0.0
      %1434 = vmatprep.subr.mxu0 0.0
      %1435 = vmatpush2.msra.mxu0 0.0
      %1436 = vmatprep.subr.mxu0 0.0
      %1437 = vmatpush2.msra.mxu0 0.0
      %1438 = vmatprep.subr.mxu0 0.0
      %1439 = vmatpush2.msra.mxu0 0.0
      %1440 = vmatprep.subr.mxu0 0.0
      %1441 = vmatpush2.msra.mxu0 0.0
      %1442 = vmatprep.subr.mxu0 0.0
      %1443 = vmatpush2.msra.mxu0 0.0
      %1444 = vmatprep.subr.mxu0 0.0
      %1445 = vmatpush2.msra.mxu0 0.0
      %1446 = vmatprep.subr.mxu0 0.0
      %1447 = vmatpush2.msra.mxu0 0.0
      %1448 = vmatprep.mubr.f32.mxu0 0.0
      %1449 = vmatmul.mubr.f32.gmra.mxu0 %v1382
      %v1450 = vpop.f32.mrf.mxu0
      %v1451 = vadd.f32 0.0, %v1450
      %v1452 = vpop.f32.mrf.mxu0
      %1453 = vdwg.mxu0
      %1454 = vrot.lane.b32.xlu0 %v592, 92
      %v1455 = vpop.permute.xlu0 %1454
      %v1458 = vsel %vm843, %v1376, 0
      %1460 = vmatprep.subr.mxu0 0.0
      %1461 = vmatpush1.msra.mxu0 0.0
      %1462 = vmatprep.subr.mxu0 0.0
      %1463 = vmatpush1.msra.mxu0 0.0
      %1464 = vmatprep.subr.mxu0 0.0
      %1465 = vmatpush1.msra.mxu0 0.0
      %1466 = vmatprep.subr.mxu0 0.0
      %1467 = vmatpush1.msra.mxu0 0.0
      %1468 = vmatprep.subr.mxu0 0.0
      %1469 = vmatpush1.msra.mxu0 0.0
      %1470 = vmatprep.subr.mxu0 0.0
      %1471 = vmatpush1.msra.mxu0 0.0
      %1472 = vmatprep.subr.mxu0 0.0
      %1473 = vmatpush1.msra.mxu0 0.0
      %1474 = vmatprep.subr.mxu0 0.0
      %1475 = vmatpush1.msra.mxu0 0.0
      %1476 = vmatprep.subr.mxu0 0.0
      %1477 = vmatpush1.msra.mxu0 0.0
      %1478 = vmatprep.subr.mxu0 0.0
      %1479 = vmatpush1.msra.mxu0 0.0
      %1480 = vmatprep.subr.mxu0 0.0
      %1481 = vmatpush1.msra.mxu0 0.0
      %1482 = vmatprep.subr.mxu0 0.0
      %1483 = vmatpush1.msra.mxu0 0.0
      %1484 = vmatprep.subr.mxu0 0.0
      %1485 = vmatpush1.msra.mxu0 0.0
      %1486 = vmatprep.subr.mxu0 0.0
      %1487 = vmatpush1.msra.mxu0 0.0
      %1488 = vmatprep.subr.mxu0 0.0
      %1489 = vmatpush1.msra.mxu0 0.0
      %1490 = vmatprep.subr.mxu0 0.0
      %1491 = vmatpush1.msra.mxu0 %v1455
      %1492 = vmatprep.subr.mxu0 0.0
      %1493 = vmatpush2.msra.mxu0 0.0
      %1494 = vmatprep.subr.mxu0 0.0
      %1495 = vmatpush2.msra.mxu0 0.0
      %1496 = vmatprep.subr.mxu0 0.0
      %1497 = vmatpush2.msra.mxu0 0.0
      %1498 = vmatprep.subr.mxu0 0.0
      %1499 = vmatpush2.msra.mxu0 0.0
      %1500 = vmatprep.subr.mxu0 0.0
      %1501 = vmatpush2.msra.mxu0 0.0
      %1502 = vmatprep.subr.mxu0 0.0
      %1503 = vmatpush2.msra.mxu0 0.0
      %1504 = vmatprep.subr.mxu0 0.0
      %1505 = vmatpush2.msra.mxu0 0.0
      %1506 = vmatprep.subr.mxu0 0.0
      %1507 = vmatpush2.msra.mxu0 0.0
      %1508 = vmatprep.subr.mxu0 0.0
      %1509 = vmatpush2.msra.mxu0 0.0
      %1510 = vmatprep.subr.mxu0 0.0
      %1511 = vmatpush2.msra.mxu0 0.0
      %1512 = vmatprep.subr.mxu0 0.0
      %1513 = vmatpush2.msra.mxu0 0.0
      %1514 = vmatprep.subr.mxu0 0.0
      %1515 = vmatpush2.msra.mxu0 0.0
      %1516 = vmatprep.subr.mxu0 0.0
      %1517 = vmatpush2.msra.mxu0 0.0
      %1518 = vmatprep.subr.mxu0 0.0
      %1519 = vmatpush2.msra.mxu0 0.0
      %1520 = vmatprep.subr.mxu0 0.0
      %1521 = vmatpush2.msra.mxu0 0.0
      %1522 = vmatprep.subr.mxu0 0.0
      %1523 = vmatpush2.msra.mxu0 0.0
      %1524 = vmatprep.mubr.f32.mxu0 0.0
      %1525 = vmatmul.mubr.f32.gmra.mxu0 %v1458
      %v1526 = vpop.f32.mrf.mxu0
      %v1527 = vadd.f32 0.0, %v1526
      %v1528 = vpop.f32.mrf.mxu0
      %1529 = vdwg.mxu0
      %1530 = vrot.lane.b32.xlu0 %v597, 92
      %v1531 = vpop.permute.xlu0 %1530
      %v1534 = vsel %vm843, %v1377, 0
      %1536 = vmatprep.subr.mxu0 0.0
      %1537 = vmatpush1.msra.mxu0 0.0
      %1538 = vmatprep.subr.mxu0 0.0
      %1539 = vmatpush1.msra.mxu0 0.0
      %1540 = vmatprep.subr.mxu0 0.0
      %1541 = vmatpush1.msra.mxu0 0.0
      %1542 = vmatprep.subr.mxu0 0.0
      %1543 = vmatpush1.msra.mxu0 0.0
      %1544 = vmatprep.subr.mxu0 0.0
      %1545 = vmatpush1.msra.mxu0 0.0
      %1546 = vmatprep.subr.mxu0 0.0
      %1547 = vmatpush1.msra.mxu0 0.0
      %1548 = vmatprep.subr.mxu0 0.0
      %1549 = vmatpush1.msra.mxu0 0.0
      %1550 = vmatprep.subr.mxu0 0.0
      %1551 = vmatpush1.msra.mxu0 0.0
      %1552 = vmatprep.subr.mxu0 0.0
      %1553 = vmatpush1.msra.mxu0 0.0
      %1554 = vmatprep.subr.mxu0 0.0
      %1555 = vmatpush1.msra.mxu0 0.0
      %1556 = vmatprep.subr.mxu0 0.0
      %1557 = vmatpush1.msra.mxu0 0.0
      %1558 = vmatprep.subr.mxu0 0.0
      %1559 = vmatpush1.msra.mxu0 0.0
      %1560 = vmatprep.subr.mxu0 0.0
      %1561 = vmatpush1.msra.mxu0 0.0
      %1562 = vmatprep.subr.mxu0 0.0
      %1563 = vmatpush1.msra.mxu0 0.0
      %1564 = vmatprep.subr.mxu0 0.0
      %1565 = vmatpush1.msra.mxu0 0.0
      %1566 = vmatprep.subr.mxu0 0.0
      %1567 = vmatpush1.msra.mxu0 %v1531
      %1568 = vmatprep.subr.mxu0 0.0
      %1569 = vmatpush2.msra.mxu0 0.0
      %1570 = vmatprep.subr.mxu0 0.0
      %1571 = vmatpush2.msra.mxu0 0.0
      %1572 = vmatprep.subr.mxu0 0.0
      %1573 = vmatpush2.msra.mxu0 0.0
      %1574 = vmatprep.subr.mxu0 0.0
      %1575 = vmatpush2.msra.mxu0 0.0
      %1576 = vmatprep.subr.mxu0 0.0
      %1577 = vmatpush2.msra.mxu0 0.0
      %1578 = vmatprep.subr.mxu0 0.0
      %1579 = vmatpush2.msra.mxu0 0.0
      %1580 = vmatprep.subr.mxu0 0.0
      %1581 = vmatpush2.msra.mxu0 0.0
      %1582 = vmatprep.subr.mxu0 0.0
      %1583 = vmatpush2.msra.mxu0 0.0
      %1584 = vmatprep.subr.mxu0 0.0
      %1585 = vmatpush2.msra.mxu0 0.0
      %1586 = vmatprep.subr.mxu0 0.0
      %1587 = vmatpush2.msra.mxu0 0.0
      %1588 = vmatprep.subr.mxu0 0.0
      %1589 = vmatpush2.msra.mxu0 0.0
      %1590 = vmatprep.subr.mxu0 0.0
      %1591 = vmatpush2.msra.mxu0 0.0
      %1592 = vmatprep.subr.mxu0 0.0
      %1593 = vmatpush2.msra.mxu0 0.0
      %1594 = vmatprep.subr.mxu0 0.0
      %1595 = vmatpush2.msra.mxu0 0.0
      %1596 = vmatprep.subr.mxu0 0.0
      %1597 = vmatpush2.msra.mxu0 0.0
      %1598 = vmatprep.subr.mxu0 0.0
      %1599 = vmatpush2.msra.mxu0 0.0
      %1600 = vmatprep.mubr.f32.mxu0 0.0
      %1601 = vmatmul.mubr.f32.gmra.mxu0 %v1534
      %v1602 = vpop.f32.mrf.mxu0
      %v1603 = vadd.f32 0.0, %v1602
      %v1604 = vpop.f32.mrf.mxu0
      %1605 = vdwg.mxu0
      %1606 = vrot.lane.b32.xlu0 %v587, 120
      %v1607 = vpop.permute.xlu0 %1606
      %1608 = vrot.lane.b32.xlu0 %v587, 104
      %v1609 = vpop.permute.xlu0 %1608
      %v1610 = vsel %vm606, %v1607, 0
      %v1612 = vsel %vm606, %v1609, 0
      %1614 = vmatprep.subr.mxu0 0.0
      %1615 = vmatpush1.xpose.msra.mxu0 0.0
      %1616 = vmatprep.subr.mxu0 0.0
      %1617 = vmatpush1.xpose.msra.mxu0 0.0
      %1618 = vmatprep.subr.mxu0 0.0
      %1619 = vmatpush1.xpose.msra.mxu0 0.0
      %1620 = vmatprep.subr.mxu0 0.0
      %1621 = vmatpush1.xpose.msra.mxu0 0.0
      %1622 = vmatprep.subr.mxu0 0.0
      %1623 = vmatpush1.xpose.msra.mxu0 0.0
      %1624 = vmatprep.subr.mxu0 0.0
      %1625 = vmatpush1.xpose.msra.mxu0 0.0
      %1626 = vmatprep.subr.mxu0 0.0
      %1627 = vmatpush1.xpose.msra.mxu0 0.0
      %1628 = vmatprep.subr.mxu0 0.0
      %1629 = vmatpush1.xpose.msra.mxu0 0.0
      %1630 = vmatprep.subr.mxu0 0.0
      %1631 = vmatpush1.xpose.msra.mxu0 0.0
      %1632 = vmatprep.subr.mxu0 0.0
      %1633 = vmatpush1.xpose.msra.mxu0 0.0
      %1634 = vmatprep.subr.mxu0 0.0
      %1635 = vmatpush1.xpose.msra.mxu0 0.0
      %1636 = vmatprep.subr.mxu0 0.0
      %1637 = vmatpush1.xpose.msra.mxu0 0.0
      %1638 = vmatprep.subr.mxu0 0.0
      %1639 = vmatpush1.xpose.msra.mxu0 0.0
      %1640 = vmatprep.subr.mxu0 0.0
      %1641 = vmatpush1.xpose.msra.mxu0 0.0
      %1642 = vmatprep.subr.mxu0 0.0
      %1643 = vmatpush1.xpose.msra.mxu0 0.0
      %1644 = vmatprep.subr.mxu0 0.0
      %1645 = vmatpush1.xpose.msra.mxu0 %v1612
      %1646 = vmatprep.subr.mxu0 0.0
      %1647 = vmatpush2.xpose.msra.mxu0 0.0
      %1648 = vmatprep.subr.mxu0 0.0
      %1649 = vmatpush2.xpose.msra.mxu0 0.0
      %1650 = vmatprep.subr.mxu0 0.0
      %1651 = vmatpush2.xpose.msra.mxu0 0.0
      %1652 = vmatprep.subr.mxu0 0.0
      %1653 = vmatpush2.xpose.msra.mxu0 0.0
      %1654 = vmatprep.subr.mxu0 0.0
      %1655 = vmatpush2.xpose.msra.mxu0 0.0
      %1656 = vmatprep.subr.mxu0 0.0
      %1657 = vmatpush2.xpose.msra.mxu0 0.0
      %1658 = vmatprep.subr.mxu0 0.0
      %1659 = vmatpush2.xpose.msra.mxu0 0.0
      %1660 = vmatprep.subr.mxu0 0.0
      %1661 = vmatpush2.xpose.msra.mxu0 0.0
      %1662 = vmatprep.subr.mxu0 0.0
      %1663 = vmatpush2.xpose.msra.mxu0 0.0
      %1664 = vmatprep.subr.mxu0 0.0
      %1665 = vmatpush2.xpose.msra.mxu0 0.0
      %1666 = vmatprep.subr.mxu0 0.0
      %1667 = vmatpush2.xpose.msra.mxu0 0.0
      %1668 = vmatprep.subr.mxu0 0.0
      %1669 = vmatpush2.xpose.msra.mxu0 0.0
      %1670 = vmatprep.subr.mxu0 0.0
      %1671 = vmatpush2.xpose.msra.mxu0 0.0
      %1672 = vmatprep.subr.mxu0 0.0
      %1673 = vmatpush2.xpose.msra.mxu0 0.0
      %1674 = vmatprep.subr.mxu0 0.0
      %1675 = vmatpush2.xpose.msra.mxu0 0.0
      %1676 = vmatprep.subr.mxu0 0.0
      %1677 = vmatpush2.xpose.msra.mxu0 0.0
      %1678 = vmatprep.mubr.f32.mxu0 0.0
      %1679 = vmatmul.mubr.f32.gmra.mxu0 %v1610
      %v1680 = vpop.f32.mrf.mxu0
      %v1681 = vadd.f32 0.0, %v1680
      %v1682 = vpop.f32.mrf.mxu0
      %1683 = vdwg.mxu0
      %1684 = vrot.lane.b32.xlu0 %v592, 120
      %v1685 = vpop.permute.xlu0 %1684
      %1686 = vrot.lane.b32.xlu0 %v592, 104
      %v1687 = vpop.permute.xlu0 %1686
      %v1688 = vsel %vm606, %v1685, 0
      %v1690 = vsel %vm606, %v1687, 0
      %1692 = vmatprep.subr.mxu0 0.0
      %1693 = vmatpush1.xpose.msra.mxu0 0.0
      %1694 = vmatprep.subr.mxu0 0.0
      %1695 = vmatpush1.xpose.msra.mxu0 0.0
      %1696 = vmatprep.subr.mxu0 0.0
      %1697 = vmatpush1.xpose.msra.mxu0 0.0
      %1698 = vmatprep.subr.mxu0 0.0
      %1699 = vmatpush1.xpose.msra.mxu0 0.0
      %1700 = vmatprep.subr.mxu0 0.0
      %1701 = vmatpush1.xpose.msra.mxu0 0.0
      %1702 = vmatprep.subr.mxu0 0.0
      %1703 = vmatpush1.xpose.msra.mxu0 0.0
      %1704 = vmatprep.subr.mxu0 0.0
      %1705 = vmatpush1.xpose.msra.mxu0 0.0
      %1706 = vmatprep.subr.mxu0 0.0
      %1707 = vmatpush1.xpose.msra.mxu0 0.0
      %1708 = vmatprep.subr.mxu0 0.0
      %1709 = vmatpush1.xpose.msra.mxu0 0.0
      %1710 = vmatprep.subr.mxu0 0.0
      %1711 = vmatpush1.xpose.msra.mxu0 0.0
      %1712 = vmatprep.subr.mxu0 0.0
      %1713 = vmatpush1.xpose.msra.mxu0 0.0
      %1714 = vmatprep.subr.mxu0 0.0
      %1715 = vmatpush1.xpose.msra.mxu0 0.0
      %1716 = vmatprep.subr.mxu0 0.0
      %1717 = vmatpush1.xpose.msra.mxu0 0.0
      %1718 = vmatprep.subr.mxu0 0.0
      %1719 = vmatpush1.xpose.msra.mxu0 0.0
      %1720 = vmatprep.subr.mxu0 0.0
      %1721 = vmatpush1.xpose.msra.mxu0 0.0
      %1722 = vmatprep.subr.mxu0 0.0
      %1723 = vmatpush1.xpose.msra.mxu0 %v1690
      %1724 = vmatprep.subr.mxu0 0.0
      %1725 = vmatpush2.xpose.msra.mxu0 0.0
      %1726 = vmatprep.subr.mxu0 0.0
      %1727 = vmatpush2.xpose.msra.mxu0 0.0
      %1728 = vmatprep.subr.mxu0 0.0
      %1729 = vmatpush2.xpose.msra.mxu0 0.0
      %1730 = vmatprep.subr.mxu0 0.0
      %1731 = vmatpush2.xpose.msra.mxu0 0.0
      %1732 = vmatprep.subr.mxu0 0.0
      %1733 = vmatpush2.xpose.msra.mxu0 0.0
      %1734 = vmatprep.subr.mxu0 0.0
      %1735 = vmatpush2.xpose.msra.mxu0 0.0
      %1736 = vmatprep.subr.mxu0 0.0
      %1737 = vmatpush2.xpose.msra.mxu0 0.0
      %1738 = vmatprep.subr.mxu0 0.0
      %1739 = vmatpush2.xpose.msra.mxu0 0.0
      %1740 = vmatprep.subr.mxu0 0.0
      %1741 = vmatpush2.xpose.msra.mxu0 0.0
      %1742 = vmatprep.subr.mxu0 0.0
      %1743 = vmatpush2.xpose.msra.mxu0 0.0
      %1744 = vmatprep.subr.mxu0 0.0
      %1745 = vmatpush2.xpose.msra.mxu0 0.0
      %1746 = vmatprep.subr.mxu0 0.0
      %1747 = vmatpush2.xpose.msra.mxu0 0.0
      %1748 = vmatprep.subr.mxu0 0.0
      %1749 = vmatpush2.xpose.msra.mxu0 0.0
      %1750 = vmatprep.subr.mxu0 0.0
      %1751 = vmatpush2.xpose.msra.mxu0 0.0
      %1752 = vmatprep.subr.mxu0 0.0
      %1753 = vmatpush2.xpose.msra.mxu0 0.0
      %1754 = vmatprep.subr.mxu0 0.0
      %1755 = vmatpush2.xpose.msra.mxu0 0.0
      %1756 = vmatprep.mubr.f32.mxu0 0.0
      %1757 = vmatmul.mubr.f32.gmra.mxu0 %v1688
      %v1758 = vpop.f32.mrf.mxu0
      %v1759 = vadd.f32 0.0, %v1758
      %v1760 = vpop.f32.mrf.mxu0
      %1761 = vdwg.mxu0
      %1762 = vrot.lane.b32.xlu0 %v597, 120
      %v1763 = vpop.permute.xlu0 %1762
      %1764 = vrot.lane.b32.xlu0 %v597, 104
      %v1765 = vpop.permute.xlu0 %1764
      %v1766 = vsel %vm606, %v1763, 0
      %v1768 = vsel %vm606, %v1765, 0
      %1770 = vmatprep.subr.mxu0 0.0
      %1771 = vmatpush1.xpose.msra.mxu0 0.0
      %1772 = vmatprep.subr.mxu0 0.0
      %1773 = vmatpush1.xpose.msra.mxu0 0.0
      %1774 = vmatprep.subr.mxu0 0.0
      %1775 = vmatpush1.xpose.msra.mxu0 0.0
      %1776 = vmatprep.subr.mxu0 0.0
      %1777 = vmatpush1.xpose.msra.mxu0 0.0
      %1778 = vmatprep.subr.mxu0 0.0
      %1779 = vmatpush1.xpose.msra.mxu0 0.0
      %1780 = vmatprep.subr.mxu0 0.0
      %1781 = vmatpush1.xpose.msra.mxu0 0.0
      %1782 = vmatprep.subr.mxu0 0.0
      %1783 = vmatpush1.xpose.msra.mxu0 0.0
      %1784 = vmatprep.subr.mxu0 0.0
      %1785 = vmatpush1.xpose.msra.mxu0 0.0
      %1786 = vmatprep.subr.mxu0 0.0
      %1787 = vmatpush1.xpose.msra.mxu0 0.0
      %1788 = vmatprep.subr.mxu0 0.0
      %1789 = vmatpush1.xpose.msra.mxu0 0.0
      %1790 = vmatprep.subr.mxu0 0.0
      %1791 = vmatpush1.xpose.msra.mxu0 0.0
      %1792 = vmatprep.subr.mxu0 0.0
      %1793 = vmatpush1.xpose.msra.mxu0 0.0
      %1794 = vmatprep.subr.mxu0 0.0
      %1795 = vmatpush1.xpose.msra.mxu0 0.0
      %1796 = vmatprep.subr.mxu0 0.0
      %1797 = vmatpush1.xpose.msra.mxu0 0.0
      %1798 = vmatprep.subr.mxu0 0.0
      %1799 = vmatpush1.xpose.msra.mxu0 0.0
      %1800 = vmatprep.subr.mxu0 0.0
      %1801 = vmatpush1.xpose.msra.mxu0 %v1768
      %1802 = vmatprep.subr.mxu0 0.0
      %1803 = vmatpush2.xpose.msra.mxu0 0.0
      %1804 = vmatprep.subr.mxu0 0.0
      %1805 = vmatpush2.xpose.msra.mxu0 0.0
      %1806 = vmatprep.subr.mxu0 0.0
      %1807 = vmatpush2.xpose.msra.mxu0 0.0
      %1808 = vmatprep.subr.mxu0 0.0
      %1809 = vmatpush2.xpose.msra.mxu0 0.0
      %1810 = vmatprep.subr.mxu0 0.0
      %1811 = vmatpush2.xpose.msra.mxu0 0.0
      %1812 = vmatprep.subr.mxu0 0.0
      %1813 = vmatpush2.xpose.msra.mxu0 0.0
      %1814 = vmatprep.subr.mxu0 0.0
      %1815 = vmatpush2.xpose.msra.mxu0 0.0
      %1816 = vmatprep.subr.mxu0 0.0
      %1817 = vmatpush2.xpose.msra.mxu0 0.0
      %1818 = vmatprep.subr.mxu0 0.0
      %1819 = vmatpush2.xpose.msra.mxu0 0.0
      %1820 = vmatprep.subr.mxu0 0.0
      %1821 = vmatpush2.xpose.msra.mxu0 0.0
      %1822 = vmatprep.subr.mxu0 0.0
      %1823 = vmatpush2.xpose.msra.mxu0 0.0
      %1824 = vmatprep.subr.mxu0 0.0
      %1825 = vmatpush2.xpose.msra.mxu0 0.0
      %1826 = vmatprep.subr.mxu0 0.0
      %1827 = vmatpush2.xpose.msra.mxu0 0.0
      %1828 = vmatprep.subr.mxu0 0.0
      %1829 = vmatpush2.xpose.msra.mxu0 0.0
      %1830 = vmatprep.subr.mxu0 0.0
      %1831 = vmatpush2.xpose.msra.mxu0 0.0
      %1832 = vmatprep.subr.mxu0 0.0
      %1833 = vmatpush2.xpose.msra.mxu0 0.0
      %1834 = vmatprep.mubr.f32.mxu0 0.0
      %1835 = vmatmul.mubr.f32.gmra.mxu0 %v1766
      %v1836 = vpop.f32.mrf.mxu0
      %v1837 = vadd.f32 0.0, %v1836
      %v1838 = vpop.f32.mrf.mxu0
      %1839 = vdwg.mxu0
      %v1840 = vmul.f32 %v1681, 0.5
      %v1841 = vmul.f32 %v1759, 0.5
      %v1842 = vmul.f32 %v1837, 0.5
      %v1843 = vsel %vm839, %v1840, -1e+30
      %v1844 = vsel %vm839, %v1841, -1e+30
      %v1845 = vsel %vm839, %v1842, -1e+30
      %v1846 = vsel %vm843, %v1843, -inf
      %1847 = vmax.xlane.f32.xlu0 %v1846
      %v1848 = vpop.xlane.xlu0 %1847
      %v1849 = vsel %vm843, %v1844, -inf
      %1850 = vmax.xlane.f32.xlu0 %v1849
      %v1851 = vpop.xlane.xlu0 %1850
      %v1852 = vsel %vm843, %v1845, -inf
      %1853 = vmax.xlane.f32.xlu0 %v1852
      %v1854 = vpop.xlane.xlu0 %1853
      %v1855 = vsub.f32 %v1843, %v1848
      %v1856 = vsub.f32 %v1844, %v1851
      %v1857 = vsub.f32 %v1845, %v1854
      %v1858 = vmul.f32 %v1855, 1.442695
      %v1859 = vpow.pop %v1858
      %v1860 = vmul.f32 %v1856, 1.442695
      %v1861 = vpow.pop %v1860
      %v1862 = vmul.f32 %v1857, 1.442695
      %v1863 = vpow.pop %v1862
      %v1864 = vsel %vm843, %v1859, 0.0
      %1865 = vadd.xlane.f32.xlu0 %v1864
      %v1866 = vpop.xlane.xlu0 %1865
      %v1867 = vsel %vm843, %v1861, 0.0
      %1868 = vadd.xlane.f32.xlu0 %v1867
      %v1869 = vpop.xlane.xlu0 %1868
      %v1870 = vsel %vm843, %v1863, 0.0
      %1871 = vadd.xlane.f32.xlu0 %v1870
      %v1872 = vpop.xlane.xlu0 %1871
      %v1873 = vrcp.pop %v1866
      %v1874 = vrcp.pop %v1869
      %v1875 = vrcp.pop %v1872
      %v1876 = vmul.f32 %v1859, %v1873
      %v1877 = vmul.f32 %v1861, %v1874
      %v1878 = vmul.f32 %v1863, %v1875
      %1879 = vrot.lane.b32.xlu0 %v587, 88
      %v1880 = vpop.permute.xlu0 %1879
      %v1883 = vsel %vm843, %v1876, 0
      %1885 = vmatprep.subr.mxu0 0.0
      %1886 = vmatpush1.msra.mxu0 0.0
      %1887 = vmatprep.subr.mxu0 0.0
      %1888 = vmatpush1.msra.mxu0 0.0
      %1889 = vmatprep.subr.mxu0 0.0
      %1890 = vmatpush1.msra.mxu0 0.0
      %1891 = vmatprep.subr.mxu0 0.0
      %1892 = vmatpush1.msra.mxu0 0.0
      %1893 = vmatprep.subr.mxu0 0.0
      %1894 = vmatpush1.msra.mxu0 0.0
      %1895 = vmatprep.subr.mxu0 0.0
      %1896 = vmatpush1.msra.mxu0 0.0
      %1897 = vmatprep.subr.mxu0 0.0
      %1898 = vmatpush1.msra.mxu0 0.0
      %1899 = vmatprep.subr.mxu0 0.0
      %1900 = vmatpush1.msra.mxu0 0.0
      %1901 = vmatprep.subr.mxu0 0.0
      %1902 = vmatpush1.msra.mxu0 0.0
      %1903 = vmatprep.subr.mxu0 0.0
      %1904 = vmatpush1.msra.mxu0 0.0
      %1905 = vmatprep.subr.mxu0 0.0
      %1906 = vmatpush1.msra.mxu0 0.0
      %1907 = vmatprep.subr.mxu0 0.0
      %1908 = vmatpush1.msra.mxu0 0.0
      %1909 = vmatprep.subr.mxu0 0.0
      %1910 = vmatpush1.msra.mxu0 0.0
      %1911 = vmatprep.subr.mxu0 0.0
      %1912 = vmatpush1.msra.mxu0 0.0
      %1913 = vmatprep.subr.mxu0 0.0
      %1914 = vmatpush1.msra.mxu0 0.0
      %1915 = vmatprep.subr.mxu0 0.0
      %1916 = vmatpush1.msra.mxu0 %v1880
      %1917 = vmatprep.subr.mxu0 0.0
      %1918 = vmatpush2.msra.mxu0 0.0
      %1919 = vmatprep.subr.mxu0 0.0
      %1920 = vmatpush2.msra.mxu0 0.0
      %1921 = vmatprep.subr.mxu0 0.0
      %1922 = vmatpush2.msra.mxu0 0.0
      %1923 = vmatprep.subr.mxu0 0.0
      %1924 = vmatpush2.msra.mxu0 0.0
      %1925 = vmatprep.subr.mxu0 0.0
      %1926 = vmatpush2.msra.mxu0 0.0
      %1927 = vmatprep.subr.mxu0 0.0
      %1928 = vmatpush2.msra.mxu0 0.0
      %1929 = vmatprep.subr.mxu0 0.0
      %1930 = vmatpush2.msra.mxu0 0.0
      %1931 = vmatprep.subr.mxu0 0.0
      %1932 = vmatpush2.msra.mxu0 0.0
      %1933 = vmatprep.subr.mxu0 0.0
      %1934 = vmatpush2.msra.mxu0 0.0
      %1935 = vmatprep.subr.mxu0 0.0
      %1936 = vmatpush2.msra.mxu0 0.0
      %1937 = vmatprep.subr.mxu0 0.0
      %1938 = vmatpush2.msra.mxu0 0.0
      %1939 = vmatprep.subr.mxu0 0.0
      %1940 = vmatpush2.msra.mxu0 0.0
      %1941 = vmatprep.subr.mxu0 0.0
      %1942 = vmatpush2.msra.mxu0 0.0
      %1943 = vmatprep.subr.mxu0 0.0
      %1944 = vmatpush2.msra.mxu0 0.0
      %1945 = vmatprep.subr.mxu0 0.0
      %1946 = vmatpush2.msra.mxu0 0.0
      %1947 = vmatprep.subr.mxu0 0.0
      %1948 = vmatpush2.msra.mxu0 0.0
      %1949 = vmatprep.mubr.f32.mxu0 0.0
      %1950 = vmatmul.mubr.f32.gmra.mxu0 %v1883
      %v1951 = vpop.f32.mrf.mxu0
      %v1952 = vadd.f32 0.0, %v1951
      %v1953 = vpop.f32.mrf.mxu0
      %1954 = vdwg.mxu0
      %1955 = vrot.lane.b32.xlu0 %v592, 88
      %v1956 = vpop.permute.xlu0 %1955
      %v1959 = vsel %vm843, %v1877, 0
      %1961 = vmatprep.subr.mxu0 0.0
      %1962 = vmatpush1.msra.mxu0 0.0
      %1963 = vmatprep.subr.mxu0 0.0
      %1964 = vmatpush1.msra.mxu0 0.0
      %1965 = vmatprep.subr.mxu0 0.0
      %1966 = vmatpush1.msra.mxu0 0.0
      %1967 = vmatprep.subr.mxu0 0.0
      %1968 = vmatpush1.msra.mxu0 0.0
      %1969 = vmatprep.subr.mxu0 0.0
      %1970 = vmatpush1.msra.mxu0 0.0
      %1971 = vmatprep.subr.mxu0 0.0
      %1972 = vmatpush1.msra.mxu0 0.0
      %1973 = vmatprep.subr.mxu0 0.0
      %1974 = vmatpush1.msra.mxu0 0.0
      %1975 = vmatprep.subr.mxu0 0.0
      %1976 = vmatpush1.msra.mxu0 0.0
      %1977 = vmatprep.subr.mxu0 0.0
      %1978 = vmatpush1.msra.mxu0 0.0
      %1979 = vmatprep.subr.mxu0 0.0
      %1980 = vmatpush1.msra.mxu0 0.0
      %1981 = vmatprep.subr.mxu0 0.0
      %1982 = vmatpush1.msra.mxu0 0.0
      %1983 = vmatprep.subr.mxu0 0.0
      %1984 = vmatpush1.msra.mxu0 0.0
      %1985 = vmatprep.subr.mxu0 0.0
      %1986 = vmatpush1.msra.mxu0 0.0
      %1987 = vmatprep.subr.mxu0 0.0
      %1988 = vmatpush1.msra.mxu0 0.0
      %1989 = vmatprep.subr.mxu0 0.0
      %1990 = vmatpush1.msra.mxu0 0.0
      %1991 = vmatprep.subr.mxu0 0.0
      %1992 = vmatpush1.msra.mxu0 %v1956
      %1993 = vmatprep.subr.mxu0 0.0
      %1994 = vmatpush2.msra.mxu0 0.0
      %1995 = vmatprep.subr.mxu0 0.0
      %1996 = vmatpush2.msra.mxu0 0.0
      %1997 = vmatprep.subr.mxu0 0.0
      %1998 = vmatpush2.msra.mxu0 0.0
      %1999 = vmatprep.subr.mxu0 0.0
      %2000 = vmatpush2.msra.mxu0 0.0
      %2001 = vmatprep.subr.mxu0 0.0
      %2002 = vmatpush2.msra.mxu0 0.0
      %2003 = vmatprep.subr.mxu0 0.0
      %2004 = vmatpush2.msra.mxu0 0.0
      %2005 = vmatprep.subr.mxu0 0.0
      %2006 = vmatpush2.msra.mxu0 0.0
      %2007 = vmatprep.subr.mxu0 0.0
      %2008 = vmatpush2.msra.mxu0 0.0
      %2009 = vmatprep.subr.mxu0 0.0
      %2010 = vmatpush2.msra.mxu0 0.0
      %2011 = vmatprep.subr.mxu0 0.0
      %2012 = vmatpush2.msra.mxu0 0.0
      %2013 = vmatprep.subr.mxu0 0.0
      %2014 = vmatpush2.msra.mxu0 0.0
      %2015 = vmatprep.subr.mxu0 0.0
      %2016 = vmatpush2.msra.mxu0 0.0
      %2017 = vmatprep.subr.mxu0 0.0
      %2018 = vmatpush2.msra.mxu0 0.0
      %2019 = vmatprep.subr.mxu0 0.0
      %2020 = vmatpush2.msra.mxu0 0.0
      %2021 = vmatprep.subr.mxu0 0.0
      %2022 = vmatpush2.msra.mxu0 0.0
      %2023 = vmatprep.subr.mxu0 0.0
      %2024 = vmatpush2.msra.mxu0 0.0
      %2025 = vmatprep.mubr.f32.mxu0 0.0
      %2026 = vmatmul.mubr.f32.gmra.mxu0 %v1959
      %v2027 = vpop.f32.mrf.mxu0
      %v2028 = vadd.f32 0.0, %v2027
      %v2029 = vpop.f32.mrf.mxu0
      %2030 = vdwg.mxu0
      %2031 = vrot.lane.b32.xlu0 %v597, 88
      %v2032 = vpop.permute.xlu0 %2031
      %v2035 = vsel %vm843, %v1878, 0
      %2037 = vmatprep.subr.mxu0 0.0
      %2038 = vmatpush1.msra.mxu0 0.0
      %2039 = vmatprep.subr.mxu0 0.0
      %2040 = vmatpush1.msra.mxu0 0.0
      %2041 = vmatprep.subr.mxu0 0.0
      %2042 = vmatpush1.msra.mxu0 0.0
      %2043 = vmatprep.subr.mxu0 0.0
      %2044 = vmatpush1.msra.mxu0 0.0
      %2045 = vmatprep.subr.mxu0 0.0
      %2046 = vmatpush1.msra.mxu0 0.0
      %2047 = vmatprep.subr.mxu0 0.0
      %2048 = vmatpush1.msra.mxu0 0.0
      %2049 = vmatprep.subr.mxu0 0.0
      %2050 = vmatpush1.msra.mxu0 0.0
      %2051 = vmatprep.subr.mxu0 0.0
      %2052 = vmatpush1.msra.mxu0 0.0
      %2053 = vmatprep.subr.mxu0 0.0
      %2054 = vmatpush1.msra.mxu0 0.0
      %2055 = vmatprep.subr.mxu0 0.0
      %2056 = vmatpush1.msra.mxu0 0.0
      %2057 = vmatprep.subr.mxu0 0.0
      %2058 = vmatpush1.msra.mxu0 0.0
      %2059 = vmatprep.subr.mxu0 0.0
      %2060 = vmatpush1.msra.mxu0 0.0
      %2061 = vmatprep.subr.mxu0 0.0
      %2062 = vmatpush1.msra.mxu0 0.0
      %2063 = vmatprep.subr.mxu0 0.0
      %2064 = vmatpush1.msra.mxu0 0.0
      %2065 = vmatprep.subr.mxu0 0.0
      %2066 = vmatpush1.msra.mxu0 0.0
      %2067 = vmatprep.subr.mxu0 0.0
      %2068 = vmatpush1.msra.mxu0 %v2032
      %2069 = vmatprep.subr.mxu0 0.0
      %2070 = vmatpush2.msra.mxu0 0.0
      %2071 = vmatprep.subr.mxu0 0.0
      %2072 = vmatpush2.msra.mxu0 0.0
      %2073 = vmatprep.subr.mxu0 0.0
      %2074 = vmatpush2.msra.mxu0 0.0
      %2075 = vmatprep.subr.mxu0 0.0
      %2076 = vmatpush2.msra.mxu0 0.0
      %2077 = vmatprep.subr.mxu0 0.0
      %2078 = vmatpush2.msra.mxu0 0.0
      %2079 = vmatprep.subr.mxu0 0.0
      %2080 = vmatpush2.msra.mxu0 0.0
      %2081 = vmatprep.subr.mxu0 0.0
      %2082 = vmatpush2.msra.mxu0 0.0
      %2083 = vmatprep.subr.mxu0 0.0
      %2084 = vmatpush2.msra.mxu0 0.0
      %2085 = vmatprep.subr.mxu0 0.0
      %2086 = vmatpush2.msra.mxu0 0.0
      %2087 = vmatprep.subr.mxu0 0.0
      %2088 = vmatpush2.msra.mxu0 0.0
      %2089 = vmatprep.subr.mxu0 0.0
      %2090 = vmatpush2.msra.mxu0 0.0
      %2091 = vmatprep.subr.mxu0 0.0
      %2092 = vmatpush2.msra.mxu0 0.0
      %2093 = vmatprep.subr.mxu0 0.0
      %2094 = vmatpush2.msra.mxu0 0.0
      %2095 = vmatprep.subr.mxu0 0.0
      %2096 = vmatpush2.msra.mxu0 0.0
      %2097 = vmatprep.subr.mxu0 0.0
      %2098 = vmatpush2.msra.mxu0 0.0
      %2099 = vmatprep.subr.mxu0 0.0
      %2100 = vmatpush2.msra.mxu0 0.0
      %2101 = vmatprep.mubr.f32.mxu0 0.0
      %2102 = vmatmul.mubr.f32.gmra.mxu0 %v2035
      %v2103 = vpop.f32.mrf.mxu0
      %v2104 = vadd.f32 0.0, %v2103
      %v2105 = vpop.f32.mrf.mxu0
      %2106 = vdwg.mxu0
      %2107 = vrot.lane.b32.xlu0 %v587, 116
      %v2108 = vpop.permute.xlu0 %2107
      %2109 = vrot.lane.b32.xlu0 %v587, 100
      %v2110 = vpop.permute.xlu0 %2109
      %v2111 = vsel %vm606, %v2108, 0
      %v2113 = vsel %vm606, %v2110, 0
      %2115 = vmatprep.subr.mxu0 0.0
      %2116 = vmatpush1.xpose.msra.mxu0 0.0
      %2117 = vmatprep.subr.mxu0 0.0
      %2118 = vmatpush1.xpose.msra.mxu0 0.0
      %2119 = vmatprep.subr.mxu0 0.0
      %2120 = vmatpush1.xpose.msra.mxu0 0.0
      %2121 = vmatprep.subr.mxu0 0.0
      %2122 = vmatpush1.xpose.msra.mxu0 0.0
      %2123 = vmatprep.subr.mxu0 0.0
      %2124 = vmatpush1.xpose.msra.mxu0 0.0
      %2125 = vmatprep.subr.mxu0 0.0
      %2126 = vmatpush1.xpose.msra.mxu0 0.0
      %2127 = vmatprep.subr.mxu0 0.0
      %2128 = vmatpush1.xpose.msra.mxu0 0.0
      %2129 = vmatprep.subr.mxu0 0.0
      %2130 = vmatpush1.xpose.msra.mxu0 0.0
      %2131 = vmatprep.subr.mxu0 0.0
      %2132 = vmatpush1.xpose.msra.mxu0 0.0
      %2133 = vmatprep.subr.mxu0 0.0
      %2134 = vmatpush1.xpose.msra.mxu0 0.0
      %2135 = vmatprep.subr.mxu0 0.0
      %2136 = vmatpush1.xpose.msra.mxu0 0.0
      %2137 = vmatprep.subr.mxu0 0.0
      %2138 = vmatpush1.xpose.msra.mxu0 0.0
      %2139 = vmatprep.subr.mxu0 0.0
      %2140 = vmatpush1.xpose.msra.mxu0 0.0
      %2141 = vmatprep.subr.mxu0 0.0
      %2142 = vmatpush1.xpose.msra.mxu0 0.0
      %2143 = vmatprep.subr.mxu0 0.0
      %2144 = vmatpush1.xpose.msra.mxu0 0.0
      %2145 = vmatprep.subr.mxu0 0.0
      %2146 = vmatpush1.xpose.msra.mxu0 %v2113
      %2147 = vmatprep.subr.mxu0 0.0
      %2148 = vmatpush2.xpose.msra.mxu0 0.0
      %2149 = vmatprep.subr.mxu0 0.0
      %2150 = vmatpush2.xpose.msra.mxu0 0.0
      %2151 = vmatprep.subr.mxu0 0.0
      %2152 = vmatpush2.xpose.msra.mxu0 0.0
      %2153 = vmatprep.subr.mxu0 0.0
      %2154 = vmatpush2.xpose.msra.mxu0 0.0
      %2155 = vmatprep.subr.mxu0 0.0
      %2156 = vmatpush2.xpose.msra.mxu0 0.0
      %2157 = vmatprep.subr.mxu0 0.0
      %2158 = vmatpush2.xpose.msra.mxu0 0.0
      %2159 = vmatprep.subr.mxu0 0.0
      %2160 = vmatpush2.xpose.msra.mxu0 0.0
      %2161 = vmatprep.subr.mxu0 0.0
      %2162 = vmatpush2.xpose.msra.mxu0 0.0
      %2163 = vmatprep.subr.mxu0 0.0
      %2164 = vmatpush2.xpose.msra.mxu0 0.0
      %2165 = vmatprep.subr.mxu0 0.0
      %2166 = vmatpush2.xpose.msra.mxu0 0.0
      %2167 = vmatprep.subr.mxu0 0.0
      %2168 = vmatpush2.xpose.msra.mxu0 0.0
      %2169 = vmatprep.subr.mxu0 0.0
      %2170 = vmatpush2.xpose.msra.mxu0 0.0
      %2171 = vmatprep.subr.mxu0 0.0
      %2172 = vmatpush2.xpose.msra.mxu0 0.0
      %2173 = vmatprep.subr.mxu0 0.0
      %2174 = vmatpush2.xpose.msra.mxu0 0.0
      %2175 = vmatprep.subr.mxu0 0.0
      %2176 = vmatpush2.xpose.msra.mxu0 0.0
      %2177 = vmatprep.subr.mxu0 0.0
      %2178 = vmatpush2.xpose.msra.mxu0 0.0
      %2179 = vmatprep.mubr.f32.mxu0 0.0
      %2180 = vmatmul.mubr.f32.gmra.mxu0 %v2111
      %v2181 = vpop.f32.mrf.mxu0
      %v2182 = vadd.f32 0.0, %v2181
      %v2183 = vpop.f32.mrf.mxu0
      %2184 = vdwg.mxu0
      %2185 = vrot.lane.b32.xlu0 %v592, 116
      %v2186 = vpop.permute.xlu0 %2185
      %2187 = vrot.lane.b32.xlu0 %v592, 100
      %v2188 = vpop.permute.xlu0 %2187
      %v2189 = vsel %vm606, %v2186, 0
      %v2191 = vsel %vm606, %v2188, 0
      %2193 = vmatprep.subr.mxu0 0.0
      %2194 = vmatpush1.xpose.msra.mxu0 0.0
      %2195 = vmatprep.subr.mxu0 0.0
      %2196 = vmatpush1.xpose.msra.mxu0 0.0
      %2197 = vmatprep.subr.mxu0 0.0
      %2198 = vmatpush1.xpose.msra.mxu0 0.0
      %2199 = vmatprep.subr.mxu0 0.0
      %2200 = vmatpush1.xpose.msra.mxu0 0.0
      %2201 = vmatprep.subr.mxu0 0.0
      %2202 = vmatpush1.xpose.msra.mxu0 0.0
      %2203 = vmatprep.subr.mxu0 0.0
      %2204 = vmatpush1.xpose.msra.mxu0 0.0
      %2205 = vmatprep.subr.mxu0 0.0
      %2206 = vmatpush1.xpose.msra.mxu0 0.0
      %2207 = vmatprep.subr.mxu0 0.0
      %2208 = vmatpush1.xpose.msra.mxu0 0.0
      %2209 = vmatprep.subr.mxu0 0.0
      %2210 = vmatpush1.xpose.msra.mxu0 0.0
      %2211 = vmatprep.subr.mxu0 0.0
      %2212 = vmatpush1.xpose.msra.mxu0 0.0
      %2213 = vmatprep.subr.mxu0 0.0
      %2214 = vmatpush1.xpose.msra.mxu0 0.0
      %2215 = vmatprep.subr.mxu0 0.0
      %2216 = vmatpush1.xpose.msra.mxu0 0.0
      %2217 = vmatprep.subr.mxu0 0.0
      %2218 = vmatpush1.xpose.msra.mxu0 0.0
      %2219 = vmatprep.subr.mxu0 0.0
      %2220 = vmatpush1.xpose.msra.mxu0 0.0
      %2221 = vmatprep.subr.mxu0 0.0
      %2222 = vmatpush1.xpose.msra.mxu0 0.0
      %2223 = vmatprep.subr.mxu0 0.0
      %2224 = vmatpush1.xpose.msra.mxu0 %v2191
      %2225 = vmatprep.subr.mxu0 0.0
      %2226 = vmatpush2.xpose.msra.mxu0 0.0
      %2227 = vmatprep.subr.mxu0 0.0
      %2228 = vmatpush2.xpose.msra.mxu0 0.0
      %2229 = vmatprep.subr.mxu0 0.0
      %2230 = vmatpush2.xpose.msra.mxu0 0.0
      %2231 = vmatprep.subr.mxu0 0.0
      %2232 = vmatpush2.xpose.msra.mxu0 0.0
      %2233 = vmatprep.subr.mxu0 0.0
      %2234 = vmatpush2.xpose.msra.mxu0 0.0
      %2235 = vmatprep.subr.mxu0 0.0
      %2236 = vmatpush2.xpose.msra.mxu0 0.0
      %2237 = vmatprep.subr.mxu0 0.0
      %2238 = vmatpush2.xpose.msra.mxu0 0.0
      %2239 = vmatprep.subr.mxu0 0.0
      %2240 = vmatpush2.xpose.msra.mxu0 0.0
      %2241 = vmatprep.subr.mxu0 0.0
      %2242 = vmatpush2.xpose.msra.mxu0 0.0
      %2243 = vmatprep.subr.mxu0 0.0
      %2244 = vmatpush2.xpose.msra.mxu0 0.0
      %2245 = vmatprep.subr.mxu0 0.0
      %2246 = vmatpush2.xpose.msra.mxu0 0.0
      %2247 = vmatprep.subr.mxu0 0.0
      %2248 = vmatpush2.xpose.msra.mxu0 0.0
      %2249 = vmatprep.subr.mxu0 0.0
      %2250 = vmatpush2.xpose.msra.mxu0 0.0
      %2251 = vmatprep.subr.mxu0 0.0
      %2252 = vmatpush2.xpose.msra.mxu0 0.0
      %2253 = vmatprep.subr.mxu0 0.0
      %2254 = vmatpush2.xpose.msra.mxu0 0.0
      %2255 = vmatprep.subr.mxu0 0.0
      %2256 = vmatpush2.xpose.msra.mxu0 0.0
      %2257 = vmatprep.mubr.f32.mxu0 0.0
      %2258 = vmatmul.mubr.f32.gmra.mxu0 %v2189
      %v2259 = vpop.f32.mrf.mxu0
      %v2260 = vadd.f32 0.0, %v2259
      %v2261 = vpop.f32.mrf.mxu0
      %2262 = vdwg.mxu0
      %2263 = vrot.lane.b32.xlu0 %v597, 116
      %v2264 = vpop.permute.xlu0 %2263
      %2265 = vrot.lane.b32.xlu0 %v597, 100
      %v2266 = vpop.permute.xlu0 %2265
      %v2267 = vsel %vm606, %v2264, 0
      %v2269 = vsel %vm606, %v2266, 0
      %2271 = vmatprep.subr.mxu0 0.0
      %2272 = vmatpush1.xpose.msra.mxu0 0.0
      %2273 = vmatprep.subr.mxu0 0.0
      %2274 = vmatpush1.xpose.msra.mxu0 0.0
      %2275 = vmatprep.subr.mxu0 0.0
      %2276 = vmatpush1.xpose.msra.mxu0 0.0
      %2277 = vmatprep.subr.mxu0 0.0
      %2278 = vmatpush1.xpose.msra.mxu0 0.0
      %2279 = vmatprep.subr.mxu0 0.0
      %2280 = vmatpush1.xpose.msra.mxu0 0.0
      %2281 = vmatprep.subr.mxu0 0.0
      %2282 = vmatpush1.xpose.msra.mxu0 0.0
      %2283 = vmatprep.subr.mxu0 0.0
      %2284 = vmatpush1.xpose.msra.mxu0 0.0
      %2285 = vmatprep.subr.mxu0 0.0
      %2286 = vmatpush1.xpose.msra.mxu0 0.0
      %2287 = vmatprep.subr.mxu0 0.0
      %2288 = vmatpush1.xpose.msra.mxu0 0.0
      %2289 = vmatprep.subr.mxu0 0.0
      %2290 = vmatpush1.xpose.msra.mxu0 0.0
      %2291 = vmatprep.subr.mxu0 0.0
      %2292 = vmatpush1.xpose.msra.mxu0 0.0
      %2293 = vmatprep.subr.mxu0 0.0
      %2294 = vmatpush1.xpose.msra.mxu0 0.0
      %2295 = vmatprep.subr.mxu0 0.0
      %2296 = vmatpush1.xpose.msra.mxu0 0.0
      %2297 = vmatprep.subr.mxu0 0.0
      %2298 = vmatpush1.xpose.msra.mxu0 0.0
      %2299 = vmatprep.subr.mxu0 0.0
      %2300 = vmatpush1.xpose.msra.mxu0 0.0
      %2301 = vmatprep.subr.mxu0 0.0
      %2302 = vmatpush1.xpose.msra.mxu0 %v2269
      %2303 = vmatprep.subr.mxu0 0.0
      %2304 = vmatpush2.xpose.msra.mxu0 0.0
      %2305 = vmatprep.subr.mxu0 0.0
      %2306 = vmatpush2.xpose.msra.mxu0 0.0
      %2307 = vmatprep.subr.mxu0 0.0
      %2308 = vmatpush2.xpose.msra.mxu0 0.0
      %2309 = vmatprep.subr.mxu0 0.0
      %2310 = vmatpush2.xpose.msra.mxu0 0.0
      %2311 = vmatprep.subr.mxu0 0.0
      %2312 = vmatpush2.xpose.msra.mxu0 0.0
      %2313 = vmatprep.subr.mxu0 0.0
      %2314 = vmatpush2.xpose.msra.mxu0 0.0
      %2315 = vmatprep.subr.mxu0 0.0
      %2316 = vmatpush2.xpose.msra.mxu0 0.0
      %2317 = vmatprep.subr.mxu0 0.0
      %2318 = vmatpush2.xpose.msra.mxu0 0.0
      %2319 = vmatprep.subr.mxu0 0.0
      %2320 = vmatpush2.xpose.msra.mxu0 0.0
      %2321 = vmatprep.subr.mxu0 0.0
      %2322 = vmatpush2.xpose.msra.mxu0 0.0
      %2323 = vmatprep.subr.mxu0 0.0
      %2324 = vmatpush2.xpose.msra.mxu0 0.0
      %2325 = vmatprep.subr.mxu0 0.0
      %2326 = vmatpush2.xpose.msra.mxu0 0.0
      %2327 = vmatprep.subr.mxu0 0.0
      %2328 = vmatpush2.xpose.msra.mxu0 0.0
      %2329 = vmatprep.subr.mxu0 0.0
      %2330 = vmatpush2.xpose.msra.mxu0 0.0
      %2331 = vmatprep.subr.mxu0 0.0
      %2332 = vmatpush2.xpose.msra.mxu0 0.0
      %2333 = vmatprep.subr.mxu0 0.0
      %2334 = vmatpush2.xpose.msra.mxu0 0.0
      %2335 = vmatprep.mubr.f32.mxu0 0.0
      %2336 = vmatmul.mubr.f32.gmra.mxu0 %v2267
      %v2337 = vpop.f32.mrf.mxu0
      %v2338 = vadd.f32 0.0, %v2337
      %v2339 = vpop.f32.mrf.mxu0
      %2340 = vdwg.mxu0
      %v2341 = vmul.f32 %v2182, 0.5
      %v2342 = vmul.f32 %v2260, 0.5
      %v2343 = vmul.f32 %v2338, 0.5
      %v2344 = vsel %vm839, %v2341, -1e+30
      %v2345 = vsel %vm839, %v2342, -1e+30
      %v2346 = vsel %vm839, %v2343, -1e+30
      %v2347 = vsel %vm843, %v2344, -inf
      %2348 = vmax.xlane.f32.xlu0 %v2347
      %v2349 = vpop.xlane.xlu0 %2348
      %v2350 = vsel %vm843, %v2345, -inf
      %2351 = vmax.xlane.f32.xlu0 %v2350
      %v2352 = vpop.xlane.xlu0 %2351
      %v2353 = vsel %vm843, %v2346, -inf
      %2354 = vmax.xlane.f32.xlu0 %v2353
      %v2355 = vpop.xlane.xlu0 %2354
      %v2356 = vsub.f32 %v2344, %v2349
      %v2357 = vsub.f32 %v2345, %v2352
      %v2358 = vsub.f32 %v2346, %v2355
      %v2359 = vmul.f32 %v2356, 1.442695
      %v2360 = vpow.pop %v2359
      %v2361 = vmul.f32 %v2357, 1.442695
      %v2362 = vpow.pop %v2361
      %v2363 = vmul.f32 %v2358, 1.442695
      %v2364 = vpow.pop %v2363
      %v2365 = vsel %vm843, %v2360, 0.0
      %2366 = vadd.xlane.f32.xlu0 %v2365
      %v2367 = vpop.xlane.xlu0 %2366
      %v2368 = vsel %vm843, %v2362, 0.0
      %2369 = vadd.xlane.f32.xlu0 %v2368
      %v2370 = vpop.xlane.xlu0 %2369
      %v2371 = vsel %vm843, %v2364, 0.0
      %2372 = vadd.xlane.f32.xlu0 %v2371
      %v2373 = vpop.xlane.xlu0 %2372
      %v2374 = vrcp.pop %v2367
      %v2375 = vrcp.pop %v2370
      %v2376 = vrcp.pop %v2373
      %v2377 = vmul.f32 %v2360, %v2374
      %v2378 = vmul.f32 %v2362, %v2375
      %v2379 = vmul.f32 %v2364, %v2376
      %2380 = vrot.lane.b32.xlu0 %v587, 84
      %v2381 = vpop.permute.xlu0 %2380
      %v2384 = vsel %vm843, %v2377, 0
      %2386 = vmatprep.subr.mxu0 0.0
      %2387 = vmatpush1.msra.mxu0 0.0
      %2388 = vmatprep.subr.mxu0 0.0
      %2389 = vmatpush1.msra.mxu0 0.0
      %2390 = vmatprep.subr.mxu0 0.0
      %2391 = vmatpush1.msra.mxu0 0.0
      %2392 = vmatprep.subr.mxu0 0.0
      %2393 = vmatpush1.msra.mxu0 0.0
      %2394 = vmatprep.subr.mxu0 0.0
      %2395 = vmatpush1.msra.mxu0 0.0
      %2396 = vmatprep.subr.mxu0 0.0
      %2397 = vmatpush1.msra.mxu0 0.0
      %2398 = vmatprep.subr.mxu0 0.0
      %2399 = vmatpush1.msra.mxu0 0.0
      %2400 = vmatprep.subr.mxu0 0.0
      %2401 = vmatpush1.msra.mxu0 0.0
      %2402 = vmatprep.subr.mxu0 0.0
      %2403 = vmatpush1.msra.mxu0 0.0
      %2404 = vmatprep.subr.mxu0 0.0
      %2405 = vmatpush1.msra.mxu0 0.0
      %2406 = vmatprep.subr.mxu0 0.0
      %2407 = vmatpush1.msra.mxu0 0.0
      %2408 = vmatprep.subr.mxu0 0.0
      %2409 = vmatpush1.msra.mxu0 0.0
      %2410 = vmatprep.subr.mxu0 0.0
      %2411 = vmatpush1.msra.mxu0 0.0
      %2412 = vmatprep.subr.mxu0 0.0
      %2413 = vmatpush1.msra.mxu0 0.0
      %2414 = vmatprep.subr.mxu0 0.0
      %2415 = vmatpush1.msra.mxu0 0.0
      %2416 = vmatprep.subr.mxu0 0.0
      %2417 = vmatpush1.msra.mxu0 %v2381
      %2418 = vmatprep.subr.mxu0 0.0
      %2419 = vmatpush2.msra.mxu0 0.0
      %2420 = vmatprep.subr.mxu0 0.0
      %2421 = vmatpush2.msra.mxu0 0.0
      %2422 = vmatprep.subr.mxu0 0.0
      %2423 = vmatpush2.msra.mxu0 0.0
      %2424 = vmatprep.subr.mxu0 0.0
      %2425 = vmatpush2.msra.mxu0 0.0
      %2426 = vmatprep.subr.mxu0 0.0
      %2427 = vmatpush2.msra.mxu0 0.0
      %2428 = vmatprep.subr.mxu0 0.0
      %2429 = vmatpush2.msra.mxu0 0.0
      %2430 = vmatprep.subr.mxu0 0.0
      %2431 = vmatpush2.msra.mxu0 0.0
      %2432 = vmatprep.subr.mxu0 0.0
      %2433 = vmatpush2.msra.mxu0 0.0
      %2434 = vmatprep.subr.mxu0 0.0
      %2435 = vmatpush2.msra.mxu0 0.0
      %2436 = vmatprep.subr.mxu0 0.0
      %2437 = vmatpush2.msra.mxu0 0.0
      %2438 = vmatprep.subr.mxu0 0.0
      %2439 = vmatpush2.msra.mxu0 0.0
      %2440 = vmatprep.subr.mxu0 0.0
      %2441 = vmatpush2.msra.mxu0 0.0
      %2442 = vmatprep.subr.mxu0 0.0
      %2443 = vmatpush2.msra.mxu0 0.0
      %2444 = vmatprep.subr.mxu0 0.0
      %2445 = vmatpush2.msra.mxu0 0.0
      %2446 = vmatprep.subr.mxu0 0.0
      %2447 = vmatpush2.msra.mxu0 0.0
      %2448 = vmatprep.subr.mxu0 0.0
      %2449 = vmatpush2.msra.mxu0 0.0
      %2450 = vmatprep.mubr.f32.mxu0 0.0
      %2451 = vmatmul.mubr.f32.gmra.mxu0 %v2384
      %v2452 = vpop.f32.mrf.mxu0
      %v2453 = vadd.f32 0.0, %v2452
      %v2454 = vpop.f32.mrf.mxu0
      %2455 = vdwg.mxu0
      %2456 = vrot.lane.b32.xlu0 %v592, 84
      %v2457 = vpop.permute.xlu0 %2456
      %v2460 = vsel %vm843, %v2378, 0
      %2462 = vmatprep.subr.mxu0 0.0
      %2463 = vmatpush1.msra.mxu0 0.0
      %2464 = vmatprep.subr.mxu0 0.0
      %2465 = vmatpush1.msra.mxu0 0.0
      %2466 = vmatprep.subr.mxu0 0.0
      %2467 = vmatpush1.msra.mxu0 0.0
      %2468 = vmatprep.subr.mxu0 0.0
      %2469 = vmatpush1.msra.mxu0 0.0
      %2470 = vmatprep.subr.mxu0 0.0
      %2471 = vmatpush1.msra.mxu0 0.0
      %2472 = vmatprep.subr.mxu0 0.0
      %2473 = vmatpush1.msra.mxu0 0.0
      %2474 = vmatprep.subr.mxu0 0.0
      %2475 = vmatpush1.msra.mxu0 0.0
      %2476 = vmatprep.subr.mxu0 0.0
      %2477 = vmatpush1.msra.mxu0 0.0
      %2478 = vmatprep.subr.mxu0 0.0
      %2479 = vmatpush1.msra.mxu0 0.0
      %2480 = vmatprep.subr.mxu0 0.0
      %2481 = vmatpush1.msra.mxu0 0.0
      %2482 = vmatprep.subr.mxu0 0.0
      %2483 = vmatpush1.msra.mxu0 0.0
      %2484 = vmatprep.subr.mxu0 0.0
      %2485 = vmatpush1.msra.mxu0 0.0
      %2486 = vmatprep.subr.mxu0 0.0
      %2487 = vmatpush1.msra.mxu0 0.0
      %2488 = vmatprep.subr.mxu0 0.0
      %2489 = vmatpush1.msra.mxu0 0.0
      %2490 = vmatprep.subr.mxu0 0.0
      %2491 = vmatpush1.msra.mxu0 0.0
      %2492 = vmatprep.subr.mxu0 0.0
      %2493 = vmatpush1.msra.mxu0 %v2457
      %2494 = vmatprep.subr.mxu0 0.0
      %2495 = vmatpush2.msra.mxu0 0.0
      %2496 = vmatprep.subr.mxu0 0.0
      %2497 = vmatpush2.msra.mxu0 0.0
      %2498 = vmatprep.subr.mxu0 0.0
      %2499 = vmatpush2.msra.mxu0 0.0
      %2500 = vmatprep.subr.mxu0 0.0
      %2501 = vmatpush2.msra.mxu0 0.0
      %2502 = vmatprep.subr.mxu0 0.0
      %2503 = vmatpush2.msra.mxu0 0.0
      %2504 = vmatprep.subr.mxu0 0.0
      %2505 = vmatpush2.msra.mxu0 0.0
      %2506 = vmatprep.subr.mxu0 0.0
      %2507 = vmatpush2.msra.mxu0 0.0
      %2508 = vmatprep.subr.mxu0 0.0
      %2509 = vmatpush2.msra.mxu0 0.0
      %2510 = vmatprep.subr.mxu0 0.0
      %2511 = vmatpush2.msra.mxu0 0.0
      %2512 = vmatprep.subr.mxu0 0.0
      %2513 = vmatpush2.msra.mxu0 0.0
      %2514 = vmatprep.subr.mxu0 0.0
      %2515 = vmatpush2.msra.mxu0 0.0
      %2516 = vmatprep.subr.mxu0 0.0
      %2517 = vmatpush2.msra.mxu0 0.0
      %2518 = vmatprep.subr.mxu0 0.0
      %2519 = vmatpush2.msra.mxu0 0.0
      %2520 = vmatprep.subr.mxu0 0.0
      %2521 = vmatpush2.msra.mxu0 0.0
      %2522 = vmatprep.subr.mxu0 0.0
      %2523 = vmatpush2.msra.mxu0 0.0
      %2524 = vmatprep.subr.mxu0 0.0
      %2525 = vmatpush2.msra.mxu0 0.0
      %2526 = vmatprep.mubr.f32.mxu0 0.0
      %2527 = vmatmul.mubr.f32.gmra.mxu0 %v2460
      %v2528 = vpop.f32.mrf.mxu0
      %v2529 = vadd.f32 0.0, %v2528
      %v2530 = vpop.f32.mrf.mxu0
      %2531 = vdwg.mxu0
      %2532 = vrot.lane.b32.xlu0 %v597, 84
      %v2533 = vpop.permute.xlu0 %2532
      %v2536 = vsel %vm843, %v2379, 0
      %2538 = vmatprep.subr.mxu0 0.0
      %2539 = vmatpush1.msra.mxu0 0.0
      %2540 = vmatprep.subr.mxu0 0.0
      %2541 = vmatpush1.msra.mxu0 0.0
      %2542 = vmatprep.subr.mxu0 0.0
      %2543 = vmatpush1.msra.mxu0 0.0
      %2544 = vmatprep.subr.mxu0 0.0
      %2545 = vmatpush1.msra.mxu0 0.0
      %2546 = vmatprep.subr.mxu0 0.0
      %2547 = vmatpush1.msra.mxu0 0.0
      %2548 = vmatprep.subr.mxu0 0.0
      %2549 = vmatpush1.msra.mxu0 0.0
      %2550 = vmatprep.subr.mxu0 0.0
      %2551 = vmatpush1.msra.mxu0 0.0
      %2552 = vmatprep.subr.mxu0 0.0
      %2553 = vmatpush1.msra.mxu0 0.0
      %2554 = vmatprep.subr.mxu0 0.0
      %2555 = vmatpush1.msra.mxu0 0.0
      %2556 = vmatprep.subr.mxu0 0.0
      %2557 = vmatpush1.msra.mxu0 0.0
      %2558 = vmatprep.subr.mxu0 0.0
      %2559 = vmatpush1.msra.mxu0 0.0
      %2560 = vmatprep.subr.mxu0 0.0
      %2561 = vmatpush1.msra.mxu0 0.0
      %2562 = vmatprep.subr.mxu0 0.0
      %2563 = vmatpush1.msra.mxu0 0.0
      %2564 = vmatprep.subr.mxu0 0.0
      %2565 = vmatpush1.msra.mxu0 0.0
      %2566 = vmatprep.subr.mxu0 0.0
      %2567 = vmatpush1.msra.mxu0 0.0
      %2568 = vmatprep.subr.mxu0 0.0
      %2569 = vmatpush1.msra.mxu0 %v2533
      %2570 = vmatprep.subr.mxu0 0.0
      %2571 = vmatpush2.msra.mxu0 0.0
      %2572 = vmatprep.subr.mxu0 0.0
      %2573 = vmatpush2.msra.mxu0 0.0
      %2574 = vmatprep.subr.mxu0 0.0
      %2575 = vmatpush2.msra.mxu0 0.0
      %2576 = vmatprep.subr.mxu0 0.0
      %2577 = vmatpush2.msra.mxu0 0.0
      %2578 = vmatprep.subr.mxu0 0.0
      %2579 = vmatpush2.msra.mxu0 0.0
      %2580 = vmatprep.subr.mxu0 0.0
      %2581 = vmatpush2.msra.mxu0 0.0
      %2582 = vmatprep.subr.mxu0 0.0
      %2583 = vmatpush2.msra.mxu0 0.0
      %2584 = vmatprep.subr.mxu0 0.0
      %2585 = vmatpush2.msra.mxu0 0.0
      %2586 = vmatprep.subr.mxu0 0.0
      %2587 = vmatpush2.msra.mxu0 0.0
      %2588 = vmatprep.subr.mxu0 0.0
      %2589 = vmatpush2.msra.mxu0 0.0
      %2590 = vmatprep.subr.mxu0 0.0
      %2591 = vmatpush2.msra.mxu0 0.0
      %2592 = vmatprep.subr.mxu0 0.0
      %2593 = vmatpush2.msra.mxu0 0.0
      %2594 = vmatprep.subr.mxu0 0.0
      %2595 = vmatpush2.msra.mxu0 0.0
      %2596 = vmatprep.subr.mxu0 0.0
      %2597 = vmatpush2.msra.mxu0 0.0
      %2598 = vmatprep.subr.mxu0 0.0
      %2599 = vmatpush2.msra.mxu0 0.0
      %2600 = vmatprep.subr.mxu0 0.0
      %2601 = vmatpush2.msra.mxu0 0.0
      %2602 = vmatprep.mubr.f32.mxu0 0.0
      %2603 = vmatmul.mubr.f32.gmra.mxu0 %v2536
      %v2604 = vpop.f32.mrf.mxu0
      %v2605 = vadd.f32 0.0, %v2604
      %v2606 = vpop.f32.mrf.mxu0
      %2607 = vdwg.mxu0
      %2611 = vrot.lane.b32.xlu0 %v1451, 4
      %v2612 = vpop.permute.xlu0 %2611
      %2613 = vrot.lane.b32.xlu0 %v1527, 4
      %v2614 = vpop.permute.xlu0 %2613
      %2615 = vrot.lane.b32.xlu0 %v1603, 4
      %v2616 = vpop.permute.xlu0 %2615
      %2623 = vrot.lane.b32.xlu0 %v1952, 8
      %v2624 = vpop.permute.xlu0 %2623
      %2625 = vrot.lane.b32.xlu0 %v2028, 8
      %v2626 = vpop.permute.xlu0 %2625
      %2627 = vrot.lane.b32.xlu0 %v2104, 8
      %v2628 = vpop.permute.xlu0 %2627
      %2635 = vrot.lane.b32.xlu0 %v2453, 12
      %v2636 = vpop.permute.xlu0 %2635
      %2637 = vrot.lane.b32.xlu0 %v2529, 12
      %v2638 = vpop.permute.xlu0 %2637
      %2639 = vrot.lane.b32.xlu0 %v2605, 12
      %v2640 = vpop.permute.xlu0 %2639
      %v2644 = vsel %vm606, %v950, %v2612
      %v2645 = vsel %vm606, %v1026, %v2614
      %v2646 = vsel %vm606, %v1102, %v2616
      %v2647 = vsel %vm843, %v2644, %v2624
      %v2648 = vsel %vm843, %v2645, %v2626
      %v2649 = vsel %vm843, %v2646, %v2628
      %vm2650 = vcmask 97280
      %v2651 = vsel %vm2650, %v2647, %v2636
      %v2652 = vsel %vm2650, %v2648, %v2638
      %v2653 = vsel %vm2650, %v2649, %v2640
      %v2654 = vld [vmem:[%s3] sm:$0xff]
      %v2655 = vld [vmem:[%s3 + $0x8] sm:$0xff]
      %v2656 = vld [vmem:[%s4] sm:$0x1]
      %v2658 = vlaneseq
      %v2659 = vshrl.u32 %v2658, 7
      %v2660 = vsub.s32 0, %v2659
      %v2661 = vrot.slane %v2656, %v2660
      %v2664 = vsel %vm510, %v2651, 0
      %v2667 = vsel %vm510, %v2652, 0
      %v2670 = vsel %vm510, %v2653, 0
      %2672 = vmatprep.subr.mxu0 0.0
      %2673 = vmatpush1.msra.mxu0 0.0
      %2674 = vmatprep.subr.mxu0 0.0
      %2675 = vmatpush1.msra.mxu0 0.0
      %2676 = vmatprep.subr.mxu0 0.0
      %2677 = vmatpush1.msra.mxu0 0.0
      %2678 = vmatprep.subr.mxu0 0.0
      %2679 = vmatpush1.msra.mxu0 0.0
      %2680 = vmatprep.subr.mxu0 0.0
      %2681 = vmatpush1.msra.mxu0 0.0
      %2682 = vmatprep.subr.mxu0 0.0
      %2683 = vmatpush1.msra.mxu0 0.0
      %2684 = vmatprep.subr.mxu0 0.0
      %2685 = vmatpush1.msra.mxu0 0.0
      %2686 = vmatprep.subr.mxu0 0.0
      %2687 = vmatpush1.msra.mxu0 0.0
      %2688 = vmatprep.subr.mxu0 0.0
      %2689 = vmatpush1.msra.mxu0 0.0
      %2690 = vmatprep.subr.mxu0 0.0
      %2691 = vmatpush1.msra.mxu0 0.0
      %2692 = vmatprep.subr.mxu0 0.0
      %2693 = vmatpush1.msra.mxu0 0.0
      %2694 = vmatprep.subr.mxu0 0.0
      %2695 = vmatpush1.msra.mxu0 0.0
      %2696 = vmatprep.subr.mxu0 0.0
      %2697 = vmatpush1.msra.mxu0 0.0
      %2698 = vmatprep.subr.mxu0 0.0
      %2699 = vmatpush1.msra.mxu0 0.0
      %2700 = vmatprep.subr.mxu0 0.0
      %2701 = vmatpush1.msra.mxu0 %v2655
      %2702 = vmatprep.subr.mxu0 0.0
      %2703 = vmatpush1.msra.mxu0 %v2654
      %2704 = vmatprep.subr.mxu0 0.0
      %2705 = vmatpush2.msra.mxu0 0.0
      %2706 = vmatprep.subr.mxu0 0.0
      %2707 = vmatpush2.msra.mxu0 0.0
      %2708 = vmatprep.subr.mxu0 0.0
      %2709 = vmatpush2.msra.mxu0 0.0
      %2710 = vmatprep.subr.mxu0 0.0
      %2711 = vmatpush2.msra.mxu0 0.0
      %2712 = vmatprep.subr.mxu0 0.0
      %2713 = vmatpush2.msra.mxu0 0.0
      %2714 = vmatprep.subr.mxu0 0.0
      %2715 = vmatpush2.msra.mxu0 0.0
      %2716 = vmatprep.subr.mxu0 0.0
      %2717 = vmatpush2.msra.mxu0 0.0
      %2718 = vmatprep.subr.mxu0 0.0
      %2719 = vmatpush2.msra.mxu0 0.0
      %2720 = vmatprep.subr.mxu0 0.0
      %2721 = vmatpush2.msra.mxu0 0.0
      %2722 = vmatprep.subr.mxu0 0.0
      %2723 = vmatpush2.msra.mxu0 0.0
      %2724 = vmatprep.subr.mxu0 0.0
      %2725 = vmatpush2.msra.mxu0 0.0
      %2726 = vmatprep.subr.mxu0 0.0
      %2727 = vmatpush2.msra.mxu0 0.0
      %2728 = vmatprep.subr.mxu0 0.0
      %2729 = vmatpush2.msra.mxu0 0.0
      %2730 = vmatprep.subr.mxu0 0.0
      %2731 = vmatpush2.msra.mxu0 0.0
      %2732 = vmatprep.subr.mxu0 0.0
      %2733 = vmatpush2.msra.mxu0 0.0
      %2734 = vmatprep.subr.mxu0 0.0
      %2735 = vmatpush2.msra.mxu0 0.0
      %2736 = vmatprep.mubr.f32.mxu0 0.0
      %2737 = vmatmul.mubr.f32.gmra.mxu0 %v2664
      %v2738 = vpop.f32.mrf.mxu0
      %v2739 = vadd.f32 %v2661, %v2738
      %v2740 = vpop.f32.mrf.mxu0
      %2741 = vmatprep.mubr.f32.mxu0 0.0
      %2742 = vmatmul.mubr.f32.gmra.mxu0 %v2667
      %v2743 = vpop.f32.mrf.mxu0
      %v2744 = vadd.f32 %v2661, %v2743
      %v2745 = vpop.f32.mrf.mxu0
      %2746 = vmatprep.mubr.f32.mxu0 0.0
      %2747 = vmatmul.mubr.f32.gmra.mxu0 %v2670
      %v2748 = vpop.f32.mrf.mxu0
      %v2749 = vadd.f32 %v2661, %v2748
      %v2750 = vpop.f32.mrf.mxu0
      %2751 = vdwg.mxu0
      %v2752 = vadd.f32 %v498, %v2739
      %v2753 = vadd.f32 %v499, %v2744
      %v2754 = vadd.f32 %v500, %v2749
      %v2755 = vld [vmem:[%s9] sm:$0x1]
      %v2756 = vld [vmem:[%s10] sm:$0x1]
      %v2757 = vsel %vm510, %v2752, 0.0
      %2758 = vadd.xlane.f32.xlu0 %v2757
      %v2759 = vpop.xlane.xlu0 %2758
      %v2760 = vsel %vm510, %v2753, 0.0
      %2761 = vadd.xlane.f32.xlu0 %v2760
      %v2762 = vpop.xlane.xlu0 %2761
      %v2763 = vsel %vm510, %v2754, 0.0
      %2764 = vadd.xlane.f32.xlu0 %v2763
      %v2765 = vpop.xlane.xlu0 %2764
      %v2766 = vrcp.pop 16.0
      %v2767 = vmul.f32 %v2759, %v2766
      %v2768 = vmul.f32 %v2762, %v2766
      %v2769 = vmul.f32 %v2765, %v2766
      %v2770 = vsub.f32 %v2752, %v2767
      %v2771 = vsub.f32 %v2753, %v2768
      %v2772 = vsub.f32 %v2754, %v2769
      %v2773 = vmul.f32 %v2770, %v2770
      %v2774 = vmul.f32 %v2771, %v2771
      %v2775 = vmul.f32 %v2772, %v2772
      %v2776 = vsel %vm510, %v2773, 0.0
      %2777 = vadd.xlane.f32.xlu0 %v2776
      %v2778 = vpop.xlane.xlu0 %2777
      %v2779 = vsel %vm510, %v2774, 0.0
      %2780 = vadd.xlane.f32.xlu0 %v2779
      %v2781 = vpop.xlane.xlu0 %2780
      %v2782 = vsel %vm510, %v2775, 0.0
      %2783 = vadd.xlane.f32.xlu0 %v2782
      %v2784 = vpop.xlane.xlu0 %2783
      %v2785 = vmul.f32 %v2778, %v2766
      %v2786 = vmul.f32 %v2781, %v2766
      %v2787 = vmul.f32 %v2784, %v2766
      %v2788 = vadd.f32 %v2785, 1e-05
      %v2789 = vadd.f32 %v2786, 1e-05
      %v2790 = vadd.f32 %v2787, 1e-05
      %v2791 = vrsqrt.pop %v2788
      %v2792 = vrsqrt.pop %v2789
      %v2793 = vrsqrt.pop %v2790
      %v2794 = vmul.f32 %v2770, %v2791
      %v2795 = vmul.f32 %v2771, %v2792
      %v2796 = vmul.f32 %v2772, %v2793
      %v2798 = vlaneseq
      %v2799 = vshrl.u32 %v2798, 7
      %v2800 = vsub.s32 0, %v2799
      %v2801 = vrot.slane %v2755, %v2800
      %v2803 = vmul.f32 %v2794, %v2801
      %v2804 = vmul.f32 %v2795, %v2801
      %v2805 = vmul.f32 %v2796, %v2801
      %v2807 = vlaneseq
      %v2808 = vshrl.u32 %v2807, 7
      %v2809 = vsub.s32 0, %v2808
      %v2810 = vrot.slane %v2756, %v2809
      %v2812 = vadd.f32 %v2803, %v2810
      %v2813 = vadd.f32 %v2804, %v2810
      %v2814 = vadd.f32 %v2805, %v2810
      %v2815 = vld [vmem:[%s5] sm:$0xff]
      %v2816 = vld [vmem:[%s5 + $0x8] sm:$0xff]
      %v2817 = vld [vmem:[%s6] sm:$0x1]
      %v2819 = vlaneseq
      %v2820 = vshrl.u32 %v2819, 7
      %v2821 = vsub.s32 0, %v2820
      %v2822 = vrot.slane %v2817, %v2821
      %v2825 = vsel %vm510, %v2812, 0
      %v2828 = vsel %vm510, %v2813, 0
      %v2831 = vsel %vm510, %v2814, 0
      %2833 = vmatprep.subr.mxu0 0.0
      %2834 = vmatpush1.msra.mxu0 0.0
      %2835 = vmatprep.subr.mxu0 0.0
      %2836 = vmatpush1.msra.mxu0 0.0
      %2837 = vmatprep.subr.mxu0 0.0
      %2838 = vmatpush1.msra.mxu0 0.0
      %2839 = vmatprep.subr.mxu0 0.0
      %2840 = vmatpush1.msra.mxu0 0.0
      %2841 = vmatprep.subr.mxu0 0.0
      %2842 = vmatpush1.msra.mxu0 0.0
      %2843 = vmatprep.subr.mxu0 0.0
      %2844 = vmatpush1.msra.mxu0 0.0
      %2845 = vmatprep.subr.mxu0 0.0
      %2846 = vmatpush1.msra.mxu0 0.0
      %2847 = vmatprep.subr.mxu0 0.0
      %2848 = vmatpush1.msra.mxu0 0.0
      %2849 = vmatprep.subr.mxu0 0.0
      %2850 = vmatpush1.msra.mxu0 0.0
      %2851 = vmatprep.subr.mxu0 0.0
      %2852 = vmatpush1.msra.mxu0 0.0
      %2853 = vmatprep.subr.mxu0 0.0
      %2854 = vmatpush1.msra.mxu0 0.0
      %2855 = vmatprep.subr.mxu0 0.0
      %2856 = vmatpush1.msra.mxu0 0.0
      %2857 = vmatprep.subr.mxu0 0.0
      %2858 = vmatpush1.msra.mxu0 0.0
      %2859 = vmatprep.subr.mxu0 0.0
      %2860 = vmatpush1.msra.mxu0 0.0
      %2861 = vmatprep.subr.mxu0 0.0
      %2862 = vmatpush1.msra.mxu0 %v2816
      %2863 = vmatprep.subr.mxu0 0.0
      %2864 = vmatpush1.msra.mxu0 %v2815
      %2865 = vmatprep.subr.mxu0 0.0
      %2866 = vmatpush2.msra.mxu0 0.0
      %2867 = vmatprep.subr.mxu0 0.0
      %2868 = vmatpush2.msra.mxu0 0.0
      %2869 = vmatprep.subr.mxu0 0.0
      %2870 = vmatpush2.msra.mxu0 0.0
      %2871 = vmatprep.subr.mxu0 0.0
      %2872 = vmatpush2.msra.mxu0 0.0
      %2873 = vmatprep.subr.mxu0 0.0
      %2874 = vmatpush2.msra.mxu0 0.0
      %2875 = vmatprep.subr.mxu0 0.0
      %2876 = vmatpush2.msra.mxu0 0.0
      %2877 = vmatprep.subr.mxu0 0.0
      %2878 = vmatpush2.msra.mxu0 0.0
      %2879 = vmatprep.subr.mxu0 0.0
      %2880 = vmatpush2.msra.mxu0 0.0
      %2881 = vmatprep.subr.mxu0 0.0
      %2882 = vmatpush2.msra.mxu0 0.0
      %2883 = vmatprep.subr.mxu0 0.0
      %2884 = vmatpush2.msra.mxu0 0.0
      %2885 = vmatprep.subr.mxu0 0.0
      %2886 = vmatpush2.msra.mxu0 0.0
      %2887 = vmatprep.subr.mxu0 0.0
      %2888 = vmatpush2.msra.mxu0 0.0
      %2889 = vmatprep.subr.mxu0 0.0
      %2890 = vmatpush2.msra.mxu0 0.0
      %2891 = vmatprep.subr.mxu0 0.0
      %2892 = vmatpush2.msra.mxu0 0.0
      %2893 = vmatprep.subr.mxu0 0.0
      %2894 = vmatpush2.msra.mxu0 0.0
      %2895 = vmatprep.subr.mxu0 0.0
      %2896 = vmatpush2.msra.mxu0 0.0
      %2897 = vmatprep.mubr.f32.mxu0 0.0
      %2898 = vmatmul.mubr.f32.gmra.mxu0 %v2825
      %v2899 = vpop.f32.mrf.mxu0
      %v2900 = vadd.f32 %v2822, %v2899
      %v2901 = vpop.f32.mrf.mxu0
      %2902 = vmatprep.mubr.f32.mxu0 0.0
      %2903 = vmatmul.mubr.f32.gmra.mxu0 %v2828
      %v2904 = vpop.f32.mrf.mxu0
      %v2905 = vadd.f32 %v2822, %v2904
      %v2906 = vpop.f32.mrf.mxu0
      %2907 = vmatprep.mubr.f32.mxu0 0.0
      %2908 = vmatmul.mubr.f32.gmra.mxu0 %v2831
      %v2909 = vpop.f32.mrf.mxu0
      %v2910 = vadd.f32 %v2822, %v2909
      %v2911 = vpop.f32.mrf.mxu0
      %2912 = vdwg.mxu0
      %v2913 = vmax.f32 %v2900, 0.0
      %v2914 = vmax.f32 %v2905, 0.0
      %v2915 = vmax.f32 %v2910, 0.0
      %v2916 = vld [vmem:[%s7] sm:$0xff]
      %v2917 = vld [vmem:[%s7 + $0x8] sm:$0xff]
      %v2918 = vld [vmem:[%s7 + $0x10] sm:$0xff]
      %v2919 = vld [vmem:[%s7 + $0x18] sm:$0xff]
      %v2920 = vld [vmem:[%s8] sm:$0x1]
      %v2922 = vlaneseq
      %v2923 = vshrl.u32 %v2922, 7
      %v2924 = vsub.s32 0, %v2923
      %v2925 = vrot.slane %v2920, %v2924
      %vm2927 = vcmask 261120
      %v2929 = vsel %vm2927, %v2913, 0
      %v2932 = vsel %vm2927, %v2914, 0
      %v2935 = vsel %vm2927, %v2915, 0
      %2937 = vmatprep.subr.mxu0 0.0
      %2938 = vmatpush1.msra.mxu0 0.0
      %2939 = vmatprep.subr.mxu0 0.0
      %2940 = vmatpush1.msra.mxu0 0.0
      %2941 = vmatprep.subr.mxu0 0.0
      %2942 = vmatpush1.msra.mxu0 0.0
      %2943 = vmatprep.subr.mxu0 0.0
      %2944 = vmatpush1.msra.mxu0 0.0
      %2945 = vmatprep.subr.mxu0 0.0
      %2946 = vmatpush1.msra.mxu0 0.0
      %2947 = vmatprep.subr.mxu0 0.0
      %2948 = vmatpush1.msra.mxu0 0.0
      %2949 = vmatprep.subr.mxu0 0.0
      %2950 = vmatpush1.msra.mxu0 0.0
      %2951 = vmatprep.subr.mxu0 0.0
      %2952 = vmatpush1.msra.mxu0 0.0
      %2953 = vmatprep.subr.mxu0 0.0
      %2954 = vmatpush1.msra.mxu0 0.0
      %2955 = vmatprep.subr.mxu0 0.0
      %2956 = vmatpush1.msra.mxu0 0.0
      %2957 = vmatprep.subr.mxu0 0.0
      %2958 = vmatpush1.msra.mxu0 0.0
      %2959 = vmatprep.subr.mxu0 0.0
      %2960 = vmatpush1.msra.mxu0 0.0
      %2961 = vmatprep.subr.mxu0 0.0
      %2962 = vmatpush1.msra.mxu0 %v2919
      %2963 = vmatprep.subr.mxu0 0.0
      %2964 = vmatpush1.msra.mxu0 %v2918
      %2965 = vmatprep.subr.mxu0 0.0
      %2966 = vmatpush1.msra.mxu0 %v2917
      %2967 = vmatprep.subr.mxu0 0.0
      %2968 = vmatpush1.msra.mxu0 %v2916
      %2969 = vmatprep.subr.mxu0 0.0
      %2970 = vmatpush2.msra.mxu0 0.0
      %2971 = vmatprep.subr.mxu0 0.0
      %2972 = vmatpush2.msra.mxu0 0.0
      %2973 = vmatprep.subr.mxu0 0.0
      %2974 = vmatpush2.msra.mxu0 0.0
      %2975 = vmatprep.subr.mxu0 0.0
      %2976 = vmatpush2.msra.mxu0 0.0
      %2977 = vmatprep.subr.mxu0 0.0
      %2978 = vmatpush2.msra.mxu0 0.0
      %2979 = vmatprep.subr.mxu0 0.0
      %2980 = vmatpush2.msra.mxu0 0.0
      %2981 = vmatprep.subr.mxu0 0.0
      %2982 = vmatpush2.msra.mxu0 0.0
      %2983 = vmatprep.subr.mxu0 0.0
      %2984 = vmatpush2.msra.mxu0 0.0
      %2985 = vmatprep.subr.mxu0 0.0
      %2986 = vmatpush2.msra.mxu0 0.0
      %2987 = vmatprep.subr.mxu0 0.0
      %2988 = vmatpush2.msra.mxu0 0.0
      %2989 = vmatprep.subr.mxu0 0.0
      %2990 = vmatpush2.msra.mxu0 0.0
      %2991 = vmatprep.subr.mxu0 0.0
      %2992 = vmatpush2.msra.mxu0 0.0
      %2993 = vmatprep.subr.mxu0 0.0
      %2994 = vmatpush2.msra.mxu0 0.0
      %2995 = vmatprep.subr.mxu0 0.0
      %2996 = vmatpush2.msra.mxu0 0.0
      %2997 = vmatprep.subr.mxu0 0.0
      %2998 = vmatpush2.msra.mxu0 0.0
      %2999 = vmatprep.subr.mxu0 0.0
      %3000 = vmatpush2.msra.mxu0 0.0
      %3001 = vmatprep.mubr.f32.mxu0 0.0
      %3002 = vmatmul.mubr.f32.gmra.mxu0 %v2929
      %v3003 = vpop.f32.mrf.mxu0
      %v3004 = vadd.f32 %v2925, %v3003
      %v3005 = vpop.f32.mrf.mxu0
      %3006 = vmatprep.mubr.f32.mxu0 0.0
      %3007 = vmatmul.mubr.f32.gmra.mxu0 %v2932
      %v3008 = vpop.f32.mrf.mxu0
      %v3009 = vadd.f32 %v2925, %v3008
      %v3010 = vpop.f32.mrf.mxu0
      %3011 = vmatprep.mubr.f32.mxu0 0.0
      %3012 = vmatmul.mubr.f32.gmra.mxu0 %v2935
      %v3013 = vpop.f32.mrf.mxu0
      %v3014 = vadd.f32 %v2925, %v3013
      %v3015 = vpop.f32.mrf.mxu0
      %3016 = vdwg.mxu0
      %v3017 = vadd.f32 %v2812, %v3004
      %v3018 = vadd.f32 %v2813, %v3009
      %v3019 = vadd.f32 %v2814, %v3014
      %v3020 = vld [vmem:[%s11] sm:$0x1]
      %v3021 = vld [vmem:[%s12] sm:$0x1]
      %v3022 = vsel %vm510, %v3017, 0.0
      %3023 = vadd.xlane.f32.xlu0 %v3022
      %v3024 = vpop.xlane.xlu0 %3023
      %v3025 = vsel %vm510, %v3018, 0.0
      %3026 = vadd.xlane.f32.xlu0 %v3025
      %v3027 = vpop.xlane.xlu0 %3026
      %v3028 = vsel %vm510, %v3019, 0.0
      %3029 = vadd.xlane.f32.xlu0 %v3028
      %v3030 = vpop.xlane.xlu0 %3029
      %v3031 = vmul.f32 %v3024, %v2766
      %v3032 = vmul.f32 %v3027, %v2766
      %v3033 = vmul.f32 %v3030, %v2766
      %v3034 = vsub.f32 %v3017, %v3031
      %v3035 = vsub.f32 %v3018, %v3032
      %v3036 = vsub.f32 %v3019, %v3033
      %v3037 = vmul.f32 %v3034, %v3034
      %v3038 = vmul.f32 %v3035, %v3035
      %v3039 = vmul.f32 %v3036, %v3036
      %v3040 = vsel %vm510, %v3037, 0.0
      %3041 = vadd.xlane.f32.xlu0 %v3040
      %v3042 = vpop.xlane.xlu0 %3041
      %v3043 = vsel %vm510, %v3038, 0.0
      %3044 = vadd.xlane.f32.xlu0 %v3043
      %v3045 = vpop.xlane.xlu0 %3044
      %v3046 = vsel %vm510, %v3039, 0.0
      %3047 = vadd.xlane.f32.xlu0 %v3046
      %v3048 = vpop.xlane.xlu0 %3047
      %v3049 = vmul.f32 %v3042, %v2766
      %v3050 = vmul.f32 %v3045, %v2766
      %v3051 = vmul.f32 %v3048, %v2766
      %v3052 = vadd.f32 %v3049, 1e-05
      %v3053 = vadd.f32 %v3050, 1e-05
      %v3054 = vadd.f32 %v3051, 1e-05
      %v3055 = vrsqrt.pop %v3052
      %v3056 = vrsqrt.pop %v3053
      %v3057 = vrsqrt.pop %v3054
      %v3058 = vmul.f32 %v3034, %v3055
      %v3059 = vmul.f32 %v3035, %v3056
      %v3060 = vmul.f32 %v3036, %v3057
      %v3062 = vlaneseq
      %v3063 = vshrl.u32 %v3062, 7
      %v3064 = vsub.s32 0, %v3063
      %v3065 = vrot.slane %v3020, %v3064
      %v3067 = vmul.f32 %v3058, %v3065
      %v3068 = vmul.f32 %v3059, %v3065
      %v3069 = vmul.f32 %v3060, %v3065
      %v3071 = vlaneseq
      %v3072 = vshrl.u32 %v3071, 7
      %v3073 = vsub.s32 0, %v3072
      %v3074 = vrot.slane %v3021, %v3073
      %v3076 = vadd.f32 %v3067, %v3074
      %v3077 = vadd.f32 %v3068, %v3074
      %v3078 = vadd.f32 %v3069, %v3074
      %v3079 = vld [vmem:[%s13] sm:$0x1]
      %v3080 = vld [vmem:[%s14] sm:$0x1]
      %v3081 = vsel %vm510, %v3076, 0.0
      %3082 = vadd.xlane.f32.xlu0 %v3081
      %v3083 = vpop.xlane.xlu0 %3082
      %v3084 = vsel %vm510, %v3077, 0.0
      %3085 = vadd.xlane.f32.xlu0 %v3084
      %v3086 = vpop.xlane.xlu0 %3085
      %v3087 = vsel %vm510, %v3078, 0.0
      %3088 = vadd.xlane.f32.xlu0 %v3087
      %v3089 = vpop.xlane.xlu0 %3088
      %v3090 = vmul.f32 %v3083, %v2766
      %v3091 = vmul.f32 %v3086, %v2766
      %v3092 = vmul.f32 %v3089, %v2766
      %v3093 = vsub.f32 %v3076, %v3090
      %v3094 = vsub.f32 %v3077, %v3091
      %v3095 = vsub.f32 %v3078, %v3092
      %v3096 = vmul.f32 %v3093, %v3093
      %v3097 = vmul.f32 %v3094, %v3094
      %v3098 = vmul.f32 %v3095, %v3095
      %v3099 = vsel %vm510, %v3096, 0.0
      %3100 = vadd.xlane.f32.xlu0 %v3099
      %v3101 = vpop.xlane.xlu0 %3100
      %v3102 = vsel %vm510, %v3097, 0.0
      %3103 = vadd.xlane.f32.xlu0 %v3102
      %v3104 = vpop.xlane.xlu0 %3103
      %v3105 = vsel %vm510, %v3098, 0.0
      %3106 = vadd.xlane.f32.xlu0 %v3105
      %v3107 = vpop.xlane.xlu0 %3106
      %v3108 = vmul.f32 %v3101, %v2766
      %v3109 = vmul.f32 %v3104, %v2766
      %v3110 = vmul.f32 %v3107, %v2766
      %v3111 = vadd.f32 %v3108, 1e-05
      %v3112 = vadd.f32 %v3109, 1e-05
      %v3113 = vadd.f32 %v3110, 1e-05
      %v3114 = vrsqrt.pop %v3111
      %v3115 = vrsqrt.pop %v3112
      %v3116 = vrsqrt.pop %v3113
      %v3117 = vmul.f32 %v3093, %v3114
      %v3118 = vmul.f32 %v3094, %v3115
      %v3119 = vmul.f32 %v3095, %v3116
      %v3121 = vlaneseq
      %v3122 = vshrl.u32 %v3121, 7
      %v3123 = vsub.s32 0, %v3122
      %v3124 = vrot.slane %v3079, %v3123
      %v3126 = vmul.f32 %v3117, %v3124
      %v3127 = vmul.f32 %v3118, %v3124
      %v3128 = vmul.f32 %v3119, %v3124
      %v3130 = vlaneseq
      %v3131 = vshrl.u32 %v3130, 7
      %v3132 = vsub.s32 0, %v3131
      %v3133 = vrot.slane %v3080, %v3132
      %v3135 = vadd.f32 %v3126, %v3133
      %v3136 = vadd.f32 %v3127, %v3133
      %v3137 = vadd.f32 %v3128, %v3133
      %3138 = vst.msk [vmem:[%s496] sm:$0xff] %vm510, %v3135
      %3139 = vst.msk [vmem:[%s496 + $0x8] sm:$0xff] %vm510, %v3136
      %3140 = vst.msk [vmem:[%s496 + $0x10] sm:$0xff] %vm510, %v3137
      %s3141 = smul.u32 3, %s26
      %p3142 = scmp.lt.s32.totalorder %s3141, 5
      %s3143 = scalar_select %p3142, %s3141, 5
      %s3144 = smul.addr %s3143, 8
      %s3145 = scalar_lea.vmem %s15, %s3144
      // Predicated region
      $region81: #{model_forward.8} parent=79 // pred_check
        %p3146 = pneg %p364
      $region82: #{model_forward.8} parent=79 // pred_check_branch
        %3148 = sbr.rel (%p3146) target = $region84
      $region83: #{model_forward.8} parent=79 // pred_region
        %s3149 = smul.u32 3, %s26
      $region84: #{model_forward.8} parent=79 // pred_fallthru
        _
    $region80: #{model_forward.8} parent=5 // pred_fallthru
      _
    %p3150 = scmp.le.s32.totalorder 2, %s21
    // Predicated region
    $region85: #{model_forward.8} parent=5 // pred_check
      %p3151 = pneg %p3150
    $region86: #{model_forward.8} parent=5 // pred_check_branch
      %3153 = sbr.rel (%p3151) target = $region88
    $region87: #{model_forward.8} parent=5 // pred_region
      %s3154 = ssub.s32 %s21, 2
      // Predicated region
      $region89: #{model_forward.8} parent=87 // pred_check
        %p3155 = pneg %p370
      $region90: #{model_forward.8} parent=87 // pred_check_branch
        %3157 = sbr.rel (%p3155) target = $region92
      $region91: #{model_forward.8} parent=87 // pred_region
        %s3158 = smul.u32 3, %s27
        %p3159 = scmp.lt.s32.totalorder %s3158, 5
        %s3160 = scalar_select %p3159, %s3158, 5
        %s3161 = smul.addr %s3160, 8
        %s3162 = scalar_lea.vmem %s15, %s3161
      $region92: #{model_forward.8} parent=87 // pred_fallthru
        _
    $region88: #{model_forward.8} parent=5 // pred_fallthru
      _
  $region6: #{model_forward.8} parent=0 // loop_footer
    %s25 = sadd.s32 1, %s21
  $region7: #{model_forward.8} parent=0 // loop_footer_branch
    %20 = sbr.rel target = $region3
  $region8: #{model_forward.8} parent=0 // loop_exit
    _

</llo_original>
